<compile_context>
chip_gen: v7x
topology: tpu7x:2x2x1
jax: 0.10.0
libtpu: 0.0.40
codegen_flags: <defaults>
</compile_context>

<pallas_src>
import functools

import jax
import jax.numpy as jnp
from jax.experimental import pallas as pl
from jax.experimental.pallas import tpu as pltpu


# ----------------------------------------------------------------------------
# Fused kernel: 4 GRU layers + decoder, single invocation (no grid).
# ----------------------------------------------------------------------------
def _fused_forward_kernel(*refs, n_layers, T, B, H, return_embedding):
    """refs = [x_tm,
               (wih, whh, bgi, bhn) * n_layers,
               w1, b1, w2, b2,
               out,
               slab_a, slab_b, flat_slab]"""
    idx = 0
    x_ref = refs[idx]; idx += 1
    layer_refs = []
    for _ in range(n_layers):
        layer_refs.append(refs[idx:idx + 4])
        idx += 4
    w1_ref, b1_ref, w2_ref, b2_ref = refs[idx:idx + 4]; idx += 4
    out_ref = refs[idx]; idx += 1
    slab_a, slab_b, flat_slab = refs[idx:idx + 3]

    cur_in = x_ref[...]                      # (T*B, D_in), time-major rows
    write_slab, other_slab = slab_a, slab_b

    for layer_idx, (wih, whh, bgi, bhn) in enumerate(layer_refs):
        is_last = layer_idx == n_layers - 1

        # Hoisted input projection (+ folded biases): off the serial path.
        gi_r = jnp.dot(cur_in, wih[0], preferred_element_type=jnp.float32) + bgi[0]
        gi_z = jnp.dot(cur_in, wih[1], preferred_element_type=jnp.float32) + bgi[1]
        gi_n = jnp.dot(cur_in, wih[2], preferred_element_type=jnp.float32) + bgi[2]

        w_hr, w_hz, w_hn = whh[0], whh[1], whh[2]
        b_hn = bhn[...]                      # (1, H)

        h = jnp.zeros((B, H), jnp.float32)
        for t in range(T):                   # short static trip count: unrolled
            lo = t * B
            gh_r = jnp.dot(h, w_hr, preferred_element_type=jnp.float32)
            gh_z = jnp.dot(h, w_hz, preferred_element_type=jnp.float32)
            gh_n = jnp.dot(h, w_hn, preferred_element_type=jnp.float32) + b_hn
            r = jax.nn.sigmoid(gi_r[lo:lo + B, :] + gh_r)
            z = jax.nn.sigmoid(gi_z[lo:lo + B, :] + gh_z)
            n = jnp.tanh(gi_n[lo:lo + B, :] + r * gh_n)
            h = (1.0 - z) * n + z * h
            if is_last:
                # (B, T*H) layout == torch.reshape((B, T, H) -> (B, T*H))
                flat_slab[:, t * H:(t + 1) * H] = h
            else:
                write_slab[lo:lo + B, :] = h

        if not is_last:
            cur_in = write_slab[...]         # (T*B, H) input for next layer
            write_slab, other_slab = other_slab, write_slab
        # (inter-layer dropout 0.3 is identity in eval mode)

    # ---- fused decoder epilogue: linear -> relu -> linear -> sigmoid ----
    feats = flat_slab[...]                   # (B, T*H)
    emb = jnp.dot(feats, w1_ref[...], preferred_element_type=jnp.float32) + b1_ref[...]
    emb = jnp.maximum(emb, 0.0)              # relu (dropout 0.25 is identity)
    if return_embedding:
        out_ref[...] = emb.astype(out_ref.dtype)
    else:
        sc = jnp.dot(emb, w2_ref[...], preferred_element_type=jnp.float32) + b2_ref[...]
        out_ref[...] = jax.nn.sigmoid(sc).astype(out_ref.dtype)


# ----------------------------------------------------------------------------
# Parameters
# ----------------------------------------------------------------------------
def init_params(key, d_model, d_ffn, n_class, num_steps, n_gru_layers=4):
    """Torch-layout parameters, same init distributions as the PyTorch module."""
    d_gru = d_ffn * 2
    params = {"gru": []}
    stdv = 1.0 / float(d_gru) ** 0.5
    for layer in range(n_gru_layers):
        d_in = d_model if layer == 0 else d_gru
        key, k1, k2, k3, k4 = jax.random.split(key, 5)
        params["gru"].append({
            "w_ih": jax.random.uniform(k1, (3 * d_gru, d_in), jnp.float32, -stdv, stdv),
            "w_hh": jax.random.uniform(k2, (3 * d_gru, d_gru), jnp.float32, -stdv, stdv),
            "b_ih": jax.random.uniform(k3, (3 * d_gru,), jnp.float32, -stdv, stdv),
            "b_hh": jax.random.uniform(k4, (3 * d_gru,), jnp.float32, -stdv, stdv),
        })
    # decoder1: Linear(d_gru*T, d_ffn), xavier_normal weight, zero bias
    std1 = (2.0 / (d_gru * num_steps + d_ffn)) ** 0.5
    key, k5 = jax.random.split(key)
    params["dec1_w"] = std1 * jax.random.normal(k5, (d_ffn, d_gru * num_steps), jnp.float32)
    params["dec1_b"] = jnp.zeros((d_ffn,), jnp.float32)
    # decoder2: Linear(d_ffn, n_class)
    std2 = (2.0 / (d_ffn + n_class)) ** 0.5
    key, k6 = jax.random.split(key)
    params["dec2_w"] = std2 * jax.random.normal(k6, (n_class, d_ffn), jnp.float32)
    params["dec2_b"] = jnp.zeros((n_class,), jnp.float32)
    return params


def prepare_kernel_params(params):
    """One-time conversion torch layout -> fused-kernel layout (no per-call transposes)."""
    kp = {"gru": []}
    for lp in params["gru"]:
        w_ih, w_hh = lp["w_ih"], lp["w_hh"]
        b_ih, b_hh = lp["b_ih"], lp["b_hh"]
        H = w_hh.shape[1]
        d_in = w_ih.shape[1]
        # gate-major, pre-transposed for x @ W: (3, D_in, H) / (3, H, H); gates r,z,n
        wih_k = jnp.transpose(jnp.reshape(w_ih, (3, H, d_in)), (0, 2, 1))
        whh_k = jnp.transpose(jnp.reshape(w_hh, (3, H, H)), (0, 2, 1))
        bi = jnp.reshape(b_ih, (3, H))
        bh = jnp.reshape(b_hh, (3, H))
        # r/z: b_ih + b_hh folded; n: b_in hoisted, b_hn stays in the loop.
        bgi = jnp.reshape(jnp.stack([bi[0] + bh[0], bi[1] + bh[1], bi[2]], axis=0),
                          (3, 1, H))
        bhn = jnp.reshape(bh[2], (1, H))
        kp["gru"].append({"wih": wih_k, "whh": whh_k, "bgi": bgi, "bhn": bhn})
    kp["w1"] = jnp.transpose(params["dec1_w"])   # (T*H, d_ffn)
    kp["b1"] = jnp.reshape(params["dec1_b"], (1, -1))
    kp["w2"] = jnp.transpose(params["dec2_w"])   # (d_ffn, n_class)
    kp["b2"] = jnp.reshape(params["dec2_b"], (1, -1))
    return kp


# ----------------------------------------------------------------------------
# Forward pass
# ----------------------------------------------------------------------------
@functools.partial(jax.jit, static_argnames=("batch_size", "num_steps", "d_model",
                                             "return_embedding"))
def patient_finetune_gru_forward(kparams, patient_embeddings, *, batch_size,
                                 num_steps, d_model, return_embedding=False):
    B, T = batch_size, num_steps
    n_layers = len(kparams["gru"])
    H = kparams["gru"][0]["whh"].shape[-1]
    d_ffn = kparams["w1"].shape[-1]
    n_class = kparams["w2"].shape[-1]

    # torch.reshape(x, (B, T, d_model)), then time-major flatten for the kernel.
    x = jnp.reshape(patient_embeddings, (B, T, d_model))
    x_tm = jnp.reshape(jnp.transpose(x, (1, 0, 2)), (T * B, d_model))

    flat_args = [x_tm]
    for lp in kparams["gru"]:
        flat_args += [lp["wih"], lp["whh"], lp["bgi"], lp["bhn"]]
    flat_args += [kparams["w1"], kparams["b1"], kparams["w2"], kparams["b2"]]

    n_out = d_ffn if return_embedding else n_class

    def kernel(*refs):
        _fused_forward_kernel(*refs, n_layers=n_layers, T=T, B=B, H=H,
                              return_embedding=return_embedding)

    return pl.pallas_call(
        kernel,
        out_shape=jax.ShapeDtypeStruct((B, n_out), jnp.float32),
        scratch_shapes=[
            pltpu.VMEM((T * B, H), jnp.float32),   # inter-layer slab (ping)
            pltpu.VMEM((T * B, H), jnp.float32),   # inter-layer slab (pong)
            pltpu.VMEM((B, T * H), jnp.float32),   # decoder-input slab
        ],
    )(*flat_args)


# ----------------------------------------------------------------------------
# Pure-JAX reference (torch-layout params) for correctness validation
# ----------------------------------------------------------------------------
def _reference_forward(params, x, *, batch_size, num_steps, d_model,
                       return_embedding=False):
    B, T = batch_size, num_steps
    layer_in = jnp.reshape(x, (B, T, d_model))
    for lp in params["gru"]:
        H = lp["w_hh"].shape[1]
        w_ih_t, w_hh_t = lp["w_ih"].T, lp["w_hh"].T
        b_ih, b_hh = lp["b_ih"], lp["b_hh"]

        def step(h, x_t, w_ih_t=w_ih_t, w_hh_t=w_hh_t, b_ih=b_ih, b_hh=b_hh, H=H):
            gi = x_t @ w_ih_t + b_ih
            gh = h @ w_hh_t + b_hh
            r = jax.nn.sigmoid(gi[:, :H] + gh[:, :H])
            z = jax.nn.sigmoid(gi[:, H:2 * H] + gh[:, H:2 * H])
            n = jnp.tanh(gi[:, 2 * H:] + r * gh[:, 2 * H:])
            h_new = (1.0 - z) * n + z * h
            return h_new, h_new

        h0 = jnp.zeros((B, H), jnp.float32)
        _, ys = jax.lax.scan(step, h0, jnp.transpose(layer_in, (1, 0, 2)))
        layer_in = jnp.transpose(ys, (1, 0, 2))
    h_flat = jnp.reshape(layer_in, (B, T * layer_in.shape[-1]))
    emb = jnp.maximum(h_flat @ params["dec1_w"].T + params["dec1_b"], 0.0)
    if return_embedding:
        return emb
    return jax.nn.sigmoid(emb @ params["dec2_w"].T + params["dec2_b"])


if __name__ == "__main__":
    # Small shapes consistent with the module.
    batch_size = 2
    num_steps = 8          # num_static_and_temporal_steps
    d_model = 32
    d_ffn = 32             # -> d_gru = 64
    n_class = 4

    key = jax.random.PRNGKey(0)
    key, pkey, xkey = jax.random.split(key, 3)

    params = init_params(pkey, d_model, d_ffn, n_class, num_steps)
    kparams = prepare_kernel_params(params)     # one-time layout conversion
    x = jax.random.normal(xkey, (batch_size, num_steps, d_model), jnp.float32)

    scores = patient_finetune_gru_forward(
        kparams, x, batch_size=batch_size, num_steps=num_steps,
        d_model=d_model, return_embedding=False)
    scores = jax.block_until_ready(scores)

    assert scores.shape == (batch_size, n_class)
    assert bool(jnp.all((scores >= 0.0) & (scores <= 1.0)))

    ref = _reference_forward(params, x, batch_size=batch_size,
                             num_steps=num_steps, d_model=d_model,
                             return_embedding=False)
    assert bool(jnp.allclose(scores, ref, atol=1e-4, rtol=1e-4)), (scores, ref)

    print("KERNEL_OK")
</pallas_src>

<mosaic_0001>
module attributes {stable_mosaic.version = 11 : i64} {
  func.func @kernel(%arg0: memref<16x32xf32, #tpu.memory_space<vmem>>, %arg1: memref<3x32x64xf32, #tpu.memory_space<vmem>>, %arg2: memref<3x64x64xf32, #tpu.memory_space<vmem>>, %arg3: memref<3x1x64xf32, #tpu.memory_space<vmem>>, %arg4: memref<1x64xf32, #tpu.memory_space<vmem>>, %arg5: memref<3x64x64xf32, #tpu.memory_space<vmem>>, %arg6: memref<3x64x64xf32, #tpu.memory_space<vmem>>, %arg7: memref<3x1x64xf32, #tpu.memory_space<vmem>>, %arg8: memref<1x64xf32, #tpu.memory_space<vmem>>, %arg9: memref<3x64x64xf32, #tpu.memory_space<vmem>>, %arg10: memref<3x64x64xf32, #tpu.memory_space<vmem>>, %arg11: memref<3x1x64xf32, #tpu.memory_space<vmem>>, %arg12: memref<1x64xf32, #tpu.memory_space<vmem>>, %arg13: memref<3x64x64xf32, #tpu.memory_space<vmem>>, %arg14: memref<3x64x64xf32, #tpu.memory_space<vmem>>, %arg15: memref<3x1x64xf32, #tpu.memory_space<vmem>>, %arg16: memref<1x64xf32, #tpu.memory_space<vmem>>, %arg17: memref<512x32xf32, #tpu.memory_space<vmem>>, %arg18: memref<1x32xf32, #tpu.memory_space<vmem>>, %arg19: memref<32x4xf32, #tpu.memory_space<vmem>>, %arg20: memref<1x4xf32, #tpu.memory_space<vmem>>, %arg21: memref<2x4xf32, #tpu.memory_space<vmem>>, %arg22: memref<16x64xf32, #tpu.memory_space<vmem>>, %arg23: memref<16x64xf32, #tpu.memory_space<vmem>>, %arg24: memref<2x512xf32, #tpu.memory_space<vmem>>) attributes {dimension_semantics = [], scalar_prefetch = 0 : i64, scratch_operands = 3 : i64, tpu.core_type = #tpu.core_type<tc>} {
    %c0 = arith.constant 0 : index
    %c0_0 = arith.constant 0 : index
    %0 = vector.load %arg0[%c0, %c0_0] : memref<16x32xf32, #tpu.memory_space<vmem>>, vector<16x32xf32>
    %c0_1 = arith.constant 0 : index
    %c0_2 = arith.constant 0 : index
    %c0_3 = arith.constant 0 : index
    %1 = vector.load %arg1[%c0_1, %c0_2, %c0_3] : memref<3x32x64xf32, #tpu.memory_space<vmem>>, vector<1x32x64xf32>
    %2 = vector.shape_cast %1 : vector<1x32x64xf32> to vector<32x64xf32>
    %cst = arith.constant dense<0.000000e+00> : vector<16x64xf32>
    %3 = tpu.matmul %0, %2, %cst {dimension_numbers = #tpu.dot_dimension_numbers<[1], [0], [0], [1], [0, 0, 1, 1], [], []>} : vector<16x32xf32>, vector<32x64xf32>, vector<16x64xf32> -> vector<16x64xf32>
    %c0_4 = arith.constant 0 : index
    %c0_5 = arith.constant 0 : index
    %c0_6 = arith.constant 0 : index
    %4 = vector.load %arg3[%c0_4, %c0_5, %c0_6] : memref<3x1x64xf32, #tpu.memory_space<vmem>>, vector<1x1x64xf32>
    %5 = vector.shape_cast %4 : vector<1x1x64xf32> to vector<1x64xf32>
    %6 = vector.broadcast %5 : vector<1x64xf32> to vector<16x64xf32>
    %7 = arith.addf %3, %6 : vector<16x64xf32>
    %c1 = arith.constant 1 : index
    %c0_7 = arith.constant 0 : index
    %c0_8 = arith.constant 0 : index
    %8 = vector.load %arg1[%c1, %c0_7, %c0_8] : memref<3x32x64xf32, #tpu.memory_space<vmem>>, vector<1x32x64xf32>
    %9 = vector.shape_cast %8 : vector<1x32x64xf32> to vector<32x64xf32>
    %cst_9 = arith.constant dense<0.000000e+00> : vector<16x64xf32>
    %10 = tpu.matmul %0, %9, %cst_9 {dimension_numbers = #tpu.dot_dimension_numbers<[1], [0], [0], [1], [0, 0, 1, 1], [], []>} : vector<16x32xf32>, vector<32x64xf32>, vector<16x64xf32> -> vector<16x64xf32>
    %c1_10 = arith.constant 1 : index
    %c0_11 = arith.constant 0 : index
    %c0_12 = arith.constant 0 : index
    %11 = vector.load %arg3[%c1_10, %c0_11, %c0_12] : memref<3x1x64xf32, #tpu.memory_space<vmem>>, vector<1x1x64xf32>
    %12 = vector.shape_cast %11 : vector<1x1x64xf32> to vector<1x64xf32>
    %13 = vector.broadcast %12 : vector<1x64xf32> to vector<16x64xf32>
    %14 = arith.addf %10, %13 : vector<16x64xf32>
    %c2 = arith.constant 2 : index
    %c0_13 = arith.constant 0 : index
    %c0_14 = arith.constant 0 : index
    %15 = vector.load %arg1[%c2, %c0_13, %c0_14] : memref<3x32x64xf32, #tpu.memory_space<vmem>>, vector<1x32x64xf32>
    %16 = vector.shape_cast %15 : vector<1x32x64xf32> to vector<32x64xf32>
    %cst_15 = arith.constant dense<0.000000e+00> : vector<16x64xf32>
    %17 = tpu.matmul %0, %16, %cst_15 {dimension_numbers = #tpu.dot_dimension_numbers<[1], [0], [0], [1], [0, 0, 1, 1], [], []>} : vector<16x32xf32>, vector<32x64xf32>, vector<16x64xf32> -> vector<16x64xf32>
    %c2_16 = arith.constant 2 : index
    %c0_17 = arith.constant 0 : index
    %c0_18 = arith.constant 0 : index
    %18 = vector.load %arg3[%c2_16, %c0_17, %c0_18] : memref<3x1x64xf32, #tpu.memory_space<vmem>>, vector<1x1x64xf32>
    %19 = vector.shape_cast %18 : vector<1x1x64xf32> to vector<1x64xf32>
    %20 = vector.broadcast %19 : vector<1x64xf32> to vector<16x64xf32>
    %21 = arith.addf %17, %20 : vector<16x64xf32>
    %c0_19 = arith.constant 0 : index
    %c0_20 = arith.constant 0 : index
    %c0_21 = arith.constant 0 : index
    %22 = vector.load %arg2[%c0_19, %c0_20, %c0_21] : memref<3x64x64xf32, #tpu.memory_space<vmem>>, vector<1x64x64xf32>
    %23 = vector.shape_cast %22 : vector<1x64x64xf32> to vector<64x64xf32>
    %c1_22 = arith.constant 1 : index
    %c0_23 = arith.constant 0 : index
    %c0_24 = arith.constant 0 : index
    %24 = vector.load %arg2[%c1_22, %c0_23, %c0_24] : memref<3x64x64xf32, #tpu.memory_space<vmem>>, vector<1x64x64xf32>
    %25 = vector.shape_cast %24 : vector<1x64x64xf32> to vector<64x64xf32>
    %c2_25 = arith.constant 2 : index
    %c0_26 = arith.constant 0 : index
    %c0_27 = arith.constant 0 : index
    %26 = vector.load %arg2[%c2_25, %c0_26, %c0_27] : memref<3x64x64xf32, #tpu.memory_space<vmem>>, vector<1x64x64xf32>
    %27 = vector.shape_cast %26 : vector<1x64x64xf32> to vector<64x64xf32>
    %c0_28 = arith.constant 0 : index
    %c0_29 = arith.constant 0 : index
    %28 = vector.load %arg4[%c0_28, %c0_29] : memref<1x64xf32, #tpu.memory_space<vmem>>, vector<1x64xf32>
    %cst_30 = arith.constant 0.000000e+00 : f32
    %29 = vector.broadcast %cst_30 : f32 to vector<2x64xf32>
    %cst_31 = arith.constant dense<0.000000e+00> : vector<2x64xf32>
    %30 = tpu.matmul %29, %23, %cst_31 {dimension_numbers = #tpu.dot_dimension_numbers<[1], [0], [0], [1], [0, 0, 1, 1], [], []>} : vector<2x64xf32>, vector<64x64xf32>, vector<2x64xf32> -> vector<2x64xf32>
    %cst_32 = arith.constant dense<0.000000e+00> : vector<2x64xf32>
    %31 = tpu.matmul %29, %25, %cst_32 {dimension_numbers = #tpu.dot_dimension_numbers<[1], [0], [0], [1], [0, 0, 1, 1], [], []>} : vector<2x64xf32>, vector<64x64xf32>, vector<2x64xf32> -> vector<2x64xf32>
    %cst_33 = arith.constant dense<0.000000e+00> : vector<2x64xf32>
    %32 = tpu.matmul %29, %27, %cst_33 {dimension_numbers = #tpu.dot_dimension_numbers<[1], [0], [0], [1], [0, 0, 1, 1], [], []>} : vector<2x64xf32>, vector<64x64xf32>, vector<2x64xf32> -> vector<2x64xf32>
    %33 = vector.broadcast %28 : vector<1x64xf32> to vector<2x64xf32>
    %34 = arith.addf %32, %33 : vector<2x64xf32>
    %35 = vector.extract_strided_slice %7 {offsets = [0, 0], sizes = [2, 64], strides = [1, 1]} : vector<16x64xf32> to vector<2x64xf32>
    %36 = arith.addf %35, %30 : vector<2x64xf32>
    %37 = arith.negf %36 : vector<2x64xf32>
    %38 = math.exp %37 : vector<2x64xf32>
    %cst_34 = arith.constant 1.000000e+00 : f32
    %39 = vector.broadcast %cst_34 : f32 to vector<2x64xf32>
    %40 = arith.addf %39, %38 : vector<2x64xf32>
    %41 = arith.divf %39, %40 : vector<2x64xf32>
    %42 = vector.extract_strided_slice %14 {offsets = [0, 0], sizes = [2, 64], strides = [1, 1]} : vector<16x64xf32> to vector<2x64xf32>
    %43 = arith.addf %42, %31 : vector<2x64xf32>
    %44 = arith.negf %43 : vector<2x64xf32>
    %45 = math.exp %44 : vector<2x64xf32>
    %cst_35 = arith.constant 1.000000e+00 : f32
    %46 = vector.broadcast %cst_35 : f32 to vector<2x64xf32>
    %47 = arith.addf %46, %45 : vector<2x64xf32>
    %48 = arith.divf %46, %47 : vector<2x64xf32>
    %49 = vector.extract_strided_slice %21 {offsets = [0, 0], sizes = [2, 64], strides = [1, 1]} : vector<16x64xf32> to vector<2x64xf32>
    %50 = arith.mulf %41, %34 : vector<2x64xf32>
    %51 = arith.addf %49, %50 : vector<2x64xf32>
    %52 = math.tanh %51 : vector<2x64xf32>
    %cst_36 = arith.constant 1.000000e+00 : f32
    %53 = vector.broadcast %cst_36 : f32 to vector<2x64xf32>
    %54 = arith.subf %53, %48 : vector<2x64xf32>
    %55 = arith.mulf %54, %52 : vector<2x64xf32>
    %56 = arith.mulf %48, %29 : vector<2x64xf32>
    %57 = arith.addf %55, %56 : vector<2x64xf32>
    %c0_37 = arith.constant 0 : index
    %c0_38 = arith.constant 0 : index
    %58 = vector.load %arg22[%c0_37, %c0_38] : memref<16x64xf32, #tpu.memory_space<vmem>>, vector<2x64xf32>
    tpu.vector_store %arg22[%c0_37, %c0_38], %57 {strides = array<i32>} : memref<16x64xf32, #tpu.memory_space<vmem>>, vector<2x64xf32>,
    %cst_39 = arith.constant dense<0.000000e+00> : vector<2x64xf32>
    %59 = tpu.matmul %57, %23, %cst_39 {dimension_numbers = #tpu.dot_dimension_numbers<[1], [0], [0], [1], [0, 0, 1, 1], [], []>} : vector<2x64xf32>, vector<64x64xf32>, vector<2x64xf32> -> vector<2x64xf32>
    %cst_40 = arith.constant dense<0.000000e+00> : vector<2x64xf32>
    %60 = tpu.matmul %57, %25, %cst_40 {dimension_numbers = #tpu.dot_dimension_numbers<[1], [0], [0], [1], [0, 0, 1, 1], [], []>} : vector<2x64xf32>, vector<64x64xf32>, vector<2x64xf32> -> vector<2x64xf32>
    %cst_41 = arith.constant dense<0.000000e+00> : vector<2x64xf32>
    %61 = tpu.matmul %57, %27, %cst_41 {dimension_numbers = #tpu.dot_dimension_numbers<[1], [0], [0], [1], [0, 0, 1, 1], [], []>} : vector<2x64xf32>, vector<64x64xf32>, vector<2x64xf32> -> vector<2x64xf32>
    %62 = vector.broadcast %28 : vector<1x64xf32> to vector<2x64xf32>
    %63 = arith.addf %61, %62 : vector<2x64xf32>
    %64 = vector.extract_strided_slice %7 {offsets = [2, 0], sizes = [2, 64], strides = [1, 1]} : vector<16x64xf32> to vector<2x64xf32>
    %65 = arith.addf %64, %59 : vector<2x64xf32>
    %66 = arith.negf %65 : vector<2x64xf32>
    %67 = math.exp %66 : vector<2x64xf32>
    %cst_42 = arith.constant 1.000000e+00 : f32
    %68 = vector.broadcast %cst_42 : f32 to vector<2x64xf32>
    %69 = arith.addf %68, %67 : vector<2x64xf32>
    %70 = arith.divf %68, %69 : vector<2x64xf32>
    %71 = vector.extract_strided_slice %14 {offsets = [2, 0], sizes = [2, 64], strides = [1, 1]} : vector<16x64xf32> to vector<2x64xf32>
    %72 = arith.addf %71, %60 : vector<2x64xf32>
    %73 = arith.negf %72 : vector<2x64xf32>
    %74 = math.exp %73 : vector<2x64xf32>
    %cst_43 = arith.constant 1.000000e+00 : f32
    %75 = vector.broadcast %cst_43 : f32 to vector<2x64xf32>
    %76 = arith.addf %75, %74 : vector<2x64xf32>
    %77 = arith.divf %75, %76 : vector<2x64xf32>
    %78 = vector.extract_strided_slice %21 {offsets = [2, 0], sizes = [2, 64], strides = [1, 1]} : vector<16x64xf32> to vector<2x64xf32>
    %79 = arith.mulf %70, %63 : vector<2x64xf32>
    %80 = arith.addf %78, %79 : vector<2x64xf32>
    %81 = math.tanh %80 : vector<2x64xf32>
    %cst_44 = arith.constant 1.000000e+00 : f32
    %82 = vector.broadcast %cst_44 : f32 to vector<2x64xf32>
    %83 = arith.subf %82, %77 : vector<2x64xf32>
    %84 = arith.mulf %83, %81 : vector<2x64xf32>
    %85 = arith.mulf %77, %57 : vector<2x64xf32>
    %86 = arith.addf %84, %85 : vector<2x64xf32>
    %c2_45 = arith.constant 2 : index
    %c0_46 = arith.constant 0 : index
    %87 = vector.load %arg22[%c2_45, %c0_46] : memref<16x64xf32, #tpu.memory_space<vmem>>, vector<2x64xf32>
    tpu.vector_store %arg22[%c2_45, %c0_46], %86 {strides = array<i32>} : memref<16x64xf32, #tpu.memory_space<vmem>>, vector<2x64xf32>,
    %cst_47 = arith.constant dense<0.000000e+00> : vector<2x64xf32>
    %88 = tpu.matmul %86, %23, %cst_47 {dimension_numbers = #tpu.dot_dimension_numbers<[1], [0], [0], [1], [0, 0, 1, 1], [], []>} : vector<2x64xf32>, vector<64x64xf32>, vector<2x64xf32> -> vector<2x64xf32>
    %cst_48 = arith.constant dense<0.000000e+00> : vector<2x64xf32>
    %89 = tpu.matmul %86, %25, %cst_48 {dimension_numbers = #tpu.dot_dimension_numbers<[1], [0], [0], [1], [0, 0, 1, 1], [], []>} : vector<2x64xf32>, vector<64x64xf32>, vector<2x64xf32> -> vector<2x64xf32>
    %cst_49 = arith.constant dense<0.000000e+00> : vector<2x64xf32>
    %90 = tpu.matmul %86, %27, %cst_49 {dimension_numbers = #tpu.dot_dimension_numbers<[1], [0], [0], [1], [0, 0, 1, 1], [], []>} : vector<2x64xf32>, vector<64x64xf32>, vector<2x64xf32> -> vector<2x64xf32>
    %91 = vector.broadcast %28 : vector<1x64xf32> to vector<2x64xf32>
    %92 = arith.addf %90, %91 : vector<2x64xf32>
    %93 = vector.extract_strided_slice %7 {offsets = [4, 0], sizes = [2, 64], strides = [1, 1]} : vector<16x64xf32> to vector<2x64xf32>
    %94 = arith.addf %93, %88 : vector<2x64xf32>
    %95 = arith.negf %94 : vector<2x64xf32>
    %96 = math.exp %95 : vector<2x64xf32>
    %cst_50 = arith.constant 1.000000e+00 : f32
    %97 = vector.broadcast %cst_50 : f32 to vector<2x64xf32>
    %98 = arith.addf %97, %96 : vector<2x64xf32>
    %99 = arith.divf %97, %98 : vector<2x64xf32>
    %100 = vector.extract_strided_slice %14 {offsets = [4, 0], sizes = [2, 64], strides = [1, 1]} : vector<16x64xf32> to vector<2x64xf32>
    %101 = arith.addf %100, %89 : vector<2x64xf32>
    %102 = arith.negf %101 : vector<2x64xf32>
    %103 = math.exp %102 : vector<2x64xf32>
    %cst_51 = arith.constant 1.000000e+00 : f32
    %104 = vector.broadcast %cst_51 : f32 to vector<2x64xf32>
    %105 = arith.addf %104, %103 : vector<2x64xf32>
    %106 = arith.divf %104, %105 : vector<2x64xf32>
    %107 = vector.extract_strided_slice %21 {offsets = [4, 0], sizes = [2, 64], strides = [1, 1]} : vector<16x64xf32> to vector<2x64xf32>
    %108 = arith.mulf %99, %92 : vector<2x64xf32>
    %109 = arith.addf %107, %108 : vector<2x64xf32>
    %110 = math.tanh %109 : vector<2x64xf32>
    %cst_52 = arith.constant 1.000000e+00 : f32
    %111 = vector.broadcast %cst_52 : f32 to vector<2x64xf32>
    %112 = arith.subf %111, %106 : vector<2x64xf32>
    %113 = arith.mulf %112, %110 : vector<2x64xf32>
    %114 = arith.mulf %106, %86 : vector<2x64xf32>
    %115 = arith.addf %113, %114 : vector<2x64xf32>
    %c4 = arith.constant 4 : index
    %c0_53 = arith.constant 0 : index
    %116 = vector.load %arg22[%c4, %c0_53] : memref<16x64xf32, #tpu.memory_space<vmem>>, vector<2x64xf32>
    tpu.vector_store %arg22[%c4, %c0_53], %115 {strides = array<i32>} : memref<16x64xf32, #tpu.memory_space<vmem>>, vector<2x64xf32>,
    %cst_54 = arith.constant dense<0.000000e+00> : vector<2x64xf32>
    %117 = tpu.matmul %115, %23, %cst_54 {dimension_numbers = #tpu.dot_dimension_numbers<[1], [0], [0], [1], [0, 0, 1, 1], [], []>} : vector<2x64xf32>, vector<64x64xf32>, vector<2x64xf32> -> vector<2x64xf32>
    %cst_55 = arith.constant dense<0.000000e+00> : vector<2x64xf32>
    %118 = tpu.matmul %115, %25, %cst_55 {dimension_numbers = #tpu.dot_dimension_numbers<[1], [0], [0], [1], [0, 0, 1, 1], [], []>} : vector<2x64xf32>, vector<64x64xf32>, vector<2x64xf32> -> vector<2x64xf32>
    %cst_56 = arith.constant dense<0.000000e+00> : vector<2x64xf32>
    %119 = tpu.matmul %115, %27, %cst_56 {dimension_numbers = #tpu.dot_dimension_numbers<[1], [0], [0], [1], [0, 0, 1, 1], [], []>} : vector<2x64xf32>, vector<64x64xf32>, vector<2x64xf32> -> vector<2x64xf32>
    %120 = vector.broadcast %28 : vector<1x64xf32> to vector<2x64xf32>
    %121 = arith.addf %119, %120 : vector<2x64xf32>
    %122 = vector.extract_strided_slice %7 {offsets = [6, 0], sizes = [2, 64], strides = [1, 1]} : vector<16x64xf32> to vector<2x64xf32>
    %123 = arith.addf %122, %117 : vector<2x64xf32>
    %124 = arith.negf %123 : vector<2x64xf32>
    %125 = math.exp %124 : vector<2x64xf32>
    %cst_57 = arith.constant 1.000000e+00 : f32
    %126 = vector.broadcast %cst_57 : f32 to vector<2x64xf32>
    %127 = arith.addf %126, %125 : vector<2x64xf32>
    %128 = arith.divf %126, %127 : vector<2x64xf32>
    %129 = vector.extract_strided_slice %14 {offsets = [6, 0], sizes = [2, 64], strides = [1, 1]} : vector<16x64xf32> to vector<2x64xf32>
    %130 = arith.addf %129, %118 : vector<2x64xf32>
    %131 = arith.negf %130 : vector<2x64xf32>
    %132 = math.exp %131 : vector<2x64xf32>
    %cst_58 = arith.constant 1.000000e+00 : f32
    %133 = vector.broadcast %cst_58 : f32 to vector<2x64xf32>
    %134 = arith.addf %133, %132 : vector<2x64xf32>
    %135 = arith.divf %133, %134 : vector<2x64xf32>
    %136 = vector.extract_strided_slice %21 {offsets = [6, 0], sizes = [2, 64], strides = [1, 1]} : vector<16x64xf32> to vector<2x64xf32>
    %137 = arith.mulf %128, %121 : vector<2x64xf32>
    %138 = arith.addf %136, %137 : vector<2x64xf32>
    %139 = math.tanh %138 : vector<2x64xf32>
    %cst_59 = arith.constant 1.000000e+00 : f32
    %140 = vector.broadcast %cst_59 : f32 to vector<2x64xf32>
    %141 = arith.subf %140, %135 : vector<2x64xf32>
    %142 = arith.mulf %141, %139 : vector<2x64xf32>
    %143 = arith.mulf %135, %115 : vector<2x64xf32>
    %144 = arith.addf %142, %143 : vector<2x64xf32>
    %c6 = arith.constant 6 : index
    %c0_60 = arith.constant 0 : index
    %145 = vector.load %arg22[%c6, %c0_60] : memref<16x64xf32, #tpu.memory_space<vmem>>, vector<2x64xf32>
    tpu.vector_store %arg22[%c6, %c0_60], %144 {strides = array<i32>} : memref<16x64xf32, #tpu.memory_space<vmem>>, vector<2x64xf32>,
    %cst_61 = arith.constant dense<0.000000e+00> : vector<2x64xf32>
    %146 = tpu.matmul %144, %23, %cst_61 {dimension_numbers = #tpu.dot_dimension_numbers<[1], [0], [0], [1], [0, 0, 1, 1], [], []>} : vector<2x64xf32>, vector<64x64xf32>, vector<2x64xf32> -> vector<2x64xf32>
    %cst_62 = arith.constant dense<0.000000e+00> : vector<2x64xf32>
    %147 = tpu.matmul %144, %25, %cst_62 {dimension_numbers = #tpu.dot_dimension_numbers<[1], [0], [0], [1], [0, 0, 1, 1], [], []>} : vector<2x64xf32>, vector<64x64xf32>, vector<2x64xf32> -> vector<2x64xf32>
    %cst_63 = arith.constant dense<0.000000e+00> : vector<2x64xf32>
    %148 = tpu.matmul %144, %27, %cst_63 {dimension_numbers = #tpu.dot_dimension_numbers<[1], [0], [0], [1], [0, 0, 1, 1], [], []>} : vector<2x64xf32>, vector<64x64xf32>, vector<2x64xf32> -> vector<2x64xf32>
    %149 = vector.broadcast %28 : vector<1x64xf32> to vector<2x64xf32>
    %150 = arith.addf %148, %149 : vector<2x64xf32>
    %151 = vector.extract_strided_slice %7 {offsets = [8, 0], sizes = [2, 64], strides = [1, 1]} : vector<16x64xf32> to vector<2x64xf32>
    %152 = arith.addf %151, %146 : vector<2x64xf32>
    %153 = arith.negf %152 : vector<2x64xf32>
    %154 = math.exp %153 : vector<2x64xf32>
    %cst_64 = arith.constant 1.000000e+00 : f32
    %155 = vector.broadcast %cst_64 : f32 to vector<2x64xf32>
    %156 = arith.addf %155, %154 : vector<2x64xf32>
    %157 = arith.divf %155, %156 : vector<2x64xf32>
    %158 = vector.extract_strided_slice %14 {offsets = [8, 0], sizes = [2, 64], strides = [1, 1]} : vector<16x64xf32> to vector<2x64xf32>
    %159 = arith.addf %158, %147 : vector<2x64xf32>
    %160 = arith.negf %159 : vector<2x64xf32>
    %161 = math.exp %160 : vector<2x64xf32>
    %cst_65 = arith.constant 1.000000e+00 : f32
    %162 = vector.broadcast %cst_65 : f32 to vector<2x64xf32>
    %163 = arith.addf %162, %161 : vector<2x64xf32>
    %164 = arith.divf %162, %163 : vector<2x64xf32>
    %165 = vector.extract_strided_slice %21 {offsets = [8, 0], sizes = [2, 64], strides = [1, 1]} : vector<16x64xf32> to vector<2x64xf32>
    %166 = arith.mulf %157, %150 : vector<2x64xf32>
    %167 = arith.addf %165, %166 : vector<2x64xf32>
    %168 = math.tanh %167 : vector<2x64xf32>
    %cst_66 = arith.constant 1.000000e+00 : f32
    %169 = vector.broadcast %cst_66 : f32 to vector<2x64xf32>
    %170 = arith.subf %169, %164 : vector<2x64xf32>
    %171 = arith.mulf %170, %168 : vector<2x64xf32>
    %172 = arith.mulf %164, %144 : vector<2x64xf32>
    %173 = arith.addf %171, %172 : vector<2x64xf32>
    %c8 = arith.constant 8 : index
    %c0_67 = arith.constant 0 : index
    %174 = vector.load %arg22[%c8, %c0_67] : memref<16x64xf32, #tpu.memory_space<vmem>>, vector<2x64xf32>
    tpu.vector_store %arg22[%c8, %c0_67], %173 {strides = array<i32>} : memref<16x64xf32, #tpu.memory_space<vmem>>, vector<2x64xf32>,
    %cst_68 = arith.constant dense<0.000000e+00> : vector<2x64xf32>
    %175 = tpu.matmul %173, %23, %cst_68 {dimension_numbers = #tpu.dot_dimension_numbers<[1], [0], [0], [1], [0, 0, 1, 1], [], []>} : vector<2x64xf32>, vector<64x64xf32>, vector<2x64xf32> -> vector<2x64xf32>
    %cst_69 = arith.constant dense<0.000000e+00> : vector<2x64xf32>
    %176 = tpu.matmul %173, %25, %cst_69 {dimension_numbers = #tpu.dot_dimension_numbers<[1], [0], [0], [1], [0, 0, 1, 1], [], []>} : vector<2x64xf32>, vector<64x64xf32>, vector<2x64xf32> -> vector<2x64xf32>
    %cst_70 = arith.constant dense<0.000000e+00> : vector<2x64xf32>
    %177 = tpu.matmul %173, %27, %cst_70 {dimension_numbers = #tpu.dot_dimension_numbers<[1], [0], [0], [1], [0, 0, 1, 1], [], []>} : vector<2x64xf32>, vector<64x64xf32>, vector<2x64xf32> -> vector<2x64xf32>
    %178 = vector.broadcast %28 : vector<1x64xf32> to vector<2x64xf32>
    %179 = arith.addf %177, %178 : vector<2x64xf32>
    %180 = vector.extract_strided_slice %7 {offsets = [10, 0], sizes = [2, 64], strides = [1, 1]} : vector<16x64xf32> to vector<2x64xf32>
    %181 = arith.addf %180, %175 : vector<2x64xf32>
    %182 = arith.negf %181 : vector<2x64xf32>
    %183 = math.exp %182 : vector<2x64xf32>
    %cst_71 = arith.constant 1.000000e+00 : f32
    %184 = vector.broadcast %cst_71 : f32 to vector<2x64xf32>
    %185 = arith.addf %184, %183 : vector<2x64xf32>
    %186 = arith.divf %184, %185 : vector<2x64xf32>
    %187 = vector.extract_strided_slice %14 {offsets = [10, 0], sizes = [2, 64], strides = [1, 1]} : vector<16x64xf32> to vector<2x64xf32>
    %188 = arith.addf %187, %176 : vector<2x64xf32>
    %189 = arith.negf %188 : vector<2x64xf32>
    %190 = math.exp %189 : vector<2x64xf32>
    %cst_72 = arith.constant 1.000000e+00 : f32
    %191 = vector.broadcast %cst_72 : f32 to vector<2x64xf32>
    %192 = arith.addf %191, %190 : vector<2x64xf32>
    %193 = arith.divf %191, %192 : vector<2x64xf32>
    %194 = vector.extract_strided_slice %21 {offsets = [10, 0], sizes = [2, 64], strides = [1, 1]} : vector<16x64xf32> to vector<2x64xf32>
    %195 = arith.mulf %186, %179 : vector<2x64xf32>
    %196 = arith.addf %194, %195 : vector<2x64xf32>
    %197 = math.tanh %196 : vector<2x64xf32>
    %cst_73 = arith.constant 1.000000e+00 : f32
    %198 = vector.broadcast %cst_73 : f32 to vector<2x64xf32>
    %199 = arith.subf %198, %193 : vector<2x64xf32>
    %200 = arith.mulf %199, %197 : vector<2x64xf32>
    %201 = arith.mulf %193, %173 : vector<2x64xf32>
    %202 = arith.addf %200, %201 : vector<2x64xf32>
    %c10 = arith.constant 10 : index
    %c0_74 = arith.constant 0 : index
    %203 = vector.load %arg22[%c10, %c0_74] : memref<16x64xf32, #tpu.memory_space<vmem>>, vector<2x64xf32>
    tpu.vector_store %arg22[%c10, %c0_74], %202 {strides = array<i32>} : memref<16x64xf32, #tpu.memory_space<vmem>>, vector<2x64xf32>,
    %cst_75 = arith.constant dense<0.000000e+00> : vector<2x64xf32>
    %204 = tpu.matmul %202, %23, %cst_75 {dimension_numbers = #tpu.dot_dimension_numbers<[1], [0], [0], [1], [0, 0, 1, 1], [], []>} : vector<2x64xf32>, vector<64x64xf32>, vector<2x64xf32> -> vector<2x64xf32>
    %cst_76 = arith.constant dense<0.000000e+00> : vector<2x64xf32>
    %205 = tpu.matmul %202, %25, %cst_76 {dimension_numbers = #tpu.dot_dimension_numbers<[1], [0], [0], [1], [0, 0, 1, 1], [], []>} : vector<2x64xf32>, vector<64x64xf32>, vector<2x64xf32> -> vector<2x64xf32>
    %cst_77 = arith.constant dense<0.000000e+00> : vector<2x64xf32>
    %206 = tpu.matmul %202, %27, %cst_77 {dimension_numbers = #tpu.dot_dimension_numbers<[1], [0], [0], [1], [0, 0, 1, 1], [], []>} : vector<2x64xf32>, vector<64x64xf32>, vector<2x64xf32> -> vector<2x64xf32>
    %207 = vector.broadcast %28 : vector<1x64xf32> to vector<2x64xf32>
    %208 = arith.addf %206, %207 : vector<2x64xf32>
    %209 = vector.extract_strided_slice %7 {offsets = [12, 0], sizes = [2, 64], strides = [1, 1]} : vector<16x64xf32> to vector<2x64xf32>
    %210 = arith.addf %209, %204 : vector<2x64xf32>
    %211 = arith.negf %210 : vector<2x64xf32>
    %212 = math.exp %211 : vector<2x64xf32>
    %cst_78 = arith.constant 1.000000e+00 : f32
    %213 = vector.broadcast %cst_78 : f32 to vector<2x64xf32>
    %214 = arith.addf %213, %212 : vector<2x64xf32>
    %215 = arith.divf %213, %214 : vector<2x64xf32>
    %216 = vector.extract_strided_slice %14 {offsets = [12, 0], sizes = [2, 64], strides = [1, 1]} : vector<16x64xf32> to vector<2x64xf32>
    %217 = arith.addf %216, %205 : vector<2x64xf32>
    %218 = arith.negf %217 : vector<2x64xf32>
    %219 = math.exp %218 : vector<2x64xf32>
    %cst_79 = arith.constant 1.000000e+00 : f32
    %220 = vector.broadcast %cst_79 : f32 to vector<2x64xf32>
    %221 = arith.addf %220, %219 : vector<2x64xf32>
    %222 = arith.divf %220, %221 : vector<2x64xf32>
    %223 = vector.extract_strided_slice %21 {offsets = [12, 0], sizes = [2, 64], strides = [1, 1]} : vector<16x64xf32> to vector<2x64xf32>
    %224 = arith.mulf %215, %208 : vector<2x64xf32>
    %225 = arith.addf %223, %224 : vector<2x64xf32>
    %226 = math.tanh %225 : vector<2x64xf32>
    %cst_80 = arith.constant 1.000000e+00 : f32
    %227 = vector.broadcast %cst_80 : f32 to vector<2x64xf32>
    %228 = arith.subf %227, %222 : vector<2x64xf32>
    %229 = arith.mulf %228, %226 : vector<2x64xf32>
    %230 = arith.mulf %222, %202 : vector<2x64xf32>
    %231 = arith.addf %229, %230 : vector<2x64xf32>
    %c12 = arith.constant 12 : index
    %c0_81 = arith.constant 0 : index
    %232 = vector.load %arg22[%c12, %c0_81] : memref<16x64xf32, #tpu.memory_space<vmem>>, vector<2x64xf32>
    tpu.vector_store %arg22[%c12, %c0_81], %231 {strides = array<i32>} : memref<16x64xf32, #tpu.memory_space<vmem>>, vector<2x64xf32>,
    %cst_82 = arith.constant dense<0.000000e+00> : vector<2x64xf32>
    %233 = tpu.matmul %231, %23, %cst_82 {dimension_numbers = #tpu.dot_dimension_numbers<[1], [0], [0], [1], [0, 0, 1, 1], [], []>} : vector<2x64xf32>, vector<64x64xf32>, vector<2x64xf32> -> vector<2x64xf32>
    %cst_83 = arith.constant dense<0.000000e+00> : vector<2x64xf32>
    %234 = tpu.matmul %231, %25, %cst_83 {dimension_numbers = #tpu.dot_dimension_numbers<[1], [0], [0], [1], [0, 0, 1, 1], [], []>} : vector<2x64xf32>, vector<64x64xf32>, vector<2x64xf32> -> vector<2x64xf32>
    %cst_84 = arith.constant dense<0.000000e+00> : vector<2x64xf32>
    %235 = tpu.matmul %231, %27, %cst_84 {dimension_numbers = #tpu.dot_dimension_numbers<[1], [0], [0], [1], [0, 0, 1, 1], [], []>} : vector<2x64xf32>, vector<64x64xf32>, vector<2x64xf32> -> vector<2x64xf32>
    %236 = vector.broadcast %28 : vector<1x64xf32> to vector<2x64xf32>
    %237 = arith.addf %235, %236 : vector<2x64xf32>
    %238 = vector.extract_strided_slice %7 {offsets = [14, 0], sizes = [2, 64], strides = [1, 1]} : vector<16x64xf32> to vector<2x64xf32>
    %239 = arith.addf %238, %233 : vector<2x64xf32>
    %240 = arith.negf %239 : vector<2x64xf32>
    %241 = math.exp %240 : vector<2x64xf32>
    %cst_85 = arith.constant 1.000000e+00 : f32
    %242 = vector.broadcast %cst_85 : f32 to vector<2x64xf32>
    %243 = arith.addf %242, %241 : vector<2x64xf32>
    %244 = arith.divf %242, %243 : vector<2x64xf32>
    %245 = vector.extract_strided_slice %14 {offsets = [14, 0], sizes = [2, 64], strides = [1, 1]} : vector<16x64xf32> to vector<2x64xf32>
    %246 = arith.addf %245, %234 : vector<2x64xf32>
    %247 = arith.negf %246 : vector<2x64xf32>
    %248 = math.exp %247 : vector<2x64xf32>
    %cst_86 = arith.constant 1.000000e+00 : f32
    %249 = vector.broadcast %cst_86 : f32 to vector<2x64xf32>
    %250 = arith.addf %249, %248 : vector<2x64xf32>
    %251 = arith.divf %249, %250 : vector<2x64xf32>
    %252 = vector.extract_strided_slice %21 {offsets = [14, 0], sizes = [2, 64], strides = [1, 1]} : vector<16x64xf32> to vector<2x64xf32>
    %253 = arith.mulf %244, %237 : vector<2x64xf32>
    %254 = arith.addf %252, %253 : vector<2x64xf32>
    %255 = math.tanh %254 : vector<2x64xf32>
    %cst_87 = arith.constant 1.000000e+00 : f32
    %256 = vector.broadcast %cst_87 : f32 to vector<2x64xf32>
    %257 = arith.subf %256, %251 : vector<2x64xf32>
    %258 = arith.mulf %257, %255 : vector<2x64xf32>
    %259 = arith.mulf %251, %231 : vector<2x64xf32>
    %260 = arith.addf %258, %259 : vector<2x64xf32>
    %c14 = arith.constant 14 : index
    %c0_88 = arith.constant 0 : index
    %261 = vector.load %arg22[%c14, %c0_88] : memref<16x64xf32, #tpu.memory_space<vmem>>, vector<2x64xf32>
    tpu.vector_store %arg22[%c14, %c0_88], %260 {strides = array<i32>} : memref<16x64xf32, #tpu.memory_space<vmem>>, vector<2x64xf32>,
    %c0_89 = arith.constant 0 : index
    %c0_90 = arith.constant 0 : index
    %262 = vector.load %arg22[%c0_89, %c0_90] : memref<16x64xf32, #tpu.memory_space<vmem>>, vector<16x64xf32>
    %c0_91 = arith.constant 0 : index
    %c0_92 = arith.constant 0 : index
    %c0_93 = arith.constant 0 : index
    %263 = vector.load %arg5[%c0_91, %c0_92, %c0_93] : memref<3x64x64xf32, #tpu.memory_space<vmem>>, vector<1x64x64xf32>
    %264 = vector.shape_cast %263 : vector<1x64x64xf32> to vector<64x64xf32>
    %cst_94 = arith.constant dense<0.000000e+00> : vector<16x64xf32>
    %265 = tpu.matmul %262, %264, %cst_94 {dimension_numbers = #tpu.dot_dimension_numbers<[1], [0], [0], [1], [0, 0, 1, 1], [], []>} : vector<16x64xf32>, vector<64x64xf32>, vector<16x64xf32> -> vector<16x64xf32>
    %c0_95 = arith.constant 0 : index
    %c0_96 = arith.constant 0 : index
    %c0_97 = arith.constant 0 : index
    %266 = vector.load %arg7[%c0_95, %c0_96, %c0_97] : memref<3x1x64xf32, #tpu.memory_space<vmem>>, vector<1x1x64xf32>
    %267 = vector.shape_cast %266 : vector<1x1x64xf32> to vector<1x64xf32>
    %268 = vector.broadcast %267 : vector<1x64xf32> to vector<16x64xf32>
    %269 = arith.addf %265, %268 : vector<16x64xf32>
    %c1_98 = arith.constant 1 : index
    %c0_99 = arith.constant 0 : index
    %c0_100 = arith.constant 0 : index
    %270 = vector.load %arg5[%c1_98, %c0_99, %c0_100] : memref<3x64x64xf32, #tpu.memory_space<vmem>>, vector<1x64x64xf32>
    %271 = vector.shape_cast %270 : vector<1x64x64xf32> to vector<64x64xf32>
    %cst_101 = arith.constant dense<0.000000e+00> : vector<16x64xf32>
    %272 = tpu.matmul %262, %271, %cst_101 {dimension_numbers = #tpu.dot_dimension_numbers<[1], [0], [0], [1], [0, 0, 1, 1], [], []>} : vector<16x64xf32>, vector<64x64xf32>, vector<16x64xf32> -> vector<16x64xf32>
    %c1_102 = arith.constant 1 : index
    %c0_103 = arith.constant 0 : index
    %c0_104 = arith.constant 0 : index
    %273 = vector.load %arg7[%c1_102, %c0_103, %c0_104] : memref<3x1x64xf32, #tpu.memory_space<vmem>>, vector<1x1x64xf32>
    %274 = vector.shape_cast %273 : vector<1x1x64xf32> to vector<1x64xf32>
    %275 = vector.broadcast %274 : vector<1x64xf32> to vector<16x64xf32>
    %276 = arith.addf %272, %275 : vector<16x64xf32>
    %c2_105 = arith.constant 2 : index
    %c0_106 = arith.constant 0 : index
    %c0_107 = arith.constant 0 : index
    %277 = vector.load %arg5[%c2_105, %c0_106, %c0_107] : memref<3x64x64xf32, #tpu.memory_space<vmem>>, vector<1x64x64xf32>
    %278 = vector.shape_cast %277 : vector<1x64x64xf32> to vector<64x64xf32>
    %cst_108 = arith.constant dense<0.000000e+00> : vector<16x64xf32>
    %279 = tpu.matmul %262, %278, %cst_108 {dimension_numbers = #tpu.dot_dimension_numbers<[1], [0], [0], [1], [0, 0, 1, 1], [], []>} : vector<16x64xf32>, vector<64x64xf32>, vector<16x64xf32> -> vector<16x64xf32>
    %c2_109 = arith.constant 2 : index
    %c0_110 = arith.constant 0 : index
    %c0_111 = arith.constant 0 : index
    %280 = vector.load %arg7[%c2_109, %c0_110, %c0_111] : memref<3x1x64xf32, #tpu.memory_space<vmem>>, vector<1x1x64xf32>
    %281 = vector.shape_cast %280 : vector<1x1x64xf32> to vector<1x64xf32>
    %282 = vector.broadcast %281 : vector<1x64xf32> to vector<16x64xf32>
    %283 = arith.addf %279, %282 : vector<16x64xf32>
    %c0_112 = arith.constant 0 : index
    %c0_113 = arith.constant 0 : index
    %c0_114 = arith.constant 0 : index
    %284 = vector.load %arg6[%c0_112, %c0_113, %c0_114] : memref<3x64x64xf32, #tpu.memory_space<vmem>>, vector<1x64x64xf32>
    %285 = vector.shape_cast %284 : vector<1x64x64xf32> to vector<64x64xf32>
    %c1_115 = arith.constant 1 : index
    %c0_116 = arith.constant 0 : index
    %c0_117 = arith.constant 0 : index
    %286 = vector.load %arg6[%c1_115, %c0_116, %c0_117] : memref<3x64x64xf32, #tpu.memory_space<vmem>>, vector<1x64x64xf32>
    %287 = vector.shape_cast %286 : vector<1x64x64xf32> to vector<64x64xf32>
    %c2_118 = arith.constant 2 : index
    %c0_119 = arith.constant 0 : index
    %c0_120 = arith.constant 0 : index
    %288 = vector.load %arg6[%c2_118, %c0_119, %c0_120] : memref<3x64x64xf32, #tpu.memory_space<vmem>>, vector<1x64x64xf32>
    %289 = vector.shape_cast %288 : vector<1x64x64xf32> to vector<64x64xf32>
    %c0_121 = arith.constant 0 : index
    %c0_122 = arith.constant 0 : index
    %290 = vector.load %arg8[%c0_121, %c0_122] : memref<1x64xf32, #tpu.memory_space<vmem>>, vector<1x64xf32>
    %cst_123 = arith.constant 0.000000e+00 : f32
    %291 = vector.broadcast %cst_123 : f32 to vector<2x64xf32>
    %cst_124 = arith.constant dense<0.000000e+00> : vector<2x64xf32>
    %292 = tpu.matmul %291, %285, %cst_124 {dimension_numbers = #tpu.dot_dimension_numbers<[1], [0], [0], [1], [0, 0, 1, 1], [], []>} : vector<2x64xf32>, vector<64x64xf32>, vector<2x64xf32> -> vector<2x64xf32>
    %cst_125 = arith.constant dense<0.000000e+00> : vector<2x64xf32>
    %293 = tpu.matmul %291, %287, %cst_125 {dimension_numbers = #tpu.dot_dimension_numbers<[1], [0], [0], [1], [0, 0, 1, 1], [], []>} : vector<2x64xf32>, vector<64x64xf32>, vector<2x64xf32> -> vector<2x64xf32>
    %cst_126 = arith.constant dense<0.000000e+00> : vector<2x64xf32>
    %294 = tpu.matmul %291, %289, %cst_126 {dimension_numbers = #tpu.dot_dimension_numbers<[1], [0], [0], [1], [0, 0, 1, 1], [], []>} : vector<2x64xf32>, vector<64x64xf32>, vector<2x64xf32> -> vector<2x64xf32>
    %295 = vector.broadcast %290 : vector<1x64xf32> to vector<2x64xf32>
    %296 = arith.addf %294, %295 : vector<2x64xf32>
    %297 = vector.extract_strided_slice %269 {offsets = [0, 0], sizes = [2, 64], strides = [1, 1]} : vector<16x64xf32> to vector<2x64xf32>
    %298 = arith.addf %297, %292 : vector<2x64xf32>
    %299 = arith.negf %298 : vector<2x64xf32>
    %300 = math.exp %299 : vector<2x64xf32>
    %cst_127 = arith.constant 1.000000e+00 : f32
    %301 = vector.broadcast %cst_127 : f32 to vector<2x64xf32>
    %302 = arith.addf %301, %300 : vector<2x64xf32>
    %303 = arith.divf %301, %302 : vector<2x64xf32>
    %304 = vector.extract_strided_slice %276 {offsets = [0, 0], sizes = [2, 64], strides = [1, 1]} : vector<16x64xf32> to vector<2x64xf32>
    %305 = arith.addf %304, %293 : vector<2x64xf32>
    %306 = arith.negf %305 : vector<2x64xf32>
    %307 = math.exp %306 : vector<2x64xf32>
    %cst_128 = arith.constant 1.000000e+00 : f32
    %308 = vector.broadcast %cst_128 : f32 to vector<2x64xf32>
    %309 = arith.addf %308, %307 : vector<2x64xf32>
    %310 = arith.divf %308, %309 : vector<2x64xf32>
    %311 = vector.extract_strided_slice %283 {offsets = [0, 0], sizes = [2, 64], strides = [1, 1]} : vector<16x64xf32> to vector<2x64xf32>
    %312 = arith.mulf %303, %296 : vector<2x64xf32>
    %313 = arith.addf %311, %312 : vector<2x64xf32>
    %314 = math.tanh %313 : vector<2x64xf32>
    %cst_129 = arith.constant 1.000000e+00 : f32
    %315 = vector.broadcast %cst_129 : f32 to vector<2x64xf32>
    %316 = arith.subf %315, %310 : vector<2x64xf32>
    %317 = arith.mulf %316, %314 : vector<2x64xf32>
    %318 = arith.mulf %310, %291 : vector<2x64xf32>
    %319 = arith.addf %317, %318 : vector<2x64xf32>
    %c0_130 = arith.constant 0 : index
    %c0_131 = arith.constant 0 : index
    %320 = vector.load %arg23[%c0_130, %c0_131] : memref<16x64xf32, #tpu.memory_space<vmem>>, vector<2x64xf32>
    tpu.vector_store %arg23[%c0_130, %c0_131], %319 {strides = array<i32>} : memref<16x64xf32, #tpu.memory_space<vmem>>, vector<2x64xf32>,
    %cst_132 = arith.constant dense<0.000000e+00> : vector<2x64xf32>
    %321 = tpu.matmul %319, %285, %cst_132 {dimension_numbers = #tpu.dot_dimension_numbers<[1], [0], [0], [1], [0, 0, 1, 1], [], []>} : vector<2x64xf32>, vector<64x64xf32>, vector<2x64xf32> -> vector<2x64xf32>
    %cst_133 = arith.constant dense<0.000000e+00> : vector<2x64xf32>
    %322 = tpu.matmul %319, %287, %cst_133 {dimension_numbers = #tpu.dot_dimension_numbers<[1], [0], [0], [1], [0, 0, 1, 1], [], []>} : vector<2x64xf32>, vector<64x64xf32>, vector<2x64xf32> -> vector<2x64xf32>
    %cst_134 = arith.constant dense<0.000000e+00> : vector<2x64xf32>
    %323 = tpu.matmul %319, %289, %cst_134 {dimension_numbers = #tpu.dot_dimension_numbers<[1], [0], [0], [1], [0, 0, 1, 1], [], []>} : vector<2x64xf32>, vector<64x64xf32>, vector<2x64xf32> -> vector<2x64xf32>
    %324 = vector.broadcast %290 : vector<1x64xf32> to vector<2x64xf32>
    %325 = arith.addf %323, %324 : vector<2x64xf32>
    %326 = vector.extract_strided_slice %269 {offsets = [2, 0], sizes = [2, 64], strides = [1, 1]} : vector<16x64xf32> to vector<2x64xf32>
    %327 = arith.addf %326, %321 : vector<2x64xf32>
    %328 = arith.negf %327 : vector<2x64xf32>
    %329 = math.exp %328 : vector<2x64xf32>
    %cst_135 = arith.constant 1.000000e+00 : f32
    %330 = vector.broadcast %cst_135 : f32 to vector<2x64xf32>
    %331 = arith.addf %330, %329 : vector<2x64xf32>
    %332 = arith.divf %330, %331 : vector<2x64xf32>
    %333 = vector.extract_strided_slice %276 {offsets = [2, 0], sizes = [2, 64], strides = [1, 1]} : vector<16x64xf32> to vector<2x64xf32>
    %334 = arith.addf %333, %322 : vector<2x64xf32>
    %335 = arith.negf %334 : vector<2x64xf32>
    %336 = math.exp %335 : vector<2x64xf32>
    %cst_136 = arith.constant 1.000000e+00 : f32
    %337 = vector.broadcast %cst_136 : f32 to vector<2x64xf32>
    %338 = arith.addf %337, %336 : vector<2x64xf32>
    %339 = arith.divf %337, %338 : vector<2x64xf32>
    %340 = vector.extract_strided_slice %283 {offsets = [2, 0], sizes = [2, 64], strides = [1, 1]} : vector<16x64xf32> to vector<2x64xf32>
    %341 = arith.mulf %332, %325 : vector<2x64xf32>
    %342 = arith.addf %340, %341 : vector<2x64xf32>
    %343 = math.tanh %342 : vector<2x64xf32>
    %cst_137 = arith.constant 1.000000e+00 : f32
    %344 = vector.broadcast %cst_137 : f32 to vector<2x64xf32>
    %345 = arith.subf %344, %339 : vector<2x64xf32>
    %346 = arith.mulf %345, %343 : vector<2x64xf32>
    %347 = arith.mulf %339, %319 : vector<2x64xf32>
    %348 = arith.addf %346, %347 : vector<2x64xf32>
    %c2_138 = arith.constant 2 : index
    %c0_139 = arith.constant 0 : index
    %349 = vector.load %arg23[%c2_138, %c0_139] : memref<16x64xf32, #tpu.memory_space<vmem>>, vector<2x64xf32>
    tpu.vector_store %arg23[%c2_138, %c0_139], %348 {strides = array<i32>} : memref<16x64xf32, #tpu.memory_space<vmem>>, vector<2x64xf32>,
    %cst_140 = arith.constant dense<0.000000e+00> : vector<2x64xf32>
    %350 = tpu.matmul %348, %285, %cst_140 {dimension_numbers = #tpu.dot_dimension_numbers<[1], [0], [0], [1], [0, 0, 1, 1], [], []>} : vector<2x64xf32>, vector<64x64xf32>, vector<2x64xf32> -> vector<2x64xf32>
    %cst_141 = arith.constant dense<0.000000e+00> : vector<2x64xf32>
    %351 = tpu.matmul %348, %287, %cst_141 {dimension_numbers = #tpu.dot_dimension_numbers<[1], [0], [0], [1], [0, 0, 1, 1], [], []>} : vector<2x64xf32>, vector<64x64xf32>, vector<2x64xf32> -> vector<2x64xf32>
    %cst_142 = arith.constant dense<0.000000e+00> : vector<2x64xf32>
    %352 = tpu.matmul %348, %289, %cst_142 {dimension_numbers = #tpu.dot_dimension_numbers<[1], [0], [0], [1], [0, 0, 1, 1], [], []>} : vector<2x64xf32>, vector<64x64xf32>, vector<2x64xf32> -> vector<2x64xf32>
    %353 = vector.broadcast %290 : vector<1x64xf32> to vector<2x64xf32>
    %354 = arith.addf %352, %353 : vector<2x64xf32>
    %355 = vector.extract_strided_slice %269 {offsets = [4, 0], sizes = [2, 64], strides = [1, 1]} : vector<16x64xf32> to vector<2x64xf32>
    %356 = arith.addf %355, %350 : vector<2x64xf32>
    %357 = arith.negf %356 : vector<2x64xf32>
    %358 = math.exp %357 : vector<2x64xf32>
    %cst_143 = arith.constant 1.000000e+00 : f32
    %359 = vector.broadcast %cst_143 : f32 to vector<2x64xf32>
    %360 = arith.addf %359, %358 : vector<2x64xf32>
    %361 = arith.divf %359, %360 : vector<2x64xf32>
    %362 = vector.extract_strided_slice %276 {offsets = [4, 0], sizes = [2, 64], strides = [1, 1]} : vector<16x64xf32> to vector<2x64xf32>
    %363 = arith.addf %362, %351 : vector<2x64xf32>
    %364 = arith.negf %363 : vector<2x64xf32>
    %365 = math.exp %364 : vector<2x64xf32>
    %cst_144 = arith.constant 1.000000e+00 : f32
    %366 = vector.broadcast %cst_144 : f32 to vector<2x64xf32>
    %367 = arith.addf %366, %365 : vector<2x64xf32>
    %368 = arith.divf %366, %367 : vector<2x64xf32>
    %369 = vector.extract_strided_slice %283 {offsets = [4, 0], sizes = [2, 64], strides = [1, 1]} : vector<16x64xf32> to vector<2x64xf32>
    %370 = arith.mulf %361, %354 : vector<2x64xf32>
    %371 = arith.addf %369, %370 : vector<2x64xf32>
    %372 = math.tanh %371 : vector<2x64xf32>
    %cst_145 = arith.constant 1.000000e+00 : f32
    %373 = vector.broadcast %cst_145 : f32 to vector<2x64xf32>
    %374 = arith.subf %373, %368 : vector<2x64xf32>
    %375 = arith.mulf %374, %372 : vector<2x64xf32>
    %376 = arith.mulf %368, %348 : vector<2x64xf32>
    %377 = arith.addf %375, %376 : vector<2x64xf32>
    %c4_146 = arith.constant 4 : index
    %c0_147 = arith.constant 0 : index
    %378 = vector.load %arg23[%c4_146, %c0_147] : memref<16x64xf32, #tpu.memory_space<vmem>>, vector<2x64xf32>
    tpu.vector_store %arg23[%c4_146, %c0_147], %377 {strides = array<i32>} : memref<16x64xf32, #tpu.memory_space<vmem>>, vector<2x64xf32>,
    %cst_148 = arith.constant dense<0.000000e+00> : vector<2x64xf32>
    %379 = tpu.matmul %377, %285, %cst_148 {dimension_numbers = #tpu.dot_dimension_numbers<[1], [0], [0], [1], [0, 0, 1, 1], [], []>} : vector<2x64xf32>, vector<64x64xf32>, vector<2x64xf32> -> vector<2x64xf32>
    %cst_149 = arith.constant dense<0.000000e+00> : vector<2x64xf32>
    %380 = tpu.matmul %377, %287, %cst_149 {dimension_numbers = #tpu.dot_dimension_numbers<[1], [0], [0], [1], [0, 0, 1, 1], [], []>} : vector<2x64xf32>, vector<64x64xf32>, vector<2x64xf32> -> vector<2x64xf32>
    %cst_150 = arith.constant dense<0.000000e+00> : vector<2x64xf32>
    %381 = tpu.matmul %377, %289, %cst_150 {dimension_numbers = #tpu.dot_dimension_numbers<[1], [0], [0], [1], [0, 0, 1, 1], [], []>} : vector<2x64xf32>, vector<64x64xf32>, vector<2x64xf32> -> vector<2x64xf32>
    %382 = vector.broadcast %290 : vector<1x64xf32> to vector<2x64xf32>
    %383 = arith.addf %381, %382 : vector<2x64xf32>
    %384 = vector.extract_strided_slice %269 {offsets = [6, 0], sizes = [2, 64], strides = [1, 1]} : vector<16x64xf32> to vector<2x64xf32>
    %385 = arith.addf %384, %379 : vector<2x64xf32>
    %386 = arith.negf %385 : vector<2x64xf32>
    %387 = math.exp %386 : vector<2x64xf32>
    %cst_151 = arith.constant 1.000000e+00 : f32
    %388 = vector.broadcast %cst_151 : f32 to vector<2x64xf32>
    %389 = arith.addf %388, %387 : vector<2x64xf32>
    %390 = arith.divf %388, %389 : vector<2x64xf32>
    %391 = vector.extract_strided_slice %276 {offsets = [6, 0], sizes = [2, 64], strides = [1, 1]} : vector<16x64xf32> to vector<2x64xf32>
    %392 = arith.addf %391, %380 : vector<2x64xf32>
    %393 = arith.negf %392 : vector<2x64xf32>
    %394 = math.exp %393 : vector<2x64xf32>
    %cst_152 = arith.constant 1.000000e+00 : f32
    %395 = vector.broadcast %cst_152 : f32 to vector<2x64xf32>
    %396 = arith.addf %395, %394 : vector<2x64xf32>
    %397 = arith.divf %395, %396 : vector<2x64xf32>
    %398 = vector.extract_strided_slice %283 {offsets = [6, 0], sizes = [2, 64], strides = [1, 1]} : vector<16x64xf32> to vector<2x64xf32>
    %399 = arith.mulf %390, %383 : vector<2x64xf32>
    %400 = arith.addf %398, %399 : vector<2x64xf32>
    %401 = math.tanh %400 : vector<2x64xf32>
    %cst_153 = arith.constant 1.000000e+00 : f32
    %402 = vector.broadcast %cst_153 : f32 to vector<2x64xf32>
    %403 = arith.subf %402, %397 : vector<2x64xf32>
    %404 = arith.mulf %403, %401 : vector<2x64xf32>
    %405 = arith.mulf %397, %377 : vector<2x64xf32>
    %406 = arith.addf %404, %405 : vector<2x64xf32>
    %c6_154 = arith.constant 6 : index
    %c0_155 = arith.constant 0 : index
    %407 = vector.load %arg23[%c6_154, %c0_155] : memref<16x64xf32, #tpu.memory_space<vmem>>, vector<2x64xf32>
    tpu.vector_store %arg23[%c6_154, %c0_155], %406 {strides = array<i32>} : memref<16x64xf32, #tpu.memory_space<vmem>>, vector<2x64xf32>,
    %cst_156 = arith.constant dense<0.000000e+00> : vector<2x64xf32>
    %408 = tpu.matmul %406, %285, %cst_156 {dimension_numbers = #tpu.dot_dimension_numbers<[1], [0], [0], [1], [0, 0, 1, 1], [], []>} : vector<2x64xf32>, vector<64x64xf32>, vector<2x64xf32> -> vector<2x64xf32>
    %cst_157 = arith.constant dense<0.000000e+00> : vector<2x64xf32>
    %409 = tpu.matmul %406, %287, %cst_157 {dimension_numbers = #tpu.dot_dimension_numbers<[1], [0], [0], [1], [0, 0, 1, 1], [], []>} : vector<2x64xf32>, vector<64x64xf32>, vector<2x64xf32> -> vector<2x64xf32>
    %cst_158 = arith.constant dense<0.000000e+00> : vector<2x64xf32>
    %410 = tpu.matmul %406, %289, %cst_158 {dimension_numbers = #tpu.dot_dimension_numbers<[1], [0], [0], [1], [0, 0, 1, 1], [], []>} : vector<2x64xf32>, vector<64x64xf32>, vector<2x64xf32> -> vector<2x64xf32>
    %411 = vector.broadcast %290 : vector<1x64xf32> to vector<2x64xf32>
    %412 = arith.addf %410, %411 : vector<2x64xf32>
    %413 = vector.extract_strided_slice %269 {offsets = [8, 0], sizes = [2, 64], strides = [1, 1]} : vector<16x64xf32> to vector<2x64xf32>
    %414 = arith.addf %413, %408 : vector<2x64xf32>
    %415 = arith.negf %414 : vector<2x64xf32>
    %416 = math.exp %415 : vector<2x64xf32>
    %cst_159 = arith.constant 1.000000e+00 : f32
    %417 = vector.broadcast %cst_159 : f32 to vector<2x64xf32>
    %418 = arith.addf %417, %416 : vector<2x64xf32>
    %419 = arith.divf %417, %418 : vector<2x64xf32>
    %420 = vector.extract_strided_slice %276 {offsets = [8, 0], sizes = [2, 64], strides = [1, 1]} : vector<16x64xf32> to vector<2x64xf32>
    %421 = arith.addf %420, %409 : vector<2x64xf32>
    %422 = arith.negf %421 : vector<2x64xf32>
    %423 = math.exp %422 : vector<2x64xf32>
    %cst_160 = arith.constant 1.000000e+00 : f32
    %424 = vector.broadcast %cst_160 : f32 to vector<2x64xf32>
    %425 = arith.addf %424, %423 : vector<2x64xf32>
    %426 = arith.divf %424, %425 : vector<2x64xf32>
    %427 = vector.extract_strided_slice %283 {offsets = [8, 0], sizes = [2, 64], strides = [1, 1]} : vector<16x64xf32> to vector<2x64xf32>
    %428 = arith.mulf %419, %412 : vector<2x64xf32>
    %429 = arith.addf %427, %428 : vector<2x64xf32>
    %430 = math.tanh %429 : vector<2x64xf32>
    %cst_161 = arith.constant 1.000000e+00 : f32
    %431 = vector.broadcast %cst_161 : f32 to vector<2x64xf32>
    %432 = arith.subf %431, %426 : vector<2x64xf32>
    %433 = arith.mulf %432, %430 : vector<2x64xf32>
    %434 = arith.mulf %426, %406 : vector<2x64xf32>
    %435 = arith.addf %433, %434 : vector<2x64xf32>
    %c8_162 = arith.constant 8 : index
    %c0_163 = arith.constant 0 : index
    %436 = vector.load %arg23[%c8_162, %c0_163] : memref<16x64xf32, #tpu.memory_space<vmem>>, vector<2x64xf32>
    tpu.vector_store %arg23[%c8_162, %c0_163], %435 {strides = array<i32>} : memref<16x64xf32, #tpu.memory_space<vmem>>, vector<2x64xf32>,
    %cst_164 = arith.constant dense<0.000000e+00> : vector<2x64xf32>
    %437 = tpu.matmul %435, %285, %cst_164 {dimension_numbers = #tpu.dot_dimension_numbers<[1], [0], [0], [1], [0, 0, 1, 1], [], []>} : vector<2x64xf32>, vector<64x64xf32>, vector<2x64xf32> -> vector<2x64xf32>
    %cst_165 = arith.constant dense<0.000000e+00> : vector<2x64xf32>
    %438 = tpu.matmul %435, %287, %cst_165 {dimension_numbers = #tpu.dot_dimension_numbers<[1], [0], [0], [1], [0, 0, 1, 1], [], []>} : vector<2x64xf32>, vector<64x64xf32>, vector<2x64xf32> -> vector<2x64xf32>
    %cst_166 = arith.constant dense<0.000000e+00> : vector<2x64xf32>
    %439 = tpu.matmul %435, %289, %cst_166 {dimension_numbers = #tpu.dot_dimension_numbers<[1], [0], [0], [1], [0, 0, 1, 1], [], []>} : vector<2x64xf32>, vector<64x64xf32>, vector<2x64xf32> -> vector<2x64xf32>
    %440 = vector.broadcast %290 : vector<1x64xf32> to vector<2x64xf32>
    %441 = arith.addf %439, %440 : vector<2x64xf32>
    %442 = vector.extract_strided_slice %269 {offsets = [10, 0], sizes = [2, 64], strides = [1, 1]} : vector<16x64xf32> to vector<2x64xf32>
    %443 = arith.addf %442, %437 : vector<2x64xf32>
    %444 = arith.negf %443 : vector<2x64xf32>
    %445 = math.exp %444 : vector<2x64xf32>
    %cst_167 = arith.constant 1.000000e+00 : f32
    %446 = vector.broadcast %cst_167 : f32 to vector<2x64xf32>
    %447 = arith.addf %446, %445 : vector<2x64xf32>
    %448 = arith.divf %446, %447 : vector<2x64xf32>
    %449 = vector.extract_strided_slice %276 {offsets = [10, 0], sizes = [2, 64], strides = [1, 1]} : vector<16x64xf32> to vector<2x64xf32>
    %450 = arith.addf %449, %438 : vector<2x64xf32>
    %451 = arith.negf %450 : vector<2x64xf32>
    %452 = math.exp %451 : vector<2x64xf32>
    %cst_168 = arith.constant 1.000000e+00 : f32
    %453 = vector.broadcast %cst_168 : f32 to vector<2x64xf32>
    %454 = arith.addf %453, %452 : vector<2x64xf32>
    %455 = arith.divf %453, %454 : vector<2x64xf32>
    %456 = vector.extract_strided_slice %283 {offsets = [10, 0], sizes = [2, 64], strides = [1, 1]} : vector<16x64xf32> to vector<2x64xf32>
    %457 = arith.mulf %448, %441 : vector<2x64xf32>
    %458 = arith.addf %456, %457 : vector<2x64xf32>
    %459 = math.tanh %458 : vector<2x64xf32>
    %cst_169 = arith.constant 1.000000e+00 : f32
    %460 = vector.broadcast %cst_169 : f32 to vector<2x64xf32>
    %461 = arith.subf %460, %455 : vector<2x64xf32>
    %462 = arith.mulf %461, %459 : vector<2x64xf32>
    %463 = arith.mulf %455, %435 : vector<2x64xf32>
    %464 = arith.addf %462, %463 : vector<2x64xf32>
    %c10_170 = arith.constant 10 : index
    %c0_171 = arith.constant 0 : index
    %465 = vector.load %arg23[%c10_170, %c0_171] : memref<16x64xf32, #tpu.memory_space<vmem>>, vector<2x64xf32>
    tpu.vector_store %arg23[%c10_170, %c0_171], %464 {strides = array<i32>} : memref<16x64xf32, #tpu.memory_space<vmem>>, vector<2x64xf32>,
    %cst_172 = arith.constant dense<0.000000e+00> : vector<2x64xf32>
    %466 = tpu.matmul %464, %285, %cst_172 {dimension_numbers = #tpu.dot_dimension_numbers<[1], [0], [0], [1], [0, 0, 1, 1], [], []>} : vector<2x64xf32>, vector<64x64xf32>, vector<2x64xf32> -> vector<2x64xf32>
    %cst_173 = arith.constant dense<0.000000e+00> : vector<2x64xf32>
    %467 = tpu.matmul %464, %287, %cst_173 {dimension_numbers = #tpu.dot_dimension_numbers<[1], [0], [0], [1], [0, 0, 1, 1], [], []>} : vector<2x64xf32>, vector<64x64xf32>, vector<2x64xf32> -> vector<2x64xf32>
    %cst_174 = arith.constant dense<0.000000e+00> : vector<2x64xf32>
    %468 = tpu.matmul %464, %289, %cst_174 {dimension_numbers = #tpu.dot_dimension_numbers<[1], [0], [0], [1], [0, 0, 1, 1], [], []>} : vector<2x64xf32>, vector<64x64xf32>, vector<2x64xf32> -> vector<2x64xf32>
    %469 = vector.broadcast %290 : vector<1x64xf32> to vector<2x64xf32>
    %470 = arith.addf %468, %469 : vector<2x64xf32>
    %471 = vector.extract_strided_slice %269 {offsets = [12, 0], sizes = [2, 64], strides = [1, 1]} : vector<16x64xf32> to vector<2x64xf32>
    %472 = arith.addf %471, %466 : vector<2x64xf32>
    %473 = arith.negf %472 : vector<2x64xf32>
    %474 = math.exp %473 : vector<2x64xf32>
    %cst_175 = arith.constant 1.000000e+00 : f32
    %475 = vector.broadcast %cst_175 : f32 to vector<2x64xf32>
    %476 = arith.addf %475, %474 : vector<2x64xf32>
    %477 = arith.divf %475, %476 : vector<2x64xf32>
    %478 = vector.extract_strided_slice %276 {offsets = [12, 0], sizes = [2, 64], strides = [1, 1]} : vector<16x64xf32> to vector<2x64xf32>
    %479 = arith.addf %478, %467 : vector<2x64xf32>
    %480 = arith.negf %479 : vector<2x64xf32>
    %481 = math.exp %480 : vector<2x64xf32>
    %cst_176 = arith.constant 1.000000e+00 : f32
    %482 = vector.broadcast %cst_176 : f32 to vector<2x64xf32>
    %483 = arith.addf %482, %481 : vector<2x64xf32>
    %484 = arith.divf %482, %483 : vector<2x64xf32>
    %485 = vector.extract_strided_slice %283 {offsets = [12, 0], sizes = [2, 64], strides = [1, 1]} : vector<16x64xf32> to vector<2x64xf32>
    %486 = arith.mulf %477, %470 : vector<2x64xf32>
    %487 = arith.addf %485, %486 : vector<2x64xf32>
    %488 = math.tanh %487 : vector<2x64xf32>
    %cst_177 = arith.constant 1.000000e+00 : f32
    %489 = vector.broadcast %cst_177 : f32 to vector<2x64xf32>
    %490 = arith.subf %489, %484 : vector<2x64xf32>
    %491 = arith.mulf %490, %488 : vector<2x64xf32>
    %492 = arith.mulf %484, %464 : vector<2x64xf32>
    %493 = arith.addf %491, %492 : vector<2x64xf32>
    %c12_178 = arith.constant 12 : index
    %c0_179 = arith.constant 0 : index
    %494 = vector.load %arg23[%c12_178, %c0_179] : memref<16x64xf32, #tpu.memory_space<vmem>>, vector<2x64xf32>
    tpu.vector_store %arg23[%c12_178, %c0_179], %493 {strides = array<i32>} : memref<16x64xf32, #tpu.memory_space<vmem>>, vector<2x64xf32>,
    %cst_180 = arith.constant dense<0.000000e+00> : vector<2x64xf32>
    %495 = tpu.matmul %493, %285, %cst_180 {dimension_numbers = #tpu.dot_dimension_numbers<[1], [0], [0], [1], [0, 0, 1, 1], [], []>} : vector<2x64xf32>, vector<64x64xf32>, vector<2x64xf32> -> vector<2x64xf32>
    %cst_181 = arith.constant dense<0.000000e+00> : vector<2x64xf32>
    %496 = tpu.matmul %493, %287, %cst_181 {dimension_numbers = #tpu.dot_dimension_numbers<[1], [0], [0], [1], [0, 0, 1, 1], [], []>} : vector<2x64xf32>, vector<64x64xf32>, vector<2x64xf32> -> vector<2x64xf32>
    %cst_182 = arith.constant dense<0.000000e+00> : vector<2x64xf32>
    %497 = tpu.matmul %493, %289, %cst_182 {dimension_numbers = #tpu.dot_dimension_numbers<[1], [0], [0], [1], [0, 0, 1, 1], [], []>} : vector<2x64xf32>, vector<64x64xf32>, vector<2x64xf32> -> vector<2x64xf32>
    %498 = vector.broadcast %290 : vector<1x64xf32> to vector<2x64xf32>
    %499 = arith.addf %497, %498 : vector<2x64xf32>
    %500 = vector.extract_strided_slice %269 {offsets = [14, 0], sizes = [2, 64], strides = [1, 1]} : vector<16x64xf32> to vector<2x64xf32>
    %501 = arith.addf %500, %495 : vector<2x64xf32>
    %502 = arith.negf %501 : vector<2x64xf32>
    %503 = math.exp %502 : vector<2x64xf32>
    %cst_183 = arith.constant 1.000000e+00 : f32
    %504 = vector.broadcast %cst_183 : f32 to vector<2x64xf32>
    %505 = arith.addf %504, %503 : vector<2x64xf32>
    %506 = arith.divf %504, %505 : vector<2x64xf32>
    %507 = vector.extract_strided_slice %276 {offsets = [14, 0], sizes = [2, 64], strides = [1, 1]} : vector<16x64xf32> to vector<2x64xf32>
    %508 = arith.addf %507, %496 : vector<2x64xf32>
    %509 = arith.negf %508 : vector<2x64xf32>
    %510 = math.exp %509 : vector<2x64xf32>
    %cst_184 = arith.constant 1.000000e+00 : f32
    %511 = vector.broadcast %cst_184 : f32 to vector<2x64xf32>
    %512 = arith.addf %511, %510 : vector<2x64xf32>
    %513 = arith.divf %511, %512 : vector<2x64xf32>
    %514 = vector.extract_strided_slice %283 {offsets = [14, 0], sizes = [2, 64], strides = [1, 1]} : vector<16x64xf32> to vector<2x64xf32>
    %515 = arith.mulf %506, %499 : vector<2x64xf32>
    %516 = arith.addf %514, %515 : vector<2x64xf32>
    %517 = math.tanh %516 : vector<2x64xf32>
    %cst_185 = arith.constant 1.000000e+00 : f32
    %518 = vector.broadcast %cst_185 : f32 to vector<2x64xf32>
    %519 = arith.subf %518, %513 : vector<2x64xf32>
    %520 = arith.mulf %519, %517 : vector<2x64xf32>
    %521 = arith.mulf %513, %493 : vector<2x64xf32>
    %522 = arith.addf %520, %521 : vector<2x64xf32>
    %c14_186 = arith.constant 14 : index
    %c0_187 = arith.constant 0 : index
    %523 = vector.load %arg23[%c14_186, %c0_187] : memref<16x64xf32, #tpu.memory_space<vmem>>, vector<2x64xf32>
    tpu.vector_store %arg23[%c14_186, %c0_187], %522 {strides = array<i32>} : memref<16x64xf32, #tpu.memory_space<vmem>>, vector<2x64xf32>,
    %c0_188 = arith.constant 0 : index
    %c0_189 = arith.constant 0 : index
    %524 = vector.load %arg23[%c0_188, %c0_189] : memref<16x64xf32, #tpu.memory_space<vmem>>, vector<16x64xf32>
    %c0_190 = arith.constant 0 : index
    %c0_191 = arith.constant 0 : index
    %c0_192 = arith.constant 0 : index
    %525 = vector.load %arg9[%c0_190, %c0_191, %c0_192] : memref<3x64x64xf32, #tpu.memory_space<vmem>>, vector<1x64x64xf32>
    %526 = vector.shape_cast %525 : vector<1x64x64xf32> to vector<64x64xf32>
    %cst_193 = arith.constant dense<0.000000e+00> : vector<16x64xf32>
    %527 = tpu.matmul %524, %526, %cst_193 {dimension_numbers = #tpu.dot_dimension_numbers<[1], [0], [0], [1], [0, 0, 1, 1], [], []>} : vector<16x64xf32>, vector<64x64xf32>, vector<16x64xf32> -> vector<16x64xf32>
    %c0_194 = arith.constant 0 : index
    %c0_195 = arith.constant 0 : index
    %c0_196 = arith.constant 0 : index
    %528 = vector.load %arg11[%c0_194, %c0_195, %c0_196] : memref<3x1x64xf32, #tpu.memory_space<vmem>>, vector<1x1x64xf32>
    %529 = vector.shape_cast %528 : vector<1x1x64xf32> to vector<1x64xf32>
    %530 = vector.broadcast %529 : vector<1x64xf32> to vector<16x64xf32>
    %531 = arith.addf %527, %530 : vector<16x64xf32>
    %c1_197 = arith.constant 1 : index
    %c0_198 = arith.constant 0 : index
    %c0_199 = arith.constant 0 : index
    %532 = vector.load %arg9[%c1_197, %c0_198, %c0_199] : memref<3x64x64xf32, #tpu.memory_space<vmem>>, vector<1x64x64xf32>
    %533 = vector.shape_cast %532 : vector<1x64x64xf32> to vector<64x64xf32>
    %cst_200 = arith.constant dense<0.000000e+00> : vector<16x64xf32>
    %534 = tpu.matmul %524, %533, %cst_200 {dimension_numbers = #tpu.dot_dimension_numbers<[1], [0], [0], [1], [0, 0, 1, 1], [], []>} : vector<16x64xf32>, vector<64x64xf32>, vector<16x64xf32> -> vector<16x64xf32>
    %c1_201 = arith.constant 1 : index
    %c0_202 = arith.constant 0 : index
    %c0_203 = arith.constant 0 : index
    %535 = vector.load %arg11[%c1_201, %c0_202, %c0_203] : memref<3x1x64xf32, #tpu.memory_space<vmem>>, vector<1x1x64xf32>
    %536 = vector.shape_cast %535 : vector<1x1x64xf32> to vector<1x64xf32>
    %537 = vector.broadcast %536 : vector<1x64xf32> to vector<16x64xf32>
    %538 = arith.addf %534, %537 : vector<16x64xf32>
    %c2_204 = arith.constant 2 : index
    %c0_205 = arith.constant 0 : index
    %c0_206 = arith.constant 0 : index
    %539 = vector.load %arg9[%c2_204, %c0_205, %c0_206] : memref<3x64x64xf32, #tpu.memory_space<vmem>>, vector<1x64x64xf32>
    %540 = vector.shape_cast %539 : vector<1x64x64xf32> to vector<64x64xf32>
    %cst_207 = arith.constant dense<0.000000e+00> : vector<16x64xf32>
    %541 = tpu.matmul %524, %540, %cst_207 {dimension_numbers = #tpu.dot_dimension_numbers<[1], [0], [0], [1], [0, 0, 1, 1], [], []>} : vector<16x64xf32>, vector<64x64xf32>, vector<16x64xf32> -> vector<16x64xf32>
    %c2_208 = arith.constant 2 : index
    %c0_209 = arith.constant 0 : index
    %c0_210 = arith.constant 0 : index
    %542 = vector.load %arg11[%c2_208, %c0_209, %c0_210] : memref<3x1x64xf32, #tpu.memory_space<vmem>>, vector<1x1x64xf32>
    %543 = vector.shape_cast %542 : vector<1x1x64xf32> to vector<1x64xf32>
    %544 = vector.broadcast %543 : vector<1x64xf32> to vector<16x64xf32>
    %545 = arith.addf %541, %544 : vector<16x64xf32>
    %c0_211 = arith.constant 0 : index
    %c0_212 = arith.constant 0 : index
    %c0_213 = arith.constant 0 : index
    %546 = vector.load %arg10[%c0_211, %c0_212, %c0_213] : memref<3x64x64xf32, #tpu.memory_space<vmem>>, vector<1x64x64xf32>
    %547 = vector.shape_cast %546 : vector<1x64x64xf32> to vector<64x64xf32>
    %c1_214 = arith.constant 1 : index
    %c0_215 = arith.constant 0 : index
    %c0_216 = arith.constant 0 : index
    %548 = vector.load %arg10[%c1_214, %c0_215, %c0_216] : memref<3x64x64xf32, #tpu.memory_space<vmem>>, vector<1x64x64xf32>
    %549 = vector.shape_cast %548 : vector<1x64x64xf32> to vector<64x64xf32>
    %c2_217 = arith.constant 2 : index
    %c0_218 = arith.constant 0 : index
    %c0_219 = arith.constant 0 : index
    %550 = vector.load %arg10[%c2_217, %c0_218, %c0_219] : memref<3x64x64xf32, #tpu.memory_space<vmem>>, vector<1x64x64xf32>
    %551 = vector.shape_cast %550 : vector<1x64x64xf32> to vector<64x64xf32>
    %c0_220 = arith.constant 0 : index
    %c0_221 = arith.constant 0 : index
    %552 = vector.load %arg12[%c0_220, %c0_221] : memref<1x64xf32, #tpu.memory_space<vmem>>, vector<1x64xf32>
    %cst_222 = arith.constant 0.000000e+00 : f32
    %553 = vector.broadcast %cst_222 : f32 to vector<2x64xf32>
    %cst_223 = arith.constant dense<0.000000e+00> : vector<2x64xf32>
    %554 = tpu.matmul %553, %547, %cst_223 {dimension_numbers = #tpu.dot_dimension_numbers<[1], [0], [0], [1], [0, 0, 1, 1], [], []>} : vector<2x64xf32>, vector<64x64xf32>, vector<2x64xf32> -> vector<2x64xf32>
    %cst_224 = arith.constant dense<0.000000e+00> : vector<2x64xf32>
    %555 = tpu.matmul %553, %549, %cst_224 {dimension_numbers = #tpu.dot_dimension_numbers<[1], [0], [0], [1], [0, 0, 1, 1], [], []>} : vector<2x64xf32>, vector<64x64xf32>, vector<2x64xf32> -> vector<2x64xf32>
    %cst_225 = arith.constant dense<0.000000e+00> : vector<2x64xf32>
    %556 = tpu.matmul %553, %551, %cst_225 {dimension_numbers = #tpu.dot_dimension_numbers<[1], [0], [0], [1], [0, 0, 1, 1], [], []>} : vector<2x64xf32>, vector<64x64xf32>, vector<2x64xf32> -> vector<2x64xf32>
    %557 = vector.broadcast %552 : vector<1x64xf32> to vector<2x64xf32>
    %558 = arith.addf %556, %557 : vector<2x64xf32>
    %559 = vector.extract_strided_slice %531 {offsets = [0, 0], sizes = [2, 64], strides = [1, 1]} : vector<16x64xf32> to vector<2x64xf32>
    %560 = arith.addf %559, %554 : vector<2x64xf32>
    %561 = arith.negf %560 : vector<2x64xf32>
    %562 = math.exp %561 : vector<2x64xf32>
    %cst_226 = arith.constant 1.000000e+00 : f32
    %563 = vector.broadcast %cst_226 : f32 to vector<2x64xf32>
    %564 = arith.addf %563, %562 : vector<2x64xf32>
    %565 = arith.divf %563, %564 : vector<2x64xf32>
    %566 = vector.extract_strided_slice %538 {offsets = [0, 0], sizes = [2, 64], strides = [1, 1]} : vector<16x64xf32> to vector<2x64xf32>
    %567 = arith.addf %566, %555 : vector<2x64xf32>
    %568 = arith.negf %567 : vector<2x64xf32>
    %569 = math.exp %568 : vector<2x64xf32>
    %cst_227 = arith.constant 1.000000e+00 : f32
    %570 = vector.broadcast %cst_227 : f32 to vector<2x64xf32>
    %571 = arith.addf %570, %569 : vector<2x64xf32>
    %572 = arith.divf %570, %571 : vector<2x64xf32>
    %573 = vector.extract_strided_slice %545 {offsets = [0, 0], sizes = [2, 64], strides = [1, 1]} : vector<16x64xf32> to vector<2x64xf32>
    %574 = arith.mulf %565, %558 : vector<2x64xf32>
    %575 = arith.addf %573, %574 : vector<2x64xf32>
    %576 = math.tanh %575 : vector<2x64xf32>
    %cst_228 = arith.constant 1.000000e+00 : f32
    %577 = vector.broadcast %cst_228 : f32 to vector<2x64xf32>
    %578 = arith.subf %577, %572 : vector<2x64xf32>
    %579 = arith.mulf %578, %576 : vector<2x64xf32>
    %580 = arith.mulf %572, %553 : vector<2x64xf32>
    %581 = arith.addf %579, %580 : vector<2x64xf32>
    %c0_229 = arith.constant 0 : index
    %c0_230 = arith.constant 0 : index
    %582 = vector.load %arg22[%c0_229, %c0_230] : memref<16x64xf32, #tpu.memory_space<vmem>>, vector<2x64xf32>
    tpu.vector_store %arg22[%c0_229, %c0_230], %581 {strides = array<i32>} : memref<16x64xf32, #tpu.memory_space<vmem>>, vector<2x64xf32>,
    %cst_231 = arith.constant dense<0.000000e+00> : vector<2x64xf32>
    %583 = tpu.matmul %581, %547, %cst_231 {dimension_numbers = #tpu.dot_dimension_numbers<[1], [0], [0], [1], [0, 0, 1, 1], [], []>} : vector<2x64xf32>, vector<64x64xf32>, vector<2x64xf32> -> vector<2x64xf32>
    %cst_232 = arith.constant dense<0.000000e+00> : vector<2x64xf32>
    %584 = tpu.matmul %581, %549, %cst_232 {dimension_numbers = #tpu.dot_dimension_numbers<[1], [0], [0], [1], [0, 0, 1, 1], [], []>} : vector<2x64xf32>, vector<64x64xf32>, vector<2x64xf32> -> vector<2x64xf32>
    %cst_233 = arith.constant dense<0.000000e+00> : vector<2x64xf32>
    %585 = tpu.matmul %581, %551, %cst_233 {dimension_numbers = #tpu.dot_dimension_numbers<[1], [0], [0], [1], [0, 0, 1, 1], [], []>} : vector<2x64xf32>, vector<64x64xf32>, vector<2x64xf32> -> vector<2x64xf32>
    %586 = vector.broadcast %552 : vector<1x64xf32> to vector<2x64xf32>
    %587 = arith.addf %585, %586 : vector<2x64xf32>
    %588 = vector.extract_strided_slice %531 {offsets = [2, 0], sizes = [2, 64], strides = [1, 1]} : vector<16x64xf32> to vector<2x64xf32>
    %589 = arith.addf %588, %583 : vector<2x64xf32>
    %590 = arith.negf %589 : vector<2x64xf32>
    %591 = math.exp %590 : vector<2x64xf32>
    %cst_234 = arith.constant 1.000000e+00 : f32
    %592 = vector.broadcast %cst_234 : f32 to vector<2x64xf32>
    %593 = arith.addf %592, %591 : vector<2x64xf32>
    %594 = arith.divf %592, %593 : vector<2x64xf32>
    %595 = vector.extract_strided_slice %538 {offsets = [2, 0], sizes = [2, 64], strides = [1, 1]} : vector<16x64xf32> to vector<2x64xf32>
    %596 = arith.addf %595, %584 : vector<2x64xf32>
    %597 = arith.negf %596 : vector<2x64xf32>
    %598 = math.exp %597 : vector<2x64xf32>
    %cst_235 = arith.constant 1.000000e+00 : f32
    %599 = vector.broadcast %cst_235 : f32 to vector<2x64xf32>
    %600 = arith.addf %599, %598 : vector<2x64xf32>
    %601 = arith.divf %599, %600 : vector<2x64xf32>
    %602 = vector.extract_strided_slice %545 {offsets = [2, 0], sizes = [2, 64], strides = [1, 1]} : vector<16x64xf32> to vector<2x64xf32>
    %603 = arith.mulf %594, %587 : vector<2x64xf32>
    %604 = arith.addf %602, %603 : vector<2x64xf32>
    %605 = math.tanh %604 : vector<2x64xf32>
    %cst_236 = arith.constant 1.000000e+00 : f32
    %606 = vector.broadcast %cst_236 : f32 to vector<2x64xf32>
    %607 = arith.subf %606, %601 : vector<2x64xf32>
    %608 = arith.mulf %607, %605 : vector<2x64xf32>
    %609 = arith.mulf %601, %581 : vector<2x64xf32>
    %610 = arith.addf %608, %609 : vector<2x64xf32>
    %c2_237 = arith.constant 2 : index
    %c0_238 = arith.constant 0 : index
    %611 = vector.load %arg22[%c2_237, %c0_238] : memref<16x64xf32, #tpu.memory_space<vmem>>, vector<2x64xf32>
    tpu.vector_store %arg22[%c2_237, %c0_238], %610 {strides = array<i32>} : memref<16x64xf32, #tpu.memory_space<vmem>>, vector<2x64xf32>,
    %cst_239 = arith.constant dense<0.000000e+00> : vector<2x64xf32>
    %612 = tpu.matmul %610, %547, %cst_239 {dimension_numbers = #tpu.dot_dimension_numbers<[1], [0], [0], [1], [0, 0, 1, 1], [], []>} : vector<2x64xf32>, vector<64x64xf32>, vector<2x64xf32> -> vector<2x64xf32>
    %cst_240 = arith.constant dense<0.000000e+00> : vector<2x64xf32>
    %613 = tpu.matmul %610, %549, %cst_240 {dimension_numbers = #tpu.dot_dimension_numbers<[1], [0], [0], [1], [0, 0, 1, 1], [], []>} : vector<2x64xf32>, vector<64x64xf32>, vector<2x64xf32> -> vector<2x64xf32>
    %cst_241 = arith.constant dense<0.000000e+00> : vector<2x64xf32>
    %614 = tpu.matmul %610, %551, %cst_241 {dimension_numbers = #tpu.dot_dimension_numbers<[1], [0], [0], [1], [0, 0, 1, 1], [], []>} : vector<2x64xf32>, vector<64x64xf32>, vector<2x64xf32> -> vector<2x64xf32>
    %615 = vector.broadcast %552 : vector<1x64xf32> to vector<2x64xf32>
    %616 = arith.addf %614, %615 : vector<2x64xf32>
    %617 = vector.extract_strided_slice %531 {offsets = [4, 0], sizes = [2, 64], strides = [1, 1]} : vector<16x64xf32> to vector<2x64xf32>
    %618 = arith.addf %617, %612 : vector<2x64xf32>
    %619 = arith.negf %618 : vector<2x64xf32>
    %620 = math.exp %619 : vector<2x64xf32>
    %cst_242 = arith.constant 1.000000e+00 : f32
    %621 = vector.broadcast %cst_242 : f32 to vector<2x64xf32>
    %622 = arith.addf %621, %620 : vector<2x64xf32>
    %623 = arith.divf %621, %622 : vector<2x64xf32>
    %624 = vector.extract_strided_slice %538 {offsets = [4, 0], sizes = [2, 64], strides = [1, 1]} : vector<16x64xf32> to vector<2x64xf32>
    %625 = arith.addf %624, %613 : vector<2x64xf32>
    %626 = arith.negf %625 : vector<2x64xf32>
    %627 = math.exp %626 : vector<2x64xf32>
    %cst_243 = arith.constant 1.000000e+00 : f32
    %628 = vector.broadcast %cst_243 : f32 to vector<2x64xf32>
    %629 = arith.addf %628, %627 : vector<2x64xf32>
    %630 = arith.divf %628, %629 : vector<2x64xf32>
    %631 = vector.extract_strided_slice %545 {offsets = [4, 0], sizes = [2, 64], strides = [1, 1]} : vector<16x64xf32> to vector<2x64xf32>
    %632 = arith.mulf %623, %616 : vector<2x64xf32>
    %633 = arith.addf %631, %632 : vector<2x64xf32>
    %634 = math.tanh %633 : vector<2x64xf32>
    %cst_244 = arith.constant 1.000000e+00 : f32
    %635 = vector.broadcast %cst_244 : f32 to vector<2x64xf32>
    %636 = arith.subf %635, %630 : vector<2x64xf32>
    %637 = arith.mulf %636, %634 : vector<2x64xf32>
    %638 = arith.mulf %630, %610 : vector<2x64xf32>
    %639 = arith.addf %637, %638 : vector<2x64xf32>
    %c4_245 = arith.constant 4 : index
    %c0_246 = arith.constant 0 : index
    %640 = vector.load %arg22[%c4_245, %c0_246] : memref<16x64xf32, #tpu.memory_space<vmem>>, vector<2x64xf32>
    tpu.vector_store %arg22[%c4_245, %c0_246], %639 {strides = array<i32>} : memref<16x64xf32, #tpu.memory_space<vmem>>, vector<2x64xf32>,
    %cst_247 = arith.constant dense<0.000000e+00> : vector<2x64xf32>
    %641 = tpu.matmul %639, %547, %cst_247 {dimension_numbers = #tpu.dot_dimension_numbers<[1], [0], [0], [1], [0, 0, 1, 1], [], []>} : vector<2x64xf32>, vector<64x64xf32>, vector<2x64xf32> -> vector<2x64xf32>
    %cst_248 = arith.constant dense<0.000000e+00> : vector<2x64xf32>
    %642 = tpu.matmul %639, %549, %cst_248 {dimension_numbers = #tpu.dot_dimension_numbers<[1], [0], [0], [1], [0, 0, 1, 1], [], []>} : vector<2x64xf32>, vector<64x64xf32>, vector<2x64xf32> -> vector<2x64xf32>
    %cst_249 = arith.constant dense<0.000000e+00> : vector<2x64xf32>
    %643 = tpu.matmul %639, %551, %cst_249 {dimension_numbers = #tpu.dot_dimension_numbers<[1], [0], [0], [1], [0, 0, 1, 1], [], []>} : vector<2x64xf32>, vector<64x64xf32>, vector<2x64xf32> -> vector<2x64xf32>
    %644 = vector.broadcast %552 : vector<1x64xf32> to vector<2x64xf32>
    %645 = arith.addf %643, %644 : vector<2x64xf32>
    %646 = vector.extract_strided_slice %531 {offsets = [6, 0], sizes = [2, 64], strides = [1, 1]} : vector<16x64xf32> to vector<2x64xf32>
    %647 = arith.addf %646, %641 : vector<2x64xf32>
    %648 = arith.negf %647 : vector<2x64xf32>
    %649 = math.exp %648 : vector<2x64xf32>
    %cst_250 = arith.constant 1.000000e+00 : f32
    %650 = vector.broadcast %cst_250 : f32 to vector<2x64xf32>
    %651 = arith.addf %650, %649 : vector<2x64xf32>
    %652 = arith.divf %650, %651 : vector<2x64xf32>
    %653 = vector.extract_strided_slice %538 {offsets = [6, 0], sizes = [2, 64], strides = [1, 1]} : vector<16x64xf32> to vector<2x64xf32>
    %654 = arith.addf %653, %642 : vector<2x64xf32>
    %655 = arith.negf %654 : vector<2x64xf32>
    %656 = math.exp %655 : vector<2x64xf32>
    %cst_251 = arith.constant 1.000000e+00 : f32
    %657 = vector.broadcast %cst_251 : f32 to vector<2x64xf32>
    %658 = arith.addf %657, %656 : vector<2x64xf32>
    %659 = arith.divf %657, %658 : vector<2x64xf32>
    %660 = vector.extract_strided_slice %545 {offsets = [6, 0], sizes = [2, 64], strides = [1, 1]} : vector<16x64xf32> to vector<2x64xf32>
    %661 = arith.mulf %652, %645 : vector<2x64xf32>
    %662 = arith.addf %660, %661 : vector<2x64xf32>
    %663 = math.tanh %662 : vector<2x64xf32>
    %cst_252 = arith.constant 1.000000e+00 : f32
    %664 = vector.broadcast %cst_252 : f32 to vector<2x64xf32>
    %665 = arith.subf %664, %659 : vector<2x64xf32>
    %666 = arith.mulf %665, %663 : vector<2x64xf32>
    %667 = arith.mulf %659, %639 : vector<2x64xf32>
    %668 = arith.addf %666, %667 : vector<2x64xf32>
    %c6_253 = arith.constant 6 : index
    %c0_254 = arith.constant 0 : index
    %669 = vector.load %arg22[%c6_253, %c0_254] : memref<16x64xf32, #tpu.memory_space<vmem>>, vector<2x64xf32>
    tpu.vector_store %arg22[%c6_253, %c0_254], %668 {strides = array<i32>} : memref<16x64xf32, #tpu.memory_space<vmem>>, vector<2x64xf32>,
    %cst_255 = arith.constant dense<0.000000e+00> : vector<2x64xf32>
    %670 = tpu.matmul %668, %547, %cst_255 {dimension_numbers = #tpu.dot_dimension_numbers<[1], [0], [0], [1], [0, 0, 1, 1], [], []>} : vector<2x64xf32>, vector<64x64xf32>, vector<2x64xf32> -> vector<2x64xf32>
    %cst_256 = arith.constant dense<0.000000e+00> : vector<2x64xf32>
    %671 = tpu.matmul %668, %549, %cst_256 {dimension_numbers = #tpu.dot_dimension_numbers<[1], [0], [0], [1], [0, 0, 1, 1], [], []>} : vector<2x64xf32>, vector<64x64xf32>, vector<2x64xf32> -> vector<2x64xf32>
    %cst_257 = arith.constant dense<0.000000e+00> : vector<2x64xf32>
    %672 = tpu.matmul %668, %551, %cst_257 {dimension_numbers = #tpu.dot_dimension_numbers<[1], [0], [0], [1], [0, 0, 1, 1], [], []>} : vector<2x64xf32>, vector<64x64xf32>, vector<2x64xf32> -> vector<2x64xf32>
    %673 = vector.broadcast %552 : vector<1x64xf32> to vector<2x64xf32>
    %674 = arith.addf %672, %673 : vector<2x64xf32>
    %675 = vector.extract_strided_slice %531 {offsets = [8, 0], sizes = [2, 64], strides = [1, 1]} : vector<16x64xf32> to vector<2x64xf32>
    %676 = arith.addf %675, %670 : vector<2x64xf32>
    %677 = arith.negf %676 : vector<2x64xf32>
    %678 = math.exp %677 : vector<2x64xf32>
    %cst_258 = arith.constant 1.000000e+00 : f32
    %679 = vector.broadcast %cst_258 : f32 to vector<2x64xf32>
    %680 = arith.addf %679, %678 : vector<2x64xf32>
    %681 = arith.divf %679, %680 : vector<2x64xf32>
    %682 = vector.extract_strided_slice %538 {offsets = [8, 0], sizes = [2, 64], strides = [1, 1]} : vector<16x64xf32> to vector<2x64xf32>
    %683 = arith.addf %682, %671 : vector<2x64xf32>
    %684 = arith.negf %683 : vector<2x64xf32>
    %685 = math.exp %684 : vector<2x64xf32>
    %cst_259 = arith.constant 1.000000e+00 : f32
    %686 = vector.broadcast %cst_259 : f32 to vector<2x64xf32>
    %687 = arith.addf %686, %685 : vector<2x64xf32>
    %688 = arith.divf %686, %687 : vector<2x64xf32>
    %689 = vector.extract_strided_slice %545 {offsets = [8, 0], sizes = [2, 64], strides = [1, 1]} : vector<16x64xf32> to vector<2x64xf32>
    %690 = arith.mulf %681, %674 : vector<2x64xf32>
    %691 = arith.addf %689, %690 : vector<2x64xf32>
    %692 = math.tanh %691 : vector<2x64xf32>
    %cst_260 = arith.constant 1.000000e+00 : f32
    %693 = vector.broadcast %cst_260 : f32 to vector<2x64xf32>
    %694 = arith.subf %693, %688 : vector<2x64xf32>
    %695 = arith.mulf %694, %692 : vector<2x64xf32>
    %696 = arith.mulf %688, %668 : vector<2x64xf32>
    %697 = arith.addf %695, %696 : vector<2x64xf32>
    %c8_261 = arith.constant 8 : index
    %c0_262 = arith.constant 0 : index
    %698 = vector.load %arg22[%c8_261, %c0_262] : memref<16x64xf32, #tpu.memory_space<vmem>>, vector<2x64xf32>
    tpu.vector_store %arg22[%c8_261, %c0_262], %697 {strides = array<i32>} : memref<16x64xf32, #tpu.memory_space<vmem>>, vector<2x64xf32>,
    %cst_263 = arith.constant dense<0.000000e+00> : vector<2x64xf32>
    %699 = tpu.matmul %697, %547, %cst_263 {dimension_numbers = #tpu.dot_dimension_numbers<[1], [0], [0], [1], [0, 0, 1, 1], [], []>} : vector<2x64xf32>, vector<64x64xf32>, vector<2x64xf32> -> vector<2x64xf32>
    %cst_264 = arith.constant dense<0.000000e+00> : vector<2x64xf32>
    %700 = tpu.matmul %697, %549, %cst_264 {dimension_numbers = #tpu.dot_dimension_numbers<[1], [0], [0], [1], [0, 0, 1, 1], [], []>} : vector<2x64xf32>, vector<64x64xf32>, vector<2x64xf32> -> vector<2x64xf32>
    %cst_265 = arith.constant dense<0.000000e+00> : vector<2x64xf32>
    %701 = tpu.matmul %697, %551, %cst_265 {dimension_numbers = #tpu.dot_dimension_numbers<[1], [0], [0], [1], [0, 0, 1, 1], [], []>} : vector<2x64xf32>, vector<64x64xf32>, vector<2x64xf32> -> vector<2x64xf32>
    %702 = vector.broadcast %552 : vector<1x64xf32> to vector<2x64xf32>
    %703 = arith.addf %701, %702 : vector<2x64xf32>
    %704 = vector.extract_strided_slice %531 {offsets = [10, 0], sizes = [2, 64], strides = [1, 1]} : vector<16x64xf32> to vector<2x64xf32>
    %705 = arith.addf %704, %699 : vector<2x64xf32>
    %706 = arith.negf %705 : vector<2x64xf32>
    %707 = math.exp %706 : vector<2x64xf32>
    %cst_266 = arith.constant 1.000000e+00 : f32
    %708 = vector.broadcast %cst_266 : f32 to vector<2x64xf32>
    %709 = arith.addf %708, %707 : vector<2x64xf32>
    %710 = arith.divf %708, %709 : vector<2x64xf32>
    %711 = vector.extract_strided_slice %538 {offsets = [10, 0], sizes = [2, 64], strides = [1, 1]} : vector<16x64xf32> to vector<2x64xf32>
    %712 = arith.addf %711, %700 : vector<2x64xf32>
    %713 = arith.negf %712 : vector<2x64xf32>
    %714 = math.exp %713 : vector<2x64xf32>
    %cst_267 = arith.constant 1.000000e+00 : f32
    %715 = vector.broadcast %cst_267 : f32 to vector<2x64xf32>
    %716 = arith.addf %715, %714 : vector<2x64xf32>
    %717 = arith.divf %715, %716 : vector<2x64xf32>
    %718 = vector.extract_strided_slice %545 {offsets = [10, 0], sizes = [2, 64], strides = [1, 1]} : vector<16x64xf32> to vector<2x64xf32>
    %719 = arith.mulf %710, %703 : vector<2x64xf32>
    %720 = arith.addf %718, %719 : vector<2x64xf32>
    %721 = math.tanh %720 : vector<2x64xf32>
    %cst_268 = arith.constant 1.000000e+00 : f32
    %722 = vector.broadcast %cst_268 : f32 to vector<2x64xf32>
    %723 = arith.subf %722, %717 : vector<2x64xf32>
    %724 = arith.mulf %723, %721 : vector<2x64xf32>
    %725 = arith.mulf %717, %697 : vector<2x64xf32>
    %726 = arith.addf %724, %725 : vector<2x64xf32>
    %c10_269 = arith.constant 10 : index
    %c0_270 = arith.constant 0 : index
    %727 = vector.load %arg22[%c10_269, %c0_270] : memref<16x64xf32, #tpu.memory_space<vmem>>, vector<2x64xf32>
    tpu.vector_store %arg22[%c10_269, %c0_270], %726 {strides = array<i32>} : memref<16x64xf32, #tpu.memory_space<vmem>>, vector<2x64xf32>,
    %cst_271 = arith.constant dense<0.000000e+00> : vector<2x64xf32>
    %728 = tpu.matmul %726, %547, %cst_271 {dimension_numbers = #tpu.dot_dimension_numbers<[1], [0], [0], [1], [0, 0, 1, 1], [], []>} : vector<2x64xf32>, vector<64x64xf32>, vector<2x64xf32> -> vector<2x64xf32>
    %cst_272 = arith.constant dense<0.000000e+00> : vector<2x64xf32>
    %729 = tpu.matmul %726, %549, %cst_272 {dimension_numbers = #tpu.dot_dimension_numbers<[1], [0], [0], [1], [0, 0, 1, 1], [], []>} : vector<2x64xf32>, vector<64x64xf32>, vector<2x64xf32> -> vector<2x64xf32>
    %cst_273 = arith.constant dense<0.000000e+00> : vector<2x64xf32>
    %730 = tpu.matmul %726, %551, %cst_273 {dimension_numbers = #tpu.dot_dimension_numbers<[1], [0], [0], [1], [0, 0, 1, 1], [], []>} : vector<2x64xf32>, vector<64x64xf32>, vector<2x64xf32> -> vector<2x64xf32>
    %731 = vector.broadcast %552 : vector<1x64xf32> to vector<2x64xf32>
    %732 = arith.addf %730, %731 : vector<2x64xf32>
    %733 = vector.extract_strided_slice %531 {offsets = [12, 0], sizes = [2, 64], strides = [1, 1]} : vector<16x64xf32> to vector<2x64xf32>
    %734 = arith.addf %733, %728 : vector<2x64xf32>
    %735 = arith.negf %734 : vector<2x64xf32>
    %736 = math.exp %735 : vector<2x64xf32>
    %cst_274 = arith.constant 1.000000e+00 : f32
    %737 = vector.broadcast %cst_274 : f32 to vector<2x64xf32>
    %738 = arith.addf %737, %736 : vector<2x64xf32>
    %739 = arith.divf %737, %738 : vector<2x64xf32>
    %740 = vector.extract_strided_slice %538 {offsets = [12, 0], sizes = [2, 64], strides = [1, 1]} : vector<16x64xf32> to vector<2x64xf32>
    %741 = arith.addf %740, %729 : vector<2x64xf32>
    %742 = arith.negf %741 : vector<2x64xf32>
    %743 = math.exp %742 : vector<2x64xf32>
    %cst_275 = arith.constant 1.000000e+00 : f32
    %744 = vector.broadcast %cst_275 : f32 to vector<2x64xf32>
    %745 = arith.addf %744, %743 : vector<2x64xf32>
    %746 = arith.divf %744, %745 : vector<2x64xf32>
    %747 = vector.extract_strided_slice %545 {offsets = [12, 0], sizes = [2, 64], strides = [1, 1]} : vector<16x64xf32> to vector<2x64xf32>
    %748 = arith.mulf %739, %732 : vector<2x64xf32>
    %749 = arith.addf %747, %748 : vector<2x64xf32>
    %750 = math.tanh %749 : vector<2x64xf32>
    %cst_276 = arith.constant 1.000000e+00 : f32
    %751 = vector.broadcast %cst_276 : f32 to vector<2x64xf32>
    %752 = arith.subf %751, %746 : vector<2x64xf32>
    %753 = arith.mulf %752, %750 : vector<2x64xf32>
    %754 = arith.mulf %746, %726 : vector<2x64xf32>
    %755 = arith.addf %753, %754 : vector<2x64xf32>
    %c12_277 = arith.constant 12 : index
    %c0_278 = arith.constant 0 : index
    %756 = vector.load %arg22[%c12_277, %c0_278] : memref<16x64xf32, #tpu.memory_space<vmem>>, vector<2x64xf32>
    tpu.vector_store %arg22[%c12_277, %c0_278], %755 {strides = array<i32>} : memref<16x64xf32, #tpu.memory_space<vmem>>, vector<2x64xf32>,
    %cst_279 = arith.constant dense<0.000000e+00> : vector<2x64xf32>
    %757 = tpu.matmul %755, %547, %cst_279 {dimension_numbers = #tpu.dot_dimension_numbers<[1], [0], [0], [1], [0, 0, 1, 1], [], []>} : vector<2x64xf32>, vector<64x64xf32>, vector<2x64xf32> -> vector<2x64xf32>
    %cst_280 = arith.constant dense<0.000000e+00> : vector<2x64xf32>
    %758 = tpu.matmul %755, %549, %cst_280 {dimension_numbers = #tpu.dot_dimension_numbers<[1], [0], [0], [1], [0, 0, 1, 1], [], []>} : vector<2x64xf32>, vector<64x64xf32>, vector<2x64xf32> -> vector<2x64xf32>
    %cst_281 = arith.constant dense<0.000000e+00> : vector<2x64xf32>
    %759 = tpu.matmul %755, %551, %cst_281 {dimension_numbers = #tpu.dot_dimension_numbers<[1], [0], [0], [1], [0, 0, 1, 1], [], []>} : vector<2x64xf32>, vector<64x64xf32>, vector<2x64xf32> -> vector<2x64xf32>
    %760 = vector.broadcast %552 : vector<1x64xf32> to vector<2x64xf32>
    %761 = arith.addf %759, %760 : vector<2x64xf32>
    %762 = vector.extract_strided_slice %531 {offsets = [14, 0], sizes = [2, 64], strides = [1, 1]} : vector<16x64xf32> to vector<2x64xf32>
    %763 = arith.addf %762, %757 : vector<2x64xf32>
    %764 = arith.negf %763 : vector<2x64xf32>
    %765 = math.exp %764 : vector<2x64xf32>
    %cst_282 = arith.constant 1.000000e+00 : f32
    %766 = vector.broadcast %cst_282 : f32 to vector<2x64xf32>
    %767 = arith.addf %766, %765 : vector<2x64xf32>
    %768 = arith.divf %766, %767 : vector<2x64xf32>
    %769 = vector.extract_strided_slice %538 {offsets = [14, 0], sizes = [2, 64], strides = [1, 1]} : vector<16x64xf32> to vector<2x64xf32>
    %770 = arith.addf %769, %758 : vector<2x64xf32>
    %771 = arith.negf %770 : vector<2x64xf32>
    %772 = math.exp %771 : vector<2x64xf32>
    %cst_283 = arith.constant 1.000000e+00 : f32
    %773 = vector.broadcast %cst_283 : f32 to vector<2x64xf32>
    %774 = arith.addf %773, %772 : vector<2x64xf32>
    %775 = arith.divf %773, %774 : vector<2x64xf32>
    %776 = vector.extract_strided_slice %545 {offsets = [14, 0], sizes = [2, 64], strides = [1, 1]} : vector<16x64xf32> to vector<2x64xf32>
    %777 = arith.mulf %768, %761 : vector<2x64xf32>
    %778 = arith.addf %776, %777 : vector<2x64xf32>
    %779 = math.tanh %778 : vector<2x64xf32>
    %cst_284 = arith.constant 1.000000e+00 : f32
    %780 = vector.broadcast %cst_284 : f32 to vector<2x64xf32>
    %781 = arith.subf %780, %775 : vector<2x64xf32>
    %782 = arith.mulf %781, %779 : vector<2x64xf32>
    %783 = arith.mulf %775, %755 : vector<2x64xf32>
    %784 = arith.addf %782, %783 : vector<2x64xf32>
    %c14_285 = arith.constant 14 : index
    %c0_286 = arith.constant 0 : index
    %785 = vector.load %arg22[%c14_285, %c0_286] : memref<16x64xf32, #tpu.memory_space<vmem>>, vector<2x64xf32>
    tpu.vector_store %arg22[%c14_285, %c0_286], %784 {strides = array<i32>} : memref<16x64xf32, #tpu.memory_space<vmem>>, vector<2x64xf32>,
    %c0_287 = arith.constant 0 : index
    %c0_288 = arith.constant 0 : index
    %786 = vector.load %arg22[%c0_287, %c0_288] : memref<16x64xf32, #tpu.memory_space<vmem>>, vector<16x64xf32>
    %c0_289 = arith.constant 0 : index
    %c0_290 = arith.constant 0 : index
    %c0_291 = arith.constant 0 : index
    %787 = vector.load %arg13[%c0_289, %c0_290, %c0_291] : memref<3x64x64xf32, #tpu.memory_space<vmem>>, vector<1x64x64xf32>
    %788 = vector.shape_cast %787 : vector<1x64x64xf32> to vector<64x64xf32>
    %cst_292 = arith.constant dense<0.000000e+00> : vector<16x64xf32>
    %789 = tpu.matmul %786, %788, %cst_292 {dimension_numbers = #tpu.dot_dimension_numbers<[1], [0], [0], [1], [0, 0, 1, 1], [], []>} : vector<16x64xf32>, vector<64x64xf32>, vector<16x64xf32> -> vector<16x64xf32>
    %c0_293 = arith.constant 0 : index
    %c0_294 = arith.constant 0 : index
    %c0_295 = arith.constant 0 : index
    %790 = vector.load %arg15[%c0_293, %c0_294, %c0_295] : memref<3x1x64xf32, #tpu.memory_space<vmem>>, vector<1x1x64xf32>
    %791 = vector.shape_cast %790 : vector<1x1x64xf32> to vector<1x64xf32>
    %792 = vector.broadcast %791 : vector<1x64xf32> to vector<16x64xf32>
    %793 = arith.addf %789, %792 : vector<16x64xf32>
    %c1_296 = arith.constant 1 : index
    %c0_297 = arith.constant 0 : index
    %c0_298 = arith.constant 0 : index
    %794 = vector.load %arg13[%c1_296, %c0_297, %c0_298] : memref<3x64x64xf32, #tpu.memory_space<vmem>>, vector<1x64x64xf32>
    %795 = vector.shape_cast %794 : vector<1x64x64xf32> to vector<64x64xf32>
    %cst_299 = arith.constant dense<0.000000e+00> : vector<16x64xf32>
    %796 = tpu.matmul %786, %795, %cst_299 {dimension_numbers = #tpu.dot_dimension_numbers<[1], [0], [0], [1], [0, 0, 1, 1], [], []>} : vector<16x64xf32>, vector<64x64xf32>, vector<16x64xf32> -> vector<16x64xf32>
    %c1_300 = arith.constant 1 : index
    %c0_301 = arith.constant 0 : index
    %c0_302 = arith.constant 0 : index
    %797 = vector.load %arg15[%c1_300, %c0_301, %c0_302] : memref<3x1x64xf32, #tpu.memory_space<vmem>>, vector<1x1x64xf32>
    %798 = vector.shape_cast %797 : vector<1x1x64xf32> to vector<1x64xf32>
    %799 = vector.broadcast %798 : vector<1x64xf32> to vector<16x64xf32>
    %800 = arith.addf %796, %799 : vector<16x64xf32>
    %c2_303 = arith.constant 2 : index
    %c0_304 = arith.constant 0 : index
    %c0_305 = arith.constant 0 : index
    %801 = vector.load %arg13[%c2_303, %c0_304, %c0_305] : memref<3x64x64xf32, #tpu.memory_space<vmem>>, vector<1x64x64xf32>
    %802 = vector.shape_cast %801 : vector<1x64x64xf32> to vector<64x64xf32>
    %cst_306 = arith.constant dense<0.000000e+00> : vector<16x64xf32>
    %803 = tpu.matmul %786, %802, %cst_306 {dimension_numbers = #tpu.dot_dimension_numbers<[1], [0], [0], [1], [0, 0, 1, 1], [], []>} : vector<16x64xf32>, vector<64x64xf32>, vector<16x64xf32> -> vector<16x64xf32>
    %c2_307 = arith.constant 2 : index
    %c0_308 = arith.constant 0 : index
    %c0_309 = arith.constant 0 : index
    %804 = vector.load %arg15[%c2_307, %c0_308, %c0_309] : memref<3x1x64xf32, #tpu.memory_space<vmem>>, vector<1x1x64xf32>
    %805 = vector.shape_cast %804 : vector<1x1x64xf32> to vector<1x64xf32>
    %806 = vector.broadcast %805 : vector<1x64xf32> to vector<16x64xf32>
    %807 = arith.addf %803, %806 : vector<16x64xf32>
    %c0_310 = arith.constant 0 : index
    %c0_311 = arith.constant 0 : index
    %c0_312 = arith.constant 0 : index
    %808 = vector.load %arg14[%c0_310, %c0_311, %c0_312] : memref<3x64x64xf32, #tpu.memory_space<vmem>>, vector<1x64x64xf32>
    %809 = vector.shape_cast %808 : vector<1x64x64xf32> to vector<64x64xf32>
    %c1_313 = arith.constant 1 : index
    %c0_314 = arith.constant 0 : index
    %c0_315 = arith.constant 0 : index
    %810 = vector.load %arg14[%c1_313, %c0_314, %c0_315] : memref<3x64x64xf32, #tpu.memory_space<vmem>>, vector<1x64x64xf32>
    %811 = vector.shape_cast %810 : vector<1x64x64xf32> to vector<64x64xf32>
    %c2_316 = arith.constant 2 : index
    %c0_317 = arith.constant 0 : index
    %c0_318 = arith.constant 0 : index
    %812 = vector.load %arg14[%c2_316, %c0_317, %c0_318] : memref<3x64x64xf32, #tpu.memory_space<vmem>>, vector<1x64x64xf32>
    %813 = vector.shape_cast %812 : vector<1x64x64xf32> to vector<64x64xf32>
    %c0_319 = arith.constant 0 : index
    %c0_320 = arith.constant 0 : index
    %814 = vector.load %arg16[%c0_319, %c0_320] : memref<1x64xf32, #tpu.memory_space<vmem>>, vector<1x64xf32>
    %cst_321 = arith.constant 0.000000e+00 : f32
    %815 = vector.broadcast %cst_321 : f32 to vector<2x64xf32>
    %cst_322 = arith.constant dense<0.000000e+00> : vector<2x64xf32>
    %816 = tpu.matmul %815, %809, %cst_322 {dimension_numbers = #tpu.dot_dimension_numbers<[1], [0], [0], [1], [0, 0, 1, 1], [], []>} : vector<2x64xf32>, vector<64x64xf32>, vector<2x64xf32> -> vector<2x64xf32>
    %cst_323 = arith.constant dense<0.000000e+00> : vector<2x64xf32>
    %817 = tpu.matmul %815, %811, %cst_323 {dimension_numbers = #tpu.dot_dimension_numbers<[1], [0], [0], [1], [0, 0, 1, 1], [], []>} : vector<2x64xf32>, vector<64x64xf32>, vector<2x64xf32> -> vector<2x64xf32>
    %cst_324 = arith.constant dense<0.000000e+00> : vector<2x64xf32>
    %818 = tpu.matmul %815, %813, %cst_324 {dimension_numbers = #tpu.dot_dimension_numbers<[1], [0], [0], [1], [0, 0, 1, 1], [], []>} : vector<2x64xf32>, vector<64x64xf32>, vector<2x64xf32> -> vector<2x64xf32>
    %819 = vector.broadcast %814 : vector<1x64xf32> to vector<2x64xf32>
    %820 = arith.addf %818, %819 : vector<2x64xf32>
    %821 = vector.extract_strided_slice %793 {offsets = [0, 0], sizes = [2, 64], strides = [1, 1]} : vector<16x64xf32> to vector<2x64xf32>
    %822 = arith.addf %821, %816 : vector<2x64xf32>
    %823 = arith.negf %822 : vector<2x64xf32>
    %824 = math.exp %823 : vector<2x64xf32>
    %cst_325 = arith.constant 1.000000e+00 : f32
    %825 = vector.broadcast %cst_325 : f32 to vector<2x64xf32>
    %826 = arith.addf %825, %824 : vector<2x64xf32>
    %827 = arith.divf %825, %826 : vector<2x64xf32>
    %828 = vector.extract_strided_slice %800 {offsets = [0, 0], sizes = [2, 64], strides = [1, 1]} : vector<16x64xf32> to vector<2x64xf32>
    %829 = arith.addf %828, %817 : vector<2x64xf32>
    %830 = arith.negf %829 : vector<2x64xf32>
    %831 = math.exp %830 : vector<2x64xf32>
    %cst_326 = arith.constant 1.000000e+00 : f32
    %832 = vector.broadcast %cst_326 : f32 to vector<2x64xf32>
    %833 = arith.addf %832, %831 : vector<2x64xf32>
    %834 = arith.divf %832, %833 : vector<2x64xf32>
    %835 = vector.extract_strided_slice %807 {offsets = [0, 0], sizes = [2, 64], strides = [1, 1]} : vector<16x64xf32> to vector<2x64xf32>
    %836 = arith.mulf %827, %820 : vector<2x64xf32>
    %837 = arith.addf %835, %836 : vector<2x64xf32>
    %838 = math.tanh %837 : vector<2x64xf32>
    %cst_327 = arith.constant 1.000000e+00 : f32
    %839 = vector.broadcast %cst_327 : f32 to vector<2x64xf32>
    %840 = arith.subf %839, %834 : vector<2x64xf32>
    %841 = arith.mulf %840, %838 : vector<2x64xf32>
    %842 = arith.mulf %834, %815 : vector<2x64xf32>
    %843 = arith.addf %841, %842 : vector<2x64xf32>
    %c0_328 = arith.constant 0 : index
    %c0_329 = arith.constant 0 : index
    %844 = vector.load %arg24[%c0_328, %c0_329] : memref<2x512xf32, #tpu.memory_space<vmem>>, vector<2x64xf32>
    tpu.vector_store %arg24[%c0_328, %c0_329], %843 {strides = array<i32>} : memref<2x512xf32, #tpu.memory_space<vmem>>, vector<2x64xf32>,
    %cst_330 = arith.constant dense<0.000000e+00> : vector<2x64xf32>
    %845 = tpu.matmul %843, %809, %cst_330 {dimension_numbers = #tpu.dot_dimension_numbers<[1], [0], [0], [1], [0, 0, 1, 1], [], []>} : vector<2x64xf32>, vector<64x64xf32>, vector<2x64xf32> -> vector<2x64xf32>
    %cst_331 = arith.constant dense<0.000000e+00> : vector<2x64xf32>
    %846 = tpu.matmul %843, %811, %cst_331 {dimension_numbers = #tpu.dot_dimension_numbers<[1], [0], [0], [1], [0, 0, 1, 1], [], []>} : vector<2x64xf32>, vector<64x64xf32>, vector<2x64xf32> -> vector<2x64xf32>
    %cst_332 = arith.constant dense<0.000000e+00> : vector<2x64xf32>
    %847 = tpu.matmul %843, %813, %cst_332 {dimension_numbers = #tpu.dot_dimension_numbers<[1], [0], [0], [1], [0, 0, 1, 1], [], []>} : vector<2x64xf32>, vector<64x64xf32>, vector<2x64xf32> -> vector<2x64xf32>
    %848 = vector.broadcast %814 : vector<1x64xf32> to vector<2x64xf32>
    %849 = arith.addf %847, %848 : vector<2x64xf32>
    %850 = vector.extract_strided_slice %793 {offsets = [2, 0], sizes = [2, 64], strides = [1, 1]} : vector<16x64xf32> to vector<2x64xf32>
    %851 = arith.addf %850, %845 : vector<2x64xf32>
    %852 = arith.negf %851 : vector<2x64xf32>
    %853 = math.exp %852 : vector<2x64xf32>
    %cst_333 = arith.constant 1.000000e+00 : f32
    %854 = vector.broadcast %cst_333 : f32 to vector<2x64xf32>
    %855 = arith.addf %854, %853 : vector<2x64xf32>
    %856 = arith.divf %854, %855 : vector<2x64xf32>
    %857 = vector.extract_strided_slice %800 {offsets = [2, 0], sizes = [2, 64], strides = [1, 1]} : vector<16x64xf32> to vector<2x64xf32>
    %858 = arith.addf %857, %846 : vector<2x64xf32>
    %859 = arith.negf %858 : vector<2x64xf32>
    %860 = math.exp %859 : vector<2x64xf32>
    %cst_334 = arith.constant 1.000000e+00 : f32
    %861 = vector.broadcast %cst_334 : f32 to vector<2x64xf32>
    %862 = arith.addf %861, %860 : vector<2x64xf32>
    %863 = arith.divf %861, %862 : vector<2x64xf32>
    %864 = vector.extract_strided_slice %807 {offsets = [2, 0], sizes = [2, 64], strides = [1, 1]} : vector<16x64xf32> to vector<2x64xf32>
    %865 = arith.mulf %856, %849 : vector<2x64xf32>
    %866 = arith.addf %864, %865 : vector<2x64xf32>
    %867 = math.tanh %866 : vector<2x64xf32>
    %cst_335 = arith.constant 1.000000e+00 : f32
    %868 = vector.broadcast %cst_335 : f32 to vector<2x64xf32>
    %869 = arith.subf %868, %863 : vector<2x64xf32>
    %870 = arith.mulf %869, %867 : vector<2x64xf32>
    %871 = arith.mulf %863, %843 : vector<2x64xf32>
    %872 = arith.addf %870, %871 : vector<2x64xf32>
    %c0_336 = arith.constant 0 : index
    %c64 = arith.constant 64 : index
    %873 = vector.load %arg24[%c0_336, %c64] : memref<2x512xf32, #tpu.memory_space<vmem>>, vector<2x64xf32>
    tpu.vector_store %arg24[%c0_336, %c64], %872 {strides = array<i32>} : memref<2x512xf32, #tpu.memory_space<vmem>>, vector<2x64xf32>,
    %cst_337 = arith.constant dense<0.000000e+00> : vector<2x64xf32>
    %874 = tpu.matmul %872, %809, %cst_337 {dimension_numbers = #tpu.dot_dimension_numbers<[1], [0], [0], [1], [0, 0, 1, 1], [], []>} : vector<2x64xf32>, vector<64x64xf32>, vector<2x64xf32> -> vector<2x64xf32>
    %cst_338 = arith.constant dense<0.000000e+00> : vector<2x64xf32>
    %875 = tpu.matmul %872, %811, %cst_338 {dimension_numbers = #tpu.dot_dimension_numbers<[1], [0], [0], [1], [0, 0, 1, 1], [], []>} : vector<2x64xf32>, vector<64x64xf32>, vector<2x64xf32> -> vector<2x64xf32>
    %cst_339 = arith.constant dense<0.000000e+00> : vector<2x64xf32>
    %876 = tpu.matmul %872, %813, %cst_339 {dimension_numbers = #tpu.dot_dimension_numbers<[1], [0], [0], [1], [0, 0, 1, 1], [], []>} : vector<2x64xf32>, vector<64x64xf32>, vector<2x64xf32> -> vector<2x64xf32>
    %877 = vector.broadcast %814 : vector<1x64xf32> to vector<2x64xf32>
    %878 = arith.addf %876, %877 : vector<2x64xf32>
    %879 = vector.extract_strided_slice %793 {offsets = [4, 0], sizes = [2, 64], strides = [1, 1]} : vector<16x64xf32> to vector<2x64xf32>
    %880 = arith.addf %879, %874 : vector<2x64xf32>
    %881 = arith.negf %880 : vector<2x64xf32>
    %882 = math.exp %881 : vector<2x64xf32>
    %cst_340 = arith.constant 1.000000e+00 : f32
    %883 = vector.broadcast %cst_340 : f32 to vector<2x64xf32>
    %884 = arith.addf %883, %882 : vector<2x64xf32>
    %885 = arith.divf %883, %884 : vector<2x64xf32>
    %886 = vector.extract_strided_slice %800 {offsets = [4, 0], sizes = [2, 64], strides = [1, 1]} : vector<16x64xf32> to vector<2x64xf32>
    %887 = arith.addf %886, %875 : vector<2x64xf32>
    %888 = arith.negf %887 : vector<2x64xf32>
    %889 = math.exp %888 : vector<2x64xf32>
    %cst_341 = arith.constant 1.000000e+00 : f32
    %890 = vector.broadcast %cst_341 : f32 to vector<2x64xf32>
    %891 = arith.addf %890, %889 : vector<2x64xf32>
    %892 = arith.divf %890, %891 : vector<2x64xf32>
    %893 = vector.extract_strided_slice %807 {offsets = [4, 0], sizes = [2, 64], strides = [1, 1]} : vector<16x64xf32> to vector<2x64xf32>
    %894 = arith.mulf %885, %878 : vector<2x64xf32>
    %895 = arith.addf %893, %894 : vector<2x64xf32>
    %896 = math.tanh %895 : vector<2x64xf32>
    %cst_342 = arith.constant 1.000000e+00 : f32
    %897 = vector.broadcast %cst_342 : f32 to vector<2x64xf32>
    %898 = arith.subf %897, %892 : vector<2x64xf32>
    %899 = arith.mulf %898, %896 : vector<2x64xf32>
    %900 = arith.mulf %892, %872 : vector<2x64xf32>
    %901 = arith.addf %899, %900 : vector<2x64xf32>
    %c0_343 = arith.constant 0 : index
    %c128 = arith.constant 128 : index
    %902 = vector.load %arg24[%c0_343, %c128] : memref<2x512xf32, #tpu.memory_space<vmem>>, vector<2x64xf32>
    tpu.vector_store %arg24[%c0_343, %c128], %901 {strides = array<i32>} : memref<2x512xf32, #tpu.memory_space<vmem>>, vector<2x64xf32>,
    %cst_344 = arith.constant dense<0.000000e+00> : vector<2x64xf32>
    %903 = tpu.matmul %901, %809, %cst_344 {dimension_numbers = #tpu.dot_dimension_numbers<[1], [0], [0], [1], [0, 0, 1, 1], [], []>} : vector<2x64xf32>, vector<64x64xf32>, vector<2x64xf32> -> vector<2x64xf32>
    %cst_345 = arith.constant dense<0.000000e+00> : vector<2x64xf32>
    %904 = tpu.matmul %901, %811, %cst_345 {dimension_numbers = #tpu.dot_dimension_numbers<[1], [0], [0], [1], [0, 0, 1, 1], [], []>} : vector<2x64xf32>, vector<64x64xf32>, vector<2x64xf32> -> vector<2x64xf32>
    %cst_346 = arith.constant dense<0.000000e+00> : vector<2x64xf32>
    %905 = tpu.matmul %901, %813, %cst_346 {dimension_numbers = #tpu.dot_dimension_numbers<[1], [0], [0], [1], [0, 0, 1, 1], [], []>} : vector<2x64xf32>, vector<64x64xf32>, vector<2x64xf32> -> vector<2x64xf32>
    %906 = vector.broadcast %814 : vector<1x64xf32> to vector<2x64xf32>
    %907 = arith.addf %905, %906 : vector<2x64xf32>
    %908 = vector.extract_strided_slice %793 {offsets = [6, 0], sizes = [2, 64], strides = [1, 1]} : vector<16x64xf32> to vector<2x64xf32>
    %909 = arith.addf %908, %903 : vector<2x64xf32>
    %910 = arith.negf %909 : vector<2x64xf32>
    %911 = math.exp %910 : vector<2x64xf32>
    %cst_347 = arith.constant 1.000000e+00 : f32
    %912 = vector.broadcast %cst_347 : f32 to vector<2x64xf32>
    %913 = arith.addf %912, %911 : vector<2x64xf32>
    %914 = arith.divf %912, %913 : vector<2x64xf32>
    %915 = vector.extract_strided_slice %800 {offsets = [6, 0], sizes = [2, 64], strides = [1, 1]} : vector<16x64xf32> to vector<2x64xf32>
    %916 = arith.addf %915, %904 : vector<2x64xf32>
    %917 = arith.negf %916 : vector<2x64xf32>
    %918 = math.exp %917 : vector<2x64xf32>
    %cst_348 = arith.constant 1.000000e+00 : f32
    %919 = vector.broadcast %cst_348 : f32 to vector<2x64xf32>
    %920 = arith.addf %919, %918 : vector<2x64xf32>
    %921 = arith.divf %919, %920 : vector<2x64xf32>
    %922 = vector.extract_strided_slice %807 {offsets = [6, 0], sizes = [2, 64], strides = [1, 1]} : vector<16x64xf32> to vector<2x64xf32>
    %923 = arith.mulf %914, %907 : vector<2x64xf32>
    %924 = arith.addf %922, %923 : vector<2x64xf32>
    %925 = math.tanh %924 : vector<2x64xf32>
    %cst_349 = arith.constant 1.000000e+00 : f32
    %926 = vector.broadcast %cst_349 : f32 to vector<2x64xf32>
    %927 = arith.subf %926, %921 : vector<2x64xf32>
    %928 = arith.mulf %927, %925 : vector<2x64xf32>
    %929 = arith.mulf %921, %901 : vector<2x64xf32>
    %930 = arith.addf %928, %929 : vector<2x64xf32>
    %c0_350 = arith.constant 0 : index
    %c192 = arith.constant 192 : index
    %931 = vector.load %arg24[%c0_350, %c192] : memref<2x512xf32, #tpu.memory_space<vmem>>, vector<2x64xf32>
    tpu.vector_store %arg24[%c0_350, %c192], %930 {strides = array<i32>} : memref<2x512xf32, #tpu.memory_space<vmem>>, vector<2x64xf32>,
    %cst_351 = arith.constant dense<0.000000e+00> : vector<2x64xf32>
    %932 = tpu.matmul %930, %809, %cst_351 {dimension_numbers = #tpu.dot_dimension_numbers<[1], [0], [0], [1], [0, 0, 1, 1], [], []>} : vector<2x64xf32>, vector<64x64xf32>, vector<2x64xf32> -> vector<2x64xf32>
    %cst_352 = arith.constant dense<0.000000e+00> : vector<2x64xf32>
    %933 = tpu.matmul %930, %811, %cst_352 {dimension_numbers = #tpu.dot_dimension_numbers<[1], [0], [0], [1], [0, 0, 1, 1], [], []>} : vector<2x64xf32>, vector<64x64xf32>, vector<2x64xf32> -> vector<2x64xf32>
    %cst_353 = arith.constant dense<0.000000e+00> : vector<2x64xf32>
    %934 = tpu.matmul %930, %813, %cst_353 {dimension_numbers = #tpu.dot_dimension_numbers<[1], [0], [0], [1], [0, 0, 1, 1], [], []>} : vector<2x64xf32>, vector<64x64xf32>, vector<2x64xf32> -> vector<2x64xf32>
    %935 = vector.broadcast %814 : vector<1x64xf32> to vector<2x64xf32>
    %936 = arith.addf %934, %935 : vector<2x64xf32>
    %937 = vector.extract_strided_slice %793 {offsets = [8, 0], sizes = [2, 64], strides = [1, 1]} : vector<16x64xf32> to vector<2x64xf32>
    %938 = arith.addf %937, %932 : vector<2x64xf32>
    %939 = arith.negf %938 : vector<2x64xf32>
    %940 = math.exp %939 : vector<2x64xf32>
    %cst_354 = arith.constant 1.000000e+00 : f32
    %941 = vector.broadcast %cst_354 : f32 to vector<2x64xf32>
    %942 = arith.addf %941, %940 : vector<2x64xf32>
    %943 = arith.divf %941, %942 : vector<2x64xf32>
    %944 = vector.extract_strided_slice %800 {offsets = [8, 0], sizes = [2, 64], strides = [1, 1]} : vector<16x64xf32> to vector<2x64xf32>
    %945 = arith.addf %944, %933 : vector<2x64xf32>
    %946 = arith.negf %945 : vector<2x64xf32>
    %947 = math.exp %946 : vector<2x64xf32>
    %cst_355 = arith.constant 1.000000e+00 : f32
    %948 = vector.broadcast %cst_355 : f32 to vector<2x64xf32>
    %949 = arith.addf %948, %947 : vector<2x64xf32>
    %950 = arith.divf %948, %949 : vector<2x64xf32>
    %951 = vector.extract_strided_slice %807 {offsets = [8, 0], sizes = [2, 64], strides = [1, 1]} : vector<16x64xf32> to vector<2x64xf32>
    %952 = arith.mulf %943, %936 : vector<2x64xf32>
    %953 = arith.addf %951, %952 : vector<2x64xf32>
    %954 = math.tanh %953 : vector<2x64xf32>
    %cst_356 = arith.constant 1.000000e+00 : f32
    %955 = vector.broadcast %cst_356 : f32 to vector<2x64xf32>
    %956 = arith.subf %955, %950 : vector<2x64xf32>
    %957 = arith.mulf %956, %954 : vector<2x64xf32>
    %958 = arith.mulf %950, %930 : vector<2x64xf32>
    %959 = arith.addf %957, %958 : vector<2x64xf32>
    %c0_357 = arith.constant 0 : index
    %c256 = arith.constant 256 : index
    %960 = vector.load %arg24[%c0_357, %c256] : memref<2x512xf32, #tpu.memory_space<vmem>>, vector<2x64xf32>
    tpu.vector_store %arg24[%c0_357, %c256], %959 {strides = array<i32>} : memref<2x512xf32, #tpu.memory_space<vmem>>, vector<2x64xf32>,
    %cst_358 = arith.constant dense<0.000000e+00> : vector<2x64xf32>
    %961 = tpu.matmul %959, %809, %cst_358 {dimension_numbers = #tpu.dot_dimension_numbers<[1], [0], [0], [1], [0, 0, 1, 1], [], []>} : vector<2x64xf32>, vector<64x64xf32>, vector<2x64xf32> -> vector<2x64xf32>
    %cst_359 = arith.constant dense<0.000000e+00> : vector<2x64xf32>
    %962 = tpu.matmul %959, %811, %cst_359 {dimension_numbers = #tpu.dot_dimension_numbers<[1], [0], [0], [1], [0, 0, 1, 1], [], []>} : vector<2x64xf32>, vector<64x64xf32>, vector<2x64xf32> -> vector<2x64xf32>
    %cst_360 = arith.constant dense<0.000000e+00> : vector<2x64xf32>
    %963 = tpu.matmul %959, %813, %cst_360 {dimension_numbers = #tpu.dot_dimension_numbers<[1], [0], [0], [1], [0, 0, 1, 1], [], []>} : vector<2x64xf32>, vector<64x64xf32>, vector<2x64xf32> -> vector<2x64xf32>
    %964 = vector.broadcast %814 : vector<1x64xf32> to vector<2x64xf32>
    %965 = arith.addf %963, %964 : vector<2x64xf32>
    %966 = vector.extract_strided_slice %793 {offsets = [10, 0], sizes = [2, 64], strides = [1, 1]} : vector<16x64xf32> to vector<2x64xf32>
    %967 = arith.addf %966, %961 : vector<2x64xf32>
    %968 = arith.negf %967 : vector<2x64xf32>
    %969 = math.exp %968 : vector<2x64xf32>
    %cst_361 = arith.constant 1.000000e+00 : f32
    %970 = vector.broadcast %cst_361 : f32 to vector<2x64xf32>
    %971 = arith.addf %970, %969 : vector<2x64xf32>
    %972 = arith.divf %970, %971 : vector<2x64xf32>
    %973 = vector.extract_strided_slice %800 {offsets = [10, 0], sizes = [2, 64], strides = [1, 1]} : vector<16x64xf32> to vector<2x64xf32>
    %974 = arith.addf %973, %962 : vector<2x64xf32>
    %975 = arith.negf %974 : vector<2x64xf32>
    %976 = math.exp %975 : vector<2x64xf32>
    %cst_362 = arith.constant 1.000000e+00 : f32
    %977 = vector.broadcast %cst_362 : f32 to vector<2x64xf32>
    %978 = arith.addf %977, %976 : vector<2x64xf32>
    %979 = arith.divf %977, %978 : vector<2x64xf32>
    %980 = vector.extract_strided_slice %807 {offsets = [10, 0], sizes = [2, 64], strides = [1, 1]} : vector<16x64xf32> to vector<2x64xf32>
    %981 = arith.mulf %972, %965 : vector<2x64xf32>
    %982 = arith.addf %980, %981 : vector<2x64xf32>
    %983 = math.tanh %982 : vector<2x64xf32>
    %cst_363 = arith.constant 1.000000e+00 : f32
    %984 = vector.broadcast %cst_363 : f32 to vector<2x64xf32>
    %985 = arith.subf %984, %979 : vector<2x64xf32>
    %986 = arith.mulf %985, %983 : vector<2x64xf32>
    %987 = arith.mulf %979, %959 : vector<2x64xf32>
    %988 = arith.addf %986, %987 : vector<2x64xf32>
    %c0_364 = arith.constant 0 : index
    %c320 = arith.constant 320 : index
    %989 = vector.load %arg24[%c0_364, %c320] : memref<2x512xf32, #tpu.memory_space<vmem>>, vector<2x64xf32>
    tpu.vector_store %arg24[%c0_364, %c320], %988 {strides = array<i32>} : memref<2x512xf32, #tpu.memory_space<vmem>>, vector<2x64xf32>,
    %cst_365 = arith.constant dense<0.000000e+00> : vector<2x64xf32>
    %990 = tpu.matmul %988, %809, %cst_365 {dimension_numbers = #tpu.dot_dimension_numbers<[1], [0], [0], [1], [0, 0, 1, 1], [], []>} : vector<2x64xf32>, vector<64x64xf32>, vector<2x64xf32> -> vector<2x64xf32>
    %cst_366 = arith.constant dense<0.000000e+00> : vector<2x64xf32>
    %991 = tpu.matmul %988, %811, %cst_366 {dimension_numbers = #tpu.dot_dimension_numbers<[1], [0], [0], [1], [0, 0, 1, 1], [], []>} : vector<2x64xf32>, vector<64x64xf32>, vector<2x64xf32> -> vector<2x64xf32>
    %cst_367 = arith.constant dense<0.000000e+00> : vector<2x64xf32>
    %992 = tpu.matmul %988, %813, %cst_367 {dimension_numbers = #tpu.dot_dimension_numbers<[1], [0], [0], [1], [0, 0, 1, 1], [], []>} : vector<2x64xf32>, vector<64x64xf32>, vector<2x64xf32> -> vector<2x64xf32>
    %993 = vector.broadcast %814 : vector<1x64xf32> to vector<2x64xf32>
    %994 = arith.addf %992, %993 : vector<2x64xf32>
    %995 = vector.extract_strided_slice %793 {offsets = [12, 0], sizes = [2, 64], strides = [1, 1]} : vector<16x64xf32> to vector<2x64xf32>
    %996 = arith.addf %995, %990 : vector<2x64xf32>
    %997 = arith.negf %996 : vector<2x64xf32>
    %998 = math.exp %997 : vector<2x64xf32>
    %cst_368 = arith.constant 1.000000e+00 : f32
    %999 = vector.broadcast %cst_368 : f32 to vector<2x64xf32>
    %1000 = arith.addf %999, %998 : vector<2x64xf32>
    %1001 = arith.divf %999, %1000 : vector<2x64xf32>
    %1002 = vector.extract_strided_slice %800 {offsets = [12, 0], sizes = [2, 64], strides = [1, 1]} : vector<16x64xf32> to vector<2x64xf32>
    %1003 = arith.addf %1002, %991 : vector<2x64xf32>
    %1004 = arith.negf %1003 : vector<2x64xf32>
    %1005 = math.exp %1004 : vector<2x64xf32>
    %cst_369 = arith.constant 1.000000e+00 : f32
    %1006 = vector.broadcast %cst_369 : f32 to vector<2x64xf32>
    %1007 = arith.addf %1006, %1005 : vector<2x64xf32>
    %1008 = arith.divf %1006, %1007 : vector<2x64xf32>
    %1009 = vector.extract_strided_slice %807 {offsets = [12, 0], sizes = [2, 64], strides = [1, 1]} : vector<16x64xf32> to vector<2x64xf32>
    %1010 = arith.mulf %1001, %994 : vector<2x64xf32>
    %1011 = arith.addf %1009, %1010 : vector<2x64xf32>
    %1012 = math.tanh %1011 : vector<2x64xf32>
    %cst_370 = arith.constant 1.000000e+00 : f32
    %1013 = vector.broadcast %cst_370 : f32 to vector<2x64xf32>
    %1014 = arith.subf %1013, %1008 : vector<2x64xf32>
    %1015 = arith.mulf %1014, %1012 : vector<2x64xf32>
    %1016 = arith.mulf %1008, %988 : vector<2x64xf32>
    %1017 = arith.addf %1015, %1016 : vector<2x64xf32>
    %c0_371 = arith.constant 0 : index
    %c384 = arith.constant 384 : index
    %1018 = vector.load %arg24[%c0_371, %c384] : memref<2x512xf32, #tpu.memory_space<vmem>>, vector<2x64xf32>
    tpu.vector_store %arg24[%c0_371, %c384], %1017 {strides = array<i32>} : memref<2x512xf32, #tpu.memory_space<vmem>>, vector<2x64xf32>,
    %cst_372 = arith.constant dense<0.000000e+00> : vector<2x64xf32>
    %1019 = tpu.matmul %1017, %809, %cst_372 {dimension_numbers = #tpu.dot_dimension_numbers<[1], [0], [0], [1], [0, 0, 1, 1], [], []>} : vector<2x64xf32>, vector<64x64xf32>, vector<2x64xf32> -> vector<2x64xf32>
    %cst_373 = arith.constant dense<0.000000e+00> : vector<2x64xf32>
    %1020 = tpu.matmul %1017, %811, %cst_373 {dimension_numbers = #tpu.dot_dimension_numbers<[1], [0], [0], [1], [0, 0, 1, 1], [], []>} : vector<2x64xf32>, vector<64x64xf32>, vector<2x64xf32> -> vector<2x64xf32>
    %cst_374 = arith.constant dense<0.000000e+00> : vector<2x64xf32>
    %1021 = tpu.matmul %1017, %813, %cst_374 {dimension_numbers = #tpu.dot_dimension_numbers<[1], [0], [0], [1], [0, 0, 1, 1], [], []>} : vector<2x64xf32>, vector<64x64xf32>, vector<2x64xf32> -> vector<2x64xf32>
    %1022 = vector.broadcast %814 : vector<1x64xf32> to vector<2x64xf32>
    %1023 = arith.addf %1021, %1022 : vector<2x64xf32>
    %1024 = vector.extract_strided_slice %793 {offsets = [14, 0], sizes = [2, 64], strides = [1, 1]} : vector<16x64xf32> to vector<2x64xf32>
    %1025 = arith.addf %1024, %1019 : vector<2x64xf32>
    %1026 = arith.negf %1025 : vector<2x64xf32>
    %1027 = math.exp %1026 : vector<2x64xf32>
    %cst_375 = arith.constant 1.000000e+00 : f32
    %1028 = vector.broadcast %cst_375 : f32 to vector<2x64xf32>
    %1029 = arith.addf %1028, %1027 : vector<2x64xf32>
    %1030 = arith.divf %1028, %1029 : vector<2x64xf32>
    %1031 = vector.extract_strided_slice %800 {offsets = [14, 0], sizes = [2, 64], strides = [1, 1]} : vector<16x64xf32> to vector<2x64xf32>
    %1032 = arith.addf %1031, %1020 : vector<2x64xf32>
    %1033 = arith.negf %1032 : vector<2x64xf32>
    %1034 = math.exp %1033 : vector<2x64xf32>
    %cst_376 = arith.constant 1.000000e+00 : f32
    %1035 = vector.broadcast %cst_376 : f32 to vector<2x64xf32>
    %1036 = arith.addf %1035, %1034 : vector<2x64xf32>
    %1037 = arith.divf %1035, %1036 : vector<2x64xf32>
    %1038 = vector.extract_strided_slice %807 {offsets = [14, 0], sizes = [2, 64], strides = [1, 1]} : vector<16x64xf32> to vector<2x64xf32>
    %1039 = arith.mulf %1030, %1023 : vector<2x64xf32>
    %1040 = arith.addf %1038, %1039 : vector<2x64xf32>
    %1041 = math.tanh %1040 : vector<2x64xf32>
    %cst_377 = arith.constant 1.000000e+00 : f32
    %1042 = vector.broadcast %cst_377 : f32 to vector<2x64xf32>
    %1043 = arith.subf %1042, %1037 : vector<2x64xf32>
    %1044 = arith.mulf %1043, %1041 : vector<2x64xf32>
    %1045 = arith.mulf %1037, %1017 : vector<2x64xf32>
    %1046 = arith.addf %1044, %1045 : vector<2x64xf32>
    %c0_378 = arith.constant 0 : index
    %c448 = arith.constant 448 : index
    %1047 = vector.load %arg24[%c0_378, %c448] : memref<2x512xf32, #tpu.memory_space<vmem>>, vector<2x64xf32>
    tpu.vector_store %arg24[%c0_378, %c448], %1046 {strides = array<i32>} : memref<2x512xf32, #tpu.memory_space<vmem>>, vector<2x64xf32>,
    %c0_379 = arith.constant 0 : index
    %c0_380 = arith.constant 0 : index
    %1048 = vector.load %arg24[%c0_379, %c0_380] : memref<2x512xf32, #tpu.memory_space<vmem>>, vector<2x512xf32>
    %c0_381 = arith.constant 0 : index
    %c0_382 = arith.constant 0 : index
    %1049 = vector.load %arg17[%c0_381, %c0_382] : memref<512x32xf32, #tpu.memory_space<vmem>>, vector<512x32xf32>
    %cst_383 = arith.constant dense<0.000000e+00> : vector<2x32xf32>
    %1050 = tpu.matmul %1048, %1049, %cst_383 {dimension_numbers = #tpu.dot_dimension_numbers<[1], [0], [0], [1], [0, 0, 1, 1], [], []>} : vector<2x512xf32>, vector<512x32xf32>, vector<2x32xf32> -> vector<2x32xf32>
    %c0_384 = arith.constant 0 : index
    %c0_385 = arith.constant 0 : index
    %1051 = vector.load %arg18[%c0_384, %c0_385] : memref<1x32xf32, #tpu.memory_space<vmem>>, vector<1x32xf32>
    %1052 = vector.broadcast %1051 : vector<1x32xf32> to vector<2x32xf32>
    %1053 = arith.addf %1050, %1052 : vector<2x32xf32>
    %cst_386 = arith.constant 0.000000e+00 : f32
    %1054 = vector.broadcast %cst_386 : f32 to vector<2x32xf32>
    %1055 = arith.maximumf %1053, %1054 : vector<2x32xf32>
    %c0_387 = arith.constant 0 : index
    %c0_388 = arith.constant 0 : index
    %1056 = vector.load %arg19[%c0_387, %c0_388] : memref<32x4xf32, #tpu.memory_space<vmem>>, vector<32x4xf32>
    %cst_389 = arith.constant dense<0.000000e+00> : vector<2x4xf32>
    %1057 = tpu.matmul %1055, %1056, %cst_389 {dimension_numbers = #tpu.dot_dimension_numbers<[1], [0], [0], [1], [0, 0, 1, 1], [], []>} : vector<2x32xf32>, vector<32x4xf32>, vector<2x4xf32> -> vector<2x4xf32>
    %c0_390 = arith.constant 0 : index
    %c0_391 = arith.constant 0 : index
    %1058 = vector.load %arg20[%c0_390, %c0_391] : memref<1x4xf32, #tpu.memory_space<vmem>>, vector<1x4xf32>
    %1059 = vector.broadcast %1058 : vector<1x4xf32> to vector<2x4xf32>
    %1060 = arith.addf %1057, %1059 : vector<2x4xf32>
    %1061 = arith.negf %1060 : vector<2x4xf32>
    %1062 = math.exp %1061 : vector<2x4xf32>
    %cst_392 = arith.constant 1.000000e+00 : f32
    %1063 = vector.broadcast %cst_392 : f32 to vector<2x4xf32>
    %1064 = arith.addf %1063, %1062 : vector<2x4xf32>
    %1065 = arith.divf %1063, %1064 : vector<2x4xf32>
    %c0_393 = arith.constant 0 : index
    %c0_394 = arith.constant 0 : index
    %1066 = vector.load %arg21[%c0_393, %c0_394] : memref<2x4xf32, #tpu.memory_space<vmem>>, vector<2x4xf32>
    tpu.vector_store %arg21[%c0_393, %c0_394], %1065 {strides = array<i32>} : memref<2x4xf32, #tpu.memory_space<vmem>>, vector<2x4xf32>,
    return
  }
}

</mosaic_0001>

<llo_original>
// kernel: patient_finetune_gru_forward.1
$region0: #{patient_finetune_gru_forward.1}
  #allocation0 [shape = 'u32[]', space=smem, size = 0x4, offset = 0x4, fixed_abs, tag = 'smem constant byte address 0x4 - core index']
  #allocation1 [shape = 'u32[144,128]{1,0:T(1,128)}', space=vmem, size = 0x12000, scoped, tag = 'internal scratch']
  #allocation2 [shape = 'f32[16,64]{1,0:T(8,128)}', space=vmem, size = 0x2000, scoped, tag = 'scratch operand']
  #allocation3 [shape = 'f32[16,64]{1,0:T(8,128)}', space=vmem, size = 0x2000, scoped, tag = 'scratch operand']
  #allocation4 [shape = 'f32[2,512]{1,0:T(2,128)}', space=vmem, size = 0x1000, scoped, tag = 'scratch operand']
  %s0 = inlined_call_operand.vmem [shape: f32[16,32], index: 0, kind: input, shape index: {}]
  %s1 = inlined_call_operand.hbm [shape: f32[3,32,64], index: 1, kind: input, shape index: {}]
  %s2 = inlined_call_operand.vmem [shape: f32[3,64,64], index: 2, kind: input, shape index: {}]
  %s3 = inlined_call_operand.hbm [shape: f32[3,1,64], index: 3, kind: input, shape index: {}]
  %s4 = inlined_call_operand.hbm [shape: f32[1,64], index: 4, kind: input, shape index: {}]
  %s5 = inlined_call_operand.vmem [shape: f32[3,64,64], index: 5, kind: input, shape index: {}]
  %s6 = inlined_call_operand.vmem [shape: f32[3,64,64], index: 6, kind: input, shape index: {}]
  %s7 = inlined_call_operand.hbm [shape: f32[3,1,64], index: 7, kind: input, shape index: {}]
  %s8 = inlined_call_operand.hbm [shape: f32[1,64], index: 8, kind: input, shape index: {}]
  %s9 = inlined_call_operand.hbm [shape: f32[3,64,64], index: 9, kind: input, shape index: {}]
  %s10 = inlined_call_operand.hbm [shape: f32[3,64,64], index: 10, kind: input, shape index: {}]
  %s11 = inlined_call_operand.hbm [shape: f32[3,1,64], index: 11, kind: input, shape index: {}]
  %s12 = inlined_call_operand.hbm [shape: f32[1,64], index: 12, kind: input, shape index: {}]
  %s13 = inlined_call_operand.vmem [shape: f32[3,64,64], index: 13, kind: input, shape index: {}]
  %s14 = inlined_call_operand.hbm [shape: f32[3,64,64], index: 14, kind: input, shape index: {}]
  %s15 = inlined_call_operand.hbm [shape: f32[3,1,64], index: 15, kind: input, shape index: {}]
  %s16 = inlined_call_operand.hbm [shape: f32[1,64], index: 16, kind: input, shape index: {}]
  %s17 = inlined_call_operand.vmem [shape: f32[512,32], index: 17, kind: input, shape index: {}]
  %s18 = inlined_call_operand.hbm [shape: f32[1,32], index: 18, kind: input, shape index: {}]
  %s19 = inlined_call_operand.vmem [shape: f32[32,4], index: 19, kind: input, shape index: {}]
  %s20 = inlined_call_operand.hbm [shape: f32[1,4], index: 20, kind: input, shape index: {}]
  %s21 = inlined_call_operand.hbm [shape: f32[2,4], index: 21, kind: output, shape index: {}]
  %s22 = sld [smem:[#allocation0]]
  $region150: #{patient_finetune_gru_forward.1} parent=0
    _
  %s24 = ssub.s32 1, %s22
  %s25 = scalar_select 0, %s24, %s22
  $region1: #{patient_finetune_gru_forward.1} parent=0
    #allocation5 [shape = 'u8[49152]{0}', space=vmem, size = 0xc000, scoped, tag = 'input window, operand 1, single buffered']
    #allocation6 [shape = 's32[1]{0}', space=sflag, size = 0x4, scoped, tag = 'scoped memory for patient_finetune_gru_forward.1']
    #allocation7 [shape = 's32[1]{0}', space=sflag, size = 0x4, scoped, tag = 'scoped memory for patient_finetune_gru_forward.1']
    #allocation8 [shape = 'u8[1536]{0}', space=vmem, size = 0x800, scoped, tag = 'input window, operand 3, single buffered']
    #allocation9 [shape = 's32[1]{0}', space=sflag, size = 0x4, scoped, tag = 'scoped memory for patient_finetune_gru_forward.1']
    #allocation10 [shape = 'u8[512]{0}', space=vmem, size = 0x400, scoped, tag = 'input window, operand 4, single buffered']
    #allocation11 [shape = 'u8[1536]{0}', space=vmem, size = 0x800, scoped, tag = 'input window, operand 7, single buffered']
    #allocation12 [shape = 's32[1]{0}', space=sflag, size = 0x4, scoped, tag = 'scoped memory for patient_finetune_gru_forward.1']
    #allocation13 [shape = 'u8[512]{0}', space=vmem, size = 0x400, scoped, tag = 'input window, operand 8, single buffered']
    #allocation14 [shape = 'u8[98304]{0}', space=vmem, size = 0x18000, scoped, tag = 'input window, operand 9, single buffered']
    #allocation15 [shape = 's32[1]{0}', space=sflag, size = 0x4, scoped, tag = 'scoped memory for patient_finetune_gru_forward.1']
    #allocation16 [shape = 'u8[98304]{0}', space=vmem, size = 0x18000, scoped, tag = 'input window, operand 10, single buffered']
    #allocation17 [shape = 'u8[1536]{0}', space=vmem, size = 0x800, scoped, tag = 'input window, operand 11, single buffered']
    #allocation18 [shape = 's32[1]{0}', space=sflag, size = 0x4, scoped, tag = 'scoped memory for patient_finetune_gru_forward.1']
    #allocation19 [shape = 'u8[512]{0}', space=vmem, size = 0x400, scoped, tag = 'input window, operand 12, single buffered']
    #allocation20 [shape = 'u8[98304]{0}', space=vmem, size = 0x18000, scoped, tag = 'input window, operand 14, single buffered']
    #allocation21 [shape = 's32[1]{0}', space=sflag, size = 0x4, scoped, tag = 'scoped memory for patient_finetune_gru_forward.1']
    #allocation22 [shape = 'u8[1536]{0}', space=vmem, size = 0x800, scoped, tag = 'input window, operand 15, single buffered']
    #allocation23 [shape = 'u8[512]{0}', space=vmem, size = 0x400, scoped, tag = 'input window, operand 16, single buffered']
    #allocation24 [shape = 's32[1]{0}', space=sflag, size = 0x4, scoped, tag = 'scoped memory for patient_finetune_gru_forward.1']
    #allocation25 [shape = 'u8[512]{0}', space=vmem, size = 0x400, scoped, tag = 'input window, operand 18, single buffered']
    #allocation26 [shape = 'u8[512]{0}', space=vmem, size = 0x400, scoped, tag = 'input window, operand 20, single buffered']
    #allocation27 [shape = 's32[1]{0}', space=sflag, size = 0x4, scoped, tag = 'scoped memory for patient_finetune_gru_forward.1']
    #allocation28 [shape = 'u8[1024]{0}', space=vmem, size = 0x400, scoped, tag = 'output window, operand 0, single buffered']
    %26 = vsyncpa [#allocation6], 0
    %27 = vsyncpa [#allocation9], 0
    %28 = vsyncpa [#allocation12], 0
    %29 = vsyncpa [#allocation15], 0
    %30 = vsyncpa [#allocation18], 0
    %31 = vsyncpa [#allocation21], 0
    %32 = vsyncpa [#allocation24], 0
    %33 = vsyncpa [#allocation27], 0
    %34 = vsyncpa [#allocation7], 0
    // Predicated region
    $region2: #{patient_finetune_gru_forward.1} parent=1 // pred_check
      _
    $region3: #{patient_finetune_gru_forward.1} parent=1 // pred_check_branch
      %36 = sbr.rel (0) target = $region5
    $region4: #{patient_finetune_gru_forward.1} parent=1 // pred_region
      _
    $region5: #{patient_finetune_gru_forward.1} parent=1 // pred_fallthru
      _
    // Predicated region
    $region6: #{patient_finetune_gru_forward.1} parent=1 // pred_check
      _
    $region7: #{patient_finetune_gru_forward.1} parent=1 // pred_check_branch
      %38 = sbr.rel (0) target = $region9
    $region8: #{patient_finetune_gru_forward.1} parent=1 // pred_region
      %s40 = ssub.s32 1536, 1536
      %41 = vsyncadd [#allocation6], %s40
      %s42 = sshll.u32 [#allocation5], 4
      %s43 = int_to_ptr.vmem [resolvable:$true] %s42
      %48 = dma.hbm_to_vmem [thread:$0]  %s1, 1536, %s43, [#allocation6], 128, 128, 8
    $region9: #{patient_finetune_gru_forward.1} parent=1 // pred_fallthru
      _
    // Predicated region
    $region10: #{patient_finetune_gru_forward.1} parent=1 // pred_check
      _
    $region11: #{patient_finetune_gru_forward.1} parent=1 // pred_check_branch
      %50 = sbr.rel (0) target = $region13
    $region12: #{patient_finetune_gru_forward.1} parent=1 // pred_region
      _
    $region13: #{patient_finetune_gru_forward.1} parent=1 // pred_fallthru
      _
    // Predicated region
    $region14: #{patient_finetune_gru_forward.1} parent=1 // pred_check
      _
    $region15: #{patient_finetune_gru_forward.1} parent=1 // pred_check_branch
      %52 = sbr.rel (0) target = $region17
    $region16: #{patient_finetune_gru_forward.1} parent=1 // pred_region
      %s54 = ssub.s32 48, 48
      %55 = vsyncadd [#allocation9], %s54
      %s56 = sshll.u32 [#allocation8], 4
      %s57 = int_to_ptr.vmem [resolvable:$true] %s56
      %62 = dma.hbm_to_vmem [thread:$0]  %s3, 48, %s57, [#allocation9], 16, 16, 1
    $region17: #{patient_finetune_gru_forward.1} parent=1 // pred_fallthru
      _
    // Predicated region
    $region18: #{patient_finetune_gru_forward.1} parent=1 // pred_check
      _
    $region19: #{patient_finetune_gru_forward.1} parent=1 // pred_check_branch
      %64 = sbr.rel (0) target = $region21
    $region20: #{patient_finetune_gru_forward.1} parent=1 // pred_region
      %s66 = ssub.s32 16, 16
      %67 = vsyncadd [#allocation9], %s66
      %s69 = sshll.u32 [#allocation10], 4
      %s70 = int_to_ptr.vmem [resolvable:$true] %s69
      %72 = dma.hbm_to_vmem [thread:$0]  %s4, 16, %s70, [#allocation9]
    $region21: #{patient_finetune_gru_forward.1} parent=1 // pred_fallthru
      _
    // Predicated region
    $region22: #{patient_finetune_gru_forward.1} parent=1 // pred_check
      _
    $region23: #{patient_finetune_gru_forward.1} parent=1 // pred_check_branch
      %74 = sbr.rel (0) target = $region25
    $region24: #{patient_finetune_gru_forward.1} parent=1 // pred_region
      _
    $region25: #{patient_finetune_gru_forward.1} parent=1 // pred_fallthru
      _
    // Predicated region
    $region26: #{patient_finetune_gru_forward.1} parent=1 // pred_check
      _
    $region27: #{patient_finetune_gru_forward.1} parent=1 // pred_check_branch
      %76 = sbr.rel (0) target = $region29
    $region28: #{patient_finetune_gru_forward.1} parent=1 // pred_region
      _
    $region29: #{patient_finetune_gru_forward.1} parent=1 // pred_fallthru
      _
    // Predicated region
    $region30: #{patient_finetune_gru_forward.1} parent=1 // pred_check
      _
    $region31: #{patient_finetune_gru_forward.1} parent=1 // pred_check_branch
      %78 = sbr.rel (0) target = $region33
    $region32: #{patient_finetune_gru_forward.1} parent=1 // pred_region
      %s80 = ssub.s32 48, 48
      %81 = vsyncadd [#allocation12], %s80
      %s82 = sshll.u32 [#allocation11], 4
      %s83 = int_to_ptr.vmem [resolvable:$true] %s82
      %88 = dma.hbm_to_vmem [thread:$0]  %s7, 48, %s83, [#allocation12], 16, 16, 1
    $region33: #{patient_finetune_gru_forward.1} parent=1 // pred_fallthru
      _
    // Predicated region
    $region34: #{patient_finetune_gru_forward.1} parent=1 // pred_check
      _
    $region35: #{patient_finetune_gru_forward.1} parent=1 // pred_check_branch
      %90 = sbr.rel (0) target = $region37
    $region36: #{patient_finetune_gru_forward.1} parent=1 // pred_region
      %s92 = ssub.s32 16, 16
      %93 = vsyncadd [#allocation12], %s92
      %s95 = sshll.u32 [#allocation13], 4
      %s96 = int_to_ptr.vmem [resolvable:$true] %s95
      %98 = dma.hbm_to_vmem [thread:$0]  %s8, 16, %s96, [#allocation12]
    $region37: #{patient_finetune_gru_forward.1} parent=1 // pred_fallthru
      _
    // Predicated region
    $region38: #{patient_finetune_gru_forward.1} parent=1 // pred_check
      _
    $region39: #{patient_finetune_gru_forward.1} parent=1 // pred_check_branch
      %100 = sbr.rel (0) target = $region41
    $region40: #{patient_finetune_gru_forward.1} parent=1 // pred_region
      %s102 = ssub.s32 3072, 3072
      %103 = vsyncadd [#allocation15], %s102
      %s104 = sshll.u32 [#allocation14], 4
      %s105 = int_to_ptr.vmem [resolvable:$true] %s104
      %110 = dma.hbm_to_vmem [thread:$0]  %s9, 3072, %s105, [#allocation15], 128, 128, 8
    $region41: #{patient_finetune_gru_forward.1} parent=1 // pred_fallthru
      _
    // Predicated region
    $region42: #{patient_finetune_gru_forward.1} parent=1 // pred_check
      _
    $region43: #{patient_finetune_gru_forward.1} parent=1 // pred_check_branch
      %112 = sbr.rel (0) target = $region45
    $region44: #{patient_finetune_gru_forward.1} parent=1 // pred_region
      %s114 = ssub.s32 3072, 3072
      %115 = vsyncadd [#allocation15], %s114
      %s116 = sshll.u32 [#allocation16], 4
      %s117 = int_to_ptr.vmem [resolvable:$true] %s116
      %122 = dma.hbm_to_vmem [thread:$0]  %s10, 3072, %s117, [#allocation15], 128, 128, 8
    $region45: #{patient_finetune_gru_forward.1} parent=1 // pred_fallthru
      _
    // Predicated region
    $region46: #{patient_finetune_gru_forward.1} parent=1 // pred_check
      _
    $region47: #{patient_finetune_gru_forward.1} parent=1 // pred_check_branch
      %124 = sbr.rel (0) target = $region49
    $region48: #{patient_finetune_gru_forward.1} parent=1 // pred_region
      %s126 = ssub.s32 48, 48
      %127 = vsyncadd [#allocation18], %s126
      %s128 = sshll.u32 [#allocation17], 4
      %s129 = int_to_ptr.vmem [resolvable:$true] %s128
      %134 = dma.hbm_to_vmem [thread:$0]  %s11, 48, %s129, [#allocation18], 16, 16, 1
    $region49: #{patient_finetune_gru_forward.1} parent=1 // pred_fallthru
      _
    // Predicated region
    $region50: #{patient_finetune_gru_forward.1} parent=1 // pred_check
      _
    $region51: #{patient_finetune_gru_forward.1} parent=1 // pred_check_branch
      %136 = sbr.rel (0) target = $region53
    $region52: #{patient_finetune_gru_forward.1} parent=1 // pred_region
      %s138 = ssub.s32 16, 16
      %139 = vsyncadd [#allocation18], %s138
      %s141 = sshll.u32 [#allocation19], 4
      %s142 = int_to_ptr.vmem [resolvable:$true] %s141
      %144 = dma.hbm_to_vmem [thread:$0]  %s12, 16, %s142, [#allocation18]
    $region53: #{patient_finetune_gru_forward.1} parent=1 // pred_fallthru
      _
    // Predicated region
    $region54: #{patient_finetune_gru_forward.1} parent=1 // pred_check
      _
    $region55: #{patient_finetune_gru_forward.1} parent=1 // pred_check_branch
      %146 = sbr.rel (0) target = $region57
    $region56: #{patient_finetune_gru_forward.1} parent=1 // pred_region
      _
    $region57: #{patient_finetune_gru_forward.1} parent=1 // pred_fallthru
      _
    // Predicated region
    $region58: #{patient_finetune_gru_forward.1} parent=1 // pred_check
      _
    $region59: #{patient_finetune_gru_forward.1} parent=1 // pred_check_branch
      %148 = sbr.rel (0) target = $region61
    $region60: #{patient_finetune_gru_forward.1} parent=1 // pred_region
      %s150 = ssub.s32 3072, 3072
      %151 = vsyncadd [#allocation21], %s150
      %s152 = sshll.u32 [#allocation20], 4
      %s153 = int_to_ptr.vmem [resolvable:$true] %s152
      %158 = dma.hbm_to_vmem [thread:$0]  %s14, 3072, %s153, [#allocation21], 128, 128, 8
    $region61: #{patient_finetune_gru_forward.1} parent=1 // pred_fallthru
      _
    // Predicated region
    $region62: #{patient_finetune_gru_forward.1} parent=1 // pred_check
      _
    $region63: #{patient_finetune_gru_forward.1} parent=1 // pred_check_branch
      %160 = sbr.rel (0) target = $region65
    $region64: #{patient_finetune_gru_forward.1} parent=1 // pred_region
      %s162 = ssub.s32 48, 48
      %163 = vsyncadd [#allocation21], %s162
      %s164 = sshll.u32 [#allocation22], 4
      %s165 = int_to_ptr.vmem [resolvable:$true] %s164
      %170 = dma.hbm_to_vmem [thread:$0]  %s15, 48, %s165, [#allocation21], 16, 16, 1
    $region65: #{patient_finetune_gru_forward.1} parent=1 // pred_fallthru
      _
    // Predicated region
    $region66: #{patient_finetune_gru_forward.1} parent=1 // pred_check
      _
    $region67: #{patient_finetune_gru_forward.1} parent=1 // pred_check_branch
      %172 = sbr.rel (0) target = $region69
    $region68: #{patient_finetune_gru_forward.1} parent=1 // pred_region
      %s174 = ssub.s32 16, 16
      %175 = vsyncadd [#allocation24], %s174
      %s177 = sshll.u32 [#allocation23], 4
      %s178 = int_to_ptr.vmem [resolvable:$true] %s177
      %180 = dma.hbm_to_vmem [thread:$0]  %s16, 16, %s178, [#allocation24]
    $region69: #{patient_finetune_gru_forward.1} parent=1 // pred_fallthru
      _
    // Predicated region
    $region70: #{patient_finetune_gru_forward.1} parent=1 // pred_check
      _
    $region71: #{patient_finetune_gru_forward.1} parent=1 // pred_check_branch
      %182 = sbr.rel (0) target = $region73
    $region72: #{patient_finetune_gru_forward.1} parent=1 // pred_region
      _
    $region73: #{patient_finetune_gru_forward.1} parent=1 // pred_fallthru
      _
    // Predicated region
    $region74: #{patient_finetune_gru_forward.1} parent=1 // pred_check
      _
    $region75: #{patient_finetune_gru_forward.1} parent=1 // pred_check_branch
      %184 = sbr.rel (0) target = $region77
    $region76: #{patient_finetune_gru_forward.1} parent=1 // pred_region
      %s186 = ssub.s32 16, 16
      %187 = vsyncadd [#allocation24], %s186
      %s189 = sshll.u32 [#allocation25], 4
      %s190 = int_to_ptr.vmem [resolvable:$true] %s189
      %192 = dma.hbm_to_vmem [thread:$0]  %s18, 16, %s190, [#allocation24]
    $region77: #{patient_finetune_gru_forward.1} parent=1 // pred_fallthru
      _
    // Predicated region
    $region78: #{patient_finetune_gru_forward.1} parent=1 // pred_check
      _
    $region79: #{patient_finetune_gru_forward.1} parent=1 // pred_check_branch
      %194 = sbr.rel (0) target = $region81
    $region80: #{patient_finetune_gru_forward.1} parent=1 // pred_region
      _
    $region81: #{patient_finetune_gru_forward.1} parent=1 // pred_fallthru
      _
    // Predicated region
    $region82: #{patient_finetune_gru_forward.1} parent=1 // pred_check
      _
    $region83: #{patient_finetune_gru_forward.1} parent=1 // pred_check_branch
      %196 = sbr.rel (0) target = $region85
    $region84: #{patient_finetune_gru_forward.1} parent=1 // pred_region
      %s198 = ssub.s32 16, 16
      %199 = vsyncadd [#allocation27], %s198
      %s201 = sshll.u32 [#allocation26], 4
      %s202 = int_to_ptr.vmem [resolvable:$true] %s201
      %204 = dma.hbm_to_vmem [thread:$0]  %s20, 16, %s202, [#allocation27]
    $region85: #{patient_finetune_gru_forward.1} parent=1 // pred_fallthru
      _
    // Predicated region
    $region86: #{patient_finetune_gru_forward.1} parent=1 // pred_check
      _
    $region87: #{patient_finetune_gru_forward.1} parent=1 // pred_check_branch
      %206 = sbr.rel (0) target = $region89
    $region88: #{patient_finetune_gru_forward.1} parent=1 // pred_region
      %207 = dma.done [#allocation6], 1536
    $region89: #{patient_finetune_gru_forward.1} parent=1 // pred_fallthru
      _
    // Predicated region
    $region90: #{patient_finetune_gru_forward.1} parent=1 // pred_check
      _
    $region91: #{patient_finetune_gru_forward.1} parent=1 // pred_check_branch
      %209 = sbr.rel (0) target = $region93
    $region92: #{patient_finetune_gru_forward.1} parent=1 // pred_region
      %210 = dma.done [#allocation9], 48
    $region93: #{patient_finetune_gru_forward.1} parent=1 // pred_fallthru
      _
    // Predicated region
    $region94: #{patient_finetune_gru_forward.1} parent=1 // pred_check
      _
    $region95: #{patient_finetune_gru_forward.1} parent=1 // pred_check_branch
      %212 = sbr.rel (0) target = $region97
    $region96: #{patient_finetune_gru_forward.1} parent=1 // pred_region
      %213 = dma.done [#allocation9], 16
    $region97: #{patient_finetune_gru_forward.1} parent=1 // pred_fallthru
      _
    // Predicated region
    $region98: #{patient_finetune_gru_forward.1} parent=1 // pred_check
      _
    $region99: #{patient_finetune_gru_forward.1} parent=1 // pred_check_branch
      %215 = sbr.rel (0) target = $region101
    $region100: #{patient_finetune_gru_forward.1} parent=1 // pred_region
      %216 = dma.done [#allocation12], 48
    $region101: #{patient_finetune_gru_forward.1} parent=1 // pred_fallthru
      _
    // Predicated region
    $region102: #{patient_finetune_gru_forward.1} parent=1 // pred_check
      _
    $region103: #{patient_finetune_gru_forward.1} parent=1 // pred_check_branch
      %218 = sbr.rel (0) target = $region105
    $region104: #{patient_finetune_gru_forward.1} parent=1 // pred_region
      %219 = dma.done [#allocation12], 16
    $region105: #{patient_finetune_gru_forward.1} parent=1 // pred_fallthru
      _
    // Predicated region
    $region106: #{patient_finetune_gru_forward.1} parent=1 // pred_check
      _
    $region107: #{patient_finetune_gru_forward.1} parent=1 // pred_check_branch
      %221 = sbr.rel (0) target = $region109
    $region108: #{patient_finetune_gru_forward.1} parent=1 // pred_region
      %222 = dma.done [#allocation15], 3072
    $region109: #{patient_finetune_gru_forward.1} parent=1 // pred_fallthru
      _
    // Predicated region
    $region110: #{patient_finetune_gru_forward.1} parent=1 // pred_check
      _
    $region111: #{patient_finetune_gru_forward.1} parent=1 // pred_check_branch
      %224 = sbr.rel (0) target = $region113
    $region112: #{patient_finetune_gru_forward.1} parent=1 // pred_region
      %225 = dma.done [#allocation15], 3072
    $region113: #{patient_finetune_gru_forward.1} parent=1 // pred_fallthru
      _
    // Predicated region
    $region114: #{patient_finetune_gru_forward.1} parent=1 // pred_check
      _
    $region115: #{patient_finetune_gru_forward.1} parent=1 // pred_check_branch
      %227 = sbr.rel (0) target = $region117
    $region116: #{patient_finetune_gru_forward.1} parent=1 // pred_region
      %228 = dma.done [#allocation18], 48
    $region117: #{patient_finetune_gru_forward.1} parent=1 // pred_fallthru
      _
    // Predicated region
    $region118: #{patient_finetune_gru_forward.1} parent=1 // pred_check
      _
    $region119: #{patient_finetune_gru_forward.1} parent=1 // pred_check_branch
      %230 = sbr.rel (0) target = $region121
    $region120: #{patient_finetune_gru_forward.1} parent=1 // pred_region
      %231 = dma.done [#allocation18], 16
    $region121: #{patient_finetune_gru_forward.1} parent=1 // pred_fallthru
      _
    // Predicated region
    $region122: #{patient_finetune_gru_forward.1} parent=1 // pred_check
      _
    $region123: #{patient_finetune_gru_forward.1} parent=1 // pred_check_branch
      %233 = sbr.rel (0) target = $region125
    $region124: #{patient_finetune_gru_forward.1} parent=1 // pred_region
      %234 = dma.done [#allocation21], 3072
    $region125: #{patient_finetune_gru_forward.1} parent=1 // pred_fallthru
      _
    // Predicated region
    $region126: #{patient_finetune_gru_forward.1} parent=1 // pred_check
      _
    $region127: #{patient_finetune_gru_forward.1} parent=1 // pred_check_branch
      %236 = sbr.rel (0) target = $region129
    $region128: #{patient_finetune_gru_forward.1} parent=1 // pred_region
      %237 = dma.done [#allocation21], 48
    $region129: #{patient_finetune_gru_forward.1} parent=1 // pred_fallthru
      _
    // Predicated region
    $region130: #{patient_finetune_gru_forward.1} parent=1 // pred_check
      _
    $region131: #{patient_finetune_gru_forward.1} parent=1 // pred_check_branch
      %239 = sbr.rel (0) target = $region133
    $region132: #{patient_finetune_gru_forward.1} parent=1 // pred_region
      %240 = dma.done [#allocation24], 16
    $region133: #{patient_finetune_gru_forward.1} parent=1 // pred_fallthru
      _
    // Predicated region
    $region134: #{patient_finetune_gru_forward.1} parent=1 // pred_check
      _
    $region135: #{patient_finetune_gru_forward.1} parent=1 // pred_check_branch
      %242 = sbr.rel (0) target = $region137
    $region136: #{patient_finetune_gru_forward.1} parent=1 // pred_region
      %243 = dma.done [#allocation24], 16
    $region137: #{patient_finetune_gru_forward.1} parent=1 // pred_fallthru
      _
    // Predicated region
    $region138: #{patient_finetune_gru_forward.1} parent=1 // pred_check
      _
    $region139: #{patient_finetune_gru_forward.1} parent=1 // pred_check_branch
      %245 = sbr.rel (0) target = $region141
    $region140: #{patient_finetune_gru_forward.1} parent=1 // pred_region
      %246 = dma.done [#allocation27], 16
    $region141: #{patient_finetune_gru_forward.1} parent=1 // pred_fallthru
      _
    %v247 = vld [vmem:[%s0] sm:$0xff]
    %v248 = vld [vmem:[%s0 + $0x8] sm:$0xff]
    %v249 = vld [vmem:[#allocation5] sm:$0xff]
    %v250 = vld [vmem:[#allocation5 + $0x8] sm:$0xff]
    %v251 = vld [vmem:[#allocation5 + $0x10] sm:$0xff]
    %v252 = vld [vmem:[#allocation5 + $0x18] sm:$0xff]
    %v253 = vld [vmem:[#allocation8] sm:$0x1]
    %v255 = vlaneseq
    %v256 = vshrl.u32 %v255, 7
    %v257 = vsub.s32 0, %v256
    %v258 = vrot.slane %v253, %v257
    %vm260 = vcmask 261120
    %v262 = vsel %vm260, %v247, 0
    %v265 = vsel %vm260, %v248, 0
    %267 = vmatprep.subr.mxu0 0.0
    %268 = vmatpush1.msra.mxu0 %v249
    %269 = vmatprep.subr.mxu0 0.0
    %270 = vmatpush1.msra.mxu0 %v250
    %271 = vmatprep.subr.mxu0 0.0
    %272 = vmatpush1.msra.mxu0 %v251
    %273 = vmatprep.subr.mxu0 0.0
    %274 = vmatpush1.msra.mxu0 %v252
    %275 = vmatprep.subr.mxu0 0.0
    %276 = vmatpush1.msra.mxu0 0.0
    %277 = vmatprep.subr.mxu0 0.0
    %278 = vmatpush1.msra.mxu0 0.0
    %279 = vmatprep.subr.mxu0 0.0
    %280 = vmatpush1.msra.mxu0 0.0
    %281 = vmatprep.subr.mxu0 0.0
    %282 = vmatpush1.msra.mxu0 0.0
    %283 = vmatprep.subr.mxu0 0.0
    %284 = vmatpush1.msra.mxu0 0.0
    %285 = vmatprep.subr.mxu0 0.0
    %286 = vmatpush1.msra.mxu0 0.0
    %287 = vmatprep.subr.mxu0 0.0
    %288 = vmatpush1.msra.mxu0 0.0
    %289 = vmatprep.subr.mxu0 0.0
    %290 = vmatpush1.msra.mxu0 0.0
    %291 = vmatprep.subr.mxu0 0.0
    %292 = vmatpush1.msra.mxu0 0.0
    %293 = vmatprep.subr.mxu0 0.0
    %294 = vmatpush1.msra.mxu0 0.0
    %295 = vmatprep.subr.mxu0 0.0
    %296 = vmatpush1.msra.mxu0 0.0
    %297 = vmatprep.subr.mxu0 0.0
    %298 = vmatpush1.msra.mxu0 0.0
    %299 = vmatprep.subr.mxu0 0.0
    %300 = vmatpush1.msra.mxu0 0.0
    %301 = vmatprep.subr.mxu0 0.0
    %302 = vmatpush1.msra.mxu0 0.0
    %303 = vmatprep.subr.mxu0 0.0
    %304 = vmatpush1.msra.mxu0 0.0
    %305 = vmatprep.subr.mxu0 0.0
    %306 = vmatpush1.msra.mxu0 0.0
    %307 = vmatprep.subr.mxu0 0.0
    %308 = vmatpush1.msra.mxu0 0.0
    %309 = vmatprep.subr.mxu0 0.0
    %310 = vmatpush1.msra.mxu0 0.0
    %311 = vmatprep.subr.mxu0 0.0
    %312 = vmatpush1.msra.mxu0 0.0
    %313 = vmatprep.subr.mxu0 0.0
    %314 = vmatpush1.msra.mxu0 0.0
    %315 = vmatprep.subr.mxu0 0.0
    %316 = vmatpush1.msra.mxu0 0.0
    %317 = vmatprep.subr.mxu0 0.0
    %318 = vmatpush1.msra.mxu0 0.0
    %319 = vmatprep.subr.mxu0 0.0
    %320 = vmatpush1.msra.mxu0 0.0
    %321 = vmatprep.subr.mxu0 0.0
    %322 = vmatpush1.msra.mxu0 0.0
    %323 = vmatprep.subr.mxu0 0.0
    %324 = vmatpush1.msra.mxu0 0.0
    %325 = vmatprep.subr.mxu0 0.0
    %326 = vmatpush1.msra.mxu0 0.0
    %327 = vmatprep.subr.mxu0 0.0
    %328 = vmatpush1.msra.mxu0 0.0
    %329 = vmatprep.subr.mxu0 0.0
    %330 = vmatpush1.msra.mxu0 0.0
    %331 = vmatprep.mubr.f32.mxu0 0.0
    %332 = vmatmul.mubr.f32.gmra.mrb[0].mxu0 %v262
    %v333 = vpop.f32.mrb[0].mxu0
    %v334 = vadd.f32 %v258, %v333
    %v335 = vpop.f32.mrb[0].mxu0
    %336 = vmatprep.mubr.f32.mxu0 0.0
    %337 = vmatmul.mubr.f32.gmra.mrb[0].mxu0 %v265
    %v338 = vpop.f32.mrb[0].mxu0
    %v339 = vadd.f32 %v258, %v338
    %v340 = vpop.f32.mrb[0].mxu0
    %341 = vdwg.mxu0
    %s342 = scalar_lea.vmem [#allocation5], 32
    %v343 = vld [vmem:[%s342] sm:$0xff]
    %v344 = vld [vmem:[%s342 + $0x8] sm:$0xff]
    %v345 = vld [vmem:[%s342 + $0x10] sm:$0xff]
    %v346 = vld [vmem:[%s342 + $0x18] sm:$0xff]
    %s347 = scalar_lea.vmem [#allocation8], 1
    %v348 = vld [vmem:[%s347] sm:$0x1]
    %v350 = vlaneseq
    %v351 = vshrl.u32 %v350, 7
    %v352 = vsub.s32 0, %v351
    %v353 = vrot.slane %v348, %v352
    %355 = vmatprep.subr.mxu0 0.0
    %356 = vmatpush1.msra.mxu0 %v343
    %357 = vmatprep.subr.mxu0 0.0
    %358 = vmatpush1.msra.mxu0 %v344
    %359 = vmatprep.subr.mxu0 0.0
    %360 = vmatpush1.msra.mxu0 %v345
    %361 = vmatprep.subr.mxu0 0.0
    %362 = vmatpush1.msra.mxu0 %v346
    %363 = vmatprep.subr.mxu0 0.0
    %364 = vmatpush1.msra.mxu0 0.0
    %365 = vmatprep.subr.mxu0 0.0
    %366 = vmatpush1.msra.mxu0 0.0
    %367 = vmatprep.subr.mxu0 0.0
    %368 = vmatpush1.msra.mxu0 0.0
    %369 = vmatprep.subr.mxu0 0.0
    %370 = vmatpush1.msra.mxu0 0.0
    %371 = vmatprep.subr.mxu0 0.0
    %372 = vmatpush1.msra.mxu0 0.0
    %373 = vmatprep.subr.mxu0 0.0
    %374 = vmatpush1.msra.mxu0 0.0
    %375 = vmatprep.subr.mxu0 0.0
    %376 = vmatpush1.msra.mxu0 0.0
    %377 = vmatprep.subr.mxu0 0.0
    %378 = vmatpush1.msra.mxu0 0.0
    %379 = vmatprep.subr.mxu0 0.0
    %380 = vmatpush1.msra.mxu0 0.0
    %381 = vmatprep.subr.mxu0 0.0
    %382 = vmatpush1.msra.mxu0 0.0
    %383 = vmatprep.subr.mxu0 0.0
    %384 = vmatpush1.msra.mxu0 0.0
    %385 = vmatprep.subr.mxu0 0.0
    %386 = vmatpush1.msra.mxu0 0.0
    %387 = vmatprep.subr.mxu0 0.0
    %388 = vmatpush1.msra.mxu0 0.0
    %389 = vmatprep.subr.mxu0 0.0
    %390 = vmatpush1.msra.mxu0 0.0
    %391 = vmatprep.subr.mxu0 0.0
    %392 = vmatpush1.msra.mxu0 0.0
    %393 = vmatprep.subr.mxu0 0.0
    %394 = vmatpush1.msra.mxu0 0.0
    %395 = vmatprep.subr.mxu0 0.0
    %396 = vmatpush1.msra.mxu0 0.0
    %397 = vmatprep.subr.mxu0 0.0
    %398 = vmatpush1.msra.mxu0 0.0
    %399 = vmatprep.subr.mxu0 0.0
    %400 = vmatpush1.msra.mxu0 0.0
    %401 = vmatprep.subr.mxu0 0.0
    %402 = vmatpush1.msra.mxu0 0.0
    %403 = vmatprep.subr.mxu0 0.0
    %404 = vmatpush1.msra.mxu0 0.0
    %405 = vmatprep.subr.mxu0 0.0
    %406 = vmatpush1.msra.mxu0 0.0
    %407 = vmatprep.subr.mxu0 0.0
    %408 = vmatpush1.msra.mxu0 0.0
    %409 = vmatprep.subr.mxu0 0.0
    %410 = vmatpush1.msra.mxu0 0.0
    %411 = vmatprep.subr.mxu0 0.0
    %412 = vmatpush1.msra.mxu0 0.0
    %413 = vmatprep.subr.mxu0 0.0
    %414 = vmatpush1.msra.mxu0 0.0
    %415 = vmatprep.subr.mxu0 0.0
    %416 = vmatpush1.msra.mxu0 0.0
    %417 = vmatprep.subr.mxu0 0.0
    %418 = vmatpush1.msra.mxu0 0.0
    %419 = vmatprep.mubr.f32.mxu0 0.0
    %420 = vmatmul.mubr.f32.gmra.mrb[0].mxu0 %v262
    %v421 = vpop.f32.mrb[0].mxu0
    %v422 = vadd.f32 %v353, %v421
    %v423 = vpop.f32.mrb[0].mxu0
    %424 = vmatprep.mubr.f32.mxu0 0.0
    %425 = vmatmul.mubr.f32.gmra.mrb[0].mxu0 %v265
    %v426 = vpop.f32.mrb[0].mxu0
    %v427 = vadd.f32 %v353, %v426
    %v428 = vpop.f32.mrb[0].mxu0
    %429 = vdwg.mxu0
    %s430 = scalar_lea.vmem [#allocation5], 64
    %v431 = vld [vmem:[%s430] sm:$0xff]
    %v432 = vld [vmem:[%s430 + $0x8] sm:$0xff]
    %v433 = vld [vmem:[%s430 + $0x10] sm:$0xff]
    %v434 = vld [vmem:[%s430 + $0x18] sm:$0xff]
    %s435 = scalar_lea.vmem [#allocation8], 2
    %v436 = vld [vmem:[%s435] sm:$0x1]
    %v438 = vlaneseq
    %v439 = vshrl.u32 %v438, 7
    %v440 = vsub.s32 0, %v439
    %v441 = vrot.slane %v436, %v440
    %443 = vmatprep.subr.mxu0 0.0
    %444 = vmatpush1.msra.mxu0 %v431
    %445 = vmatprep.subr.mxu0 0.0
    %446 = vmatpush1.msra.mxu0 %v432
    %447 = vmatprep.subr.mxu0 0.0
    %448 = vmatpush1.msra.mxu0 %v433
    %449 = vmatprep.subr.mxu0 0.0
    %450 = vmatpush1.msra.mxu0 %v434
    %451 = vmatprep.subr.mxu0 0.0
    %452 = vmatpush1.msra.mxu0 0.0
    %453 = vmatprep.subr.mxu0 0.0
    %454 = vmatpush1.msra.mxu0 0.0
    %455 = vmatprep.subr.mxu0 0.0
    %456 = vmatpush1.msra.mxu0 0.0
    %457 = vmatprep.subr.mxu0 0.0
    %458 = vmatpush1.msra.mxu0 0.0
    %459 = vmatprep.subr.mxu0 0.0
    %460 = vmatpush1.msra.mxu0 0.0
    %461 = vmatprep.subr.mxu0 0.0
    %462 = vmatpush1.msra.mxu0 0.0
    %463 = vmatprep.subr.mxu0 0.0
    %464 = vmatpush1.msra.mxu0 0.0
    %465 = vmatprep.subr.mxu0 0.0
    %466 = vmatpush1.msra.mxu0 0.0
    %467 = vmatprep.subr.mxu0 0.0
    %468 = vmatpush1.msra.mxu0 0.0
    %469 = vmatprep.subr.mxu0 0.0
    %470 = vmatpush1.msra.mxu0 0.0
    %471 = vmatprep.subr.mxu0 0.0
    %472 = vmatpush1.msra.mxu0 0.0
    %473 = vmatprep.subr.mxu0 0.0
    %474 = vmatpush1.msra.mxu0 0.0
    %475 = vmatprep.subr.mxu0 0.0
    %476 = vmatpush1.msra.mxu0 0.0
    %477 = vmatprep.subr.mxu0 0.0
    %478 = vmatpush1.msra.mxu0 0.0
    %479 = vmatprep.subr.mxu0 0.0
    %480 = vmatpush1.msra.mxu0 0.0
    %481 = vmatprep.subr.mxu0 0.0
    %482 = vmatpush1.msra.mxu0 0.0
    %483 = vmatprep.subr.mxu0 0.0
    %484 = vmatpush1.msra.mxu0 0.0
    %485 = vmatprep.subr.mxu0 0.0
    %486 = vmatpush1.msra.mxu0 0.0
    %487 = vmatprep.subr.mxu0 0.0
    %488 = vmatpush1.msra.mxu0 0.0
    %489 = vmatprep.subr.mxu0 0.0
    %490 = vmatpush1.msra.mxu0 0.0
    %491 = vmatprep.subr.mxu0 0.0
    %492 = vmatpush1.msra.mxu0 0.0
    %493 = vmatprep.subr.mxu0 0.0
    %494 = vmatpush1.msra.mxu0 0.0
    %495 = vmatprep.subr.mxu0 0.0
    %496 = vmatpush1.msra.mxu0 0.0
    %497 = vmatprep.subr.mxu0 0.0
    %498 = vmatpush1.msra.mxu0 0.0
    %499 = vmatprep.subr.mxu0 0.0
    %500 = vmatpush1.msra.mxu0 0.0
    %501 = vmatprep.subr.mxu0 0.0
    %502 = vmatpush1.msra.mxu0 0.0
    %503 = vmatprep.subr.mxu0 0.0
    %504 = vmatpush1.msra.mxu0 0.0
    %505 = vmatprep.subr.mxu0 0.0
    %506 = vmatpush1.msra.mxu0 0.0
    %507 = vmatprep.mubr.f32.mxu0 0.0
    %508 = vmatmul.mubr.f32.gmra.mrb[0].mxu0 %v262
    %v509 = vpop.f32.mrb[0].mxu0
    %v510 = vadd.f32 %v441, %v509
    %v511 = vpop.f32.mrb[0].mxu0
    %512 = vmatprep.mubr.f32.mxu0 0.0
    %513 = vmatmul.mubr.f32.gmra.mrb[0].mxu0 %v265
    %v514 = vpop.f32.mrb[0].mxu0
    %v515 = vadd.f32 %v441, %v514
    %v516 = vpop.f32.mrb[0].mxu0
    %517 = vdwg.mxu0
    %v518 = vld [vmem:[%s2] sm:$0xff]
    %v519 = vld [vmem:[%s2 + $0x8] sm:$0xff]
    %v520 = vld [vmem:[%s2 + $0x10] sm:$0xff]
    %v521 = vld [vmem:[%s2 + $0x18] sm:$0xff]
    %v522 = vld [vmem:[%s2 + $0x20] sm:$0xff]
    %v523 = vld [vmem:[%s2 + $0x28] sm:$0xff]
    %v524 = vld [vmem:[%s2 + $0x30] sm:$0xff]
    %v525 = vld [vmem:[%s2 + $0x38] sm:$0xff]
    %s526 = scalar_lea.vmem %s2, 64
    %v527 = vld [vmem:[%s526] sm:$0xff]
    %v528 = vld [vmem:[%s526 + $0x8] sm:$0xff]
    %v529 = vld [vmem:[%s526 + $0x10] sm:$0xff]
    %v530 = vld [vmem:[%s526 + $0x18] sm:$0xff]
    %v531 = vld [vmem:[%s526 + $0x20] sm:$0xff]
    %v532 = vld [vmem:[%s526 + $0x28] sm:$0xff]
    %v533 = vld [vmem:[%s526 + $0x30] sm:$0xff]
    %v534 = vld [vmem:[%s526 + $0x38] sm:$0xff]
    %s535 = scalar_lea.vmem %s2, 128
    %v536 = vld [vmem:[%s535] sm:$0xff]
    %v537 = vld [vmem:[%s535 + $0x8] sm:$0xff]
    %v538 = vld [vmem:[%s535 + $0x10] sm:$0xff]
    %v539 = vld [vmem:[%s535 + $0x18] sm:$0xff]
    %v540 = vld [vmem:[%s535 + $0x20] sm:$0xff]
    %v541 = vld [vmem:[%s535 + $0x28] sm:$0xff]
    %v542 = vld [vmem:[%s535 + $0x30] sm:$0xff]
    %v543 = vld [vmem:[%s535 + $0x38] sm:$0xff]
    %v544 = vld [vmem:[#allocation10] sm:$0x1]
    %vm545 = vcmask 523264
    %v547 = vsel %vm545, 0.0, 0
    %549 = vmatprep.subr.mxu0 0.0
    %550 = vmatpush1.msra.mxu0 %v518
    %551 = vmatprep.subr.mxu0 0.0
    %552 = vmatpush1.msra.mxu0 %v519
    %553 = vmatprep.subr.mxu0 0.0
    %554 = vmatpush1.msra.mxu0 %v520
    %555 = vmatprep.subr.mxu0 0.0
    %556 = vmatpush1.msra.mxu0 %v521
    %557 = vmatprep.subr.mxu0 0.0
    %558 = vmatpush1.msra.mxu0 %v522
    %559 = vmatprep.subr.mxu0 0.0
    %560 = vmatpush1.msra.mxu0 %v523
    %561 = vmatprep.subr.mxu0 0.0
    %562 = vmatpush1.msra.mxu0 %v524
    %563 = vmatprep.subr.mxu0 0.0
    %564 = vmatpush1.msra.mxu0 %v525
    %565 = vmatprep.subr.mxu0 0.0
    %566 = vmatpush1.msra.mxu0 0.0
    %567 = vmatprep.subr.mxu0 0.0
    %568 = vmatpush1.msra.mxu0 0.0
    %569 = vmatprep.subr.mxu0 0.0
    %570 = vmatpush1.msra.mxu0 0.0
    %571 = vmatprep.subr.mxu0 0.0
    %572 = vmatpush1.msra.mxu0 0.0
    %573 = vmatprep.subr.mxu0 0.0
    %574 = vmatpush1.msra.mxu0 0.0
    %575 = vmatprep.subr.mxu0 0.0
    %576 = vmatpush1.msra.mxu0 0.0
    %577 = vmatprep.subr.mxu0 0.0
    %578 = vmatpush1.msra.mxu0 0.0
    %579 = vmatprep.subr.mxu0 0.0
    %580 = vmatpush1.msra.mxu0 0.0
    %581 = vmatprep.subr.mxu0 0.0
    %582 = vmatpush1.msra.mxu0 0.0
    %583 = vmatprep.subr.mxu0 0.0
    %584 = vmatpush1.msra.mxu0 0.0
    %585 = vmatprep.subr.mxu0 0.0
    %586 = vmatpush1.msra.mxu0 0.0
    %587 = vmatprep.subr.mxu0 0.0
    %588 = vmatpush1.msra.mxu0 0.0
    %589 = vmatprep.subr.mxu0 0.0
    %590 = vmatpush1.msra.mxu0 0.0
    %591 = vmatprep.subr.mxu0 0.0
    %592 = vmatpush1.msra.mxu0 0.0
    %593 = vmatprep.subr.mxu0 0.0
    %594 = vmatpush1.msra.mxu0 0.0
    %595 = vmatprep.subr.mxu0 0.0
    %596 = vmatpush1.msra.mxu0 0.0
    %597 = vmatprep.subr.mxu0 0.0
    %598 = vmatpush1.msra.mxu0 0.0
    %599 = vmatprep.subr.mxu0 0.0
    %600 = vmatpush1.msra.mxu0 0.0
    %601 = vmatprep.subr.mxu0 0.0
    %602 = vmatpush1.msra.mxu0 0.0
    %603 = vmatprep.subr.mxu0 0.0
    %604 = vmatpush1.msra.mxu0 0.0
    %605 = vmatprep.subr.mxu0 0.0
    %606 = vmatpush1.msra.mxu0 0.0
    %607 = vmatprep.subr.mxu0 0.0
    %608 = vmatpush1.msra.mxu0 0.0
    %609 = vmatprep.subr.mxu0 0.0
    %610 = vmatpush1.msra.mxu0 0.0
    %611 = vmatprep.subr.mxu0 0.0
    %612 = vmatpush1.msra.mxu0 0.0
    %613 = vmatprep.mubr.f32.mxu0 0.0
    %614 = vmatmul.mubr.f32.gmra.mrb[0].mxu0 %v547
    %v615 = vpop.f32.mrb[0].mxu0
    %v616 = vadd.f32 0.0, %v615
    %v617 = vpop.f32.mrb[0].mxu0
    %618 = vdwg.mxu0
    %619 = vmatprep.subr.mxu0 0.0
    %620 = vmatpush1.msra.mxu0 %v527
    %621 = vmatprep.subr.mxu0 0.0
    %622 = vmatpush1.msra.mxu0 %v528
    %623 = vmatprep.subr.mxu0 0.0
    %624 = vmatpush1.msra.mxu0 %v529
    %625 = vmatprep.subr.mxu0 0.0
    %626 = vmatpush1.msra.mxu0 %v530
    %627 = vmatprep.subr.mxu0 0.0
    %628 = vmatpush1.msra.mxu0 %v531
    %629 = vmatprep.subr.mxu0 0.0
    %630 = vmatpush1.msra.mxu0 %v532
    %631 = vmatprep.subr.mxu0 0.0
    %632 = vmatpush1.msra.mxu0 %v533
    %633 = vmatprep.subr.mxu0 0.0
    %634 = vmatpush1.msra.mxu0 %v534
    %635 = vmatprep.subr.mxu0 0.0
    %636 = vmatpush1.msra.mxu0 0.0
    %637 = vmatprep.subr.mxu0 0.0
    %638 = vmatpush1.msra.mxu0 0.0
    %639 = vmatprep.subr.mxu0 0.0
    %640 = vmatpush1.msra.mxu0 0.0
    %641 = vmatprep.subr.mxu0 0.0
    %642 = vmatpush1.msra.mxu0 0.0
    %643 = vmatprep.subr.mxu0 0.0
    %644 = vmatpush1.msra.mxu0 0.0
    %645 = vmatprep.subr.mxu0 0.0
    %646 = vmatpush1.msra.mxu0 0.0
    %647 = vmatprep.subr.mxu0 0.0
    %648 = vmatpush1.msra.mxu0 0.0
    %649 = vmatprep.subr.mxu0 0.0
    %650 = vmatpush1.msra.mxu0 0.0
    %651 = vmatprep.subr.mxu0 0.0
    %652 = vmatpush1.msra.mxu0 0.0
    %653 = vmatprep.subr.mxu0 0.0
    %654 = vmatpush1.msra.mxu0 0.0
    %655 = vmatprep.subr.mxu0 0.0
    %656 = vmatpush1.msra.mxu0 0.0
    %657 = vmatprep.subr.mxu0 0.0
    %658 = vmatpush1.msra.mxu0 0.0
    %659 = vmatprep.subr.mxu0 0.0
    %660 = vmatpush1.msra.mxu0 0.0
    %661 = vmatprep.subr.mxu0 0.0
    %662 = vmatpush1.msra.mxu0 0.0
    %663 = vmatprep.subr.mxu0 0.0
    %664 = vmatpush1.msra.mxu0 0.0
    %665 = vmatprep.subr.mxu0 0.0
    %666 = vmatpush1.msra.mxu0 0.0
    %667 = vmatprep.subr.mxu0 0.0
    %668 = vmatpush1.msra.mxu0 0.0
    %669 = vmatprep.subr.mxu0 0.0
    %670 = vmatpush1.msra.mxu0 0.0
    %671 = vmatprep.subr.mxu0 0.0
    %672 = vmatpush1.msra.mxu0 0.0
    %673 = vmatprep.subr.mxu0 0.0
    %674 = vmatpush1.msra.mxu0 0.0
    %675 = vmatprep.subr.mxu0 0.0
    %676 = vmatpush1.msra.mxu0 0.0
    %677 = vmatprep.subr.mxu0 0.0
    %678 = vmatpush1.msra.mxu0 0.0
    %679 = vmatprep.subr.mxu0 0.0
    %680 = vmatpush1.msra.mxu0 0.0
    %681 = vmatprep.subr.mxu0 0.0
    %682 = vmatpush1.msra.mxu0 0.0
    %683 = vmatprep.mubr.f32.mxu0 0.0
    %684 = vmatmul.mubr.f32.gmra.mrb[0].mxu0 %v547
    %v685 = vpop.f32.mrb[0].mxu0
    %v686 = vadd.f32 0.0, %v685
    %v687 = vpop.f32.mrb[0].mxu0
    %688 = vdwg.mxu0
    %v690 = vlaneseq
    %v691 = vshrl.u32 %v690, 7
    %v692 = vsub.s32 0, %v691
    %v693 = vrot.slane %v544, %v692
    %695 = vmatprep.subr.mxu0 0.0
    %696 = vmatpush1.msra.mxu0 %v536
    %697 = vmatprep.subr.mxu0 0.0
    %698 = vmatpush1.msra.mxu0 %v537
    %699 = vmatprep.subr.mxu0 0.0
    %700 = vmatpush1.msra.mxu0 %v538
    %701 = vmatprep.subr.mxu0 0.0
    %702 = vmatpush1.msra.mxu0 %v539
    %703 = vmatprep.subr.mxu0 0.0
    %704 = vmatpush1.msra.mxu0 %v540
    %705 = vmatprep.subr.mxu0 0.0
    %706 = vmatpush1.msra.mxu0 %v541
    %707 = vmatprep.subr.mxu0 0.0
    %708 = vmatpush1.msra.mxu0 %v542
    %709 = vmatprep.subr.mxu0 0.0
    %710 = vmatpush1.msra.mxu0 %v543
    %711 = vmatprep.subr.mxu0 0.0
    %712 = vmatpush1.msra.mxu0 0.0
    %713 = vmatprep.subr.mxu0 0.0
    %714 = vmatpush1.msra.mxu0 0.0
    %715 = vmatprep.subr.mxu0 0.0
    %716 = vmatpush1.msra.mxu0 0.0
    %717 = vmatprep.subr.mxu0 0.0
    %718 = vmatpush1.msra.mxu0 0.0
    %719 = vmatprep.subr.mxu0 0.0
    %720 = vmatpush1.msra.mxu0 0.0
    %721 = vmatprep.subr.mxu0 0.0
    %722 = vmatpush1.msra.mxu0 0.0
    %723 = vmatprep.subr.mxu0 0.0
    %724 = vmatpush1.msra.mxu0 0.0
    %725 = vmatprep.subr.mxu0 0.0
    %726 = vmatpush1.msra.mxu0 0.0
    %727 = vmatprep.subr.mxu0 0.0
    %728 = vmatpush1.msra.mxu0 0.0
    %729 = vmatprep.subr.mxu0 0.0
    %730 = vmatpush1.msra.mxu0 0.0
    %731 = vmatprep.subr.mxu0 0.0
    %732 = vmatpush1.msra.mxu0 0.0
    %733 = vmatprep.subr.mxu0 0.0
    %734 = vmatpush1.msra.mxu0 0.0
    %735 = vmatprep.subr.mxu0 0.0
    %736 = vmatpush1.msra.mxu0 0.0
    %737 = vmatprep.subr.mxu0 0.0
    %738 = vmatpush1.msra.mxu0 0.0
    %739 = vmatprep.subr.mxu0 0.0
    %740 = vmatpush1.msra.mxu0 0.0
    %741 = vmatprep.subr.mxu0 0.0
    %742 = vmatpush1.msra.mxu0 0.0
    %743 = vmatprep.subr.mxu0 0.0
    %744 = vmatpush1.msra.mxu0 0.0
    %745 = vmatprep.subr.mxu0 0.0
    %746 = vmatpush1.msra.mxu0 0.0
    %747 = vmatprep.subr.mxu0 0.0
    %748 = vmatpush1.msra.mxu0 0.0
    %749 = vmatprep.subr.mxu0 0.0
    %750 = vmatpush1.msra.mxu0 0.0
    %751 = vmatprep.subr.mxu0 0.0
    %752 = vmatpush1.msra.mxu0 0.0
    %753 = vmatprep.subr.mxu0 0.0
    %754 = vmatpush1.msra.mxu0 0.0
    %755 = vmatprep.subr.mxu0 0.0
    %756 = vmatpush1.msra.mxu0 0.0
    %757 = vmatprep.subr.mxu0 0.0
    %758 = vmatpush1.msra.mxu0 0.0
    %759 = vmatprep.mubr.f32.mxu0 0.0
    %760 = vmatmul.mubr.f32.gmra.mrb[0].mxu0 %v547
    %v761 = vpop.f32.mrb[0].mxu0
    %v762 = vadd.f32 %v693, %v761
    %v763 = vpop.f32.mrb[0].mxu0
    %764 = vdwg.mxu0
    %v765 = vadd.f32 %v334, %v616
    %v766 = vxor.u32 %v765, 2147483648
    %v767 = vmul.f32 %v766, 1.442695
    %v768 = vpow.pop %v767
    %v769 = vadd.f32 %v768, 1.0
    %v770 = vrcp.pop %v769
    %v771 = vmul.f32 1.0, %v770
    %v772 = vadd.f32 %v422, %v686
    %v773 = vxor.u32 %v772, 2147483648
    %v774 = vmul.f32 %v773, 1.442695
    %v775 = vpow.pop %v774
    %v776 = vadd.f32 %v775, 1.0
    %v777 = vrcp.pop %v776
    %v778 = vmul.f32 1.0, %v777
    %v779 = vmul.f32 %v771, %v762
    %v780 = vadd.f32 %v510, %v779
    %v781 = vtanh.pop %v780
    %v782 = vsub.f32 1.0, %v778
    %v783 = vmul.f32 %v782, %v781
    %v784 = vmul.f32 %v778, 0.0
    %v785 = vadd.f32 %v783, %v784
    %vm786 = vcmask 517120
    %787 = vst.msk [vmem:[#allocation2] sm:$0x3] %vm786, %v785
    %v789 = vsel %vm545, %v785, 0
    %791 = vmatprep.subr.mxu0 0.0
    %792 = vmatpush1.msra.mxu0 %v518
    %793 = vmatprep.subr.mxu0 0.0
    %794 = vmatpush1.msra.mxu0 %v519
    %795 = vmatprep.subr.mxu0 0.0
    %796 = vmatpush1.msra.mxu0 %v520
    %797 = vmatprep.subr.mxu0 0.0
    %798 = vmatpush1.msra.mxu0 %v521
    %799 = vmatprep.subr.mxu0 0.0
    %800 = vmatpush1.msra.mxu0 %v522
    %801 = vmatprep.subr.mxu0 0.0
    %802 = vmatpush1.msra.mxu0 %v523
    %803 = vmatprep.subr.mxu0 0.0
    %804 = vmatpush1.msra.mxu0 %v524
    %805 = vmatprep.subr.mxu0 0.0
    %806 = vmatpush1.msra.mxu0 %v525
    %807 = vmatprep.subr.mxu0 0.0
    %808 = vmatpush1.msra.mxu0 0.0
    %809 = vmatprep.subr.mxu0 0.0
    %810 = vmatpush1.msra.mxu0 0.0
    %811 = vmatprep.subr.mxu0 0.0
    %812 = vmatpush1.msra.mxu0 0.0
    %813 = vmatprep.subr.mxu0 0.0
    %814 = vmatpush1.msra.mxu0 0.0
    %815 = vmatprep.subr.mxu0 0.0
    %816 = vmatpush1.msra.mxu0 0.0
    %817 = vmatprep.subr.mxu0 0.0
    %818 = vmatpush1.msra.mxu0 0.0
    %819 = vmatprep.subr.mxu0 0.0
    %820 = vmatpush1.msra.mxu0 0.0
    %821 = vmatprep.subr.mxu0 0.0
    %822 = vmatpush1.msra.mxu0 0.0
    %823 = vmatprep.subr.mxu0 0.0
    %824 = vmatpush1.msra.mxu0 0.0
    %825 = vmatprep.subr.mxu0 0.0
    %826 = vmatpush1.msra.mxu0 0.0
    %827 = vmatprep.subr.mxu0 0.0
    %828 = vmatpush1.msra.mxu0 0.0
    %829 = vmatprep.subr.mxu0 0.0
    %830 = vmatpush1.msra.mxu0 0.0
    %831 = vmatprep.subr.mxu0 0.0
    %832 = vmatpush1.msra.mxu0 0.0
    %833 = vmatprep.subr.mxu0 0.0
    %834 = vmatpush1.msra.mxu0 0.0
    %835 = vmatprep.subr.mxu0 0.0
    %836 = vmatpush1.msra.mxu0 0.0
    %837 = vmatprep.subr.mxu0 0.0
    %838 = vmatpush1.msra.mxu0 0.0
    %839 = vmatprep.subr.mxu0 0.0
    %840 = vmatpush1.msra.mxu0 0.0
    %841 = vmatprep.subr.mxu0 0.0
    %842 = vmatpush1.msra.mxu0 0.0
    %843 = vmatprep.subr.mxu0 0.0
    %844 = vmatpush1.msra.mxu0 0.0
    %845 = vmatprep.subr.mxu0 0.0
    %846 = vmatpush1.msra.mxu0 0.0
    %847 = vmatprep.subr.mxu0 0.0
    %848 = vmatpush1.msra.mxu0 0.0
    %849 = vmatprep.subr.mxu0 0.0
    %850 = vmatpush1.msra.mxu0 0.0
    %851 = vmatprep.subr.mxu0 0.0
    %852 = vmatpush1.msra.mxu0 0.0
    %853 = vmatprep.subr.mxu0 0.0
    %854 = vmatpush1.msra.mxu0 0.0
    %855 = vmatprep.mubr.f32.mxu0 0.0
    %856 = vmatmul.mubr.f32.gmra.mrb[0].mxu0 %v789
    %v857 = vpop.f32.mrb[0].mxu0
    %v858 = vadd.f32 0.0, %v857
    %v859 = vpop.f32.mrb[0].mxu0
    %860 = vdwg.mxu0
    %861 = vmatprep.subr.mxu0 0.0
    %862 = vmatpush1.msra.mxu0 %v527
    %863 = vmatprep.subr.mxu0 0.0
    %864 = vmatpush1.msra.mxu0 %v528
    %865 = vmatprep.subr.mxu0 0.0
    %866 = vmatpush1.msra.mxu0 %v529
    %867 = vmatprep.subr.mxu0 0.0
    %868 = vmatpush1.msra.mxu0 %v530
    %869 = vmatprep.subr.mxu0 0.0
    %870 = vmatpush1.msra.mxu0 %v531
    %871 = vmatprep.subr.mxu0 0.0
    %872 = vmatpush1.msra.mxu0 %v532
    %873 = vmatprep.subr.mxu0 0.0
    %874 = vmatpush1.msra.mxu0 %v533
    %875 = vmatprep.subr.mxu0 0.0
    %876 = vmatpush1.msra.mxu0 %v534
    %877 = vmatprep.subr.mxu0 0.0
    %878 = vmatpush1.msra.mxu0 0.0
    %879 = vmatprep.subr.mxu0 0.0
    %880 = vmatpush1.msra.mxu0 0.0
    %881 = vmatprep.subr.mxu0 0.0
    %882 = vmatpush1.msra.mxu0 0.0
    %883 = vmatprep.subr.mxu0 0.0
    %884 = vmatpush1.msra.mxu0 0.0
    %885 = vmatprep.subr.mxu0 0.0
    %886 = vmatpush1.msra.mxu0 0.0
    %887 = vmatprep.subr.mxu0 0.0
    %888 = vmatpush1.msra.mxu0 0.0
    %889 = vmatprep.subr.mxu0 0.0
    %890 = vmatpush1.msra.mxu0 0.0
    %891 = vmatprep.subr.mxu0 0.0
    %892 = vmatpush1.msra.mxu0 0.0
    %893 = vmatprep.subr.mxu0 0.0
    %894 = vmatpush1.msra.mxu0 0.0
    %895 = vmatprep.subr.mxu0 0.0
    %896 = vmatpush1.msra.mxu0 0.0
    %897 = vmatprep.subr.mxu0 0.0
    %898 = vmatpush1.msra.mxu0 0.0
    %899 = vmatprep.subr.mxu0 0.0
    %900 = vmatpush1.msra.mxu0 0.0
    %901 = vmatprep.subr.mxu0 0.0
    %902 = vmatpush1.msra.mxu0 0.0
    %903 = vmatprep.subr.mxu0 0.0
    %904 = vmatpush1.msra.mxu0 0.0
    %905 = vmatprep.subr.mxu0 0.0
    %906 = vmatpush1.msra.mxu0 0.0
    %907 = vmatprep.subr.mxu0 0.0
    %908 = vmatpush1.msra.mxu0 0.0
    %909 = vmatprep.subr.mxu0 0.0
    %910 = vmatpush1.msra.mxu0 0.0
    %911 = vmatprep.subr.mxu0 0.0
    %912 = vmatpush1.msra.mxu0 0.0
    %913 = vmatprep.subr.mxu0 0.0
    %914 = vmatpush1.msra.mxu0 0.0
    %915 = vmatprep.subr.mxu0 0.0
    %916 = vmatpush1.msra.mxu0 0.0
    %917 = vmatprep.subr.mxu0 0.0
    %918 = vmatpush1.msra.mxu0 0.0
    %919 = vmatprep.subr.mxu0 0.0
    %920 = vmatpush1.msra.mxu0 0.0
    %921 = vmatprep.subr.mxu0 0.0
    %922 = vmatpush1.msra.mxu0 0.0
    %923 = vmatprep.subr.mxu0 0.0
    %924 = vmatpush1.msra.mxu0 0.0
    %925 = vmatprep.mubr.f32.mxu0 0.0
    %926 = vmatmul.mubr.f32.gmra.mrb[0].mxu0 %v789
    %v927 = vpop.f32.mrb[0].mxu0
    %v928 = vadd.f32 0.0, %v927
    %v929 = vpop.f32.mrb[0].mxu0
    %930 = vdwg.mxu0
    %931 = vmatprep.subr.mxu0 0.0
    %932 = vmatpush1.msra.mxu0 %v536
    %933 = vmatprep.subr.mxu0 0.0
    %934 = vmatpush1.msra.mxu0 %v537
    %935 = vmatprep.subr.mxu0 0.0
    %936 = vmatpush1.msra.mxu0 %v538
    %937 = vmatprep.subr.mxu0 0.0
    %938 = vmatpush1.msra.mxu0 %v539
    %939 = vmatprep.subr.mxu0 0.0
    %940 = vmatpush1.msra.mxu0 %v540
    %941 = vmatprep.subr.mxu0 0.0
    %942 = vmatpush1.msra.mxu0 %v541
    %943 = vmatprep.subr.mxu0 0.0
    %944 = vmatpush1.msra.mxu0 %v542
    %945 = vmatprep.subr.mxu0 0.0
    %946 = vmatpush1.msra.mxu0 %v543
    %947 = vmatprep.subr.mxu0 0.0
    %948 = vmatpush1.msra.mxu0 0.0
    %949 = vmatprep.subr.mxu0 0.0
    %950 = vmatpush1.msra.mxu0 0.0
    %951 = vmatprep.subr.mxu0 0.0
    %952 = vmatpush1.msra.mxu0 0.0
    %953 = vmatprep.subr.mxu0 0.0
    %954 = vmatpush1.msra.mxu0 0.0
    %955 = vmatprep.subr.mxu0 0.0
    %956 = vmatpush1.msra.mxu0 0.0
    %957 = vmatprep.subr.mxu0 0.0
    %958 = vmatpush1.msra.mxu0 0.0
    %959 = vmatprep.subr.mxu0 0.0
    %960 = vmatpush1.msra.mxu0 0.0
    %961 = vmatprep.subr.mxu0 0.0
    %962 = vmatpush1.msra.mxu0 0.0
    %963 = vmatprep.subr.mxu0 0.0
    %964 = vmatpush1.msra.mxu0 0.0
    %965 = vmatprep.subr.mxu0 0.0
    %966 = vmatpush1.msra.mxu0 0.0
    %967 = vmatprep.subr.mxu0 0.0
    %968 = vmatpush1.msra.mxu0 0.0
    %969 = vmatprep.subr.mxu0 0.0
    %970 = vmatpush1.msra.mxu0 0.0
    %971 = vmatprep.subr.mxu0 0.0
    %972 = vmatpush1.msra.mxu0 0.0
    %973 = vmatprep.subr.mxu0 0.0
    %974 = vmatpush1.msra.mxu0 0.0
    %975 = vmatprep.subr.mxu0 0.0
    %976 = vmatpush1.msra.mxu0 0.0
    %977 = vmatprep.subr.mxu0 0.0
    %978 = vmatpush1.msra.mxu0 0.0
    %979 = vmatprep.subr.mxu0 0.0
    %980 = vmatpush1.msra.mxu0 0.0
    %981 = vmatprep.subr.mxu0 0.0
    %982 = vmatpush1.msra.mxu0 0.0
    %983 = vmatprep.subr.mxu0 0.0
    %984 = vmatpush1.msra.mxu0 0.0
    %985 = vmatprep.subr.mxu0 0.0
    %986 = vmatpush1.msra.mxu0 0.0
    %987 = vmatprep.subr.mxu0 0.0
    %988 = vmatpush1.msra.mxu0 0.0
    %989 = vmatprep.subr.mxu0 0.0
    %990 = vmatpush1.msra.mxu0 0.0
    %991 = vmatprep.subr.mxu0 0.0
    %992 = vmatpush1.msra.mxu0 0.0
    %993 = vmatprep.subr.mxu0 0.0
    %994 = vmatpush1.msra.mxu0 0.0
    %995 = vmatprep.mubr.f32.mxu0 0.0
    %996 = vmatmul.mubr.f32.gmra.mrb[0].mxu0 %v789
    %v997 = vpop.f32.mrb[0].mxu0
    %v998 = vadd.f32 %v693, %v997
    %v999 = vpop.f32.mrb[0].mxu0
    %1000 = vdwg.mxu0
    %v1002 = vrot.slane %v858, 6
    %v1004 = vadd.f32 %v334, %v1002
    %v1005 = vxor.u32 %v1004, 2147483648
    %v1006 = vmul.f32 %v1005, 1.442695
    %v1007 = vpow.pop %v1006
    %v1008 = vadd.f32 %v1007, 1.0
    %v1009 = vrcp.pop %v1008
    %v1010 = vmul.f32 1.0, %v1009
    %v1012 = vrot.slane %v928, 6
    %v1014 = vadd.f32 %v422, %v1012
    %v1015 = vxor.u32 %v1014, 2147483648
    %v1016 = vmul.f32 %v1015, 1.442695
    %v1017 = vpow.pop %v1016
    %v1018 = vadd.f32 %v1017, 1.0
    %v1019 = vrcp.pop %v1018
    %v1020 = vmul.f32 1.0, %v1019
    %v1022 = vrot.slane %v998, 6
    %v1024 = vmul.f32 %v1010, %v1022
    %v1025 = vadd.f32 %v510, %v1024
    %v1026 = vtanh.pop %v1025
    %v1027 = vsub.f32 1.0, %v1020
    %v1028 = vmul.f32 %v1027, %v1026
    %v1029 = vrot.slane %v785, 6
    %v1031 = vmul.f32 %v1020, %v1029
    %v1032 = vadd.f32 %v1028, %v1031
    %vm1033 = vcmask 519170
    %1034 = vst.msk [vmem:[#allocation2] sm:$0xc] %vm1033, %v1032
    %v1036 = vrot.slane %v1032, 2
    %v1037 = vsel %vm545, %v1036, 0
    %1039 = vmatprep.subr.mxu0 0.0
    %1040 = vmatpush1.msra.mxu0 %v518
    %1041 = vmatprep.subr.mxu0 0.0
    %1042 = vmatpush1.msra.mxu0 %v519
    %1043 = vmatprep.subr.mxu0 0.0
    %1044 = vmatpush1.msra.mxu0 %v520
    %1045 = vmatprep.subr.mxu0 0.0
    %1046 = vmatpush1.msra.mxu0 %v521
    %1047 = vmatprep.subr.mxu0 0.0
    %1048 = vmatpush1.msra.mxu0 %v522
    %1049 = vmatprep.subr.mxu0 0.0
    %1050 = vmatpush1.msra.mxu0 %v523
    %1051 = vmatprep.subr.mxu0 0.0
    %1052 = vmatpush1.msra.mxu0 %v524
    %1053 = vmatprep.subr.mxu0 0.0
    %1054 = vmatpush1.msra.mxu0 %v525
    %1055 = vmatprep.subr.mxu0 0.0
    %1056 = vmatpush1.msra.mxu0 0.0
    %1057 = vmatprep.subr.mxu0 0.0
    %1058 = vmatpush1.msra.mxu0 0.0
    %1059 = vmatprep.subr.mxu0 0.0
    %1060 = vmatpush1.msra.mxu0 0.0
    %1061 = vmatprep.subr.mxu0 0.0
    %1062 = vmatpush1.msra.mxu0 0.0
    %1063 = vmatprep.subr.mxu0 0.0
    %1064 = vmatpush1.msra.mxu0 0.0
    %1065 = vmatprep.subr.mxu0 0.0
    %1066 = vmatpush1.msra.mxu0 0.0
    %1067 = vmatprep.subr.mxu0 0.0
    %1068 = vmatpush1.msra.mxu0 0.0
    %1069 = vmatprep.subr.mxu0 0.0
    %1070 = vmatpush1.msra.mxu0 0.0
    %1071 = vmatprep.subr.mxu0 0.0
    %1072 = vmatpush1.msra.mxu0 0.0
    %1073 = vmatprep.subr.mxu0 0.0
    %1074 = vmatpush1.msra.mxu0 0.0
    %1075 = vmatprep.subr.mxu0 0.0
    %1076 = vmatpush1.msra.mxu0 0.0
    %1077 = vmatprep.subr.mxu0 0.0
    %1078 = vmatpush1.msra.mxu0 0.0
    %1079 = vmatprep.subr.mxu0 0.0
    %1080 = vmatpush1.msra.mxu0 0.0
    %1081 = vmatprep.subr.mxu0 0.0
    %1082 = vmatpush1.msra.mxu0 0.0
    %1083 = vmatprep.subr.mxu0 0.0
    %1084 = vmatpush1.msra.mxu0 0.0
    %1085 = vmatprep.subr.mxu0 0.0
    %1086 = vmatpush1.msra.mxu0 0.0
    %1087 = vmatprep.subr.mxu0 0.0
    %1088 = vmatpush1.msra.mxu0 0.0
    %1089 = vmatprep.subr.mxu0 0.0
    %1090 = vmatpush1.msra.mxu0 0.0
    %1091 = vmatprep.subr.mxu0 0.0
    %1092 = vmatpush1.msra.mxu0 0.0
    %1093 = vmatprep.subr.mxu0 0.0
    %1094 = vmatpush1.msra.mxu0 0.0
    %1095 = vmatprep.subr.mxu0 0.0
    %1096 = vmatpush1.msra.mxu0 0.0
    %1097 = vmatprep.subr.mxu0 0.0
    %1098 = vmatpush1.msra.mxu0 0.0
    %1099 = vmatprep.subr.mxu0 0.0
    %1100 = vmatpush1.msra.mxu0 0.0
    %1101 = vmatprep.subr.mxu0 0.0
    %1102 = vmatpush1.msra.mxu0 0.0
    %1103 = vmatprep.mubr.f32.mxu0 0.0
    %1104 = vmatmul.mubr.f32.gmra.mrb[0].mxu0 %v1037
    %v1105 = vpop.f32.mrb[0].mxu0
    %v1106 = vadd.f32 0.0, %v1105
    %v1107 = vpop.f32.mrb[0].mxu0
    %1108 = vdwg.mxu0
    %1109 = vmatprep.subr.mxu0 0.0
    %1110 = vmatpush1.msra.mxu0 %v527
    %1111 = vmatprep.subr.mxu0 0.0
    %1112 = vmatpush1.msra.mxu0 %v528
    %1113 = vmatprep.subr.mxu0 0.0
    %1114 = vmatpush1.msra.mxu0 %v529
    %1115 = vmatprep.subr.mxu0 0.0
    %1116 = vmatpush1.msra.mxu0 %v530
    %1117 = vmatprep.subr.mxu0 0.0
    %1118 = vmatpush1.msra.mxu0 %v531
    %1119 = vmatprep.subr.mxu0 0.0
    %1120 = vmatpush1.msra.mxu0 %v532
    %1121 = vmatprep.subr.mxu0 0.0
    %1122 = vmatpush1.msra.mxu0 %v533
    %1123 = vmatprep.subr.mxu0 0.0
    %1124 = vmatpush1.msra.mxu0 %v534
    %1125 = vmatprep.subr.mxu0 0.0
    %1126 = vmatpush1.msra.mxu0 0.0
    %1127 = vmatprep.subr.mxu0 0.0
    %1128 = vmatpush1.msra.mxu0 0.0
    %1129 = vmatprep.subr.mxu0 0.0
    %1130 = vmatpush1.msra.mxu0 0.0
    %1131 = vmatprep.subr.mxu0 0.0
    %1132 = vmatpush1.msra.mxu0 0.0
    %1133 = vmatprep.subr.mxu0 0.0
    %1134 = vmatpush1.msra.mxu0 0.0
    %1135 = vmatprep.subr.mxu0 0.0
    %1136 = vmatpush1.msra.mxu0 0.0
    %1137 = vmatprep.subr.mxu0 0.0
    %1138 = vmatpush1.msra.mxu0 0.0
    %1139 = vmatprep.subr.mxu0 0.0
    %1140 = vmatpush1.msra.mxu0 0.0
    %1141 = vmatprep.subr.mxu0 0.0
    %1142 = vmatpush1.msra.mxu0 0.0
    %1143 = vmatprep.subr.mxu0 0.0
    %1144 = vmatpush1.msra.mxu0 0.0
    %1145 = vmatprep.subr.mxu0 0.0
    %1146 = vmatpush1.msra.mxu0 0.0
    %1147 = vmatprep.subr.mxu0 0.0
    %1148 = vmatpush1.msra.mxu0 0.0
    %1149 = vmatprep.subr.mxu0 0.0
    %1150 = vmatpush1.msra.mxu0 0.0
    %1151 = vmatprep.subr.mxu0 0.0
    %1152 = vmatpush1.msra.mxu0 0.0
    %1153 = vmatprep.subr.mxu0 0.0
    %1154 = vmatpush1.msra.mxu0 0.0
    %1155 = vmatprep.subr.mxu0 0.0
    %1156 = vmatpush1.msra.mxu0 0.0
    %1157 = vmatprep.subr.mxu0 0.0
    %1158 = vmatpush1.msra.mxu0 0.0
    %1159 = vmatprep.subr.mxu0 0.0
    %1160 = vmatpush1.msra.mxu0 0.0
    %1161 = vmatprep.subr.mxu0 0.0
    %1162 = vmatpush1.msra.mxu0 0.0
    %1163 = vmatprep.subr.mxu0 0.0
    %1164 = vmatpush1.msra.mxu0 0.0
    %1165 = vmatprep.subr.mxu0 0.0
    %1166 = vmatpush1.msra.mxu0 0.0
    %1167 = vmatprep.subr.mxu0 0.0
    %1168 = vmatpush1.msra.mxu0 0.0
    %1169 = vmatprep.subr.mxu0 0.0
    %1170 = vmatpush1.msra.mxu0 0.0
    %1171 = vmatprep.subr.mxu0 0.0
    %1172 = vmatpush1.msra.mxu0 0.0
    %1173 = vmatprep.mubr.f32.mxu0 0.0
    %1174 = vmatmul.mubr.f32.gmra.mrb[0].mxu0 %v1037
    %v1175 = vpop.f32.mrb[0].mxu0
    %v1176 = vadd.f32 0.0, %v1175
    %v1177 = vpop.f32.mrb[0].mxu0
    %1178 = vdwg.mxu0
    %1179 = vmatprep.subr.mxu0 0.0
    %1180 = vmatpush1.msra.mxu0 %v536
    %1181 = vmatprep.subr.mxu0 0.0
    %1182 = vmatpush1.msra.mxu0 %v537
    %1183 = vmatprep.subr.mxu0 0.0
    %1184 = vmatpush1.msra.mxu0 %v538
    %1185 = vmatprep.subr.mxu0 0.0
    %1186 = vmatpush1.msra.mxu0 %v539
    %1187 = vmatprep.subr.mxu0 0.0
    %1188 = vmatpush1.msra.mxu0 %v540
    %1189 = vmatprep.subr.mxu0 0.0
    %1190 = vmatpush1.msra.mxu0 %v541
    %1191 = vmatprep.subr.mxu0 0.0
    %1192 = vmatpush1.msra.mxu0 %v542
    %1193 = vmatprep.subr.mxu0 0.0
    %1194 = vmatpush1.msra.mxu0 %v543
    %1195 = vmatprep.subr.mxu0 0.0
    %1196 = vmatpush1.msra.mxu0 0.0
    %1197 = vmatprep.subr.mxu0 0.0
    %1198 = vmatpush1.msra.mxu0 0.0
    %1199 = vmatprep.subr.mxu0 0.0
    %1200 = vmatpush1.msra.mxu0 0.0
    %1201 = vmatprep.subr.mxu0 0.0
    %1202 = vmatpush1.msra.mxu0 0.0
    %1203 = vmatprep.subr.mxu0 0.0
    %1204 = vmatpush1.msra.mxu0 0.0
    %1205 = vmatprep.subr.mxu0 0.0
    %1206 = vmatpush1.msra.mxu0 0.0
    %1207 = vmatprep.subr.mxu0 0.0
    %1208 = vmatpush1.msra.mxu0 0.0
    %1209 = vmatprep.subr.mxu0 0.0
    %1210 = vmatpush1.msra.mxu0 0.0
    %1211 = vmatprep.subr.mxu0 0.0
    %1212 = vmatpush1.msra.mxu0 0.0
    %1213 = vmatprep.subr.mxu0 0.0
    %1214 = vmatpush1.msra.mxu0 0.0
    %1215 = vmatprep.subr.mxu0 0.0
    %1216 = vmatpush1.msra.mxu0 0.0
    %1217 = vmatprep.subr.mxu0 0.0
    %1218 = vmatpush1.msra.mxu0 0.0
    %1219 = vmatprep.subr.mxu0 0.0
    %1220 = vmatpush1.msra.mxu0 0.0
    %1221 = vmatprep.subr.mxu0 0.0
    %1222 = vmatpush1.msra.mxu0 0.0
    %1223 = vmatprep.subr.mxu0 0.0
    %1224 = vmatpush1.msra.mxu0 0.0
    %1225 = vmatprep.subr.mxu0 0.0
    %1226 = vmatpush1.msra.mxu0 0.0
    %1227 = vmatprep.subr.mxu0 0.0
    %1228 = vmatpush1.msra.mxu0 0.0
    %1229 = vmatprep.subr.mxu0 0.0
    %1230 = vmatpush1.msra.mxu0 0.0
    %1231 = vmatprep.subr.mxu0 0.0
    %1232 = vmatpush1.msra.mxu0 0.0
    %1233 = vmatprep.subr.mxu0 0.0
    %1234 = vmatpush1.msra.mxu0 0.0
    %1235 = vmatprep.subr.mxu0 0.0
    %1236 = vmatpush1.msra.mxu0 0.0
    %1237 = vmatprep.subr.mxu0 0.0
    %1238 = vmatpush1.msra.mxu0 0.0
    %1239 = vmatprep.subr.mxu0 0.0
    %1240 = vmatpush1.msra.mxu0 0.0
    %1241 = vmatprep.subr.mxu0 0.0
    %1242 = vmatpush1.msra.mxu0 0.0
    %1243 = vmatprep.mubr.f32.mxu0 0.0
    %1244 = vmatmul.mubr.f32.gmra.mrb[0].mxu0 %v1037
    %v1245 = vpop.f32.mrb[0].mxu0
    %v1246 = vadd.f32 %v693, %v1245
    %v1247 = vpop.f32.mrb[0].mxu0
    %1248 = vdwg.mxu0
    %v1250 = vrot.slane %v1106, 4
    %v1252 = vadd.f32 %v334, %v1250
    %v1253 = vxor.u32 %v1252, 2147483648
    %v1254 = vmul.f32 %v1253, 1.442695
    %v1255 = vpow.pop %v1254
    %v1256 = vadd.f32 %v1255, 1.0
    %v1257 = vrcp.pop %v1256
    %v1258 = vmul.f32 1.0, %v1257
    %v1260 = vrot.slane %v1176, 4
    %v1262 = vadd.f32 %v422, %v1260
    %v1263 = vxor.u32 %v1262, 2147483648
    %v1264 = vmul.f32 %v1263, 1.442695
    %v1265 = vpow.pop %v1264
    %v1266 = vadd.f32 %v1265, 1.0
    %v1267 = vrcp.pop %v1266
    %v1268 = vmul.f32 1.0, %v1267
    %v1270 = vrot.slane %v1246, 4
    %v1272 = vmul.f32 %v1258, %v1270
    %v1273 = vadd.f32 %v510, %v1272
    %v1274 = vtanh.pop %v1273
    %v1275 = vsub.f32 1.0, %v1268
    %v1276 = vmul.f32 %v1275, %v1274
    %v1277 = vrot.slane %v1032, 6
    %v1279 = vmul.f32 %v1268, %v1277
    %v1280 = vadd.f32 %v1276, %v1279
    %vm1281 = vcmask 521220
    %1282 = vst.msk [vmem:[#allocation2] sm:$0x30] %vm1281, %v1280
    %v1284 = vrot.slane %v1280, 4
    %v1285 = vsel %vm545, %v1284, 0
    %1287 = vmatprep.subr.mxu0 0.0
    %1288 = vmatpush1.msra.mxu0 %v518
    %1289 = vmatprep.subr.mxu0 0.0
    %1290 = vmatpush1.msra.mxu0 %v519
    %1291 = vmatprep.subr.mxu0 0.0
    %1292 = vmatpush1.msra.mxu0 %v520
    %1293 = vmatprep.subr.mxu0 0.0
    %1294 = vmatpush1.msra.mxu0 %v521
    %1295 = vmatprep.subr.mxu0 0.0
    %1296 = vmatpush1.msra.mxu0 %v522
    %1297 = vmatprep.subr.mxu0 0.0
    %1298 = vmatpush1.msra.mxu0 %v523
    %1299 = vmatprep.subr.mxu0 0.0
    %1300 = vmatpush1.msra.mxu0 %v524
    %1301 = vmatprep.subr.mxu0 0.0
    %1302 = vmatpush1.msra.mxu0 %v525
    %1303 = vmatprep.subr.mxu0 0.0
    %1304 = vmatpush1.msra.mxu0 0.0
    %1305 = vmatprep.subr.mxu0 0.0
    %1306 = vmatpush1.msra.mxu0 0.0
    %1307 = vmatprep.subr.mxu0 0.0
    %1308 = vmatpush1.msra.mxu0 0.0
    %1309 = vmatprep.subr.mxu0 0.0
    %1310 = vmatpush1.msra.mxu0 0.0
    %1311 = vmatprep.subr.mxu0 0.0
    %1312 = vmatpush1.msra.mxu0 0.0
    %1313 = vmatprep.subr.mxu0 0.0
    %1314 = vmatpush1.msra.mxu0 0.0
    %1315 = vmatprep.subr.mxu0 0.0
    %1316 = vmatpush1.msra.mxu0 0.0
    %1317 = vmatprep.subr.mxu0 0.0
    %1318 = vmatpush1.msra.mxu0 0.0
    %1319 = vmatprep.subr.mxu0 0.0
    %1320 = vmatpush1.msra.mxu0 0.0
    %1321 = vmatprep.subr.mxu0 0.0
    %1322 = vmatpush1.msra.mxu0 0.0
    %1323 = vmatprep.subr.mxu0 0.0
    %1324 = vmatpush1.msra.mxu0 0.0
    %1325 = vmatprep.subr.mxu0 0.0
    %1326 = vmatpush1.msra.mxu0 0.0
    %1327 = vmatprep.subr.mxu0 0.0
    %1328 = vmatpush1.msra.mxu0 0.0
    %1329 = vmatprep.subr.mxu0 0.0
    %1330 = vmatpush1.msra.mxu0 0.0
    %1331 = vmatprep.subr.mxu0 0.0
    %1332 = vmatpush1.msra.mxu0 0.0
    %1333 = vmatprep.subr.mxu0 0.0
    %1334 = vmatpush1.msra.mxu0 0.0
    %1335 = vmatprep.subr.mxu0 0.0
    %1336 = vmatpush1.msra.mxu0 0.0
    %1337 = vmatprep.subr.mxu0 0.0
    %1338 = vmatpush1.msra.mxu0 0.0
    %1339 = vmatprep.subr.mxu0 0.0
    %1340 = vmatpush1.msra.mxu0 0.0
    %1341 = vmatprep.subr.mxu0 0.0
    %1342 = vmatpush1.msra.mxu0 0.0
    %1343 = vmatprep.subr.mxu0 0.0
    %1344 = vmatpush1.msra.mxu0 0.0
    %1345 = vmatprep.subr.mxu0 0.0
    %1346 = vmatpush1.msra.mxu0 0.0
    %1347 = vmatprep.subr.mxu0 0.0
    %1348 = vmatpush1.msra.mxu0 0.0
    %1349 = vmatprep.subr.mxu0 0.0
    %1350 = vmatpush1.msra.mxu0 0.0
    %1351 = vmatprep.mubr.f32.mxu0 0.0
    %1352 = vmatmul.mubr.f32.gmra.mrb[0].mxu0 %v1285
    %v1353 = vpop.f32.mrb[0].mxu0
    %v1354 = vadd.f32 0.0, %v1353
    %v1355 = vpop.f32.mrb[0].mxu0
    %1356 = vdwg.mxu0
    %1357 = vmatprep.subr.mxu0 0.0
    %1358 = vmatpush1.msra.mxu0 %v527
    %1359 = vmatprep.subr.mxu0 0.0
    %1360 = vmatpush1.msra.mxu0 %v528
    %1361 = vmatprep.subr.mxu0 0.0
    %1362 = vmatpush1.msra.mxu0 %v529
    %1363 = vmatprep.subr.mxu0 0.0
    %1364 = vmatpush1.msra.mxu0 %v530
    %1365 = vmatprep.subr.mxu0 0.0
    %1366 = vmatpush1.msra.mxu0 %v531
    %1367 = vmatprep.subr.mxu0 0.0
    %1368 = vmatpush1.msra.mxu0 %v532
    %1369 = vmatprep.subr.mxu0 0.0
    %1370 = vmatpush1.msra.mxu0 %v533
    %1371 = vmatprep.subr.mxu0 0.0
    %1372 = vmatpush1.msra.mxu0 %v534
    %1373 = vmatprep.subr.mxu0 0.0
    %1374 = vmatpush1.msra.mxu0 0.0
    %1375 = vmatprep.subr.mxu0 0.0
    %1376 = vmatpush1.msra.mxu0 0.0
    %1377 = vmatprep.subr.mxu0 0.0
    %1378 = vmatpush1.msra.mxu0 0.0
    %1379 = vmatprep.subr.mxu0 0.0
    %1380 = vmatpush1.msra.mxu0 0.0
    %1381 = vmatprep.subr.mxu0 0.0
    %1382 = vmatpush1.msra.mxu0 0.0
    %1383 = vmatprep.subr.mxu0 0.0
    %1384 = vmatpush1.msra.mxu0 0.0
    %1385 = vmatprep.subr.mxu0 0.0
    %1386 = vmatpush1.msra.mxu0 0.0
    %1387 = vmatprep.subr.mxu0 0.0
    %1388 = vmatpush1.msra.mxu0 0.0
    %1389 = vmatprep.subr.mxu0 0.0
    %1390 = vmatpush1.msra.mxu0 0.0
    %1391 = vmatprep.subr.mxu0 0.0
    %1392 = vmatpush1.msra.mxu0 0.0
    %1393 = vmatprep.subr.mxu0 0.0
    %1394 = vmatpush1.msra.mxu0 0.0
    %1395 = vmatprep.subr.mxu0 0.0
    %1396 = vmatpush1.msra.mxu0 0.0
    %1397 = vmatprep.subr.mxu0 0.0
    %1398 = vmatpush1.msra.mxu0 0.0
    %1399 = vmatprep.subr.mxu0 0.0
    %1400 = vmatpush1.msra.mxu0 0.0
    %1401 = vmatprep.subr.mxu0 0.0
    %1402 = vmatpush1.msra.mxu0 0.0
    %1403 = vmatprep.subr.mxu0 0.0
    %1404 = vmatpush1.msra.mxu0 0.0
    %1405 = vmatprep.subr.mxu0 0.0
    %1406 = vmatpush1.msra.mxu0 0.0
    %1407 = vmatprep.subr.mxu0 0.0
    %1408 = vmatpush1.msra.mxu0 0.0
    %1409 = vmatprep.subr.mxu0 0.0
    %1410 = vmatpush1.msra.mxu0 0.0
    %1411 = vmatprep.subr.mxu0 0.0
    %1412 = vmatpush1.msra.mxu0 0.0
    %1413 = vmatprep.subr.mxu0 0.0
    %1414 = vmatpush1.msra.mxu0 0.0
    %1415 = vmatprep.subr.mxu0 0.0
    %1416 = vmatpush1.msra.mxu0 0.0
    %1417 = vmatprep.subr.mxu0 0.0
    %1418 = vmatpush1.msra.mxu0 0.0
    %1419 = vmatprep.subr.mxu0 0.0
    %1420 = vmatpush1.msra.mxu0 0.0
    %1421 = vmatprep.mubr.f32.mxu0 0.0
    %1422 = vmatmul.mubr.f32.gmra.mrb[0].mxu0 %v1285
    %v1423 = vpop.f32.mrb[0].mxu0
    %v1424 = vadd.f32 0.0, %v1423
    %v1425 = vpop.f32.mrb[0].mxu0
    %1426 = vdwg.mxu0
    %1427 = vmatprep.subr.mxu0 0.0
    %1428 = vmatpush1.msra.mxu0 %v536
    %1429 = vmatprep.subr.mxu0 0.0
    %1430 = vmatpush1.msra.mxu0 %v537
    %1431 = vmatprep.subr.mxu0 0.0
    %1432 = vmatpush1.msra.mxu0 %v538
    %1433 = vmatprep.subr.mxu0 0.0
    %1434 = vmatpush1.msra.mxu0 %v539
    %1435 = vmatprep.subr.mxu0 0.0
    %1436 = vmatpush1.msra.mxu0 %v540
    %1437 = vmatprep.subr.mxu0 0.0
    %1438 = vmatpush1.msra.mxu0 %v541
    %1439 = vmatprep.subr.mxu0 0.0
    %1440 = vmatpush1.msra.mxu0 %v542
    %1441 = vmatprep.subr.mxu0 0.0
    %1442 = vmatpush1.msra.mxu0 %v543
    %1443 = vmatprep.subr.mxu0 0.0
    %1444 = vmatpush1.msra.mxu0 0.0
    %1445 = vmatprep.subr.mxu0 0.0
    %1446 = vmatpush1.msra.mxu0 0.0
    %1447 = vmatprep.subr.mxu0 0.0
    %1448 = vmatpush1.msra.mxu0 0.0
    %1449 = vmatprep.subr.mxu0 0.0
    %1450 = vmatpush1.msra.mxu0 0.0
    %1451 = vmatprep.subr.mxu0 0.0
    %1452 = vmatpush1.msra.mxu0 0.0
    %1453 = vmatprep.subr.mxu0 0.0
    %1454 = vmatpush1.msra.mxu0 0.0
    %1455 = vmatprep.subr.mxu0 0.0
    %1456 = vmatpush1.msra.mxu0 0.0
    %1457 = vmatprep.subr.mxu0 0.0
    %1458 = vmatpush1.msra.mxu0 0.0
    %1459 = vmatprep.subr.mxu0 0.0
    %1460 = vmatpush1.msra.mxu0 0.0
    %1461 = vmatprep.subr.mxu0 0.0
    %1462 = vmatpush1.msra.mxu0 0.0
    %1463 = vmatprep.subr.mxu0 0.0
    %1464 = vmatpush1.msra.mxu0 0.0
    %1465 = vmatprep.subr.mxu0 0.0
    %1466 = vmatpush1.msra.mxu0 0.0
    %1467 = vmatprep.subr.mxu0 0.0
    %1468 = vmatpush1.msra.mxu0 0.0
    %1469 = vmatprep.subr.mxu0 0.0
    %1470 = vmatpush1.msra.mxu0 0.0
    %1471 = vmatprep.subr.mxu0 0.0
    %1472 = vmatpush1.msra.mxu0 0.0
    %1473 = vmatprep.subr.mxu0 0.0
    %1474 = vmatpush1.msra.mxu0 0.0
    %1475 = vmatprep.subr.mxu0 0.0
    %1476 = vmatpush1.msra.mxu0 0.0
    %1477 = vmatprep.subr.mxu0 0.0
    %1478 = vmatpush1.msra.mxu0 0.0
    %1479 = vmatprep.subr.mxu0 0.0
    %1480 = vmatpush1.msra.mxu0 0.0
    %1481 = vmatprep.subr.mxu0 0.0
    %1482 = vmatpush1.msra.mxu0 0.0
    %1483 = vmatprep.subr.mxu0 0.0
    %1484 = vmatpush1.msra.mxu0 0.0
    %1485 = vmatprep.subr.mxu0 0.0
    %1486 = vmatpush1.msra.mxu0 0.0
    %1487 = vmatprep.subr.mxu0 0.0
    %1488 = vmatpush1.msra.mxu0 0.0
    %1489 = vmatprep.subr.mxu0 0.0
    %1490 = vmatpush1.msra.mxu0 0.0
    %1491 = vmatprep.mubr.f32.mxu0 0.0
    %1492 = vmatmul.mubr.f32.gmra.mrb[0].mxu0 %v1285
    %v1493 = vpop.f32.mrb[0].mxu0
    %v1494 = vadd.f32 %v693, %v1493
    %v1495 = vpop.f32.mrb[0].mxu0
    %1496 = vdwg.mxu0
    %v1498 = vrot.slane %v1354, 2
    %v1500 = vadd.f32 %v334, %v1498
    %v1501 = vxor.u32 %v1500, 2147483648
    %v1502 = vmul.f32 %v1501, 1.442695
    %v1503 = vpow.pop %v1502
    %v1504 = vadd.f32 %v1503, 1.0
    %v1505 = vrcp.pop %v1504
    %v1506 = vmul.f32 1.0, %v1505
    %v1508 = vrot.slane %v1424, 2
    %v1510 = vadd.f32 %v422, %v1508
    %v1511 = vxor.u32 %v1510, 2147483648
    %v1512 = vmul.f32 %v1511, 1.442695
    %v1513 = vpow.pop %v1512
    %v1514 = vadd.f32 %v1513, 1.0
    %v1515 = vrcp.pop %v1514
    %v1516 = vmul.f32 1.0, %v1515
    %v1518 = vrot.slane %v1494, 2
    %v1520 = vmul.f32 %v1506, %v1518
    %v1521 = vadd.f32 %v510, %v1520
    %v1522 = vtanh.pop %v1521
    %v1523 = vsub.f32 1.0, %v1516
    %v1524 = vmul.f32 %v1523, %v1522
    %v1525 = vrot.slane %v1280, 6
    %v1527 = vmul.f32 %v1516, %v1525
    %v1528 = vadd.f32 %v1524, %v1527
    %vm1529 = vcmask 523270
    %1530 = vst.msk [vmem:[#allocation2] sm:$0xc0] %vm1529, %v1528
    %v1532 = vrot.slane %v1528, 6
    %v1533 = vsel %vm545, %v1532, 0
    %1535 = vmatprep.subr.mxu0 0.0
    %1536 = vmatpush1.msra.mxu0 %v518
    %1537 = vmatprep.subr.mxu0 0.0
    %1538 = vmatpush1.msra.mxu0 %v519
    %1539 = vmatprep.subr.mxu0 0.0
    %1540 = vmatpush1.msra.mxu0 %v520
    %1541 = vmatprep.subr.mxu0 0.0
    %1542 = vmatpush1.msra.mxu0 %v521
    %1543 = vmatprep.subr.mxu0 0.0
    %1544 = vmatpush1.msra.mxu0 %v522
    %1545 = vmatprep.subr.mxu0 0.0
    %1546 = vmatpush1.msra.mxu0 %v523
    %1547 = vmatprep.subr.mxu0 0.0
    %1548 = vmatpush1.msra.mxu0 %v524
    %1549 = vmatprep.subr.mxu0 0.0
    %1550 = vmatpush1.msra.mxu0 %v525
    %1551 = vmatprep.subr.mxu0 0.0
    %1552 = vmatpush1.msra.mxu0 0.0
    %1553 = vmatprep.subr.mxu0 0.0
    %1554 = vmatpush1.msra.mxu0 0.0
    %1555 = vmatprep.subr.mxu0 0.0
    %1556 = vmatpush1.msra.mxu0 0.0
    %1557 = vmatprep.subr.mxu0 0.0
    %1558 = vmatpush1.msra.mxu0 0.0
    %1559 = vmatprep.subr.mxu0 0.0
    %1560 = vmatpush1.msra.mxu0 0.0
    %1561 = vmatprep.subr.mxu0 0.0
    %1562 = vmatpush1.msra.mxu0 0.0
    %1563 = vmatprep.subr.mxu0 0.0
    %1564 = vmatpush1.msra.mxu0 0.0
    %1565 = vmatprep.subr.mxu0 0.0
    %1566 = vmatpush1.msra.mxu0 0.0
    %1567 = vmatprep.subr.mxu0 0.0
    %1568 = vmatpush1.msra.mxu0 0.0
    %1569 = vmatprep.subr.mxu0 0.0
    %1570 = vmatpush1.msra.mxu0 0.0
    %1571 = vmatprep.subr.mxu0 0.0
    %1572 = vmatpush1.msra.mxu0 0.0
    %1573 = vmatprep.subr.mxu0 0.0
    %1574 = vmatpush1.msra.mxu0 0.0
    %1575 = vmatprep.subr.mxu0 0.0
    %1576 = vmatpush1.msra.mxu0 0.0
    %1577 = vmatprep.subr.mxu0 0.0
    %1578 = vmatpush1.msra.mxu0 0.0
    %1579 = vmatprep.subr.mxu0 0.0
    %1580 = vmatpush1.msra.mxu0 0.0
    %1581 = vmatprep.subr.mxu0 0.0
    %1582 = vmatpush1.msra.mxu0 0.0
    %1583 = vmatprep.subr.mxu0 0.0
    %1584 = vmatpush1.msra.mxu0 0.0
    %1585 = vmatprep.subr.mxu0 0.0
    %1586 = vmatpush1.msra.mxu0 0.0
    %1587 = vmatprep.subr.mxu0 0.0
    %1588 = vmatpush1.msra.mxu0 0.0
    %1589 = vmatprep.subr.mxu0 0.0
    %1590 = vmatpush1.msra.mxu0 0.0
    %1591 = vmatprep.subr.mxu0 0.0
    %1592 = vmatpush1.msra.mxu0 0.0
    %1593 = vmatprep.subr.mxu0 0.0
    %1594 = vmatpush1.msra.mxu0 0.0
    %1595 = vmatprep.subr.mxu0 0.0
    %1596 = vmatpush1.msra.mxu0 0.0
    %1597 = vmatprep.subr.mxu0 0.0
    %1598 = vmatpush1.msra.mxu0 0.0
    %1599 = vmatprep.mubr.f32.mxu0 0.0
    %1600 = vmatmul.mubr.f32.gmra.mrb[0].mxu0 %v1533
    %v1601 = vpop.f32.mrb[0].mxu0
    %v1602 = vadd.f32 0.0, %v1601
    %v1603 = vpop.f32.mrb[0].mxu0
    %1604 = vdwg.mxu0
    %1605 = vmatprep.subr.mxu0 0.0
    %1606 = vmatpush1.msra.mxu0 %v527
    %1607 = vmatprep.subr.mxu0 0.0
    %1608 = vmatpush1.msra.mxu0 %v528
    %1609 = vmatprep.subr.mxu0 0.0
    %1610 = vmatpush1.msra.mxu0 %v529
    %1611 = vmatprep.subr.mxu0 0.0
    %1612 = vmatpush1.msra.mxu0 %v530
    %1613 = vmatprep.subr.mxu0 0.0
    %1614 = vmatpush1.msra.mxu0 %v531
    %1615 = vmatprep.subr.mxu0 0.0
    %1616 = vmatpush1.msra.mxu0 %v532
    %1617 = vmatprep.subr.mxu0 0.0
    %1618 = vmatpush1.msra.mxu0 %v533
    %1619 = vmatprep.subr.mxu0 0.0
    %1620 = vmatpush1.msra.mxu0 %v534
    %1621 = vmatprep.subr.mxu0 0.0
    %1622 = vmatpush1.msra.mxu0 0.0
    %1623 = vmatprep.subr.mxu0 0.0
    %1624 = vmatpush1.msra.mxu0 0.0
    %1625 = vmatprep.subr.mxu0 0.0
    %1626 = vmatpush1.msra.mxu0 0.0
    %1627 = vmatprep.subr.mxu0 0.0
    %1628 = vmatpush1.msra.mxu0 0.0
    %1629 = vmatprep.subr.mxu0 0.0
    %1630 = vmatpush1.msra.mxu0 0.0
    %1631 = vmatprep.subr.mxu0 0.0
    %1632 = vmatpush1.msra.mxu0 0.0
    %1633 = vmatprep.subr.mxu0 0.0
    %1634 = vmatpush1.msra.mxu0 0.0
    %1635 = vmatprep.subr.mxu0 0.0
    %1636 = vmatpush1.msra.mxu0 0.0
    %1637 = vmatprep.subr.mxu0 0.0
    %1638 = vmatpush1.msra.mxu0 0.0
    %1639 = vmatprep.subr.mxu0 0.0
    %1640 = vmatpush1.msra.mxu0 0.0
    %1641 = vmatprep.subr.mxu0 0.0
    %1642 = vmatpush1.msra.mxu0 0.0
    %1643 = vmatprep.subr.mxu0 0.0
    %1644 = vmatpush1.msra.mxu0 0.0
    %1645 = vmatprep.subr.mxu0 0.0
    %1646 = vmatpush1.msra.mxu0 0.0
    %1647 = vmatprep.subr.mxu0 0.0
    %1648 = vmatpush1.msra.mxu0 0.0
    %1649 = vmatprep.subr.mxu0 0.0
    %1650 = vmatpush1.msra.mxu0 0.0
    %1651 = vmatprep.subr.mxu0 0.0
    %1652 = vmatpush1.msra.mxu0 0.0
    %1653 = vmatprep.subr.mxu0 0.0
    %1654 = vmatpush1.msra.mxu0 0.0
    %1655 = vmatprep.subr.mxu0 0.0
    %1656 = vmatpush1.msra.mxu0 0.0
    %1657 = vmatprep.subr.mxu0 0.0
    %1658 = vmatpush1.msra.mxu0 0.0
    %1659 = vmatprep.subr.mxu0 0.0
    %1660 = vmatpush1.msra.mxu0 0.0
    %1661 = vmatprep.subr.mxu0 0.0
    %1662 = vmatpush1.msra.mxu0 0.0
    %1663 = vmatprep.subr.mxu0 0.0
    %1664 = vmatpush1.msra.mxu0 0.0
    %1665 = vmatprep.subr.mxu0 0.0
    %1666 = vmatpush1.msra.mxu0 0.0
    %1667 = vmatprep.subr.mxu0 0.0
    %1668 = vmatpush1.msra.mxu0 0.0
    %1669 = vmatprep.mubr.f32.mxu0 0.0
    %1670 = vmatmul.mubr.f32.gmra.mrb[0].mxu0 %v1533
    %v1671 = vpop.f32.mrb[0].mxu0
    %v1672 = vadd.f32 0.0, %v1671
    %v1673 = vpop.f32.mrb[0].mxu0
    %1674 = vdwg.mxu0
    %1675 = vmatprep.subr.mxu0 0.0
    %1676 = vmatpush1.msra.mxu0 %v536
    %1677 = vmatprep.subr.mxu0 0.0
    %1678 = vmatpush1.msra.mxu0 %v537
    %1679 = vmatprep.subr.mxu0 0.0
    %1680 = vmatpush1.msra.mxu0 %v538
    %1681 = vmatprep.subr.mxu0 0.0
    %1682 = vmatpush1.msra.mxu0 %v539
    %1683 = vmatprep.subr.mxu0 0.0
    %1684 = vmatpush1.msra.mxu0 %v540
    %1685 = vmatprep.subr.mxu0 0.0
    %1686 = vmatpush1.msra.mxu0 %v541
    %1687 = vmatprep.subr.mxu0 0.0
    %1688 = vmatpush1.msra.mxu0 %v542
    %1689 = vmatprep.subr.mxu0 0.0
    %1690 = vmatpush1.msra.mxu0 %v543
    %1691 = vmatprep.subr.mxu0 0.0
    %1692 = vmatpush1.msra.mxu0 0.0
    %1693 = vmatprep.subr.mxu0 0.0
    %1694 = vmatpush1.msra.mxu0 0.0
    %1695 = vmatprep.subr.mxu0 0.0
    %1696 = vmatpush1.msra.mxu0 0.0
    %1697 = vmatprep.subr.mxu0 0.0
    %1698 = vmatpush1.msra.mxu0 0.0
    %1699 = vmatprep.subr.mxu0 0.0
    %1700 = vmatpush1.msra.mxu0 0.0
    %1701 = vmatprep.subr.mxu0 0.0
    %1702 = vmatpush1.msra.mxu0 0.0
    %1703 = vmatprep.subr.mxu0 0.0
    %1704 = vmatpush1.msra.mxu0 0.0
    %1705 = vmatprep.subr.mxu0 0.0
    %1706 = vmatpush1.msra.mxu0 0.0
    %1707 = vmatprep.subr.mxu0 0.0
    %1708 = vmatpush1.msra.mxu0 0.0
    %1709 = vmatprep.subr.mxu0 0.0
    %1710 = vmatpush1.msra.mxu0 0.0
    %1711 = vmatprep.subr.mxu0 0.0
    %1712 = vmatpush1.msra.mxu0 0.0
    %1713 = vmatprep.subr.mxu0 0.0
    %1714 = vmatpush1.msra.mxu0 0.0
    %1715 = vmatprep.subr.mxu0 0.0
    %1716 = vmatpush1.msra.mxu0 0.0
    %1717 = vmatprep.subr.mxu0 0.0
    %1718 = vmatpush1.msra.mxu0 0.0
    %1719 = vmatprep.subr.mxu0 0.0
    %1720 = vmatpush1.msra.mxu0 0.0
    %1721 = vmatprep.subr.mxu0 0.0
    %1722 = vmatpush1.msra.mxu0 0.0
    %1723 = vmatprep.subr.mxu0 0.0
    %1724 = vmatpush1.msra.mxu0 0.0
    %1725 = vmatprep.subr.mxu0 0.0
    %1726 = vmatpush1.msra.mxu0 0.0
    %1727 = vmatprep.subr.mxu0 0.0
    %1728 = vmatpush1.msra.mxu0 0.0
    %1729 = vmatprep.subr.mxu0 0.0
    %1730 = vmatpush1.msra.mxu0 0.0
    %1731 = vmatprep.subr.mxu0 0.0
    %1732 = vmatpush1.msra.mxu0 0.0
    %1733 = vmatprep.subr.mxu0 0.0
    %1734 = vmatpush1.msra.mxu0 0.0
    %1735 = vmatprep.subr.mxu0 0.0
    %1736 = vmatpush1.msra.mxu0 0.0
    %1737 = vmatprep.subr.mxu0 0.0
    %1738 = vmatpush1.msra.mxu0 0.0
    %1739 = vmatprep.mubr.f32.mxu0 0.0
    %1740 = vmatmul.mubr.f32.gmra.mrb[0].mxu0 %v1533
    %v1741 = vpop.f32.mrb[0].mxu0
    %v1742 = vadd.f32 %v693, %v1741
    %v1743 = vpop.f32.mrb[0].mxu0
    %1744 = vdwg.mxu0
    %v1745 = vadd.f32 %v339, %v1602
    %v1746 = vxor.u32 %v1745, 2147483648
    %v1747 = vmul.f32 %v1746, 1.442695
    %v1748 = vpow.pop %v1747
    %v1749 = vadd.f32 %v1748, 1.0
    %v1750 = vrcp.pop %v1749
    %v1751 = vmul.f32 1.0, %v1750
    %v1752 = vadd.f32 %v427, %v1672
    %v1753 = vxor.u32 %v1752, 2147483648
    %v1754 = vmul.f32 %v1753, 1.442695
    %v1755 = vpow.pop %v1754
    %v1756 = vadd.f32 %v1755, 1.0
    %v1757 = vrcp.pop %v1756
    %v1758 = vmul.f32 1.0, %v1757
    %v1759 = vmul.f32 %v1751, %v1742
    %v1760 = vadd.f32 %v515, %v1759
    %v1761 = vtanh.pop %v1760
    %v1762 = vsub.f32 1.0, %v1758
    %v1763 = vmul.f32 %v1762, %v1761
    %v1765 = vmul.f32 %v1758, %v1532
    %v1766 = vadd.f32 %v1763, %v1765
    %1767 = vst.msk [vmem:[#allocation2 + $0x8] sm:$0x3] %vm786, %v1766
    %v1769 = vsel %vm545, %v1766, 0
    %1771 = vmatprep.subr.mxu0 0.0
    %1772 = vmatpush1.msra.mxu0 %v518
    %1773 = vmatprep.subr.mxu0 0.0
    %1774 = vmatpush1.msra.mxu0 %v519
    %1775 = vmatprep.subr.mxu0 0.0
    %1776 = vmatpush1.msra.mxu0 %v520
    %1777 = vmatprep.subr.mxu0 0.0
    %1778 = vmatpush1.msra.mxu0 %v521
    %1779 = vmatprep.subr.mxu0 0.0
    %1780 = vmatpush1.msra.mxu0 %v522
    %1781 = vmatprep.subr.mxu0 0.0
    %1782 = vmatpush1.msra.mxu0 %v523
    %1783 = vmatprep.subr.mxu0 0.0
    %1784 = vmatpush1.msra.mxu0 %v524
    %1785 = vmatprep.subr.mxu0 0.0
    %1786 = vmatpush1.msra.mxu0 %v525
    %1787 = vmatprep.subr.mxu0 0.0
    %1788 = vmatpush1.msra.mxu0 0.0
    %1789 = vmatprep.subr.mxu0 0.0
    %1790 = vmatpush1.msra.mxu0 0.0
    %1791 = vmatprep.subr.mxu0 0.0
    %1792 = vmatpush1.msra.mxu0 0.0
    %1793 = vmatprep.subr.mxu0 0.0
    %1794 = vmatpush1.msra.mxu0 0.0
    %1795 = vmatprep.subr.mxu0 0.0
    %1796 = vmatpush1.msra.mxu0 0.0
    %1797 = vmatprep.subr.mxu0 0.0
    %1798 = vmatpush1.msra.mxu0 0.0
    %1799 = vmatprep.subr.mxu0 0.0
    %1800 = vmatpush1.msra.mxu0 0.0
    %1801 = vmatprep.subr.mxu0 0.0
    %1802 = vmatpush1.msra.mxu0 0.0
    %1803 = vmatprep.subr.mxu0 0.0
    %1804 = vmatpush1.msra.mxu0 0.0
    %1805 = vmatprep.subr.mxu0 0.0
    %1806 = vmatpush1.msra.mxu0 0.0
    %1807 = vmatprep.subr.mxu0 0.0
    %1808 = vmatpush1.msra.mxu0 0.0
    %1809 = vmatprep.subr.mxu0 0.0
    %1810 = vmatpush1.msra.mxu0 0.0
    %1811 = vmatprep.subr.mxu0 0.0
    %1812 = vmatpush1.msra.mxu0 0.0
    %1813 = vmatprep.subr.mxu0 0.0
    %1814 = vmatpush1.msra.mxu0 0.0
    %1815 = vmatprep.subr.mxu0 0.0
    %1816 = vmatpush1.msra.mxu0 0.0
    %1817 = vmatprep.subr.mxu0 0.0
    %1818 = vmatpush1.msra.mxu0 0.0
    %1819 = vmatprep.subr.mxu0 0.0
    %1820 = vmatpush1.msra.mxu0 0.0
    %1821 = vmatprep.subr.mxu0 0.0
    %1822 = vmatpush1.msra.mxu0 0.0
    %1823 = vmatprep.subr.mxu0 0.0
    %1824 = vmatpush1.msra.mxu0 0.0
    %1825 = vmatprep.subr.mxu0 0.0
    %1826 = vmatpush1.msra.mxu0 0.0
    %1827 = vmatprep.subr.mxu0 0.0
    %1828 = vmatpush1.msra.mxu0 0.0
    %1829 = vmatprep.subr.mxu0 0.0
    %1830 = vmatpush1.msra.mxu0 0.0
    %1831 = vmatprep.subr.mxu0 0.0
    %1832 = vmatpush1.msra.mxu0 0.0
    %1833 = vmatprep.subr.mxu0 0.0
    %1834 = vmatpush1.msra.mxu0 0.0
    %1835 = vmatprep.mubr.f32.mxu0 0.0
    %1836 = vmatmul.mubr.f32.gmra.mrb[0].mxu0 %v1769
    %v1837 = vpop.f32.mrb[0].mxu0
    %v1838 = vadd.f32 0.0, %v1837
    %v1839 = vpop.f32.mrb[0].mxu0
    %1840 = vdwg.mxu0
    %1841 = vmatprep.subr.mxu0 0.0
    %1842 = vmatpush1.msra.mxu0 %v527
    %1843 = vmatprep.subr.mxu0 0.0
    %1844 = vmatpush1.msra.mxu0 %v528
    %1845 = vmatprep.subr.mxu0 0.0
    %1846 = vmatpush1.msra.mxu0 %v529
    %1847 = vmatprep.subr.mxu0 0.0
    %1848 = vmatpush1.msra.mxu0 %v530
    %1849 = vmatprep.subr.mxu0 0.0
    %1850 = vmatpush1.msra.mxu0 %v531
    %1851 = vmatprep.subr.mxu0 0.0
    %1852 = vmatpush1.msra.mxu0 %v532
    %1853 = vmatprep.subr.mxu0 0.0
    %1854 = vmatpush1.msra.mxu0 %v533
    %1855 = vmatprep.subr.mxu0 0.0
    %1856 = vmatpush1.msra.mxu0 %v534
    %1857 = vmatprep.subr.mxu0 0.0
    %1858 = vmatpush1.msra.mxu0 0.0
    %1859 = vmatprep.subr.mxu0 0.0
    %1860 = vmatpush1.msra.mxu0 0.0
    %1861 = vmatprep.subr.mxu0 0.0
    %1862 = vmatpush1.msra.mxu0 0.0
    %1863 = vmatprep.subr.mxu0 0.0
    %1864 = vmatpush1.msra.mxu0 0.0
    %1865 = vmatprep.subr.mxu0 0.0
    %1866 = vmatpush1.msra.mxu0 0.0
    %1867 = vmatprep.subr.mxu0 0.0
    %1868 = vmatpush1.msra.mxu0 0.0
    %1869 = vmatprep.subr.mxu0 0.0
    %1870 = vmatpush1.msra.mxu0 0.0
    %1871 = vmatprep.subr.mxu0 0.0
    %1872 = vmatpush1.msra.mxu0 0.0
    %1873 = vmatprep.subr.mxu0 0.0
    %1874 = vmatpush1.msra.mxu0 0.0
    %1875 = vmatprep.subr.mxu0 0.0
    %1876 = vmatpush1.msra.mxu0 0.0
    %1877 = vmatprep.subr.mxu0 0.0
    %1878 = vmatpush1.msra.mxu0 0.0
    %1879 = vmatprep.subr.mxu0 0.0
    %1880 = vmatpush1.msra.mxu0 0.0
    %1881 = vmatprep.subr.mxu0 0.0
    %1882 = vmatpush1.msra.mxu0 0.0
    %1883 = vmatprep.subr.mxu0 0.0
    %1884 = vmatpush1.msra.mxu0 0.0
    %1885 = vmatprep.subr.mxu0 0.0
    %1886 = vmatpush1.msra.mxu0 0.0
    %1887 = vmatprep.subr.mxu0 0.0
    %1888 = vmatpush1.msra.mxu0 0.0
    %1889 = vmatprep.subr.mxu0 0.0
    %1890 = vmatpush1.msra.mxu0 0.0
    %1891 = vmatprep.subr.mxu0 0.0
    %1892 = vmatpush1.msra.mxu0 0.0
    %1893 = vmatprep.subr.mxu0 0.0
    %1894 = vmatpush1.msra.mxu0 0.0
    %1895 = vmatprep.subr.mxu0 0.0
    %1896 = vmatpush1.msra.mxu0 0.0
    %1897 = vmatprep.subr.mxu0 0.0
    %1898 = vmatpush1.msra.mxu0 0.0
    %1899 = vmatprep.subr.mxu0 0.0
    %1900 = vmatpush1.msra.mxu0 0.0
    %1901 = vmatprep.subr.mxu0 0.0
    %1902 = vmatpush1.msra.mxu0 0.0
    %1903 = vmatprep.subr.mxu0 0.0
    %1904 = vmatpush1.msra.mxu0 0.0
    %1905 = vmatprep.mubr.f32.mxu0 0.0
    %1906 = vmatmul.mubr.f32.gmra.mrb[0].mxu0 %v1769
    %v1907 = vpop.f32.mrb[0].mxu0
    %v1908 = vadd.f32 0.0, %v1907
    %v1909 = vpop.f32.mrb[0].mxu0
    %1910 = vdwg.mxu0
    %1911 = vmatprep.subr.mxu0 0.0
    %1912 = vmatpush1.msra.mxu0 %v536
    %1913 = vmatprep.subr.mxu0 0.0
    %1914 = vmatpush1.msra.mxu0 %v537
    %1915 = vmatprep.subr.mxu0 0.0
    %1916 = vmatpush1.msra.mxu0 %v538
    %1917 = vmatprep.subr.mxu0 0.0
    %1918 = vmatpush1.msra.mxu0 %v539
    %1919 = vmatprep.subr.mxu0 0.0
    %1920 = vmatpush1.msra.mxu0 %v540
    %1921 = vmatprep.subr.mxu0 0.0
    %1922 = vmatpush1.msra.mxu0 %v541
    %1923 = vmatprep.subr.mxu0 0.0
    %1924 = vmatpush1.msra.mxu0 %v542
    %1925 = vmatprep.subr.mxu0 0.0
    %1926 = vmatpush1.msra.mxu0 %v543
    %1927 = vmatprep.subr.mxu0 0.0
    %1928 = vmatpush1.msra.mxu0 0.0
    %1929 = vmatprep.subr.mxu0 0.0
    %1930 = vmatpush1.msra.mxu0 0.0
    %1931 = vmatprep.subr.mxu0 0.0
    %1932 = vmatpush1.msra.mxu0 0.0
    %1933 = vmatprep.subr.mxu0 0.0
    %1934 = vmatpush1.msra.mxu0 0.0
    %1935 = vmatprep.subr.mxu0 0.0
    %1936 = vmatpush1.msra.mxu0 0.0
    %1937 = vmatprep.subr.mxu0 0.0
    %1938 = vmatpush1.msra.mxu0 0.0
    %1939 = vmatprep.subr.mxu0 0.0
    %1940 = vmatpush1.msra.mxu0 0.0
    %1941 = vmatprep.subr.mxu0 0.0
    %1942 = vmatpush1.msra.mxu0 0.0
    %1943 = vmatprep.subr.mxu0 0.0
    %1944 = vmatpush1.msra.mxu0 0.0
    %1945 = vmatprep.subr.mxu0 0.0
    %1946 = vmatpush1.msra.mxu0 0.0
    %1947 = vmatprep.subr.mxu0 0.0
    %1948 = vmatpush1.msra.mxu0 0.0
    %1949 = vmatprep.subr.mxu0 0.0
    %1950 = vmatpush1.msra.mxu0 0.0
    %1951 = vmatprep.subr.mxu0 0.0
    %1952 = vmatpush1.msra.mxu0 0.0
    %1953 = vmatprep.subr.mxu0 0.0
    %1954 = vmatpush1.msra.mxu0 0.0
    %1955 = vmatprep.subr.mxu0 0.0
    %1956 = vmatpush1.msra.mxu0 0.0
    %1957 = vmatprep.subr.mxu0 0.0
    %1958 = vmatpush1.msra.mxu0 0.0
    %1959 = vmatprep.subr.mxu0 0.0
    %1960 = vmatpush1.msra.mxu0 0.0
    %1961 = vmatprep.subr.mxu0 0.0
    %1962 = vmatpush1.msra.mxu0 0.0
    %1963 = vmatprep.subr.mxu0 0.0
    %1964 = vmatpush1.msra.mxu0 0.0
    %1965 = vmatprep.subr.mxu0 0.0
    %1966 = vmatpush1.msra.mxu0 0.0
    %1967 = vmatprep.subr.mxu0 0.0
    %1968 = vmatpush1.msra.mxu0 0.0
    %1969 = vmatprep.subr.mxu0 0.0
    %1970 = vmatpush1.msra.mxu0 0.0
    %1971 = vmatprep.subr.mxu0 0.0
    %1972 = vmatpush1.msra.mxu0 0.0
    %1973 = vmatprep.subr.mxu0 0.0
    %1974 = vmatpush1.msra.mxu0 0.0
    %1975 = vmatprep.mubr.f32.mxu0 0.0
    %1976 = vmatmul.mubr.f32.gmra.mrb[0].mxu0 %v1769
    %v1977 = vpop.f32.mrb[0].mxu0
    %v1978 = vadd.f32 %v693, %v1977
    %v1979 = vpop.f32.mrb[0].mxu0
    %1980 = vdwg.mxu0
    %v1982 = vrot.slane %v1838, 6
    %v1984 = vadd.f32 %v339, %v1982
    %v1985 = vxor.u32 %v1984, 2147483648
    %v1986 = vmul.f32 %v1985, 1.442695
    %v1987 = vpow.pop %v1986
    %v1988 = vadd.f32 %v1987, 1.0
    %v1989 = vrcp.pop %v1988
    %v1990 = vmul.f32 1.0, %v1989
    %v1992 = vrot.slane %v1908, 6
    %v1994 = vadd.f32 %v427, %v1992
    %v1995 = vxor.u32 %v1994, 2147483648
    %v1996 = vmul.f32 %v1995, 1.442695
    %v1997 = vpow.pop %v1996
    %v1998 = vadd.f32 %v1997, 1.0
    %v1999 = vrcp.pop %v1998
    %v2000 = vmul.f32 1.0, %v1999
    %v2002 = vrot.slane %v1978, 6
    %v2004 = vmul.f32 %v1990, %v2002
    %v2005 = vadd.f32 %v515, %v2004
    %v2006 = vtanh.pop %v2005
    %v2007 = vsub.f32 1.0, %v2000
    %v2008 = vmul.f32 %v2007, %v2006
    %v2009 = vrot.slane %v1766, 6
    %v2011 = vmul.f32 %v2000, %v2009
    %v2012 = vadd.f32 %v2008, %v2011
    %2013 = vst.msk [vmem:[#allocation2 + $0x8] sm:$0xc] %vm1033, %v2012
    %v2015 = vrot.slane %v2012, 2
    %v2016 = vsel %vm545, %v2015, 0
    %2018 = vmatprep.subr.mxu0 0.0
    %2019 = vmatpush1.msra.mxu0 %v518
    %2020 = vmatprep.subr.mxu0 0.0
    %2021 = vmatpush1.msra.mxu0 %v519
    %2022 = vmatprep.subr.mxu0 0.0
    %2023 = vmatpush1.msra.mxu0 %v520
    %2024 = vmatprep.subr.mxu0 0.0
    %2025 = vmatpush1.msra.mxu0 %v521
    %2026 = vmatprep.subr.mxu0 0.0
    %2027 = vmatpush1.msra.mxu0 %v522
    %2028 = vmatprep.subr.mxu0 0.0
    %2029 = vmatpush1.msra.mxu0 %v523
    %2030 = vmatprep.subr.mxu0 0.0
    %2031 = vmatpush1.msra.mxu0 %v524
    %2032 = vmatprep.subr.mxu0 0.0
    %2033 = vmatpush1.msra.mxu0 %v525
    %2034 = vmatprep.subr.mxu0 0.0
    %2035 = vmatpush1.msra.mxu0 0.0
    %2036 = vmatprep.subr.mxu0 0.0
    %2037 = vmatpush1.msra.mxu0 0.0
    %2038 = vmatprep.subr.mxu0 0.0
    %2039 = vmatpush1.msra.mxu0 0.0
    %2040 = vmatprep.subr.mxu0 0.0
    %2041 = vmatpush1.msra.mxu0 0.0
    %2042 = vmatprep.subr.mxu0 0.0
    %2043 = vmatpush1.msra.mxu0 0.0
    %2044 = vmatprep.subr.mxu0 0.0
    %2045 = vmatpush1.msra.mxu0 0.0
    %2046 = vmatprep.subr.mxu0 0.0
    %2047 = vmatpush1.msra.mxu0 0.0
    %2048 = vmatprep.subr.mxu0 0.0
    %2049 = vmatpush1.msra.mxu0 0.0
    %2050 = vmatprep.subr.mxu0 0.0
    %2051 = vmatpush1.msra.mxu0 0.0
    %2052 = vmatprep.subr.mxu0 0.0
    %2053 = vmatpush1.msra.mxu0 0.0
    %2054 = vmatprep.subr.mxu0 0.0
    %2055 = vmatpush1.msra.mxu0 0.0
    %2056 = vmatprep.subr.mxu0 0.0
    %2057 = vmatpush1.msra.mxu0 0.0
    %2058 = vmatprep.subr.mxu0 0.0
    %2059 = vmatpush1.msra.mxu0 0.0
    %2060 = vmatprep.subr.mxu0 0.0
    %2061 = vmatpush1.msra.mxu0 0.0
    %2062 = vmatprep.subr.mxu0 0.0
    %2063 = vmatpush1.msra.mxu0 0.0
    %2064 = vmatprep.subr.mxu0 0.0
    %2065 = vmatpush1.msra.mxu0 0.0
    %2066 = vmatprep.subr.mxu0 0.0
    %2067 = vmatpush1.msra.mxu0 0.0
    %2068 = vmatprep.subr.mxu0 0.0
    %2069 = vmatpush1.msra.mxu0 0.0
    %2070 = vmatprep.subr.mxu0 0.0
    %2071 = vmatpush1.msra.mxu0 0.0
    %2072 = vmatprep.subr.mxu0 0.0
    %2073 = vmatpush1.msra.mxu0 0.0
    %2074 = vmatprep.subr.mxu0 0.0
    %2075 = vmatpush1.msra.mxu0 0.0
    %2076 = vmatprep.subr.mxu0 0.0
    %2077 = vmatpush1.msra.mxu0 0.0
    %2078 = vmatprep.subr.mxu0 0.0
    %2079 = vmatpush1.msra.mxu0 0.0
    %2080 = vmatprep.subr.mxu0 0.0
    %2081 = vmatpush1.msra.mxu0 0.0
    %2082 = vmatprep.mubr.f32.mxu0 0.0
    %2083 = vmatmul.mubr.f32.gmra.mrb[0].mxu0 %v2016
    %v2084 = vpop.f32.mrb[0].mxu0
    %v2085 = vadd.f32 0.0, %v2084
    %v2086 = vpop.f32.mrb[0].mxu0
    %2087 = vdwg.mxu0
    %2088 = vmatprep.subr.mxu0 0.0
    %2089 = vmatpush1.msra.mxu0 %v527
    %2090 = vmatprep.subr.mxu0 0.0
    %2091 = vmatpush1.msra.mxu0 %v528
    %2092 = vmatprep.subr.mxu0 0.0
    %2093 = vmatpush1.msra.mxu0 %v529
    %2094 = vmatprep.subr.mxu0 0.0
    %2095 = vmatpush1.msra.mxu0 %v530
    %2096 = vmatprep.subr.mxu0 0.0
    %2097 = vmatpush1.msra.mxu0 %v531
    %2098 = vmatprep.subr.mxu0 0.0
    %2099 = vmatpush1.msra.mxu0 %v532
    %2100 = vmatprep.subr.mxu0 0.0
    %2101 = vmatpush1.msra.mxu0 %v533
    %2102 = vmatprep.subr.mxu0 0.0
    %2103 = vmatpush1.msra.mxu0 %v534
    %2104 = vmatprep.subr.mxu0 0.0
    %2105 = vmatpush1.msra.mxu0 0.0
    %2106 = vmatprep.subr.mxu0 0.0
    %2107 = vmatpush1.msra.mxu0 0.0
    %2108 = vmatprep.subr.mxu0 0.0
    %2109 = vmatpush1.msra.mxu0 0.0
    %2110 = vmatprep.subr.mxu0 0.0
    %2111 = vmatpush1.msra.mxu0 0.0
    %2112 = vmatprep.subr.mxu0 0.0
    %2113 = vmatpush1.msra.mxu0 0.0
    %2114 = vmatprep.subr.mxu0 0.0
    %2115 = vmatpush1.msra.mxu0 0.0
    %2116 = vmatprep.subr.mxu0 0.0
    %2117 = vmatpush1.msra.mxu0 0.0
    %2118 = vmatprep.subr.mxu0 0.0
    %2119 = vmatpush1.msra.mxu0 0.0
    %2120 = vmatprep.subr.mxu0 0.0
    %2121 = vmatpush1.msra.mxu0 0.0
    %2122 = vmatprep.subr.mxu0 0.0
    %2123 = vmatpush1.msra.mxu0 0.0
    %2124 = vmatprep.subr.mxu0 0.0
    %2125 = vmatpush1.msra.mxu0 0.0
    %2126 = vmatprep.subr.mxu0 0.0
    %2127 = vmatpush1.msra.mxu0 0.0
    %2128 = vmatprep.subr.mxu0 0.0
    %2129 = vmatpush1.msra.mxu0 0.0
    %2130 = vmatprep.subr.mxu0 0.0
    %2131 = vmatpush1.msra.mxu0 0.0
    %2132 = vmatprep.subr.mxu0 0.0
    %2133 = vmatpush1.msra.mxu0 0.0
    %2134 = vmatprep.subr.mxu0 0.0
    %2135 = vmatpush1.msra.mxu0 0.0
    %2136 = vmatprep.subr.mxu0 0.0
    %2137 = vmatpush1.msra.mxu0 0.0
    %2138 = vmatprep.subr.mxu0 0.0
    %2139 = vmatpush1.msra.mxu0 0.0
    %2140 = vmatprep.subr.mxu0 0.0
    %2141 = vmatpush1.msra.mxu0 0.0
    %2142 = vmatprep.subr.mxu0 0.0
    %2143 = vmatpush1.msra.mxu0 0.0
    %2144 = vmatprep.subr.mxu0 0.0
    %2145 = vmatpush1.msra.mxu0 0.0
    %2146 = vmatprep.subr.mxu0 0.0
    %2147 = vmatpush1.msra.mxu0 0.0
    %2148 = vmatprep.subr.mxu0 0.0
    %2149 = vmatpush1.msra.mxu0 0.0
    %2150 = vmatprep.subr.mxu0 0.0
    %2151 = vmatpush1.msra.mxu0 0.0
    %2152 = vmatprep.mubr.f32.mxu0 0.0
    %2153 = vmatmul.mubr.f32.gmra.mrb[0].mxu0 %v2016
    %v2154 = vpop.f32.mrb[0].mxu0
    %v2155 = vadd.f32 0.0, %v2154
    %v2156 = vpop.f32.mrb[0].mxu0
    %2157 = vdwg.mxu0
    %2158 = vmatprep.subr.mxu0 0.0
    %2159 = vmatpush1.msra.mxu0 %v536
    %2160 = vmatprep.subr.mxu0 0.0
    %2161 = vmatpush1.msra.mxu0 %v537
    %2162 = vmatprep.subr.mxu0 0.0
    %2163 = vmatpush1.msra.mxu0 %v538
    %2164 = vmatprep.subr.mxu0 0.0
    %2165 = vmatpush1.msra.mxu0 %v539
    %2166 = vmatprep.subr.mxu0 0.0
    %2167 = vmatpush1.msra.mxu0 %v540
    %2168 = vmatprep.subr.mxu0 0.0
    %2169 = vmatpush1.msra.mxu0 %v541
    %2170 = vmatprep.subr.mxu0 0.0
    %2171 = vmatpush1.msra.mxu0 %v542
    %2172 = vmatprep.subr.mxu0 0.0
    %2173 = vmatpush1.msra.mxu0 %v543
    %2174 = vmatprep.subr.mxu0 0.0
    %2175 = vmatpush1.msra.mxu0 0.0
    %2176 = vmatprep.subr.mxu0 0.0
    %2177 = vmatpush1.msra.mxu0 0.0
    %2178 = vmatprep.subr.mxu0 0.0
    %2179 = vmatpush1.msra.mxu0 0.0
    %2180 = vmatprep.subr.mxu0 0.0
    %2181 = vmatpush1.msra.mxu0 0.0
    %2182 = vmatprep.subr.mxu0 0.0
    %2183 = vmatpush1.msra.mxu0 0.0
    %2184 = vmatprep.subr.mxu0 0.0
    %2185 = vmatpush1.msra.mxu0 0.0
    %2186 = vmatprep.subr.mxu0 0.0
    %2187 = vmatpush1.msra.mxu0 0.0
    %2188 = vmatprep.subr.mxu0 0.0
    %2189 = vmatpush1.msra.mxu0 0.0
    %2190 = vmatprep.subr.mxu0 0.0
    %2191 = vmatpush1.msra.mxu0 0.0
    %2192 = vmatprep.subr.mxu0 0.0
    %2193 = vmatpush1.msra.mxu0 0.0
    %2194 = vmatprep.subr.mxu0 0.0
    %2195 = vmatpush1.msra.mxu0 0.0
    %2196 = vmatprep.subr.mxu0 0.0
    %2197 = vmatpush1.msra.mxu0 0.0
    %2198 = vmatprep.subr.mxu0 0.0
    %2199 = vmatpush1.msra.mxu0 0.0
    %2200 = vmatprep.subr.mxu0 0.0
    %2201 = vmatpush1.msra.mxu0 0.0
    %2202 = vmatprep.subr.mxu0 0.0
    %2203 = vmatpush1.msra.mxu0 0.0
    %2204 = vmatprep.subr.mxu0 0.0
    %2205 = vmatpush1.msra.mxu0 0.0
    %2206 = vmatprep.subr.mxu0 0.0
    %2207 = vmatpush1.msra.mxu0 0.0
    %2208 = vmatprep.subr.mxu0 0.0
    %2209 = vmatpush1.msra.mxu0 0.0
    %2210 = vmatprep.subr.mxu0 0.0
    %2211 = vmatpush1.msra.mxu0 0.0
    %2212 = vmatprep.subr.mxu0 0.0
    %2213 = vmatpush1.msra.mxu0 0.0
    %2214 = vmatprep.subr.mxu0 0.0
    %2215 = vmatpush1.msra.mxu0 0.0
    %2216 = vmatprep.subr.mxu0 0.0
    %2217 = vmatpush1.msra.mxu0 0.0
    %2218 = vmatprep.subr.mxu0 0.0
    %2219 = vmatpush1.msra.mxu0 0.0
    %2220 = vmatprep.subr.mxu0 0.0
    %2221 = vmatpush1.msra.mxu0 0.0
    %2222 = vmatprep.mubr.f32.mxu0 0.0
    %2223 = vmatmul.mubr.f32.gmra.mrb[0].mxu0 %v2016
    %v2224 = vpop.f32.mrb[0].mxu0
    %v2225 = vadd.f32 %v693, %v2224
    %v2226 = vpop.f32.mrb[0].mxu0
    %2227 = vdwg.mxu0
    %v2229 = vrot.slane %v2085, 4
    %v2231 = vadd.f32 %v339, %v2229
    %v2232 = vxor.u32 %v2231, 2147483648
    %v2233 = vmul.f32 %v2232, 1.442695
    %v2234 = vpow.pop %v2233
    %v2235 = vadd.f32 %v2234, 1.0
    %v2236 = vrcp.pop %v2235
    %v2237 = vmul.f32 1.0, %v2236
    %v2239 = vrot.slane %v2155, 4
    %v2241 = vadd.f32 %v427, %v2239
    %v2242 = vxor.u32 %v2241, 2147483648
    %v2243 = vmul.f32 %v2242, 1.442695
    %v2244 = vpow.pop %v2243
    %v2245 = vadd.f32 %v2244, 1.0
    %v2246 = vrcp.pop %v2245
    %v2247 = vmul.f32 1.0, %v2246
    %v2249 = vrot.slane %v2225, 4
    %v2251 = vmul.f32 %v2237, %v2249
    %v2252 = vadd.f32 %v515, %v2251
    %v2253 = vtanh.pop %v2252
    %v2254 = vsub.f32 1.0, %v2247
    %v2255 = vmul.f32 %v2254, %v2253
    %v2256 = vrot.slane %v2012, 6
    %v2258 = vmul.f32 %v2247, %v2256
    %v2259 = vadd.f32 %v2255, %v2258
    %2260 = vst.msk [vmem:[#allocation2 + $0x8] sm:$0x30] %vm1281, %v2259
    %v2262 = vrot.slane %v2259, 4
    %v2263 = vsel %vm545, %v2262, 0
    %2265 = vmatprep.subr.mxu0 0.0
    %2266 = vmatpush1.msra.mxu0 %v518
    %2267 = vmatprep.subr.mxu0 0.0
    %2268 = vmatpush1.msra.mxu0 %v519
    %2269 = vmatprep.subr.mxu0 0.0
    %2270 = vmatpush1.msra.mxu0 %v520
    %2271 = vmatprep.subr.mxu0 0.0
    %2272 = vmatpush1.msra.mxu0 %v521
    %2273 = vmatprep.subr.mxu0 0.0
    %2274 = vmatpush1.msra.mxu0 %v522
    %2275 = vmatprep.subr.mxu0 0.0
    %2276 = vmatpush1.msra.mxu0 %v523
    %2277 = vmatprep.subr.mxu0 0.0
    %2278 = vmatpush1.msra.mxu0 %v524
    %2279 = vmatprep.subr.mxu0 0.0
    %2280 = vmatpush1.msra.mxu0 %v525
    %2281 = vmatprep.subr.mxu0 0.0
    %2282 = vmatpush1.msra.mxu0 0.0
    %2283 = vmatprep.subr.mxu0 0.0
    %2284 = vmatpush1.msra.mxu0 0.0
    %2285 = vmatprep.subr.mxu0 0.0
    %2286 = vmatpush1.msra.mxu0 0.0
    %2287 = vmatprep.subr.mxu0 0.0
    %2288 = vmatpush1.msra.mxu0 0.0
    %2289 = vmatprep.subr.mxu0 0.0
    %2290 = vmatpush1.msra.mxu0 0.0
    %2291 = vmatprep.subr.mxu0 0.0
    %2292 = vmatpush1.msra.mxu0 0.0
    %2293 = vmatprep.subr.mxu0 0.0
    %2294 = vmatpush1.msra.mxu0 0.0
    %2295 = vmatprep.subr.mxu0 0.0
    %2296 = vmatpush1.msra.mxu0 0.0
    %2297 = vmatprep.subr.mxu0 0.0
    %2298 = vmatpush1.msra.mxu0 0.0
    %2299 = vmatprep.subr.mxu0 0.0
    %2300 = vmatpush1.msra.mxu0 0.0
    %2301 = vmatprep.subr.mxu0 0.0
    %2302 = vmatpush1.msra.mxu0 0.0
    %2303 = vmatprep.subr.mxu0 0.0
    %2304 = vmatpush1.msra.mxu0 0.0
    %2305 = vmatprep.subr.mxu0 0.0
    %2306 = vmatpush1.msra.mxu0 0.0
    %2307 = vmatprep.subr.mxu0 0.0
    %2308 = vmatpush1.msra.mxu0 0.0
    %2309 = vmatprep.subr.mxu0 0.0
    %2310 = vmatpush1.msra.mxu0 0.0
    %2311 = vmatprep.subr.mxu0 0.0
    %2312 = vmatpush1.msra.mxu0 0.0
    %2313 = vmatprep.subr.mxu0 0.0
    %2314 = vmatpush1.msra.mxu0 0.0
    %2315 = vmatprep.subr.mxu0 0.0
    %2316 = vmatpush1.msra.mxu0 0.0
    %2317 = vmatprep.subr.mxu0 0.0
    %2318 = vmatpush1.msra.mxu0 0.0
    %2319 = vmatprep.subr.mxu0 0.0
    %2320 = vmatpush1.msra.mxu0 0.0
    %2321 = vmatprep.subr.mxu0 0.0
    %2322 = vmatpush1.msra.mxu0 0.0
    %2323 = vmatprep.subr.mxu0 0.0
    %2324 = vmatpush1.msra.mxu0 0.0
    %2325 = vmatprep.subr.mxu0 0.0
    %2326 = vmatpush1.msra.mxu0 0.0
    %2327 = vmatprep.subr.mxu0 0.0
    %2328 = vmatpush1.msra.mxu0 0.0
    %2329 = vmatprep.mubr.f32.mxu0 0.0
    %2330 = vmatmul.mubr.f32.gmra.mrb[0].mxu0 %v2263
    %v2331 = vpop.f32.mrb[0].mxu0
    %v2332 = vadd.f32 0.0, %v2331
    %v2333 = vpop.f32.mrb[0].mxu0
    %2334 = vdwg.mxu0
    %2335 = vmatprep.subr.mxu0 0.0
    %2336 = vmatpush1.msra.mxu0 %v527
    %2337 = vmatprep.subr.mxu0 0.0
    %2338 = vmatpush1.msra.mxu0 %v528
    %2339 = vmatprep.subr.mxu0 0.0
    %2340 = vmatpush1.msra.mxu0 %v529
    %2341 = vmatprep.subr.mxu0 0.0
    %2342 = vmatpush1.msra.mxu0 %v530
    %2343 = vmatprep.subr.mxu0 0.0
    %2344 = vmatpush1.msra.mxu0 %v531
    %2345 = vmatprep.subr.mxu0 0.0
    %2346 = vmatpush1.msra.mxu0 %v532
    %2347 = vmatprep.subr.mxu0 0.0
    %2348 = vmatpush1.msra.mxu0 %v533
    %2349 = vmatprep.subr.mxu0 0.0
    %2350 = vmatpush1.msra.mxu0 %v534
    %2351 = vmatprep.subr.mxu0 0.0
    %2352 = vmatpush1.msra.mxu0 0.0
    %2353 = vmatprep.subr.mxu0 0.0
    %2354 = vmatpush1.msra.mxu0 0.0
    %2355 = vmatprep.subr.mxu0 0.0
    %2356 = vmatpush1.msra.mxu0 0.0
    %2357 = vmatprep.subr.mxu0 0.0
    %2358 = vmatpush1.msra.mxu0 0.0
    %2359 = vmatprep.subr.mxu0 0.0
    %2360 = vmatpush1.msra.mxu0 0.0
    %2361 = vmatprep.subr.mxu0 0.0
    %2362 = vmatpush1.msra.mxu0 0.0
    %2363 = vmatprep.subr.mxu0 0.0
    %2364 = vmatpush1.msra.mxu0 0.0
    %2365 = vmatprep.subr.mxu0 0.0
    %2366 = vmatpush1.msra.mxu0 0.0
    %2367 = vmatprep.subr.mxu0 0.0
    %2368 = vmatpush1.msra.mxu0 0.0
    %2369 = vmatprep.subr.mxu0 0.0
    %2370 = vmatpush1.msra.mxu0 0.0
    %2371 = vmatprep.subr.mxu0 0.0
    %2372 = vmatpush1.msra.mxu0 0.0
    %2373 = vmatprep.subr.mxu0 0.0
    %2374 = vmatpush1.msra.mxu0 0.0
    %2375 = vmatprep.subr.mxu0 0.0
    %2376 = vmatpush1.msra.mxu0 0.0
    %2377 = vmatprep.subr.mxu0 0.0
    %2378 = vmatpush1.msra.mxu0 0.0
    %2379 = vmatprep.subr.mxu0 0.0
    %2380 = vmatpush1.msra.mxu0 0.0
    %2381 = vmatprep.subr.mxu0 0.0
    %2382 = vmatpush1.msra.mxu0 0.0
    %2383 = vmatprep.subr.mxu0 0.0
    %2384 = vmatpush1.msra.mxu0 0.0
    %2385 = vmatprep.subr.mxu0 0.0
    %2386 = vmatpush1.msra.mxu0 0.0
    %2387 = vmatprep.subr.mxu0 0.0
    %2388 = vmatpush1.msra.mxu0 0.0
    %2389 = vmatprep.subr.mxu0 0.0
    %2390 = vmatpush1.msra.mxu0 0.0
    %2391 = vmatprep.subr.mxu0 0.0
    %2392 = vmatpush1.msra.mxu0 0.0
    %2393 = vmatprep.subr.mxu0 0.0
    %2394 = vmatpush1.msra.mxu0 0.0
    %2395 = vmatprep.subr.mxu0 0.0
    %2396 = vmatpush1.msra.mxu0 0.0
    %2397 = vmatprep.subr.mxu0 0.0
    %2398 = vmatpush1.msra.mxu0 0.0
    %2399 = vmatprep.mubr.f32.mxu0 0.0
    %2400 = vmatmul.mubr.f32.gmra.mrb[0].mxu0 %v2263
    %v2401 = vpop.f32.mrb[0].mxu0
    %v2402 = vadd.f32 0.0, %v2401
    %v2403 = vpop.f32.mrb[0].mxu0
    %2404 = vdwg.mxu0
    %2405 = vmatprep.subr.mxu0 0.0
    %2406 = vmatpush1.msra.mxu0 %v536
    %2407 = vmatprep.subr.mxu0 0.0
    %2408 = vmatpush1.msra.mxu0 %v537
    %2409 = vmatprep.subr.mxu0 0.0
    %2410 = vmatpush1.msra.mxu0 %v538
    %2411 = vmatprep.subr.mxu0 0.0
    %2412 = vmatpush1.msra.mxu0 %v539
    %2413 = vmatprep.subr.mxu0 0.0
    %2414 = vmatpush1.msra.mxu0 %v540
    %2415 = vmatprep.subr.mxu0 0.0
    %2416 = vmatpush1.msra.mxu0 %v541
    %2417 = vmatprep.subr.mxu0 0.0
    %2418 = vmatpush1.msra.mxu0 %v542
    %2419 = vmatprep.subr.mxu0 0.0
    %2420 = vmatpush1.msra.mxu0 %v543
    %2421 = vmatprep.subr.mxu0 0.0
    %2422 = vmatpush1.msra.mxu0 0.0
    %2423 = vmatprep.subr.mxu0 0.0
    %2424 = vmatpush1.msra.mxu0 0.0
    %2425 = vmatprep.subr.mxu0 0.0
    %2426 = vmatpush1.msra.mxu0 0.0
    %2427 = vmatprep.subr.mxu0 0.0
    %2428 = vmatpush1.msra.mxu0 0.0
    %2429 = vmatprep.subr.mxu0 0.0
    %2430 = vmatpush1.msra.mxu0 0.0
    %2431 = vmatprep.subr.mxu0 0.0
    %2432 = vmatpush1.msra.mxu0 0.0
    %2433 = vmatprep.subr.mxu0 0.0
    %2434 = vmatpush1.msra.mxu0 0.0
    %2435 = vmatprep.subr.mxu0 0.0
    %2436 = vmatpush1.msra.mxu0 0.0
    %2437 = vmatprep.subr.mxu0 0.0
    %2438 = vmatpush1.msra.mxu0 0.0
    %2439 = vmatprep.subr.mxu0 0.0
    %2440 = vmatpush1.msra.mxu0 0.0
    %2441 = vmatprep.subr.mxu0 0.0
    %2442 = vmatpush1.msra.mxu0 0.0
    %2443 = vmatprep.subr.mxu0 0.0
    %2444 = vmatpush1.msra.mxu0 0.0
    %2445 = vmatprep.subr.mxu0 0.0
    %2446 = vmatpush1.msra.mxu0 0.0
    %2447 = vmatprep.subr.mxu0 0.0
    %2448 = vmatpush1.msra.mxu0 0.0
    %2449 = vmatprep.subr.mxu0 0.0
    %2450 = vmatpush1.msra.mxu0 0.0
    %2451 = vmatprep.subr.mxu0 0.0
    %2452 = vmatpush1.msra.mxu0 0.0
    %2453 = vmatprep.subr.mxu0 0.0
    %2454 = vmatpush1.msra.mxu0 0.0
    %2455 = vmatprep.subr.mxu0 0.0
    %2456 = vmatpush1.msra.mxu0 0.0
    %2457 = vmatprep.subr.mxu0 0.0
    %2458 = vmatpush1.msra.mxu0 0.0
    %2459 = vmatprep.subr.mxu0 0.0
    %2460 = vmatpush1.msra.mxu0 0.0
    %2461 = vmatprep.subr.mxu0 0.0
    %2462 = vmatpush1.msra.mxu0 0.0
    %2463 = vmatprep.subr.mxu0 0.0
    %2464 = vmatpush1.msra.mxu0 0.0
    %2465 = vmatprep.subr.mxu0 0.0
    %2466 = vmatpush1.msra.mxu0 0.0
    %2467 = vmatprep.subr.mxu0 0.0
    %2468 = vmatpush1.msra.mxu0 0.0
    %2469 = vmatprep.mubr.f32.mxu0 0.0
    %2470 = vmatmul.mubr.f32.gmra.mrb[0].mxu0 %v2263
    %v2471 = vpop.f32.mrb[0].mxu0
    %v2472 = vadd.f32 %v693, %v2471
    %v2473 = vpop.f32.mrb[0].mxu0
    %2474 = vdwg.mxu0
    %v2476 = vrot.slane %v2332, 2
    %v2478 = vadd.f32 %v339, %v2476
    %v2479 = vxor.u32 %v2478, 2147483648
    %v2480 = vmul.f32 %v2479, 1.442695
    %v2481 = vpow.pop %v2480
    %v2482 = vadd.f32 %v2481, 1.0
    %v2483 = vrcp.pop %v2482
    %v2484 = vmul.f32 1.0, %v2483
    %v2486 = vrot.slane %v2402, 2
    %v2488 = vadd.f32 %v427, %v2486
    %v2489 = vxor.u32 %v2488, 2147483648
    %v2490 = vmul.f32 %v2489, 1.442695
    %v2491 = vpow.pop %v2490
    %v2492 = vadd.f32 %v2491, 1.0
    %v2493 = vrcp.pop %v2492
    %v2494 = vmul.f32 1.0, %v2493
    %v2496 = vrot.slane %v2472, 2
    %v2498 = vmul.f32 %v2484, %v2496
    %v2499 = vadd.f32 %v515, %v2498
    %v2500 = vtanh.pop %v2499
    %v2501 = vsub.f32 1.0, %v2494
    %v2502 = vmul.f32 %v2501, %v2500
    %v2503 = vrot.slane %v2259, 6
    %v2505 = vmul.f32 %v2494, %v2503
    %v2506 = vadd.f32 %v2502, %v2505
    %2507 = vst.msk [vmem:[#allocation2 + $0x8] sm:$0xc0] %vm1529, %v2506
    %v2508 = vld [vmem:[#allocation2] sm:$0xff]
    %v2509 = vld [vmem:[#allocation2 + $0x8] sm:$0xff]
    %v2510 = vld [vmem:[%s5] sm:$0xff]
    %v2511 = vld [vmem:[%s5 + $0x8] sm:$0xff]
    %v2512 = vld [vmem:[%s5 + $0x10] sm:$0xff]
    %v2513 = vld [vmem:[%s5 + $0x18] sm:$0xff]
    %v2514 = vld [vmem:[%s5 + $0x20] sm:$0xff]
    %v2515 = vld [vmem:[%s5 + $0x28] sm:$0xff]
    %v2516 = vld [vmem:[%s5 + $0x30] sm:$0xff]
    %v2517 = vld [vmem:[%s5 + $0x38] sm:$0xff]
    %v2518 = vld [vmem:[#allocation11] sm:$0x1]
    %v2520 = vlaneseq
    %v2521 = vshrl.u32 %v2520, 7
    %v2522 = vsub.s32 0, %v2521
    %v2523 = vrot.slane %v2518, %v2522
    %v2526 = vsel %vm545, %v2508, 0
    %v2529 = vsel %vm545, %v2509, 0
    %2531 = vmatprep.subr.mxu0 0.0
    %2532 = vmatpush1.msra.mxu0 %v2510
    %2533 = vmatprep.subr.mxu0 0.0
    %2534 = vmatpush1.msra.mxu0 %v2511
    %2535 = vmatprep.subr.mxu0 0.0
    %2536 = vmatpush1.msra.mxu0 %v2512
    %2537 = vmatprep.subr.mxu0 0.0
    %2538 = vmatpush1.msra.mxu0 %v2513
    %2539 = vmatprep.subr.mxu0 0.0
    %2540 = vmatpush1.msra.mxu0 %v2514
    %2541 = vmatprep.subr.mxu0 0.0
    %2542 = vmatpush1.msra.mxu0 %v2515
    %2543 = vmatprep.subr.mxu0 0.0
    %2544 = vmatpush1.msra.mxu0 %v2516
    %2545 = vmatprep.subr.mxu0 0.0
    %2546 = vmatpush1.msra.mxu0 %v2517
    %2547 = vmatprep.subr.mxu0 0.0
    %2548 = vmatpush1.msra.mxu0 0.0
    %2549 = vmatprep.subr.mxu0 0.0
    %2550 = vmatpush1.msra.mxu0 0.0
    %2551 = vmatprep.subr.mxu0 0.0
    %2552 = vmatpush1.msra.mxu0 0.0
    %2553 = vmatprep.subr.mxu0 0.0
    %2554 = vmatpush1.msra.mxu0 0.0
    %2555 = vmatprep.subr.mxu0 0.0
    %2556 = vmatpush1.msra.mxu0 0.0
    %2557 = vmatprep.subr.mxu0 0.0
    %2558 = vmatpush1.msra.mxu0 0.0
    %2559 = vmatprep.subr.mxu0 0.0
    %2560 = vmatpush1.msra.mxu0 0.0
    %2561 = vmatprep.subr.mxu0 0.0
    %2562 = vmatpush1.msra.mxu0 0.0
    %2563 = vmatprep.subr.mxu0 0.0
    %2564 = vmatpush1.msra.mxu0 0.0
    %2565 = vmatprep.subr.mxu0 0.0
    %2566 = vmatpush1.msra.mxu0 0.0
    %2567 = vmatprep.subr.mxu0 0.0
    %2568 = vmatpush1.msra.mxu0 0.0
    %2569 = vmatprep.subr.mxu0 0.0
    %2570 = vmatpush1.msra.mxu0 0.0
    %2571 = vmatprep.subr.mxu0 0.0
    %2572 = vmatpush1.msra.mxu0 0.0
    %2573 = vmatprep.subr.mxu0 0.0
    %2574 = vmatpush1.msra.mxu0 0.0
    %2575 = vmatprep.subr.mxu0 0.0
    %2576 = vmatpush1.msra.mxu0 0.0
    %2577 = vmatprep.subr.mxu0 0.0
    %2578 = vmatpush1.msra.mxu0 0.0
    %2579 = vmatprep.subr.mxu0 0.0
    %2580 = vmatpush1.msra.mxu0 0.0
    %2581 = vmatprep.subr.mxu0 0.0
    %2582 = vmatpush1.msra.mxu0 0.0
    %2583 = vmatprep.subr.mxu0 0.0
    %2584 = vmatpush1.msra.mxu0 0.0
    %2585 = vmatprep.subr.mxu0 0.0
    %2586 = vmatpush1.msra.mxu0 0.0
    %2587 = vmatprep.subr.mxu0 0.0
    %2588 = vmatpush1.msra.mxu0 0.0
    %2589 = vmatprep.subr.mxu0 0.0
    %2590 = vmatpush1.msra.mxu0 0.0
    %2591 = vmatprep.subr.mxu0 0.0
    %2592 = vmatpush1.msra.mxu0 0.0
    %2593 = vmatprep.subr.mxu0 0.0
    %2594 = vmatpush1.msra.mxu0 0.0
    %2595 = vmatprep.mubr.f32.mxu0 0.0
    %2596 = vmatmul.mubr.f32.gmra.mrb[0].mxu0 %v2526
    %v2597 = vpop.f32.mrb[0].mxu0
    %v2598 = vadd.f32 %v2523, %v2597
    %v2599 = vpop.f32.mrb[0].mxu0
    %2600 = vmatprep.mubr.f32.mxu0 0.0
    %2601 = vmatmul.mubr.f32.gmra.mrb[0].mxu0 %v2529
    %v2602 = vpop.f32.mrb[0].mxu0
    %v2603 = vadd.f32 %v2523, %v2602
    %v2604 = vpop.f32.mrb[0].mxu0
    %2605 = vdwg.mxu0
    %s2606 = scalar_lea.vmem %s5, 64
    %v2607 = vld [vmem:[%s2606] sm:$0xff]
    %v2608 = vld [vmem:[%s2606 + $0x8] sm:$0xff]
    %v2609 = vld [vmem:[%s2606 + $0x10] sm:$0xff]
    %v2610 = vld [vmem:[%s2606 + $0x18] sm:$0xff]
    %v2611 = vld [vmem:[%s2606 + $0x20] sm:$0xff]
    %v2612 = vld [vmem:[%s2606 + $0x28] sm:$0xff]
    %v2613 = vld [vmem:[%s2606 + $0x30] sm:$0xff]
    %v2614 = vld [vmem:[%s2606 + $0x38] sm:$0xff]
    %s2615 = scalar_lea.vmem [#allocation11], 1
    %v2616 = vld [vmem:[%s2615] sm:$0x1]
    %v2618 = vlaneseq
    %v2619 = vshrl.u32 %v2618, 7
    %v2620 = vsub.s32 0, %v2619
    %v2621 = vrot.slane %v2616, %v2620
    %2623 = vmatprep.subr.mxu0 0.0
    %2624 = vmatpush1.msra.mxu0 %v2607
    %2625 = vmatprep.subr.mxu0 0.0
    %2626 = vmatpush1.msra.mxu0 %v2608
    %2627 = vmatprep.subr.mxu0 0.0
    %2628 = vmatpush1.msra.mxu0 %v2609
    %2629 = vmatprep.subr.mxu0 0.0
    %2630 = vmatpush1.msra.mxu0 %v2610
    %2631 = vmatprep.subr.mxu0 0.0
    %2632 = vmatpush1.msra.mxu0 %v2611
    %2633 = vmatprep.subr.mxu0 0.0
    %2634 = vmatpush1.msra.mxu0 %v2612
    %2635 = vmatprep.subr.mxu0 0.0
    %2636 = vmatpush1.msra.mxu0 %v2613
    %2637 = vmatprep.subr.mxu0 0.0
    %2638 = vmatpush1.msra.mxu0 %v2614
    %2639 = vmatprep.subr.mxu0 0.0
    %2640 = vmatpush1.msra.mxu0 0.0
    %2641 = vmatprep.subr.mxu0 0.0
    %2642 = vmatpush1.msra.mxu0 0.0
    %2643 = vmatprep.subr.mxu0 0.0
    %2644 = vmatpush1.msra.mxu0 0.0
    %2645 = vmatprep.subr.mxu0 0.0
    %2646 = vmatpush1.msra.mxu0 0.0
    %2647 = vmatprep.subr.mxu0 0.0
    %2648 = vmatpush1.msra.mxu0 0.0
    %2649 = vmatprep.subr.mxu0 0.0
    %2650 = vmatpush1.msra.mxu0 0.0
    %2651 = vmatprep.subr.mxu0 0.0
    %2652 = vmatpush1.msra.mxu0 0.0
    %2653 = vmatprep.subr.mxu0 0.0
    %2654 = vmatpush1.msra.mxu0 0.0
    %2655 = vmatprep.subr.mxu0 0.0
    %2656 = vmatpush1.msra.mxu0 0.0
    %2657 = vmatprep.subr.mxu0 0.0
    %2658 = vmatpush1.msra.mxu0 0.0
    %2659 = vmatprep.subr.mxu0 0.0
    %2660 = vmatpush1.msra.mxu0 0.0
    %2661 = vmatprep.subr.mxu0 0.0
    %2662 = vmatpush1.msra.mxu0 0.0
    %2663 = vmatprep.subr.mxu0 0.0
    %2664 = vmatpush1.msra.mxu0 0.0
    %2665 = vmatprep.subr.mxu0 0.0
    %2666 = vmatpush1.msra.mxu0 0.0
    %2667 = vmatprep.subr.mxu0 0.0
    %2668 = vmatpush1.msra.mxu0 0.0
    %2669 = vmatprep.subr.mxu0 0.0
    %2670 = vmatpush1.msra.mxu0 0.0
    %2671 = vmatprep.subr.mxu0 0.0
    %2672 = vmatpush1.msra.mxu0 0.0
    %2673 = vmatprep.subr.mxu0 0.0
    %2674 = vmatpush1.msra.mxu0 0.0
    %2675 = vmatprep.subr.mxu0 0.0
    %2676 = vmatpush1.msra.mxu0 0.0
    %2677 = vmatprep.subr.mxu0 0.0
    %2678 = vmatpush1.msra.mxu0 0.0
    %2679 = vmatprep.subr.mxu0 0.0
    %2680 = vmatpush1.msra.mxu0 0.0
    %2681 = vmatprep.subr.mxu0 0.0
    %2682 = vmatpush1.msra.mxu0 0.0
    %2683 = vmatprep.subr.mxu0 0.0
    %2684 = vmatpush1.msra.mxu0 0.0
    %2685 = vmatprep.subr.mxu0 0.0
    %2686 = vmatpush1.msra.mxu0 0.0
    %2687 = vmatprep.mubr.f32.mxu0 0.0
    %2688 = vmatmul.mubr.f32.gmra.mrb[0].mxu0 %v2526
    %v2689 = vpop.f32.mrb[0].mxu0
    %v2690 = vadd.f32 %v2621, %v2689
    %v2691 = vpop.f32.mrb[0].mxu0
    %2692 = vmatprep.mubr.f32.mxu0 0.0
    %2693 = vmatmul.mubr.f32.gmra.mrb[0].mxu0 %v2529
    %v2694 = vpop.f32.mrb[0].mxu0
    %v2695 = vadd.f32 %v2621, %v2694
    %v2696 = vpop.f32.mrb[0].mxu0
    %2697 = vdwg.mxu0
    %s2698 = scalar_lea.vmem %s5, 128
    %v2699 = vld [vmem:[%s2698] sm:$0xff]
    %v2700 = vld [vmem:[%s2698 + $0x8] sm:$0xff]
    %v2701 = vld [vmem:[%s2698 + $0x10] sm:$0xff]
    %v2702 = vld [vmem:[%s2698 + $0x18] sm:$0xff]
    %v2703 = vld [vmem:[%s2698 + $0x20] sm:$0xff]
    %v2704 = vld [vmem:[%s2698 + $0x28] sm:$0xff]
    %v2705 = vld [vmem:[%s2698 + $0x30] sm:$0xff]
    %v2706 = vld [vmem:[%s2698 + $0x38] sm:$0xff]
    %s2707 = scalar_lea.vmem [#allocation11], 2
    %v2708 = vld [vmem:[%s2707] sm:$0x1]
    %v2710 = vlaneseq
    %v2711 = vshrl.u32 %v2710, 7
    %v2712 = vsub.s32 0, %v2711
    %v2713 = vrot.slane %v2708, %v2712
    %2715 = vmatprep.subr.mxu0 0.0
    %2716 = vmatpush1.msra.mxu0 %v2699
    %2717 = vmatprep.subr.mxu0 0.0
    %2718 = vmatpush1.msra.mxu0 %v2700
    %2719 = vmatprep.subr.mxu0 0.0
    %2720 = vmatpush1.msra.mxu0 %v2701
    %2721 = vmatprep.subr.mxu0 0.0
    %2722 = vmatpush1.msra.mxu0 %v2702
    %2723 = vmatprep.subr.mxu0 0.0
    %2724 = vmatpush1.msra.mxu0 %v2703
    %2725 = vmatprep.subr.mxu0 0.0
    %2726 = vmatpush1.msra.mxu0 %v2704
    %2727 = vmatprep.subr.mxu0 0.0
    %2728 = vmatpush1.msra.mxu0 %v2705
    %2729 = vmatprep.subr.mxu0 0.0
    %2730 = vmatpush1.msra.mxu0 %v2706
    %2731 = vmatprep.subr.mxu0 0.0
    %2732 = vmatpush1.msra.mxu0 0.0
    %2733 = vmatprep.subr.mxu0 0.0
    %2734 = vmatpush1.msra.mxu0 0.0
    %2735 = vmatprep.subr.mxu0 0.0
    %2736 = vmatpush1.msra.mxu0 0.0
    %2737 = vmatprep.subr.mxu0 0.0
    %2738 = vmatpush1.msra.mxu0 0.0
    %2739 = vmatprep.subr.mxu0 0.0
    %2740 = vmatpush1.msra.mxu0 0.0
    %2741 = vmatprep.subr.mxu0 0.0
    %2742 = vmatpush1.msra.mxu0 0.0
    %2743 = vmatprep.subr.mxu0 0.0
    %2744 = vmatpush1.msra.mxu0 0.0
    %2745 = vmatprep.subr.mxu0 0.0
    %2746 = vmatpush1.msra.mxu0 0.0
    %2747 = vmatprep.subr.mxu0 0.0
    %2748 = vmatpush1.msra.mxu0 0.0
    %2749 = vmatprep.subr.mxu0 0.0
    %2750 = vmatpush1.msra.mxu0 0.0
    %2751 = vmatprep.subr.mxu0 0.0
    %2752 = vmatpush1.msra.mxu0 0.0
    %2753 = vmatprep.subr.mxu0 0.0
    %2754 = vmatpush1.msra.mxu0 0.0
    %2755 = vmatprep.subr.mxu0 0.0
    %2756 = vmatpush1.msra.mxu0 0.0
    %2757 = vmatprep.subr.mxu0 0.0
    %2758 = vmatpush1.msra.mxu0 0.0
    %2759 = vmatprep.subr.mxu0 0.0
    %2760 = vmatpush1.msra.mxu0 0.0
    %2761 = vmatprep.subr.mxu0 0.0
    %2762 = vmatpush1.msra.mxu0 0.0
    %2763 = vmatprep.subr.mxu0 0.0
    %2764 = vmatpush1.msra.mxu0 0.0
    %2765 = vmatprep.subr.mxu0 0.0
    %2766 = vmatpush1.msra.mxu0 0.0
    %2767 = vmatprep.subr.mxu0 0.0
    %2768 = vmatpush1.msra.mxu0 0.0
    %2769 = vmatprep.subr.mxu0 0.0
    %2770 = vmatpush1.msra.mxu0 0.0
    %2771 = vmatprep.subr.mxu0 0.0
    %2772 = vmatpush1.msra.mxu0 0.0
    %2773 = vmatprep.subr.mxu0 0.0
    %2774 = vmatpush1.msra.mxu0 0.0
    %2775 = vmatprep.subr.mxu0 0.0
    %2776 = vmatpush1.msra.mxu0 0.0
    %2777 = vmatprep.subr.mxu0 0.0
    %2778 = vmatpush1.msra.mxu0 0.0
    %2779 = vmatprep.mubr.f32.mxu0 0.0
    %2780 = vmatmul.mubr.f32.gmra.mrb[0].mxu0 %v2526
    %v2781 = vpop.f32.mrb[0].mxu0
    %v2782 = vadd.f32 %v2713, %v2781
    %v2783 = vpop.f32.mrb[0].mxu0
    %2784 = vmatprep.mubr.f32.mxu0 0.0
    %2785 = vmatmul.mubr.f32.gmra.mrb[0].mxu0 %v2529
    %v2786 = vpop.f32.mrb[0].mxu0
    %v2787 = vadd.f32 %v2713, %v2786
    %v2788 = vpop.f32.mrb[0].mxu0
    %2789 = vdwg.mxu0
    %v2790 = vld [vmem:[%s6] sm:$0xff]
    %v2791 = vld [vmem:[%s6 + $0x8] sm:$0xff]
    %v2792 = vld [vmem:[%s6 + $0x10] sm:$0xff]
    %v2793 = vld [vmem:[%s6 + $0x18] sm:$0xff]
    %v2794 = vld [vmem:[%s6 + $0x20] sm:$0xff]
    %v2795 = vld [vmem:[%s6 + $0x28] sm:$0xff]
    %v2796 = vld [vmem:[%s6 + $0x30] sm:$0xff]
    %v2797 = vld [vmem:[%s6 + $0x38] sm:$0xff]
    %s2798 = scalar_lea.vmem %s6, 64
    %v2799 = vld [vmem:[%s2798] sm:$0xff]
    %v2800 = vld [vmem:[%s2798 + $0x8] sm:$0xff]
    %v2801 = vld [vmem:[%s2798 + $0x10] sm:$0xff]
    %v2802 = vld [vmem:[%s2798 + $0x18] sm:$0xff]
    %v2803 = vld [vmem:[%s2798 + $0x20] sm:$0xff]
    %v2804 = vld [vmem:[%s2798 + $0x28] sm:$0xff]
    %v2805 = vld [vmem:[%s2798 + $0x30] sm:$0xff]
    %v2806 = vld [vmem:[%s2798 + $0x38] sm:$0xff]
    %s2807 = scalar_lea.vmem %s6, 128
    %v2808 = vld [vmem:[%s2807] sm:$0xff]
    %v2809 = vld [vmem:[%s2807 + $0x8] sm:$0xff]
    %v2810 = vld [vmem:[%s2807 + $0x10] sm:$0xff]
    %v2811 = vld [vmem:[%s2807 + $0x18] sm:$0xff]
    %v2812 = vld [vmem:[%s2807 + $0x20] sm:$0xff]
    %v2813 = vld [vmem:[%s2807 + $0x28] sm:$0xff]
    %v2814 = vld [vmem:[%s2807 + $0x30] sm:$0xff]
    %v2815 = vld [vmem:[%s2807 + $0x38] sm:$0xff]
    %v2816 = vld [vmem:[#allocation13] sm:$0x1]
    %2817 = vmatprep.subr.mxu0 0.0
    %2818 = vmatpush1.msra.mxu0 %v2790
    %2819 = vmatprep.subr.mxu0 0.0
    %2820 = vmatpush1.msra.mxu0 %v2791
    %2821 = vmatprep.subr.mxu0 0.0
    %2822 = vmatpush1.msra.mxu0 %v2792
    %2823 = vmatprep.subr.mxu0 0.0
    %2824 = vmatpush1.msra.mxu0 %v2793
    %2825 = vmatprep.subr.mxu0 0.0
    %2826 = vmatpush1.msra.mxu0 %v2794
    %2827 = vmatprep.subr.mxu0 0.0
    %2828 = vmatpush1.msra.mxu0 %v2795
    %2829 = vmatprep.subr.mxu0 0.0
    %2830 = vmatpush1.msra.mxu0 %v2796
    %2831 = vmatprep.subr.mxu0 0.0
    %2832 = vmatpush1.msra.mxu0 %v2797
    %2833 = vmatprep.subr.mxu0 0.0
    %2834 = vmatpush1.msra.mxu0 0.0
    %2835 = vmatprep.subr.mxu0 0.0
    %2836 = vmatpush1.msra.mxu0 0.0
    %2837 = vmatprep.subr.mxu0 0.0
    %2838 = vmatpush1.msra.mxu0 0.0
    %2839 = vmatprep.subr.mxu0 0.0
    %2840 = vmatpush1.msra.mxu0 0.0
    %2841 = vmatprep.subr.mxu0 0.0
    %2842 = vmatpush1.msra.mxu0 0.0
    %2843 = vmatprep.subr.mxu0 0.0
    %2844 = vmatpush1.msra.mxu0 0.0
    %2845 = vmatprep.subr.mxu0 0.0
    %2846 = vmatpush1.msra.mxu0 0.0
    %2847 = vmatprep.subr.mxu0 0.0
    %2848 = vmatpush1.msra.mxu0 0.0
    %2849 = vmatprep.subr.mxu0 0.0
    %2850 = vmatpush1.msra.mxu0 0.0
    %2851 = vmatprep.subr.mxu0 0.0
    %2852 = vmatpush1.msra.mxu0 0.0
    %2853 = vmatprep.subr.mxu0 0.0
    %2854 = vmatpush1.msra.mxu0 0.0
    %2855 = vmatprep.subr.mxu0 0.0
    %2856 = vmatpush1.msra.mxu0 0.0
    %2857 = vmatprep.subr.mxu0 0.0
    %2858 = vmatpush1.msra.mxu0 0.0
    %2859 = vmatprep.subr.mxu0 0.0
    %2860 = vmatpush1.msra.mxu0 0.0
    %2861 = vmatprep.subr.mxu0 0.0
    %2862 = vmatpush1.msra.mxu0 0.0
    %2863 = vmatprep.subr.mxu0 0.0
    %2864 = vmatpush1.msra.mxu0 0.0
    %2865 = vmatprep.subr.mxu0 0.0
    %2866 = vmatpush1.msra.mxu0 0.0
    %2867 = vmatprep.subr.mxu0 0.0
    %2868 = vmatpush1.msra.mxu0 0.0
    %2869 = vmatprep.subr.mxu0 0.0
    %2870 = vmatpush1.msra.mxu0 0.0
    %2871 = vmatprep.subr.mxu0 0.0
    %2872 = vmatpush1.msra.mxu0 0.0
    %2873 = vmatprep.subr.mxu0 0.0
    %2874 = vmatpush1.msra.mxu0 0.0
    %2875 = vmatprep.subr.mxu0 0.0
    %2876 = vmatpush1.msra.mxu0 0.0
    %2877 = vmatprep.subr.mxu0 0.0
    %2878 = vmatpush1.msra.mxu0 0.0
    %2879 = vmatprep.subr.mxu0 0.0
    %2880 = vmatpush1.msra.mxu0 0.0
    %2881 = vmatprep.mubr.f32.mxu0 0.0
    %2882 = vmatmul.mubr.f32.gmra.mrb[0].mxu0 %v547
    %v2883 = vpop.f32.mrb[0].mxu0
    %v2884 = vadd.f32 0.0, %v2883
    %v2885 = vpop.f32.mrb[0].mxu0
    %2886 = vdwg.mxu0
    %2887 = vmatprep.subr.mxu0 0.0
    %2888 = vmatpush1.msra.mxu0 %v2799
    %2889 = vmatprep.subr.mxu0 0.0
    %2890 = vmatpush1.msra.mxu0 %v2800
    %2891 = vmatprep.subr.mxu0 0.0
    %2892 = vmatpush1.msra.mxu0 %v2801
    %2893 = vmatprep.subr.mxu0 0.0
    %2894 = vmatpush1.msra.mxu0 %v2802
    %2895 = vmatprep.subr.mxu0 0.0
    %2896 = vmatpush1.msra.mxu0 %v2803
    %2897 = vmatprep.subr.mxu0 0.0
    %2898 = vmatpush1.msra.mxu0 %v2804
    %2899 = vmatprep.subr.mxu0 0.0
    %2900 = vmatpush1.msra.mxu0 %v2805
    %2901 = vmatprep.subr.mxu0 0.0
    %2902 = vmatpush1.msra.mxu0 %v2806
    %2903 = vmatprep.subr.mxu0 0.0
    %2904 = vmatpush1.msra.mxu0 0.0
    %2905 = vmatprep.subr.mxu0 0.0
    %2906 = vmatpush1.msra.mxu0 0.0
    %2907 = vmatprep.subr.mxu0 0.0
    %2908 = vmatpush1.msra.mxu0 0.0
    %2909 = vmatprep.subr.mxu0 0.0
    %2910 = vmatpush1.msra.mxu0 0.0
    %2911 = vmatprep.subr.mxu0 0.0
    %2912 = vmatpush1.msra.mxu0 0.0
    %2913 = vmatprep.subr.mxu0 0.0
    %2914 = vmatpush1.msra.mxu0 0.0
    %2915 = vmatprep.subr.mxu0 0.0
    %2916 = vmatpush1.msra.mxu0 0.0
    %2917 = vmatprep.subr.mxu0 0.0
    %2918 = vmatpush1.msra.mxu0 0.0
    %2919 = vmatprep.subr.mxu0 0.0
    %2920 = vmatpush1.msra.mxu0 0.0
    %2921 = vmatprep.subr.mxu0 0.0
    %2922 = vmatpush1.msra.mxu0 0.0
    %2923 = vmatprep.subr.mxu0 0.0
    %2924 = vmatpush1.msra.mxu0 0.0
    %2925 = vmatprep.subr.mxu0 0.0
    %2926 = vmatpush1.msra.mxu0 0.0
    %2927 = vmatprep.subr.mxu0 0.0
    %2928 = vmatpush1.msra.mxu0 0.0
    %2929 = vmatprep.subr.mxu0 0.0
    %2930 = vmatpush1.msra.mxu0 0.0
    %2931 = vmatprep.subr.mxu0 0.0
    %2932 = vmatpush1.msra.mxu0 0.0
    %2933 = vmatprep.subr.mxu0 0.0
    %2934 = vmatpush1.msra.mxu0 0.0
    %2935 = vmatprep.subr.mxu0 0.0
    %2936 = vmatpush1.msra.mxu0 0.0
    %2937 = vmatprep.subr.mxu0 0.0
    %2938 = vmatpush1.msra.mxu0 0.0
    %2939 = vmatprep.subr.mxu0 0.0
    %2940 = vmatpush1.msra.mxu0 0.0
    %2941 = vmatprep.subr.mxu0 0.0
    %2942 = vmatpush1.msra.mxu0 0.0
    %2943 = vmatprep.subr.mxu0 0.0
    %2944 = vmatpush1.msra.mxu0 0.0
    %2945 = vmatprep.subr.mxu0 0.0
    %2946 = vmatpush1.msra.mxu0 0.0
    %2947 = vmatprep.subr.mxu0 0.0
    %2948 = vmatpush1.msra.mxu0 0.0
    %2949 = vmatprep.subr.mxu0 0.0
    %2950 = vmatpush1.msra.mxu0 0.0
    %2951 = vmatprep.mubr.f32.mxu0 0.0
    %2952 = vmatmul.mubr.f32.gmra.mrb[0].mxu0 %v547
    %v2953 = vpop.f32.mrb[0].mxu0
    %v2954 = vadd.f32 0.0, %v2953
    %v2955 = vpop.f32.mrb[0].mxu0
    %2956 = vdwg.mxu0
    %v2958 = vlaneseq
    %v2959 = vshrl.u32 %v2958, 7
    %v2960 = vsub.s32 0, %v2959
    %v2961 = vrot.slane %v2816, %v2960
    %2963 = vmatprep.subr.mxu0 0.0
    %2964 = vmatpush1.msra.mxu0 %v2808
    %2965 = vmatprep.subr.mxu0 0.0
    %2966 = vmatpush1.msra.mxu0 %v2809
    %2967 = vmatprep.subr.mxu0 0.0
    %2968 = vmatpush1.msra.mxu0 %v2810
    %2969 = vmatprep.subr.mxu0 0.0
    %2970 = vmatpush1.msra.mxu0 %v2811
    %2971 = vmatprep.subr.mxu0 0.0
    %2972 = vmatpush1.msra.mxu0 %v2812
    %2973 = vmatprep.subr.mxu0 0.0
    %2974 = vmatpush1.msra.mxu0 %v2813
    %2975 = vmatprep.subr.mxu0 0.0
    %2976 = vmatpush1.msra.mxu0 %v2814
    %2977 = vmatprep.subr.mxu0 0.0
    %2978 = vmatpush1.msra.mxu0 %v2815
    %2979 = vmatprep.subr.mxu0 0.0
    %2980 = vmatpush1.msra.mxu0 0.0
    %2981 = vmatprep.subr.mxu0 0.0
    %2982 = vmatpush1.msra.mxu0 0.0
    %2983 = vmatprep.subr.mxu0 0.0
    %2984 = vmatpush1.msra.mxu0 0.0
    %2985 = vmatprep.subr.mxu0 0.0
    %2986 = vmatpush1.msra.mxu0 0.0
    %2987 = vmatprep.subr.mxu0 0.0
    %2988 = vmatpush1.msra.mxu0 0.0
    %2989 = vmatprep.subr.mxu0 0.0
    %2990 = vmatpush1.msra.mxu0 0.0
    %2991 = vmatprep.subr.mxu0 0.0
    %2992 = vmatpush1.msra.mxu0 0.0
    %2993 = vmatprep.subr.mxu0 0.0
    %2994 = vmatpush1.msra.mxu0 0.0
    %2995 = vmatprep.subr.mxu0 0.0
    %2996 = vmatpush1.msra.mxu0 0.0
    %2997 = vmatprep.subr.mxu0 0.0
    %2998 = vmatpush1.msra.mxu0 0.0
    %2999 = vmatprep.subr.mxu0 0.0
    %3000 = vmatpush1.msra.mxu0 0.0
    %3001 = vmatprep.subr.mxu0 0.0
    %3002 = vmatpush1.msra.mxu0 0.0
    %3003 = vmatprep.subr.mxu0 0.0
    %3004 = vmatpush1.msra.mxu0 0.0
    %3005 = vmatprep.subr.mxu0 0.0
    %3006 = vmatpush1.msra.mxu0 0.0
    %3007 = vmatprep.subr.mxu0 0.0
    %3008 = vmatpush1.msra.mxu0 0.0
    %3009 = vmatprep.subr.mxu0 0.0
    %3010 = vmatpush1.msra.mxu0 0.0
    %3011 = vmatprep.subr.mxu0 0.0
    %3012 = vmatpush1.msra.mxu0 0.0
    %3013 = vmatprep.subr.mxu0 0.0
    %3014 = vmatpush1.msra.mxu0 0.0
    %3015 = vmatprep.subr.mxu0 0.0
    %3016 = vmatpush1.msra.mxu0 0.0
    %3017 = vmatprep.subr.mxu0 0.0
    %3018 = vmatpush1.msra.mxu0 0.0
    %3019 = vmatprep.subr.mxu0 0.0
    %3020 = vmatpush1.msra.mxu0 0.0
    %3021 = vmatprep.subr.mxu0 0.0
    %3022 = vmatpush1.msra.mxu0 0.0
    %3023 = vmatprep.subr.mxu0 0.0
    %3024 = vmatpush1.msra.mxu0 0.0
    %3025 = vmatprep.subr.mxu0 0.0
    %3026 = vmatpush1.msra.mxu0 0.0
    %3027 = vmatprep.mubr.f32.mxu0 0.0
    %3028 = vmatmul.mubr.f32.gmra.mrb[0].mxu0 %v547
    %v3029 = vpop.f32.mrb[0].mxu0
    %v3030 = vadd.f32 %v2961, %v3029
    %v3031 = vpop.f32.mrb[0].mxu0
    %3032 = vdwg.mxu0
    %v3033 = vadd.f32 %v2598, %v2884
    %v3034 = vxor.u32 %v3033, 2147483648
    %v3035 = vmul.f32 %v3034, 1.442695
    %v3036 = vpow.pop %v3035
    %v3037 = vadd.f32 %v3036, 1.0
    %v3038 = vrcp.pop %v3037
    %v3039 = vmul.f32 1.0, %v3038
    %v3040 = vadd.f32 %v2690, %v2954
    %v3041 = vxor.u32 %v3040, 2147483648
    %v3042 = vmul.f32 %v3041, 1.442695
    %v3043 = vpow.pop %v3042
    %v3044 = vadd.f32 %v3043, 1.0
    %v3045 = vrcp.pop %v3044
    %v3046 = vmul.f32 1.0, %v3045
    %v3047 = vmul.f32 %v3039, %v3030
    %v3048 = vadd.f32 %v2782, %v3047
    %v3049 = vtanh.pop %v3048
    %v3050 = vsub.f32 1.0, %v3046
    %v3051 = vmul.f32 %v3050, %v3049
    %v3052 = vmul.f32 %v3046, 0.0
    %v3053 = vadd.f32 %v3051, %v3052
    %3054 = vst.msk [vmem:[#allocation3] sm:$0x3] %vm786, %v3053
    %v3056 = vsel %vm545, %v3053, 0
    %3058 = vmatprep.subr.mxu0 0.0
    %3059 = vmatpush1.msra.mxu0 %v2790
    %3060 = vmatprep.subr.mxu0 0.0
    %3061 = vmatpush1.msra.mxu0 %v2791
    %3062 = vmatprep.subr.mxu0 0.0
    %3063 = vmatpush1.msra.mxu0 %v2792
    %3064 = vmatprep.subr.mxu0 0.0
    %3065 = vmatpush1.msra.mxu0 %v2793
    %3066 = vmatprep.subr.mxu0 0.0
    %3067 = vmatpush1.msra.mxu0 %v2794
    %3068 = vmatprep.subr.mxu0 0.0
    %3069 = vmatpush1.msra.mxu0 %v2795
    %3070 = vmatprep.subr.mxu0 0.0
    %3071 = vmatpush1.msra.mxu0 %v2796
    %3072 = vmatprep.subr.mxu0 0.0
    %3073 = vmatpush1.msra.mxu0 %v2797
    %3074 = vmatprep.subr.mxu0 0.0
    %3075 = vmatpush1.msra.mxu0 0.0
    %3076 = vmatprep.subr.mxu0 0.0
    %3077 = vmatpush1.msra.mxu0 0.0
    %3078 = vmatprep.subr.mxu0 0.0
    %3079 = vmatpush1.msra.mxu0 0.0
    %3080 = vmatprep.subr.mxu0 0.0
    %3081 = vmatpush1.msra.mxu0 0.0
    %3082 = vmatprep.subr.mxu0 0.0
    %3083 = vmatpush1.msra.mxu0 0.0
    %3084 = vmatprep.subr.mxu0 0.0
    %3085 = vmatpush1.msra.mxu0 0.0
    %3086 = vmatprep.subr.mxu0 0.0
    %3087 = vmatpush1.msra.mxu0 0.0
    %3088 = vmatprep.subr.mxu0 0.0
    %3089 = vmatpush1.msra.mxu0 0.0
    %3090 = vmatprep.subr.mxu0 0.0
    %3091 = vmatpush1.msra.mxu0 0.0
    %3092 = vmatprep.subr.mxu0 0.0
    %3093 = vmatpush1.msra.mxu0 0.0
    %3094 = vmatprep.subr.mxu0 0.0
    %3095 = vmatpush1.msra.mxu0 0.0
    %3096 = vmatprep.subr.mxu0 0.0
    %3097 = vmatpush1.msra.mxu0 0.0
    %3098 = vmatprep.subr.mxu0 0.0
    %3099 = vmatpush1.msra.mxu0 0.0
    %3100 = vmatprep.subr.mxu0 0.0
    %3101 = vmatpush1.msra.mxu0 0.0
    %3102 = vmatprep.subr.mxu0 0.0
    %3103 = vmatpush1.msra.mxu0 0.0
    %3104 = vmatprep.subr.mxu0 0.0
    %3105 = vmatpush1.msra.mxu0 0.0
    %3106 = vmatprep.subr.mxu0 0.0
    %3107 = vmatpush1.msra.mxu0 0.0
    %3108 = vmatprep.subr.mxu0 0.0
    %3109 = vmatpush1.msra.mxu0 0.0
    %3110 = vmatprep.subr.mxu0 0.0
    %3111 = vmatpush1.msra.mxu0 0.0
    %3112 = vmatprep.subr.mxu0 0.0
    %3113 = vmatpush1.msra.mxu0 0.0
    %3114 = vmatprep.subr.mxu0 0.0
    %3115 = vmatpush1.msra.mxu0 0.0
    %3116 = vmatprep.subr.mxu0 0.0
    %3117 = vmatpush1.msra.mxu0 0.0
    %3118 = vmatprep.subr.mxu0 0.0
    %3119 = vmatpush1.msra.mxu0 0.0
    %3120 = vmatprep.subr.mxu0 0.0
    %3121 = vmatpush1.msra.mxu0 0.0
    %3122 = vmatprep.mubr.f32.mxu0 0.0
    %3123 = vmatmul.mubr.f32.gmra.mrb[0].mxu0 %v3056
    %v3124 = vpop.f32.mrb[0].mxu0
    %v3125 = vadd.f32 0.0, %v3124
    %v3126 = vpop.f32.mrb[0].mxu0
    %3127 = vdwg.mxu0
    %3128 = vmatprep.subr.mxu0 0.0
    %3129 = vmatpush1.msra.mxu0 %v2799
    %3130 = vmatprep.subr.mxu0 0.0
    %3131 = vmatpush1.msra.mxu0 %v2800
    %3132 = vmatprep.subr.mxu0 0.0
    %3133 = vmatpush1.msra.mxu0 %v2801
    %3134 = vmatprep.subr.mxu0 0.0
    %3135 = vmatpush1.msra.mxu0 %v2802
    %3136 = vmatprep.subr.mxu0 0.0
    %3137 = vmatpush1.msra.mxu0 %v2803
    %3138 = vmatprep.subr.mxu0 0.0
    %3139 = vmatpush1.msra.mxu0 %v2804
    %3140 = vmatprep.subr.mxu0 0.0
    %3141 = vmatpush1.msra.mxu0 %v2805
    %3142 = vmatprep.subr.mxu0 0.0
    %3143 = vmatpush1.msra.mxu0 %v2806
    %3144 = vmatprep.subr.mxu0 0.0
    %3145 = vmatpush1.msra.mxu0 0.0
    %3146 = vmatprep.subr.mxu0 0.0
    %3147 = vmatpush1.msra.mxu0 0.0
    %3148 = vmatprep.subr.mxu0 0.0
    %3149 = vmatpush1.msra.mxu0 0.0
    %3150 = vmatprep.subr.mxu0 0.0
    %3151 = vmatpush1.msra.mxu0 0.0
    %3152 = vmatprep.subr.mxu0 0.0
    %3153 = vmatpush1.msra.mxu0 0.0
    %3154 = vmatprep.subr.mxu0 0.0
    %3155 = vmatpush1.msra.mxu0 0.0
    %3156 = vmatprep.subr.mxu0 0.0
    %3157 = vmatpush1.msra.mxu0 0.0
    %3158 = vmatprep.subr.mxu0 0.0
    %3159 = vmatpush1.msra.mxu0 0.0
    %3160 = vmatprep.subr.mxu0 0.0
    %3161 = vmatpush1.msra.mxu0 0.0
    %3162 = vmatprep.subr.mxu0 0.0
    %3163 = vmatpush1.msra.mxu0 0.0
    %3164 = vmatprep.subr.mxu0 0.0
    %3165 = vmatpush1.msra.mxu0 0.0
    %3166 = vmatprep.subr.mxu0 0.0
    %3167 = vmatpush1.msra.mxu0 0.0
    %3168 = vmatprep.subr.mxu0 0.0
    %3169 = vmatpush1.msra.mxu0 0.0
    %3170 = vmatprep.subr.mxu0 0.0
    %3171 = vmatpush1.msra.mxu0 0.0
    %3172 = vmatprep.subr.mxu0 0.0
    %3173 = vmatpush1.msra.mxu0 0.0
    %3174 = vmatprep.subr.mxu0 0.0
    %3175 = vmatpush1.msra.mxu0 0.0
    %3176 = vmatprep.subr.mxu0 0.0
    %3177 = vmatpush1.msra.mxu0 0.0
    %3178 = vmatprep.subr.mxu0 0.0
    %3179 = vmatpush1.msra.mxu0 0.0
    %3180 = vmatprep.subr.mxu0 0.0
    %3181 = vmatpush1.msra.mxu0 0.0
    %3182 = vmatprep.subr.mxu0 0.0
    %3183 = vmatpush1.msra.mxu0 0.0
    %3184 = vmatprep.subr.mxu0 0.0
    %3185 = vmatpush1.msra.mxu0 0.0
    %3186 = vmatprep.subr.mxu0 0.0
    %3187 = vmatpush1.msra.mxu0 0.0
    %3188 = vmatprep.subr.mxu0 0.0
    %3189 = vmatpush1.msra.mxu0 0.0
    %3190 = vmatprep.subr.mxu0 0.0
    %3191 = vmatpush1.msra.mxu0 0.0
    %3192 = vmatprep.mubr.f32.mxu0 0.0
    %3193 = vmatmul.mubr.f32.gmra.mrb[0].mxu0 %v3056
    %v3194 = vpop.f32.mrb[0].mxu0
    %v3195 = vadd.f32 0.0, %v3194
    %v3196 = vpop.f32.mrb[0].mxu0
    %3197 = vdwg.mxu0
    %3198 = vmatprep.subr.mxu0 0.0
    %3199 = vmatpush1.msra.mxu0 %v2808
    %3200 = vmatprep.subr.mxu0 0.0
    %3201 = vmatpush1.msra.mxu0 %v2809
    %3202 = vmatprep.subr.mxu0 0.0
    %3203 = vmatpush1.msra.mxu0 %v2810
    %3204 = vmatprep.subr.mxu0 0.0
    %3205 = vmatpush1.msra.mxu0 %v2811
    %3206 = vmatprep.subr.mxu0 0.0
    %3207 = vmatpush1.msra.mxu0 %v2812
    %3208 = vmatprep.subr.mxu0 0.0
    %3209 = vmatpush1.msra.mxu0 %v2813
    %3210 = vmatprep.subr.mxu0 0.0
    %3211 = vmatpush1.msra.mxu0 %v2814
    %3212 = vmatprep.subr.mxu0 0.0
    %3213 = vmatpush1.msra.mxu0 %v2815
    %3214 = vmatprep.subr.mxu0 0.0
    %3215 = vmatpush1.msra.mxu0 0.0
    %3216 = vmatprep.subr.mxu0 0.0
    %3217 = vmatpush1.msra.mxu0 0.0
    %3218 = vmatprep.subr.mxu0 0.0
    %3219 = vmatpush1.msra.mxu0 0.0
    %3220 = vmatprep.subr.mxu0 0.0
    %3221 = vmatpush1.msra.mxu0 0.0
    %3222 = vmatprep.subr.mxu0 0.0
    %3223 = vmatpush1.msra.mxu0 0.0
    %3224 = vmatprep.subr.mxu0 0.0
    %3225 = vmatpush1.msra.mxu0 0.0
    %3226 = vmatprep.subr.mxu0 0.0
    %3227 = vmatpush1.msra.mxu0 0.0
    %3228 = vmatprep.subr.mxu0 0.0
    %3229 = vmatpush1.msra.mxu0 0.0
    %3230 = vmatprep.subr.mxu0 0.0
    %3231 = vmatpush1.msra.mxu0 0.0
    %3232 = vmatprep.subr.mxu0 0.0
    %3233 = vmatpush1.msra.mxu0 0.0
    %3234 = vmatprep.subr.mxu0 0.0
    %3235 = vmatpush1.msra.mxu0 0.0
    %3236 = vmatprep.subr.mxu0 0.0
    %3237 = vmatpush1.msra.mxu0 0.0
    %3238 = vmatprep.subr.mxu0 0.0
    %3239 = vmatpush1.msra.mxu0 0.0
    %3240 = vmatprep.subr.mxu0 0.0
    %3241 = vmatpush1.msra.mxu0 0.0
    %3242 = vmatprep.subr.mxu0 0.0
    %3243 = vmatpush1.msra.mxu0 0.0
    %3244 = vmatprep.subr.mxu0 0.0
    %3245 = vmatpush1.msra.mxu0 0.0
    %3246 = vmatprep.subr.mxu0 0.0
    %3247 = vmatpush1.msra.mxu0 0.0
    %3248 = vmatprep.subr.mxu0 0.0
    %3249 = vmatpush1.msra.mxu0 0.0
    %3250 = vmatprep.subr.mxu0 0.0
    %3251 = vmatpush1.msra.mxu0 0.0
    %3252 = vmatprep.subr.mxu0 0.0
    %3253 = vmatpush1.msra.mxu0 0.0
    %3254 = vmatprep.subr.mxu0 0.0
    %3255 = vmatpush1.msra.mxu0 0.0
    %3256 = vmatprep.subr.mxu0 0.0
    %3257 = vmatpush1.msra.mxu0 0.0
    %3258 = vmatprep.subr.mxu0 0.0
    %3259 = vmatpush1.msra.mxu0 0.0
    %3260 = vmatprep.subr.mxu0 0.0
    %3261 = vmatpush1.msra.mxu0 0.0
    %3262 = vmatprep.mubr.f32.mxu0 0.0
    %3263 = vmatmul.mubr.f32.gmra.mrb[0].mxu0 %v3056
    %v3264 = vpop.f32.mrb[0].mxu0
    %v3265 = vadd.f32 %v2961, %v3264
    %v3266 = vpop.f32.mrb[0].mxu0
    %3267 = vdwg.mxu0
    %v3269 = vrot.slane %v3125, 6
    %v3271 = vadd.f32 %v2598, %v3269
    %v3272 = vxor.u32 %v3271, 2147483648
    %v3273 = vmul.f32 %v3272, 1.442695
    %v3274 = vpow.pop %v3273
    %v3275 = vadd.f32 %v3274, 1.0
    %v3276 = vrcp.pop %v3275
    %v3277 = vmul.f32 1.0, %v3276
    %v3279 = vrot.slane %v3195, 6
    %v3281 = vadd.f32 %v2690, %v3279
    %v3282 = vxor.u32 %v3281, 2147483648
    %v3283 = vmul.f32 %v3282, 1.442695
    %v3284 = vpow.pop %v3283
    %v3285 = vadd.f32 %v3284, 1.0
    %v3286 = vrcp.pop %v3285
    %v3287 = vmul.f32 1.0, %v3286
    %v3289 = vrot.slane %v3265, 6
    %v3291 = vmul.f32 %v3277, %v3289
    %v3292 = vadd.f32 %v2782, %v3291
    %v3293 = vtanh.pop %v3292
    %v3294 = vsub.f32 1.0, %v3287
    %v3295 = vmul.f32 %v3294, %v3293
    %v3296 = vrot.slane %v3053, 6
    %v3298 = vmul.f32 %v3287, %v3296
    %v3299 = vadd.f32 %v3295, %v3298
    %3300 = vst.msk [vmem:[#allocation3] sm:$0xc] %vm1033, %v3299
    %v3302 = vrot.slane %v3299, 2
    %v3303 = vsel %vm545, %v3302, 0
    %3305 = vmatprep.subr.mxu0 0.0
    %3306 = vmatpush1.msra.mxu0 %v2790
    %3307 = vmatprep.subr.mxu0 0.0
    %3308 = vmatpush1.msra.mxu0 %v2791
    %3309 = vmatprep.subr.mxu0 0.0
    %3310 = vmatpush1.msra.mxu0 %v2792
    %3311 = vmatprep.subr.mxu0 0.0
    %3312 = vmatpush1.msra.mxu0 %v2793
    %3313 = vmatprep.subr.mxu0 0.0
    %3314 = vmatpush1.msra.mxu0 %v2794
    %3315 = vmatprep.subr.mxu0 0.0
    %3316 = vmatpush1.msra.mxu0 %v2795
    %3317 = vmatprep.subr.mxu0 0.0
    %3318 = vmatpush1.msra.mxu0 %v2796
    %3319 = vmatprep.subr.mxu0 0.0
    %3320 = vmatpush1.msra.mxu0 %v2797
    %3321 = vmatprep.subr.mxu0 0.0
    %3322 = vmatpush1.msra.mxu0 0.0
    %3323 = vmatprep.subr.mxu0 0.0
    %3324 = vmatpush1.msra.mxu0 0.0
    %3325 = vmatprep.subr.mxu0 0.0
    %3326 = vmatpush1.msra.mxu0 0.0
    %3327 = vmatprep.subr.mxu0 0.0
    %3328 = vmatpush1.msra.mxu0 0.0
    %3329 = vmatprep.subr.mxu0 0.0
    %3330 = vmatpush1.msra.mxu0 0.0
    %3331 = vmatprep.subr.mxu0 0.0
    %3332 = vmatpush1.msra.mxu0 0.0
    %3333 = vmatprep.subr.mxu0 0.0
    %3334 = vmatpush1.msra.mxu0 0.0
    %3335 = vmatprep.subr.mxu0 0.0
    %3336 = vmatpush1.msra.mxu0 0.0
    %3337 = vmatprep.subr.mxu0 0.0
    %3338 = vmatpush1.msra.mxu0 0.0
    %3339 = vmatprep.subr.mxu0 0.0
    %3340 = vmatpush1.msra.mxu0 0.0
    %3341 = vmatprep.subr.mxu0 0.0
    %3342 = vmatpush1.msra.mxu0 0.0
    %3343 = vmatprep.subr.mxu0 0.0
    %3344 = vmatpush1.msra.mxu0 0.0
    %3345 = vmatprep.subr.mxu0 0.0
    %3346 = vmatpush1.msra.mxu0 0.0
    %3347 = vmatprep.subr.mxu0 0.0
    %3348 = vmatpush1.msra.mxu0 0.0
    %3349 = vmatprep.subr.mxu0 0.0
    %3350 = vmatpush1.msra.mxu0 0.0
    %3351 = vmatprep.subr.mxu0 0.0
    %3352 = vmatpush1.msra.mxu0 0.0
    %3353 = vmatprep.subr.mxu0 0.0
    %3354 = vmatpush1.msra.mxu0 0.0
    %3355 = vmatprep.subr.mxu0 0.0
    %3356 = vmatpush1.msra.mxu0 0.0
    %3357 = vmatprep.subr.mxu0 0.0
    %3358 = vmatpush1.msra.mxu0 0.0
    %3359 = vmatprep.subr.mxu0 0.0
    %3360 = vmatpush1.msra.mxu0 0.0
    %3361 = vmatprep.subr.mxu0 0.0
    %3362 = vmatpush1.msra.mxu0 0.0
    %3363 = vmatprep.subr.mxu0 0.0
    %3364 = vmatpush1.msra.mxu0 0.0
    %3365 = vmatprep.subr.mxu0 0.0
    %3366 = vmatpush1.msra.mxu0 0.0
    %3367 = vmatprep.subr.mxu0 0.0
    %3368 = vmatpush1.msra.mxu0 0.0
    %3369 = vmatprep.mubr.f32.mxu0 0.0
    %3370 = vmatmul.mubr.f32.gmra.mrb[0].mxu0 %v3303
    %v3371 = vpop.f32.mrb[0].mxu0
    %v3372 = vadd.f32 0.0, %v3371
    %v3373 = vpop.f32.mrb[0].mxu0
    %3374 = vdwg.mxu0
    %3375 = vmatprep.subr.mxu0 0.0
    %3376 = vmatpush1.msra.mxu0 %v2799
    %3377 = vmatprep.subr.mxu0 0.0
    %3378 = vmatpush1.msra.mxu0 %v2800
    %3379 = vmatprep.subr.mxu0 0.0
    %3380 = vmatpush1.msra.mxu0 %v2801
    %3381 = vmatprep.subr.mxu0 0.0
    %3382 = vmatpush1.msra.mxu0 %v2802
    %3383 = vmatprep.subr.mxu0 0.0
    %3384 = vmatpush1.msra.mxu0 %v2803
    %3385 = vmatprep.subr.mxu0 0.0
    %3386 = vmatpush1.msra.mxu0 %v2804
    %3387 = vmatprep.subr.mxu0 0.0
    %3388 = vmatpush1.msra.mxu0 %v2805
    %3389 = vmatprep.subr.mxu0 0.0
    %3390 = vmatpush1.msra.mxu0 %v2806
    %3391 = vmatprep.subr.mxu0 0.0
    %3392 = vmatpush1.msra.mxu0 0.0
    %3393 = vmatprep.subr.mxu0 0.0
    %3394 = vmatpush1.msra.mxu0 0.0
    %3395 = vmatprep.subr.mxu0 0.0
    %3396 = vmatpush1.msra.mxu0 0.0
    %3397 = vmatprep.subr.mxu0 0.0
    %3398 = vmatpush1.msra.mxu0 0.0
    %3399 = vmatprep.subr.mxu0 0.0
    %3400 = vmatpush1.msra.mxu0 0.0
    %3401 = vmatprep.subr.mxu0 0.0
    %3402 = vmatpush1.msra.mxu0 0.0
    %3403 = vmatprep.subr.mxu0 0.0
    %3404 = vmatpush1.msra.mxu0 0.0
    %3405 = vmatprep.subr.mxu0 0.0
    %3406 = vmatpush1.msra.mxu0 0.0
    %3407 = vmatprep.subr.mxu0 0.0
    %3408 = vmatpush1.msra.mxu0 0.0
    %3409 = vmatprep.subr.mxu0 0.0
    %3410 = vmatpush1.msra.mxu0 0.0
    %3411 = vmatprep.subr.mxu0 0.0
    %3412 = vmatpush1.msra.mxu0 0.0
    %3413 = vmatprep.subr.mxu0 0.0
    %3414 = vmatpush1.msra.mxu0 0.0
    %3415 = vmatprep.subr.mxu0 0.0
    %3416 = vmatpush1.msra.mxu0 0.0
    %3417 = vmatprep.subr.mxu0 0.0
    %3418 = vmatpush1.msra.mxu0 0.0
    %3419 = vmatprep.subr.mxu0 0.0
    %3420 = vmatpush1.msra.mxu0 0.0
    %3421 = vmatprep.subr.mxu0 0.0
    %3422 = vmatpush1.msra.mxu0 0.0
    %3423 = vmatprep.subr.mxu0 0.0
    %3424 = vmatpush1.msra.mxu0 0.0
    %3425 = vmatprep.subr.mxu0 0.0
    %3426 = vmatpush1.msra.mxu0 0.0
    %3427 = vmatprep.subr.mxu0 0.0
    %3428 = vmatpush1.msra.mxu0 0.0
    %3429 = vmatprep.subr.mxu0 0.0
    %3430 = vmatpush1.msra.mxu0 0.0
    %3431 = vmatprep.subr.mxu0 0.0
    %3432 = vmatpush1.msra.mxu0 0.0
    %3433 = vmatprep.subr.mxu0 0.0
    %3434 = vmatpush1.msra.mxu0 0.0
    %3435 = vmatprep.subr.mxu0 0.0
    %3436 = vmatpush1.msra.mxu0 0.0
    %3437 = vmatprep.subr.mxu0 0.0
    %3438 = vmatpush1.msra.mxu0 0.0
    %3439 = vmatprep.mubr.f32.mxu0 0.0
    %3440 = vmatmul.mubr.f32.gmra.mrb[0].mxu0 %v3303
    %v3441 = vpop.f32.mrb[0].mxu0
    %v3442 = vadd.f32 0.0, %v3441
    %v3443 = vpop.f32.mrb[0].mxu0
    %3444 = vdwg.mxu0
    %3445 = vmatprep.subr.mxu0 0.0
    %3446 = vmatpush1.msra.mxu0 %v2808
    %3447 = vmatprep.subr.mxu0 0.0
    %3448 = vmatpush1.msra.mxu0 %v2809
    %3449 = vmatprep.subr.mxu0 0.0
    %3450 = vmatpush1.msra.mxu0 %v2810
    %3451 = vmatprep.subr.mxu0 0.0
    %3452 = vmatpush1.msra.mxu0 %v2811
    %3453 = vmatprep.subr.mxu0 0.0
    %3454 = vmatpush1.msra.mxu0 %v2812
    %3455 = vmatprep.subr.mxu0 0.0
    %3456 = vmatpush1.msra.mxu0 %v2813
    %3457 = vmatprep.subr.mxu0 0.0
    %3458 = vmatpush1.msra.mxu0 %v2814
    %3459 = vmatprep.subr.mxu0 0.0
    %3460 = vmatpush1.msra.mxu0 %v2815
    %3461 = vmatprep.subr.mxu0 0.0
    %3462 = vmatpush1.msra.mxu0 0.0
    %3463 = vmatprep.subr.mxu0 0.0
    %3464 = vmatpush1.msra.mxu0 0.0
    %3465 = vmatprep.subr.mxu0 0.0
    %3466 = vmatpush1.msra.mxu0 0.0
    %3467 = vmatprep.subr.mxu0 0.0
    %3468 = vmatpush1.msra.mxu0 0.0
    %3469 = vmatprep.subr.mxu0 0.0
    %3470 = vmatpush1.msra.mxu0 0.0
    %3471 = vmatprep.subr.mxu0 0.0
    %3472 = vmatpush1.msra.mxu0 0.0
    %3473 = vmatprep.subr.mxu0 0.0
    %3474 = vmatpush1.msra.mxu0 0.0
    %3475 = vmatprep.subr.mxu0 0.0
    %3476 = vmatpush1.msra.mxu0 0.0
    %3477 = vmatprep.subr.mxu0 0.0
    %3478 = vmatpush1.msra.mxu0 0.0
    %3479 = vmatprep.subr.mxu0 0.0
    %3480 = vmatpush1.msra.mxu0 0.0
    %3481 = vmatprep.subr.mxu0 0.0
    %3482 = vmatpush1.msra.mxu0 0.0
    %3483 = vmatprep.subr.mxu0 0.0
    %3484 = vmatpush1.msra.mxu0 0.0
    %3485 = vmatprep.subr.mxu0 0.0
    %3486 = vmatpush1.msra.mxu0 0.0
    %3487 = vmatprep.subr.mxu0 0.0
    %3488 = vmatpush1.msra.mxu0 0.0
    %3489 = vmatprep.subr.mxu0 0.0
    %3490 = vmatpush1.msra.mxu0 0.0
    %3491 = vmatprep.subr.mxu0 0.0
    %3492 = vmatpush1.msra.mxu0 0.0
    %3493 = vmatprep.subr.mxu0 0.0
    %3494 = vmatpush1.msra.mxu0 0.0
    %3495 = vmatprep.subr.mxu0 0.0
    %3496 = vmatpush1.msra.mxu0 0.0
    %3497 = vmatprep.subr.mxu0 0.0
    %3498 = vmatpush1.msra.mxu0 0.0
    %3499 = vmatprep.subr.mxu0 0.0
    %3500 = vmatpush1.msra.mxu0 0.0
    %3501 = vmatprep.subr.mxu0 0.0
    %3502 = vmatpush1.msra.mxu0 0.0
    %3503 = vmatprep.subr.mxu0 0.0
    %3504 = vmatpush1.msra.mxu0 0.0
    %3505 = vmatprep.subr.mxu0 0.0
    %3506 = vmatpush1.msra.mxu0 0.0
    %3507 = vmatprep.subr.mxu0 0.0
    %3508 = vmatpush1.msra.mxu0 0.0
    %3509 = vmatprep.mubr.f32.mxu0 0.0
    %3510 = vmatmul.mubr.f32.gmra.mrb[0].mxu0 %v3303
    %v3511 = vpop.f32.mrb[0].mxu0
    %v3512 = vadd.f32 %v2961, %v3511
    %v3513 = vpop.f32.mrb[0].mxu0
    %3514 = vdwg.mxu0
    %v3516 = vrot.slane %v3372, 4
    %v3518 = vadd.f32 %v2598, %v3516
    %v3519 = vxor.u32 %v3518, 2147483648
    %v3520 = vmul.f32 %v3519, 1.442695
    %v3521 = vpow.pop %v3520
    %v3522 = vadd.f32 %v3521, 1.0
    %v3523 = vrcp.pop %v3522
    %v3524 = vmul.f32 1.0, %v3523
    %v3526 = vrot.slane %v3442, 4
    %v3528 = vadd.f32 %v2690, %v3526
    %v3529 = vxor.u32 %v3528, 2147483648
    %v3530 = vmul.f32 %v3529, 1.442695
    %v3531 = vpow.pop %v3530
    %v3532 = vadd.f32 %v3531, 1.0
    %v3533 = vrcp.pop %v3532
    %v3534 = vmul.f32 1.0, %v3533
    %v3536 = vrot.slane %v3512, 4
    %v3538 = vmul.f32 %v3524, %v3536
    %v3539 = vadd.f32 %v2782, %v3538
    %v3540 = vtanh.pop %v3539
    %v3541 = vsub.f32 1.0, %v3534
    %v3542 = vmul.f32 %v3541, %v3540
    %v3543 = vrot.slane %v3299, 6
    %v3545 = vmul.f32 %v3534, %v3543
    %v3546 = vadd.f32 %v3542, %v3545
    %3547 = vst.msk [vmem:[#allocation3] sm:$0x30] %vm1281, %v3546
    %v3549 = vrot.slane %v3546, 4
    %v3550 = vsel %vm545, %v3549, 0
    %3552 = vmatprep.subr.mxu0 0.0
    %3553 = vmatpush1.msra.mxu0 %v2790
    %3554 = vmatprep.subr.mxu0 0.0
    %3555 = vmatpush1.msra.mxu0 %v2791
    %3556 = vmatprep.subr.mxu0 0.0
    %3557 = vmatpush1.msra.mxu0 %v2792
    %3558 = vmatprep.subr.mxu0 0.0
    %3559 = vmatpush1.msra.mxu0 %v2793
    %3560 = vmatprep.subr.mxu0 0.0
    %3561 = vmatpush1.msra.mxu0 %v2794
    %3562 = vmatprep.subr.mxu0 0.0
    %3563 = vmatpush1.msra.mxu0 %v2795
    %3564 = vmatprep.subr.mxu0 0.0
    %3565 = vmatpush1.msra.mxu0 %v2796
    %3566 = vmatprep.subr.mxu0 0.0
    %3567 = vmatpush1.msra.mxu0 %v2797
    %3568 = vmatprep.subr.mxu0 0.0
    %3569 = vmatpush1.msra.mxu0 0.0
    %3570 = vmatprep.subr.mxu0 0.0
    %3571 = vmatpush1.msra.mxu0 0.0
    %3572 = vmatprep.subr.mxu0 0.0
    %3573 = vmatpush1.msra.mxu0 0.0
    %3574 = vmatprep.subr.mxu0 0.0
    %3575 = vmatpush1.msra.mxu0 0.0
    %3576 = vmatprep.subr.mxu0 0.0
    %3577 = vmatpush1.msra.mxu0 0.0
    %3578 = vmatprep.subr.mxu0 0.0
    %3579 = vmatpush1.msra.mxu0 0.0
    %3580 = vmatprep.subr.mxu0 0.0
    %3581 = vmatpush1.msra.mxu0 0.0
    %3582 = vmatprep.subr.mxu0 0.0
    %3583 = vmatpush1.msra.mxu0 0.0
    %3584 = vmatprep.subr.mxu0 0.0
    %3585 = vmatpush1.msra.mxu0 0.0
    %3586 = vmatprep.subr.mxu0 0.0
    %3587 = vmatpush1.msra.mxu0 0.0
    %3588 = vmatprep.subr.mxu0 0.0
    %3589 = vmatpush1.msra.mxu0 0.0
    %3590 = vmatprep.subr.mxu0 0.0
    %3591 = vmatpush1.msra.mxu0 0.0
    %3592 = vmatprep.subr.mxu0 0.0
    %3593 = vmatpush1.msra.mxu0 0.0
    %3594 = vmatprep.subr.mxu0 0.0
    %3595 = vmatpush1.msra.mxu0 0.0
    %3596 = vmatprep.subr.mxu0 0.0
    %3597 = vmatpush1.msra.mxu0 0.0
    %3598 = vmatprep.subr.mxu0 0.0
    %3599 = vmatpush1.msra.mxu0 0.0
    %3600 = vmatprep.subr.mxu0 0.0
    %3601 = vmatpush1.msra.mxu0 0.0
    %3602 = vmatprep.subr.mxu0 0.0
    %3603 = vmatpush1.msra.mxu0 0.0
    %3604 = vmatprep.subr.mxu0 0.0
    %3605 = vmatpush1.msra.mxu0 0.0
    %3606 = vmatprep.subr.mxu0 0.0
    %3607 = vmatpush1.msra.mxu0 0.0
    %3608 = vmatprep.subr.mxu0 0.0
    %3609 = vmatpush1.msra.mxu0 0.0
    %3610 = vmatprep.subr.mxu0 0.0
    %3611 = vmatpush1.msra.mxu0 0.0
    %3612 = vmatprep.subr.mxu0 0.0
    %3613 = vmatpush1.msra.mxu0 0.0
    %3614 = vmatprep.subr.mxu0 0.0
    %3615 = vmatpush1.msra.mxu0 0.0
    %3616 = vmatprep.mubr.f32.mxu0 0.0
    %3617 = vmatmul.mubr.f32.gmra.mrb[0].mxu0 %v3550
    %v3618 = vpop.f32.mrb[0].mxu0
    %v3619 = vadd.f32 0.0, %v3618
    %v3620 = vpop.f32.mrb[0].mxu0
    %3621 = vdwg.mxu0
    %3622 = vmatprep.subr.mxu0 0.0
    %3623 = vmatpush1.msra.mxu0 %v2799
    %3624 = vmatprep.subr.mxu0 0.0
    %3625 = vmatpush1.msra.mxu0 %v2800
    %3626 = vmatprep.subr.mxu0 0.0
    %3627 = vmatpush1.msra.mxu0 %v2801
    %3628 = vmatprep.subr.mxu0 0.0
    %3629 = vmatpush1.msra.mxu0 %v2802
    %3630 = vmatprep.subr.mxu0 0.0
    %3631 = vmatpush1.msra.mxu0 %v2803
    %3632 = vmatprep.subr.mxu0 0.0
    %3633 = vmatpush1.msra.mxu0 %v2804
    %3634 = vmatprep.subr.mxu0 0.0
    %3635 = vmatpush1.msra.mxu0 %v2805
    %3636 = vmatprep.subr.mxu0 0.0
    %3637 = vmatpush1.msra.mxu0 %v2806
    %3638 = vmatprep.subr.mxu0 0.0
    %3639 = vmatpush1.msra.mxu0 0.0
    %3640 = vmatprep.subr.mxu0 0.0
    %3641 = vmatpush1.msra.mxu0 0.0
    %3642 = vmatprep.subr.mxu0 0.0
    %3643 = vmatpush1.msra.mxu0 0.0
    %3644 = vmatprep.subr.mxu0 0.0
    %3645 = vmatpush1.msra.mxu0 0.0
    %3646 = vmatprep.subr.mxu0 0.0
    %3647 = vmatpush1.msra.mxu0 0.0
    %3648 = vmatprep.subr.mxu0 0.0
    %3649 = vmatpush1.msra.mxu0 0.0
    %3650 = vmatprep.subr.mxu0 0.0
    %3651 = vmatpush1.msra.mxu0 0.0
    %3652 = vmatprep.subr.mxu0 0.0
    %3653 = vmatpush1.msra.mxu0 0.0
    %3654 = vmatprep.subr.mxu0 0.0
    %3655 = vmatpush1.msra.mxu0 0.0
    %3656 = vmatprep.subr.mxu0 0.0
    %3657 = vmatpush1.msra.mxu0 0.0
    %3658 = vmatprep.subr.mxu0 0.0
    %3659 = vmatpush1.msra.mxu0 0.0
    %3660 = vmatprep.subr.mxu0 0.0
    %3661 = vmatpush1.msra.mxu0 0.0
    %3662 = vmatprep.subr.mxu0 0.0
    %3663 = vmatpush1.msra.mxu0 0.0
    %3664 = vmatprep.subr.mxu0 0.0
    %3665 = vmatpush1.msra.mxu0 0.0
    %3666 = vmatprep.subr.mxu0 0.0
    %3667 = vmatpush1.msra.mxu0 0.0
    %3668 = vmatprep.subr.mxu0 0.0
    %3669 = vmatpush1.msra.mxu0 0.0
    %3670 = vmatprep.subr.mxu0 0.0
    %3671 = vmatpush1.msra.mxu0 0.0
    %3672 = vmatprep.subr.mxu0 0.0
    %3673 = vmatpush1.msra.mxu0 0.0
    %3674 = vmatprep.subr.mxu0 0.0
    %3675 = vmatpush1.msra.mxu0 0.0
    %3676 = vmatprep.subr.mxu0 0.0
    %3677 = vmatpush1.msra.mxu0 0.0
    %3678 = vmatprep.subr.mxu0 0.0
    %3679 = vmatpush1.msra.mxu0 0.0
    %3680 = vmatprep.subr.mxu0 0.0
    %3681 = vmatpush1.msra.mxu0 0.0
    %3682 = vmatprep.subr.mxu0 0.0
    %3683 = vmatpush1.msra.mxu0 0.0
    %3684 = vmatprep.subr.mxu0 0.0
    %3685 = vmatpush1.msra.mxu0 0.0
    %3686 = vmatprep.mubr.f32.mxu0 0.0
    %3687 = vmatmul.mubr.f32.gmra.mrb[0].mxu0 %v3550
    %v3688 = vpop.f32.mrb[0].mxu0
    %v3689 = vadd.f32 0.0, %v3688
    %v3690 = vpop.f32.mrb[0].mxu0
    %3691 = vdwg.mxu0
    %3692 = vmatprep.subr.mxu0 0.0
    %3693 = vmatpush1.msra.mxu0 %v2808
    %3694 = vmatprep.subr.mxu0 0.0
    %3695 = vmatpush1.msra.mxu0 %v2809
    %3696 = vmatprep.subr.mxu0 0.0
    %3697 = vmatpush1.msra.mxu0 %v2810
    %3698 = vmatprep.subr.mxu0 0.0
    %3699 = vmatpush1.msra.mxu0 %v2811
    %3700 = vmatprep.subr.mxu0 0.0
    %3701 = vmatpush1.msra.mxu0 %v2812
    %3702 = vmatprep.subr.mxu0 0.0
    %3703 = vmatpush1.msra.mxu0 %v2813
    %3704 = vmatprep.subr.mxu0 0.0
    %3705 = vmatpush1.msra.mxu0 %v2814
    %3706 = vmatprep.subr.mxu0 0.0
    %3707 = vmatpush1.msra.mxu0 %v2815
    %3708 = vmatprep.subr.mxu0 0.0
    %3709 = vmatpush1.msra.mxu0 0.0
    %3710 = vmatprep.subr.mxu0 0.0
    %3711 = vmatpush1.msra.mxu0 0.0
    %3712 = vmatprep.subr.mxu0 0.0
    %3713 = vmatpush1.msra.mxu0 0.0
    %3714 = vmatprep.subr.mxu0 0.0
    %3715 = vmatpush1.msra.mxu0 0.0
    %3716 = vmatprep.subr.mxu0 0.0
    %3717 = vmatpush1.msra.mxu0 0.0
    %3718 = vmatprep.subr.mxu0 0.0
    %3719 = vmatpush1.msra.mxu0 0.0
    %3720 = vmatprep.subr.mxu0 0.0
    %3721 = vmatpush1.msra.mxu0 0.0
    %3722 = vmatprep.subr.mxu0 0.0
    %3723 = vmatpush1.msra.mxu0 0.0
    %3724 = vmatprep.subr.mxu0 0.0
    %3725 = vmatpush1.msra.mxu0 0.0
    %3726 = vmatprep.subr.mxu0 0.0
    %3727 = vmatpush1.msra.mxu0 0.0
    %3728 = vmatprep.subr.mxu0 0.0
    %3729 = vmatpush1.msra.mxu0 0.0
    %3730 = vmatprep.subr.mxu0 0.0
    %3731 = vmatpush1.msra.mxu0 0.0
    %3732 = vmatprep.subr.mxu0 0.0
    %3733 = vmatpush1.msra.mxu0 0.0
    %3734 = vmatprep.subr.mxu0 0.0
    %3735 = vmatpush1.msra.mxu0 0.0
    %3736 = vmatprep.subr.mxu0 0.0
    %3737 = vmatpush1.msra.mxu0 0.0
    %3738 = vmatprep.subr.mxu0 0.0
    %3739 = vmatpush1.msra.mxu0 0.0
    %3740 = vmatprep.subr.mxu0 0.0
    %3741 = vmatpush1.msra.mxu0 0.0
    %3742 = vmatprep.subr.mxu0 0.0
    %3743 = vmatpush1.msra.mxu0 0.0
    %3744 = vmatprep.subr.mxu0 0.0
    %3745 = vmatpush1.msra.mxu0 0.0
    %3746 = vmatprep.subr.mxu0 0.0
    %3747 = vmatpush1.msra.mxu0 0.0
    %3748 = vmatprep.subr.mxu0 0.0
    %3749 = vmatpush1.msra.mxu0 0.0
    %3750 = vmatprep.subr.mxu0 0.0
    %3751 = vmatpush1.msra.mxu0 0.0
    %3752 = vmatprep.subr.mxu0 0.0
    %3753 = vmatpush1.msra.mxu0 0.0
    %3754 = vmatprep.subr.mxu0 0.0
    %3755 = vmatpush1.msra.mxu0 0.0
    %3756 = vmatprep.mubr.f32.mxu0 0.0
    %3757 = vmatmul.mubr.f32.gmra.mrb[0].mxu0 %v3550
    %v3758 = vpop.f32.mrb[0].mxu0
    %v3759 = vadd.f32 %v2961, %v3758
    %v3760 = vpop.f32.mrb[0].mxu0
    %3761 = vdwg.mxu0
    %v3763 = vrot.slane %v3619, 2
    %v3765 = vadd.f32 %v2598, %v3763
    %v3766 = vxor.u32 %v3765, 2147483648
    %v3767 = vmul.f32 %v3766, 1.442695
    %v3768 = vpow.pop %v3767
    %v3769 = vadd.f32 %v3768, 1.0
    %v3770 = vrcp.pop %v3769
    %v3771 = vmul.f32 1.0, %v3770
    %v3773 = vrot.slane %v3689, 2
    %v3775 = vadd.f32 %v2690, %v3773
    %v3776 = vxor.u32 %v3775, 2147483648
    %v3777 = vmul.f32 %v3776, 1.442695
    %v3778 = vpow.pop %v3777
    %v3779 = vadd.f32 %v3778, 1.0
    %v3780 = vrcp.pop %v3779
    %v3781 = vmul.f32 1.0, %v3780
    %v3783 = vrot.slane %v3759, 2
    %v3785 = vmul.f32 %v3771, %v3783
    %v3786 = vadd.f32 %v2782, %v3785
    %v3787 = vtanh.pop %v3786
    %v3788 = vsub.f32 1.0, %v3781
    %v3789 = vmul.f32 %v3788, %v3787
    %v3790 = vrot.slane %v3546, 6
    %v3792 = vmul.f32 %v3781, %v3790
    %v3793 = vadd.f32 %v3789, %v3792
    %3794 = vst.msk [vmem:[#allocation3] sm:$0xc0] %vm1529, %v3793
    %v3796 = vrot.slane %v3793, 6
    %v3797 = vsel %vm545, %v3796, 0
    %3799 = vmatprep.subr.mxu0 0.0
    %3800 = vmatpush1.msra.mxu0 %v2790
    %3801 = vmatprep.subr.mxu0 0.0
    %3802 = vmatpush1.msra.mxu0 %v2791
    %3803 = vmatprep.subr.mxu0 0.0
    %3804 = vmatpush1.msra.mxu0 %v2792
    %3805 = vmatprep.subr.mxu0 0.0
    %3806 = vmatpush1.msra.mxu0 %v2793
    %3807 = vmatprep.subr.mxu0 0.0
    %3808 = vmatpush1.msra.mxu0 %v2794
    %3809 = vmatprep.subr.mxu0 0.0
    %3810 = vmatpush1.msra.mxu0 %v2795
    %3811 = vmatprep.subr.mxu0 0.0
    %3812 = vmatpush1.msra.mxu0 %v2796
    %3813 = vmatprep.subr.mxu0 0.0
    %3814 = vmatpush1.msra.mxu0 %v2797
    %3815 = vmatprep.subr.mxu0 0.0
    %3816 = vmatpush1.msra.mxu0 0.0
    %3817 = vmatprep.subr.mxu0 0.0
    %3818 = vmatpush1.msra.mxu0 0.0
    %3819 = vmatprep.subr.mxu0 0.0
    %3820 = vmatpush1.msra.mxu0 0.0
    %3821 = vmatprep.subr.mxu0 0.0
    %3822 = vmatpush1.msra.mxu0 0.0
    %3823 = vmatprep.subr.mxu0 0.0
    %3824 = vmatpush1.msra.mxu0 0.0
    %3825 = vmatprep.subr.mxu0 0.0
    %3826 = vmatpush1.msra.mxu0 0.0
    %3827 = vmatprep.subr.mxu0 0.0
    %3828 = vmatpush1.msra.mxu0 0.0
    %3829 = vmatprep.subr.mxu0 0.0
    %3830 = vmatpush1.msra.mxu0 0.0
    %3831 = vmatprep.subr.mxu0 0.0
    %3832 = vmatpush1.msra.mxu0 0.0
    %3833 = vmatprep.subr.mxu0 0.0
    %3834 = vmatpush1.msra.mxu0 0.0
    %3835 = vmatprep.subr.mxu0 0.0
    %3836 = vmatpush1.msra.mxu0 0.0
    %3837 = vmatprep.subr.mxu0 0.0
    %3838 = vmatpush1.msra.mxu0 0.0
    %3839 = vmatprep.subr.mxu0 0.0
    %3840 = vmatpush1.msra.mxu0 0.0
    %3841 = vmatprep.subr.mxu0 0.0
    %3842 = vmatpush1.msra.mxu0 0.0
    %3843 = vmatprep.subr.mxu0 0.0
    %3844 = vmatpush1.msra.mxu0 0.0
    %3845 = vmatprep.subr.mxu0 0.0
    %3846 = vmatpush1.msra.mxu0 0.0
    %3847 = vmatprep.subr.mxu0 0.0
    %3848 = vmatpush1.msra.mxu0 0.0
    %3849 = vmatprep.subr.mxu0 0.0
    %3850 = vmatpush1.msra.mxu0 0.0
    %3851 = vmatprep.subr.mxu0 0.0
    %3852 = vmatpush1.msra.mxu0 0.0
    %3853 = vmatprep.subr.mxu0 0.0
    %3854 = vmatpush1.msra.mxu0 0.0
    %3855 = vmatprep.subr.mxu0 0.0
    %3856 = vmatpush1.msra.mxu0 0.0
    %3857 = vmatprep.subr.mxu0 0.0
    %3858 = vmatpush1.msra.mxu0 0.0
    %3859 = vmatprep.subr.mxu0 0.0
    %3860 = vmatpush1.msra.mxu0 0.0
    %3861 = vmatprep.subr.mxu0 0.0
    %3862 = vmatpush1.msra.mxu0 0.0
    %3863 = vmatprep.mubr.f32.mxu0 0.0
    %3864 = vmatmul.mubr.f32.gmra.mrb[0].mxu0 %v3797
    %v3865 = vpop.f32.mrb[0].mxu0
    %v3866 = vadd.f32 0.0, %v3865
    %v3867 = vpop.f32.mrb[0].mxu0
    %3868 = vdwg.mxu0
    %3869 = vmatprep.subr.mxu0 0.0
    %3870 = vmatpush1.msra.mxu0 %v2799
    %3871 = vmatprep.subr.mxu0 0.0
    %3872 = vmatpush1.msra.mxu0 %v2800
    %3873 = vmatprep.subr.mxu0 0.0
    %3874 = vmatpush1.msra.mxu0 %v2801
    %3875 = vmatprep.subr.mxu0 0.0
    %3876 = vmatpush1.msra.mxu0 %v2802
    %3877 = vmatprep.subr.mxu0 0.0
    %3878 = vmatpush1.msra.mxu0 %v2803
    %3879 = vmatprep.subr.mxu0 0.0
    %3880 = vmatpush1.msra.mxu0 %v2804
    %3881 = vmatprep.subr.mxu0 0.0
    %3882 = vmatpush1.msra.mxu0 %v2805
    %3883 = vmatprep.subr.mxu0 0.0
    %3884 = vmatpush1.msra.mxu0 %v2806
    %3885 = vmatprep.subr.mxu0 0.0
    %3886 = vmatpush1.msra.mxu0 0.0
    %3887 = vmatprep.subr.mxu0 0.0
    %3888 = vmatpush1.msra.mxu0 0.0
    %3889 = vmatprep.subr.mxu0 0.0
    %3890 = vmatpush1.msra.mxu0 0.0
    %3891 = vmatprep.subr.mxu0 0.0
    %3892 = vmatpush1.msra.mxu0 0.0
    %3893 = vmatprep.subr.mxu0 0.0
    %3894 = vmatpush1.msra.mxu0 0.0
    %3895 = vmatprep.subr.mxu0 0.0
    %3896 = vmatpush1.msra.mxu0 0.0
    %3897 = vmatprep.subr.mxu0 0.0
    %3898 = vmatpush1.msra.mxu0 0.0
    %3899 = vmatprep.subr.mxu0 0.0
    %3900 = vmatpush1.msra.mxu0 0.0
    %3901 = vmatprep.subr.mxu0 0.0
    %3902 = vmatpush1.msra.mxu0 0.0
    %3903 = vmatprep.subr.mxu0 0.0
    %3904 = vmatpush1.msra.mxu0 0.0
    %3905 = vmatprep.subr.mxu0 0.0
    %3906 = vmatpush1.msra.mxu0 0.0
    %3907 = vmatprep.subr.mxu0 0.0
    %3908 = vmatpush1.msra.mxu0 0.0
    %3909 = vmatprep.subr.mxu0 0.0
    %3910 = vmatpush1.msra.mxu0 0.0
    %3911 = vmatprep.subr.mxu0 0.0
    %3912 = vmatpush1.msra.mxu0 0.0
    %3913 = vmatprep.subr.mxu0 0.0
    %3914 = vmatpush1.msra.mxu0 0.0
    %3915 = vmatprep.subr.mxu0 0.0
    %3916 = vmatpush1.msra.mxu0 0.0
    %3917 = vmatprep.subr.mxu0 0.0
    %3918 = vmatpush1.msra.mxu0 0.0
    %3919 = vmatprep.subr.mxu0 0.0
    %3920 = vmatpush1.msra.mxu0 0.0
    %3921 = vmatprep.subr.mxu0 0.0
    %3922 = vmatpush1.msra.mxu0 0.0
    %3923 = vmatprep.subr.mxu0 0.0
    %3924 = vmatpush1.msra.mxu0 0.0
    %3925 = vmatprep.subr.mxu0 0.0
    %3926 = vmatpush1.msra.mxu0 0.0
    %3927 = vmatprep.subr.mxu0 0.0
    %3928 = vmatpush1.msra.mxu0 0.0
    %3929 = vmatprep.subr.mxu0 0.0
    %3930 = vmatpush1.msra.mxu0 0.0
    %3931 = vmatprep.subr.mxu0 0.0
    %3932 = vmatpush1.msra.mxu0 0.0
    %3933 = vmatprep.mubr.f32.mxu0 0.0
    %3934 = vmatmul.mubr.f32.gmra.mrb[0].mxu0 %v3797
    %v3935 = vpop.f32.mrb[0].mxu0
    %v3936 = vadd.f32 0.0, %v3935
    %v3937 = vpop.f32.mrb[0].mxu0
    %3938 = vdwg.mxu0
    %3939 = vmatprep.subr.mxu0 0.0
    %3940 = vmatpush1.msra.mxu0 %v2808
    %3941 = vmatprep.subr.mxu0 0.0
    %3942 = vmatpush1.msra.mxu0 %v2809
    %3943 = vmatprep.subr.mxu0 0.0
    %3944 = vmatpush1.msra.mxu0 %v2810
    %3945 = vmatprep.subr.mxu0 0.0
    %3946 = vmatpush1.msra.mxu0 %v2811
    %3947 = vmatprep.subr.mxu0 0.0
    %3948 = vmatpush1.msra.mxu0 %v2812
    %3949 = vmatprep.subr.mxu0 0.0
    %3950 = vmatpush1.msra.mxu0 %v2813
    %3951 = vmatprep.subr.mxu0 0.0
    %3952 = vmatpush1.msra.mxu0 %v2814
    %3953 = vmatprep.subr.mxu0 0.0
    %3954 = vmatpush1.msra.mxu0 %v2815
    %3955 = vmatprep.subr.mxu0 0.0
    %3956 = vmatpush1.msra.mxu0 0.0
    %3957 = vmatprep.subr.mxu0 0.0
    %3958 = vmatpush1.msra.mxu0 0.0
    %3959 = vmatprep.subr.mxu0 0.0
    %3960 = vmatpush1.msra.mxu0 0.0
    %3961 = vmatprep.subr.mxu0 0.0
    %3962 = vmatpush1.msra.mxu0 0.0
    %3963 = vmatprep.subr.mxu0 0.0
    %3964 = vmatpush1.msra.mxu0 0.0
    %3965 = vmatprep.subr.mxu0 0.0
    %3966 = vmatpush1.msra.mxu0 0.0
    %3967 = vmatprep.subr.mxu0 0.0
    %3968 = vmatpush1.msra.mxu0 0.0
    %3969 = vmatprep.subr.mxu0 0.0
    %3970 = vmatpush1.msra.mxu0 0.0
    %3971 = vmatprep.subr.mxu0 0.0
    %3972 = vmatpush1.msra.mxu0 0.0
    %3973 = vmatprep.subr.mxu0 0.0
    %3974 = vmatpush1.msra.mxu0 0.0
    %3975 = vmatprep.subr.mxu0 0.0
    %3976 = vmatpush1.msra.mxu0 0.0
    %3977 = vmatprep.subr.mxu0 0.0
    %3978 = vmatpush1.msra.mxu0 0.0
    %3979 = vmatprep.subr.mxu0 0.0
    %3980 = vmatpush1.msra.mxu0 0.0
    %3981 = vmatprep.subr.mxu0 0.0
    %3982 = vmatpush1.msra.mxu0 0.0
    %3983 = vmatprep.subr.mxu0 0.0
    %3984 = vmatpush1.msra.mxu0 0.0
    %3985 = vmatprep.subr.mxu0 0.0
    %3986 = vmatpush1.msra.mxu0 0.0
    %3987 = vmatprep.subr.mxu0 0.0
    %3988 = vmatpush1.msra.mxu0 0.0
    %3989 = vmatprep.subr.mxu0 0.0
    %3990 = vmatpush1.msra.mxu0 0.0
    %3991 = vmatprep.subr.mxu0 0.0
    %3992 = vmatpush1.msra.mxu0 0.0
    %3993 = vmatprep.subr.mxu0 0.0
    %3994 = vmatpush1.msra.mxu0 0.0
    %3995 = vmatprep.subr.mxu0 0.0
    %3996 = vmatpush1.msra.mxu0 0.0
    %3997 = vmatprep.subr.mxu0 0.0
    %3998 = vmatpush1.msra.mxu0 0.0
    %3999 = vmatprep.subr.mxu0 0.0
    %4000 = vmatpush1.msra.mxu0 0.0
    %4001 = vmatprep.subr.mxu0 0.0
    %4002 = vmatpush1.msra.mxu0 0.0
    %4003 = vmatprep.mubr.f32.mxu0 0.0
    %4004 = vmatmul.mubr.f32.gmra.mrb[0].mxu0 %v3797
    %v4005 = vpop.f32.mrb[0].mxu0
    %v4006 = vadd.f32 %v2961, %v4005
    %v4007 = vpop.f32.mrb[0].mxu0
    %4008 = vdwg.mxu0
    %v4009 = vadd.f32 %v2603, %v3866
    %v4010 = vxor.u32 %v4009, 2147483648
    %v4011 = vmul.f32 %v4010, 1.442695
    %v4012 = vpow.pop %v4011
    %v4013 = vadd.f32 %v4012, 1.0
    %v4014 = vrcp.pop %v4013
    %v4015 = vmul.f32 1.0, %v4014
    %v4016 = vadd.f32 %v2695, %v3936
    %v4017 = vxor.u32 %v4016, 2147483648
    %v4018 = vmul.f32 %v4017, 1.442695
    %v4019 = vpow.pop %v4018
    %v4020 = vadd.f32 %v4019, 1.0
    %v4021 = vrcp.pop %v4020
    %v4022 = vmul.f32 1.0, %v4021
    %v4023 = vmul.f32 %v4015, %v4006
    %v4024 = vadd.f32 %v2787, %v4023
    %v4025 = vtanh.pop %v4024
    %v4026 = vsub.f32 1.0, %v4022
    %v4027 = vmul.f32 %v4026, %v4025
    %v4029 = vmul.f32 %v4022, %v3796
    %v4030 = vadd.f32 %v4027, %v4029
    %4031 = vst.msk [vmem:[#allocation3 + $0x8] sm:$0x3] %vm786, %v4030
    %v4033 = vsel %vm545, %v4030, 0
    %4035 = vmatprep.subr.mxu0 0.0
    %4036 = vmatpush1.msra.mxu0 %v2790
    %4037 = vmatprep.subr.mxu0 0.0
    %4038 = vmatpush1.msra.mxu0 %v2791
    %4039 = vmatprep.subr.mxu0 0.0
    %4040 = vmatpush1.msra.mxu0 %v2792
    %4041 = vmatprep.subr.mxu0 0.0
    %4042 = vmatpush1.msra.mxu0 %v2793
    %4043 = vmatprep.subr.mxu0 0.0
    %4044 = vmatpush1.msra.mxu0 %v2794
    %4045 = vmatprep.subr.mxu0 0.0
    %4046 = vmatpush1.msra.mxu0 %v2795
    %4047 = vmatprep.subr.mxu0 0.0
    %4048 = vmatpush1.msra.mxu0 %v2796
    %4049 = vmatprep.subr.mxu0 0.0
    %4050 = vmatpush1.msra.mxu0 %v2797
    %4051 = vmatprep.subr.mxu0 0.0
    %4052 = vmatpush1.msra.mxu0 0.0
    %4053 = vmatprep.subr.mxu0 0.0
    %4054 = vmatpush1.msra.mxu0 0.0
    %4055 = vmatprep.subr.mxu0 0.0
    %4056 = vmatpush1.msra.mxu0 0.0
    %4057 = vmatprep.subr.mxu0 0.0
    %4058 = vmatpush1.msra.mxu0 0.0
    %4059 = vmatprep.subr.mxu0 0.0
    %4060 = vmatpush1.msra.mxu0 0.0
    %4061 = vmatprep.subr.mxu0 0.0
    %4062 = vmatpush1.msra.mxu0 0.0
    %4063 = vmatprep.subr.mxu0 0.0
    %4064 = vmatpush1.msra.mxu0 0.0
    %4065 = vmatprep.subr.mxu0 0.0
    %4066 = vmatpush1.msra.mxu0 0.0
    %4067 = vmatprep.subr.mxu0 0.0
    %4068 = vmatpush1.msra.mxu0 0.0
    %4069 = vmatprep.subr.mxu0 0.0
    %4070 = vmatpush1.msra.mxu0 0.0
    %4071 = vmatprep.subr.mxu0 0.0
    %4072 = vmatpush1.msra.mxu0 0.0
    %4073 = vmatprep.subr.mxu0 0.0
    %4074 = vmatpush1.msra.mxu0 0.0
    %4075 = vmatprep.subr.mxu0 0.0
    %4076 = vmatpush1.msra.mxu0 0.0
    %4077 = vmatprep.subr.mxu0 0.0
    %4078 = vmatpush1.msra.mxu0 0.0
    %4079 = vmatprep.subr.mxu0 0.0
    %4080 = vmatpush1.msra.mxu0 0.0
    %4081 = vmatprep.subr.mxu0 0.0
    %4082 = vmatpush1.msra.mxu0 0.0
    %4083 = vmatprep.subr.mxu0 0.0
    %4084 = vmatpush1.msra.mxu0 0.0
    %4085 = vmatprep.subr.mxu0 0.0
    %4086 = vmatpush1.msra.mxu0 0.0
    %4087 = vmatprep.subr.mxu0 0.0
    %4088 = vmatpush1.msra.mxu0 0.0
    %4089 = vmatprep.subr.mxu0 0.0
    %4090 = vmatpush1.msra.mxu0 0.0
    %4091 = vmatprep.subr.mxu0 0.0
    %4092 = vmatpush1.msra.mxu0 0.0
    %4093 = vmatprep.subr.mxu0 0.0
    %4094 = vmatpush1.msra.mxu0 0.0
    %4095 = vmatprep.subr.mxu0 0.0
    %4096 = vmatpush1.msra.mxu0 0.0
    %4097 = vmatprep.subr.mxu0 0.0
    %4098 = vmatpush1.msra.mxu0 0.0
    %4099 = vmatprep.mubr.f32.mxu0 0.0
    %4100 = vmatmul.mubr.f32.gmra.mrb[0].mxu0 %v4033
    %v4101 = vpop.f32.mrb[0].mxu0
    %v4102 = vadd.f32 0.0, %v4101
    %v4103 = vpop.f32.mrb[0].mxu0
    %4104 = vdwg.mxu0
    %4105 = vmatprep.subr.mxu0 0.0
    %4106 = vmatpush1.msra.mxu0 %v2799
    %4107 = vmatprep.subr.mxu0 0.0
    %4108 = vmatpush1.msra.mxu0 %v2800
    %4109 = vmatprep.subr.mxu0 0.0
    %4110 = vmatpush1.msra.mxu0 %v2801
    %4111 = vmatprep.subr.mxu0 0.0
    %4112 = vmatpush1.msra.mxu0 %v2802
    %4113 = vmatprep.subr.mxu0 0.0
    %4114 = vmatpush1.msra.mxu0 %v2803
    %4115 = vmatprep.subr.mxu0 0.0
    %4116 = vmatpush1.msra.mxu0 %v2804
    %4117 = vmatprep.subr.mxu0 0.0
    %4118 = vmatpush1.msra.mxu0 %v2805
    %4119 = vmatprep.subr.mxu0 0.0
    %4120 = vmatpush1.msra.mxu0 %v2806
    %4121 = vmatprep.subr.mxu0 0.0
    %4122 = vmatpush1.msra.mxu0 0.0
    %4123 = vmatprep.subr.mxu0 0.0
    %4124 = vmatpush1.msra.mxu0 0.0
    %4125 = vmatprep.subr.mxu0 0.0
    %4126 = vmatpush1.msra.mxu0 0.0
    %4127 = vmatprep.subr.mxu0 0.0
    %4128 = vmatpush1.msra.mxu0 0.0
    %4129 = vmatprep.subr.mxu0 0.0
    %4130 = vmatpush1.msra.mxu0 0.0
    %4131 = vmatprep.subr.mxu0 0.0
    %4132 = vmatpush1.msra.mxu0 0.0
    %4133 = vmatprep.subr.mxu0 0.0
    %4134 = vmatpush1.msra.mxu0 0.0
    %4135 = vmatprep.subr.mxu0 0.0
    %4136 = vmatpush1.msra.mxu0 0.0
    %4137 = vmatprep.subr.mxu0 0.0
    %4138 = vmatpush1.msra.mxu0 0.0
    %4139 = vmatprep.subr.mxu0 0.0
    %4140 = vmatpush1.msra.mxu0 0.0
    %4141 = vmatprep.subr.mxu0 0.0
    %4142 = vmatpush1.msra.mxu0 0.0
    %4143 = vmatprep.subr.mxu0 0.0
    %4144 = vmatpush1.msra.mxu0 0.0
    %4145 = vmatprep.subr.mxu0 0.0
    %4146 = vmatpush1.msra.mxu0 0.0
    %4147 = vmatprep.subr.mxu0 0.0
    %4148 = vmatpush1.msra.mxu0 0.0
    %4149 = vmatprep.subr.mxu0 0.0
    %4150 = vmatpush1.msra.mxu0 0.0
    %4151 = vmatprep.subr.mxu0 0.0
    %4152 = vmatpush1.msra.mxu0 0.0
    %4153 = vmatprep.subr.mxu0 0.0
    %4154 = vmatpush1.msra.mxu0 0.0
    %4155 = vmatprep.subr.mxu0 0.0
    %4156 = vmatpush1.msra.mxu0 0.0
    %4157 = vmatprep.subr.mxu0 0.0
    %4158 = vmatpush1.msra.mxu0 0.0
    %4159 = vmatprep.subr.mxu0 0.0
    %4160 = vmatpush1.msra.mxu0 0.0
    %4161 = vmatprep.subr.mxu0 0.0
    %4162 = vmatpush1.msra.mxu0 0.0
    %4163 = vmatprep.subr.mxu0 0.0
    %4164 = vmatpush1.msra.mxu0 0.0
    %4165 = vmatprep.subr.mxu0 0.0
    %4166 = vmatpush1.msra.mxu0 0.0
    %4167 = vmatprep.subr.mxu0 0.0
    %4168 = vmatpush1.msra.mxu0 0.0
    %4169 = vmatprep.mubr.f32.mxu0 0.0
    %4170 = vmatmul.mubr.f32.gmra.mrb[0].mxu0 %v4033
    %v4171 = vpop.f32.mrb[0].mxu0
    %v4172 = vadd.f32 0.0, %v4171
    %v4173 = vpop.f32.mrb[0].mxu0
    %4174 = vdwg.mxu0
    %4175 = vmatprep.subr.mxu0 0.0
    %4176 = vmatpush1.msra.mxu0 %v2808
    %4177 = vmatprep.subr.mxu0 0.0
    %4178 = vmatpush1.msra.mxu0 %v2809
    %4179 = vmatprep.subr.mxu0 0.0
    %4180 = vmatpush1.msra.mxu0 %v2810
    %4181 = vmatprep.subr.mxu0 0.0
    %4182 = vmatpush1.msra.mxu0 %v2811
    %4183 = vmatprep.subr.mxu0 0.0
    %4184 = vmatpush1.msra.mxu0 %v2812
    %4185 = vmatprep.subr.mxu0 0.0
    %4186 = vmatpush1.msra.mxu0 %v2813
    %4187 = vmatprep.subr.mxu0 0.0
    %4188 = vmatpush1.msra.mxu0 %v2814
    %4189 = vmatprep.subr.mxu0 0.0
    %4190 = vmatpush1.msra.mxu0 %v2815
    %4191 = vmatprep.subr.mxu0 0.0
    %4192 = vmatpush1.msra.mxu0 0.0
    %4193 = vmatprep.subr.mxu0 0.0
    %4194 = vmatpush1.msra.mxu0 0.0
    %4195 = vmatprep.subr.mxu0 0.0
    %4196 = vmatpush1.msra.mxu0 0.0
    %4197 = vmatprep.subr.mxu0 0.0
    %4198 = vmatpush1.msra.mxu0 0.0
    %4199 = vmatprep.subr.mxu0 0.0
    %4200 = vmatpush1.msra.mxu0 0.0
    %4201 = vmatprep.subr.mxu0 0.0
    %4202 = vmatpush1.msra.mxu0 0.0
    %4203 = vmatprep.subr.mxu0 0.0
    %4204 = vmatpush1.msra.mxu0 0.0
    %4205 = vmatprep.subr.mxu0 0.0
    %4206 = vmatpush1.msra.mxu0 0.0
    %4207 = vmatprep.subr.mxu0 0.0
    %4208 = vmatpush1.msra.mxu0 0.0
    %4209 = vmatprep.subr.mxu0 0.0
    %4210 = vmatpush1.msra.mxu0 0.0
    %4211 = vmatprep.subr.mxu0 0.0
    %4212 = vmatpush1.msra.mxu0 0.0
    %4213 = vmatprep.subr.mxu0 0.0
    %4214 = vmatpush1.msra.mxu0 0.0
    %4215 = vmatprep.subr.mxu0 0.0
    %4216 = vmatpush1.msra.mxu0 0.0
    %4217 = vmatprep.subr.mxu0 0.0
    %4218 = vmatpush1.msra.mxu0 0.0
    %4219 = vmatprep.subr.mxu0 0.0
    %4220 = vmatpush1.msra.mxu0 0.0
    %4221 = vmatprep.subr.mxu0 0.0
    %4222 = vmatpush1.msra.mxu0 0.0
    %4223 = vmatprep.subr.mxu0 0.0
    %4224 = vmatpush1.msra.mxu0 0.0
    %4225 = vmatprep.subr.mxu0 0.0
    %4226 = vmatpush1.msra.mxu0 0.0
    %4227 = vmatprep.subr.mxu0 0.0
    %4228 = vmatpush1.msra.mxu0 0.0
    %4229 = vmatprep.subr.mxu0 0.0
    %4230 = vmatpush1.msra.mxu0 0.0
    %4231 = vmatprep.subr.mxu0 0.0
    %4232 = vmatpush1.msra.mxu0 0.0
    %4233 = vmatprep.subr.mxu0 0.0
    %4234 = vmatpush1.msra.mxu0 0.0
    %4235 = vmatprep.subr.mxu0 0.0
    %4236 = vmatpush1.msra.mxu0 0.0
    %4237 = vmatprep.subr.mxu0 0.0
    %4238 = vmatpush1.msra.mxu0 0.0
    %4239 = vmatprep.mubr.f32.mxu0 0.0
    %4240 = vmatmul.mubr.f32.gmra.mrb[0].mxu0 %v4033
    %v4241 = vpop.f32.mrb[0].mxu0
    %v4242 = vadd.f32 %v2961, %v4241
    %v4243 = vpop.f32.mrb[0].mxu0
    %4244 = vdwg.mxu0
    %v4246 = vrot.slane %v4102, 6
    %v4248 = vadd.f32 %v2603, %v4246
    %v4249 = vxor.u32 %v4248, 2147483648
    %v4250 = vmul.f32 %v4249, 1.442695
    %v4251 = vpow.pop %v4250
    %v4252 = vadd.f32 %v4251, 1.0
    %v4253 = vrcp.pop %v4252
    %v4254 = vmul.f32 1.0, %v4253
    %v4256 = vrot.slane %v4172, 6
    %v4258 = vadd.f32 %v2695, %v4256
    %v4259 = vxor.u32 %v4258, 2147483648
    %v4260 = vmul.f32 %v4259, 1.442695
    %v4261 = vpow.pop %v4260
    %v4262 = vadd.f32 %v4261, 1.0
    %v4263 = vrcp.pop %v4262
    %v4264 = vmul.f32 1.0, %v4263
    %v4266 = vrot.slane %v4242, 6
    %v4268 = vmul.f32 %v4254, %v4266
    %v4269 = vadd.f32 %v2787, %v4268
    %v4270 = vtanh.pop %v4269
    %v4271 = vsub.f32 1.0, %v4264
    %v4272 = vmul.f32 %v4271, %v4270
    %v4273 = vrot.slane %v4030, 6
    %v4275 = vmul.f32 %v4264, %v4273
    %v4276 = vadd.f32 %v4272, %v4275
    %4277 = vst.msk [vmem:[#allocation3 + $0x8] sm:$0xc] %vm1033, %v4276
    %v4279 = vrot.slane %v4276, 2
    %v4280 = vsel %vm545, %v4279, 0
    %4282 = vmatprep.subr.mxu0 0.0
    %4283 = vmatpush1.msra.mxu0 %v2790
    %4284 = vmatprep.subr.mxu0 0.0
    %4285 = vmatpush1.msra.mxu0 %v2791
    %4286 = vmatprep.subr.mxu0 0.0
    %4287 = vmatpush1.msra.mxu0 %v2792
    %4288 = vmatprep.subr.mxu0 0.0
    %4289 = vmatpush1.msra.mxu0 %v2793
    %4290 = vmatprep.subr.mxu0 0.0
    %4291 = vmatpush1.msra.mxu0 %v2794
    %4292 = vmatprep.subr.mxu0 0.0
    %4293 = vmatpush1.msra.mxu0 %v2795
    %4294 = vmatprep.subr.mxu0 0.0
    %4295 = vmatpush1.msra.mxu0 %v2796
    %4296 = vmatprep.subr.mxu0 0.0
    %4297 = vmatpush1.msra.mxu0 %v2797
    %4298 = vmatprep.subr.mxu0 0.0
    %4299 = vmatpush1.msra.mxu0 0.0
    %4300 = vmatprep.subr.mxu0 0.0
    %4301 = vmatpush1.msra.mxu0 0.0
    %4302 = vmatprep.subr.mxu0 0.0
    %4303 = vmatpush1.msra.mxu0 0.0
    %4304 = vmatprep.subr.mxu0 0.0
    %4305 = vmatpush1.msra.mxu0 0.0
    %4306 = vmatprep.subr.mxu0 0.0
    %4307 = vmatpush1.msra.mxu0 0.0
    %4308 = vmatprep.subr.mxu0 0.0
    %4309 = vmatpush1.msra.mxu0 0.0
    %4310 = vmatprep.subr.mxu0 0.0
    %4311 = vmatpush1.msra.mxu0 0.0
    %4312 = vmatprep.subr.mxu0 0.0
    %4313 = vmatpush1.msra.mxu0 0.0
    %4314 = vmatprep.subr.mxu0 0.0
    %4315 = vmatpush1.msra.mxu0 0.0
    %4316 = vmatprep.subr.mxu0 0.0
    %4317 = vmatpush1.msra.mxu0 0.0
    %4318 = vmatprep.subr.mxu0 0.0
    %4319 = vmatpush1.msra.mxu0 0.0
    %4320 = vmatprep.subr.mxu0 0.0
    %4321 = vmatpush1.msra.mxu0 0.0
    %4322 = vmatprep.subr.mxu0 0.0
    %4323 = vmatpush1.msra.mxu0 0.0
    %4324 = vmatprep.subr.mxu0 0.0
    %4325 = vmatpush1.msra.mxu0 0.0
    %4326 = vmatprep.subr.mxu0 0.0
    %4327 = vmatpush1.msra.mxu0 0.0
    %4328 = vmatprep.subr.mxu0 0.0
    %4329 = vmatpush1.msra.mxu0 0.0
    %4330 = vmatprep.subr.mxu0 0.0
    %4331 = vmatpush1.msra.mxu0 0.0
    %4332 = vmatprep.subr.mxu0 0.0
    %4333 = vmatpush1.msra.mxu0 0.0
    %4334 = vmatprep.subr.mxu0 0.0
    %4335 = vmatpush1.msra.mxu0 0.0
    %4336 = vmatprep.subr.mxu0 0.0
    %4337 = vmatpush1.msra.mxu0 0.0
    %4338 = vmatprep.subr.mxu0 0.0
    %4339 = vmatpush1.msra.mxu0 0.0
    %4340 = vmatprep.subr.mxu0 0.0
    %4341 = vmatpush1.msra.mxu0 0.0
    %4342 = vmatprep.subr.mxu0 0.0
    %4343 = vmatpush1.msra.mxu0 0.0
    %4344 = vmatprep.subr.mxu0 0.0
    %4345 = vmatpush1.msra.mxu0 0.0
    %4346 = vmatprep.mubr.f32.mxu0 0.0
    %4347 = vmatmul.mubr.f32.gmra.mrb[0].mxu0 %v4280
    %v4348 = vpop.f32.mrb[0].mxu0
    %v4349 = vadd.f32 0.0, %v4348
    %v4350 = vpop.f32.mrb[0].mxu0
    %4351 = vdwg.mxu0
    %4352 = vmatprep.subr.mxu0 0.0
    %4353 = vmatpush1.msra.mxu0 %v2799
    %4354 = vmatprep.subr.mxu0 0.0
    %4355 = vmatpush1.msra.mxu0 %v2800
    %4356 = vmatprep.subr.mxu0 0.0
    %4357 = vmatpush1.msra.mxu0 %v2801
    %4358 = vmatprep.subr.mxu0 0.0
    %4359 = vmatpush1.msra.mxu0 %v2802
    %4360 = vmatprep.subr.mxu0 0.0
    %4361 = vmatpush1.msra.mxu0 %v2803
    %4362 = vmatprep.subr.mxu0 0.0
    %4363 = vmatpush1.msra.mxu0 %v2804
    %4364 = vmatprep.subr.mxu0 0.0
    %4365 = vmatpush1.msra.mxu0 %v2805
    %4366 = vmatprep.subr.mxu0 0.0
    %4367 = vmatpush1.msra.mxu0 %v2806
    %4368 = vmatprep.subr.mxu0 0.0
    %4369 = vmatpush1.msra.mxu0 0.0
    %4370 = vmatprep.subr.mxu0 0.0
    %4371 = vmatpush1.msra.mxu0 0.0
    %4372 = vmatprep.subr.mxu0 0.0
    %4373 = vmatpush1.msra.mxu0 0.0
    %4374 = vmatprep.subr.mxu0 0.0
    %4375 = vmatpush1.msra.mxu0 0.0
    %4376 = vmatprep.subr.mxu0 0.0
    %4377 = vmatpush1.msra.mxu0 0.0
    %4378 = vmatprep.subr.mxu0 0.0
    %4379 = vmatpush1.msra.mxu0 0.0
    %4380 = vmatprep.subr.mxu0 0.0
    %4381 = vmatpush1.msra.mxu0 0.0
    %4382 = vmatprep.subr.mxu0 0.0
    %4383 = vmatpush1.msra.mxu0 0.0
    %4384 = vmatprep.subr.mxu0 0.0
    %4385 = vmatpush1.msra.mxu0 0.0
    %4386 = vmatprep.subr.mxu0 0.0
    %4387 = vmatpush1.msra.mxu0 0.0
    %4388 = vmatprep.subr.mxu0 0.0
    %4389 = vmatpush1.msra.mxu0 0.0
    %4390 = vmatprep.subr.mxu0 0.0
    %4391 = vmatpush1.msra.mxu0 0.0
    %4392 = vmatprep.subr.mxu0 0.0
    %4393 = vmatpush1.msra.mxu0 0.0
    %4394 = vmatprep.subr.mxu0 0.0
    %4395 = vmatpush1.msra.mxu0 0.0
    %4396 = vmatprep.subr.mxu0 0.0
    %4397 = vmatpush1.msra.mxu0 0.0
    %4398 = vmatprep.subr.mxu0 0.0
    %4399 = vmatpush1.msra.mxu0 0.0
    %4400 = vmatprep.subr.mxu0 0.0
    %4401 = vmatpush1.msra.mxu0 0.0
    %4402 = vmatprep.subr.mxu0 0.0
    %4403 = vmatpush1.msra.mxu0 0.0
    %4404 = vmatprep.subr.mxu0 0.0
    %4405 = vmatpush1.msra.mxu0 0.0
    %4406 = vmatprep.subr.mxu0 0.0
    %4407 = vmatpush1.msra.mxu0 0.0
    %4408 = vmatprep.subr.mxu0 0.0
    %4409 = vmatpush1.msra.mxu0 0.0
    %4410 = vmatprep.subr.mxu0 0.0
    %4411 = vmatpush1.msra.mxu0 0.0
    %4412 = vmatprep.subr.mxu0 0.0
    %4413 = vmatpush1.msra.mxu0 0.0
    %4414 = vmatprep.subr.mxu0 0.0
    %4415 = vmatpush1.msra.mxu0 0.0
    %4416 = vmatprep.mubr.f32.mxu0 0.0
    %4417 = vmatmul.mubr.f32.gmra.mrb[0].mxu0 %v4280
    %v4418 = vpop.f32.mrb[0].mxu0
    %v4419 = vadd.f32 0.0, %v4418
    %v4420 = vpop.f32.mrb[0].mxu0
    %4421 = vdwg.mxu0
    %4422 = vmatprep.subr.mxu0 0.0
    %4423 = vmatpush1.msra.mxu0 %v2808
    %4424 = vmatprep.subr.mxu0 0.0
    %4425 = vmatpush1.msra.mxu0 %v2809
    %4426 = vmatprep.subr.mxu0 0.0
    %4427 = vmatpush1.msra.mxu0 %v2810
    %4428 = vmatprep.subr.mxu0 0.0
    %4429 = vmatpush1.msra.mxu0 %v2811
    %4430 = vmatprep.subr.mxu0 0.0
    %4431 = vmatpush1.msra.mxu0 %v2812
    %4432 = vmatprep.subr.mxu0 0.0
    %4433 = vmatpush1.msra.mxu0 %v2813
    %4434 = vmatprep.subr.mxu0 0.0
    %4435 = vmatpush1.msra.mxu0 %v2814
    %4436 = vmatprep.subr.mxu0 0.0
    %4437 = vmatpush1.msra.mxu0 %v2815
    %4438 = vmatprep.subr.mxu0 0.0
    %4439 = vmatpush1.msra.mxu0 0.0
    %4440 = vmatprep.subr.mxu0 0.0
    %4441 = vmatpush1.msra.mxu0 0.0
    %4442 = vmatprep.subr.mxu0 0.0
    %4443 = vmatpush1.msra.mxu0 0.0
    %4444 = vmatprep.subr.mxu0 0.0
    %4445 = vmatpush1.msra.mxu0 0.0
    %4446 = vmatprep.subr.mxu0 0.0
    %4447 = vmatpush1.msra.mxu0 0.0
    %4448 = vmatprep.subr.mxu0 0.0
    %4449 = vmatpush1.msra.mxu0 0.0
    %4450 = vmatprep.subr.mxu0 0.0
    %4451 = vmatpush1.msra.mxu0 0.0
    %4452 = vmatprep.subr.mxu0 0.0
    %4453 = vmatpush1.msra.mxu0 0.0
    %4454 = vmatprep.subr.mxu0 0.0
    %4455 = vmatpush1.msra.mxu0 0.0
    %4456 = vmatprep.subr.mxu0 0.0
    %4457 = vmatpush1.msra.mxu0 0.0
    %4458 = vmatprep.subr.mxu0 0.0
    %4459 = vmatpush1.msra.mxu0 0.0
    %4460 = vmatprep.subr.mxu0 0.0
    %4461 = vmatpush1.msra.mxu0 0.0
    %4462 = vmatprep.subr.mxu0 0.0
    %4463 = vmatpush1.msra.mxu0 0.0
    %4464 = vmatprep.subr.mxu0 0.0
    %4465 = vmatpush1.msra.mxu0 0.0
    %4466 = vmatprep.subr.mxu0 0.0
    %4467 = vmatpush1.msra.mxu0 0.0
    %4468 = vmatprep.subr.mxu0 0.0
    %4469 = vmatpush1.msra.mxu0 0.0
    %4470 = vmatprep.subr.mxu0 0.0
    %4471 = vmatpush1.msra.mxu0 0.0
    %4472 = vmatprep.subr.mxu0 0.0
    %4473 = vmatpush1.msra.mxu0 0.0
    %4474 = vmatprep.subr.mxu0 0.0
    %4475 = vmatpush1.msra.mxu0 0.0
    %4476 = vmatprep.subr.mxu0 0.0
    %4477 = vmatpush1.msra.mxu0 0.0
    %4478 = vmatprep.subr.mxu0 0.0
    %4479 = vmatpush1.msra.mxu0 0.0
    %4480 = vmatprep.subr.mxu0 0.0
    %4481 = vmatpush1.msra.mxu0 0.0
    %4482 = vmatprep.subr.mxu0 0.0
    %4483 = vmatpush1.msra.mxu0 0.0
    %4484 = vmatprep.subr.mxu0 0.0
    %4485 = vmatpush1.msra.mxu0 0.0
    %4486 = vmatprep.mubr.f32.mxu0 0.0
    %4487 = vmatmul.mubr.f32.gmra.mrb[0].mxu0 %v4280
    %v4488 = vpop.f32.mrb[0].mxu0
    %v4489 = vadd.f32 %v2961, %v4488
    %v4490 = vpop.f32.mrb[0].mxu0
    %4491 = vdwg.mxu0
    %v4493 = vrot.slane %v4349, 4
    %v4495 = vadd.f32 %v2603, %v4493
    %v4496 = vxor.u32 %v4495, 2147483648
    %v4497 = vmul.f32 %v4496, 1.442695
    %v4498 = vpow.pop %v4497
    %v4499 = vadd.f32 %v4498, 1.0
    %v4500 = vrcp.pop %v4499
    %v4501 = vmul.f32 1.0, %v4500
    %v4503 = vrot.slane %v4419, 4
    %v4505 = vadd.f32 %v2695, %v4503
    %v4506 = vxor.u32 %v4505, 2147483648
    %v4507 = vmul.f32 %v4506, 1.442695
    %v4508 = vpow.pop %v4507
    %v4509 = vadd.f32 %v4508, 1.0
    %v4510 = vrcp.pop %v4509
    %v4511 = vmul.f32 1.0, %v4510
    %v4513 = vrot.slane %v4489, 4
    %v4515 = vmul.f32 %v4501, %v4513
    %v4516 = vadd.f32 %v2787, %v4515
    %v4517 = vtanh.pop %v4516
    %v4518 = vsub.f32 1.0, %v4511
    %v4519 = vmul.f32 %v4518, %v4517
    %v4520 = vrot.slane %v4276, 6
    %v4522 = vmul.f32 %v4511, %v4520
    %v4523 = vadd.f32 %v4519, %v4522
    %4524 = vst.msk [vmem:[#allocation3 + $0x8] sm:$0x30] %vm1281, %v4523
    %v4526 = vrot.slane %v4523, 4
    %v4527 = vsel %vm545, %v4526, 0
    %4529 = vmatprep.subr.mxu0 0.0
    %4530 = vmatpush1.msra.mxu0 %v2790
    %4531 = vmatprep.subr.mxu0 0.0
    %4532 = vmatpush1.msra.mxu0 %v2791
    %4533 = vmatprep.subr.mxu0 0.0
    %4534 = vmatpush1.msra.mxu0 %v2792
    %4535 = vmatprep.subr.mxu0 0.0
    %4536 = vmatpush1.msra.mxu0 %v2793
    %4537 = vmatprep.subr.mxu0 0.0
    %4538 = vmatpush1.msra.mxu0 %v2794
    %4539 = vmatprep.subr.mxu0 0.0
    %4540 = vmatpush1.msra.mxu0 %v2795
    %4541 = vmatprep.subr.mxu0 0.0
    %4542 = vmatpush1.msra.mxu0 %v2796
    %4543 = vmatprep.subr.mxu0 0.0
    %4544 = vmatpush1.msra.mxu0 %v2797
    %4545 = vmatprep.subr.mxu0 0.0
    %4546 = vmatpush1.msra.mxu0 0.0
    %4547 = vmatprep.subr.mxu0 0.0
    %4548 = vmatpush1.msra.mxu0 0.0
    %4549 = vmatprep.subr.mxu0 0.0
    %4550 = vmatpush1.msra.mxu0 0.0
    %4551 = vmatprep.subr.mxu0 0.0
    %4552 = vmatpush1.msra.mxu0 0.0
    %4553 = vmatprep.subr.mxu0 0.0
    %4554 = vmatpush1.msra.mxu0 0.0
    %4555 = vmatprep.subr.mxu0 0.0
    %4556 = vmatpush1.msra.mxu0 0.0
    %4557 = vmatprep.subr.mxu0 0.0
    %4558 = vmatpush1.msra.mxu0 0.0
    %4559 = vmatprep.subr.mxu0 0.0
    %4560 = vmatpush1.msra.mxu0 0.0
    %4561 = vmatprep.subr.mxu0 0.0
    %4562 = vmatpush1.msra.mxu0 0.0
    %4563 = vmatprep.subr.mxu0 0.0
    %4564 = vmatpush1.msra.mxu0 0.0
    %4565 = vmatprep.subr.mxu0 0.0
    %4566 = vmatpush1.msra.mxu0 0.0
    %4567 = vmatprep.subr.mxu0 0.0
    %4568 = vmatpush1.msra.mxu0 0.0
    %4569 = vmatprep.subr.mxu0 0.0
    %4570 = vmatpush1.msra.mxu0 0.0
    %4571 = vmatprep.subr.mxu0 0.0
    %4572 = vmatpush1.msra.mxu0 0.0
    %4573 = vmatprep.subr.mxu0 0.0
    %4574 = vmatpush1.msra.mxu0 0.0
    %4575 = vmatprep.subr.mxu0 0.0
    %4576 = vmatpush1.msra.mxu0 0.0
    %4577 = vmatprep.subr.mxu0 0.0
    %4578 = vmatpush1.msra.mxu0 0.0
    %4579 = vmatprep.subr.mxu0 0.0
    %4580 = vmatpush1.msra.mxu0 0.0
    %4581 = vmatprep.subr.mxu0 0.0
    %4582 = vmatpush1.msra.mxu0 0.0
    %4583 = vmatprep.subr.mxu0 0.0
    %4584 = vmatpush1.msra.mxu0 0.0
    %4585 = vmatprep.subr.mxu0 0.0
    %4586 = vmatpush1.msra.mxu0 0.0
    %4587 = vmatprep.subr.mxu0 0.0
    %4588 = vmatpush1.msra.mxu0 0.0
    %4589 = vmatprep.subr.mxu0 0.0
    %4590 = vmatpush1.msra.mxu0 0.0
    %4591 = vmatprep.subr.mxu0 0.0
    %4592 = vmatpush1.msra.mxu0 0.0
    %4593 = vmatprep.mubr.f32.mxu0 0.0
    %4594 = vmatmul.mubr.f32.gmra.mrb[0].mxu0 %v4527
    %v4595 = vpop.f32.mrb[0].mxu0
    %v4596 = vadd.f32 0.0, %v4595
    %v4597 = vpop.f32.mrb[0].mxu0
    %4598 = vdwg.mxu0
    %4599 = vmatprep.subr.mxu0 0.0
    %4600 = vmatpush1.msra.mxu0 %v2799
    %4601 = vmatprep.subr.mxu0 0.0
    %4602 = vmatpush1.msra.mxu0 %v2800
    %4603 = vmatprep.subr.mxu0 0.0
    %4604 = vmatpush1.msra.mxu0 %v2801
    %4605 = vmatprep.subr.mxu0 0.0
    %4606 = vmatpush1.msra.mxu0 %v2802
    %4607 = vmatprep.subr.mxu0 0.0
    %4608 = vmatpush1.msra.mxu0 %v2803
    %4609 = vmatprep.subr.mxu0 0.0
    %4610 = vmatpush1.msra.mxu0 %v2804
    %4611 = vmatprep.subr.mxu0 0.0
    %4612 = vmatpush1.msra.mxu0 %v2805
    %4613 = vmatprep.subr.mxu0 0.0
    %4614 = vmatpush1.msra.mxu0 %v2806
    %4615 = vmatprep.subr.mxu0 0.0
    %4616 = vmatpush1.msra.mxu0 0.0
    %4617 = vmatprep.subr.mxu0 0.0
    %4618 = vmatpush1.msra.mxu0 0.0
    %4619 = vmatprep.subr.mxu0 0.0
    %4620 = vmatpush1.msra.mxu0 0.0
    %4621 = vmatprep.subr.mxu0 0.0
    %4622 = vmatpush1.msra.mxu0 0.0
    %4623 = vmatprep.subr.mxu0 0.0
    %4624 = vmatpush1.msra.mxu0 0.0
    %4625 = vmatprep.subr.mxu0 0.0
    %4626 = vmatpush1.msra.mxu0 0.0
    %4627 = vmatprep.subr.mxu0 0.0
    %4628 = vmatpush1.msra.mxu0 0.0
    %4629 = vmatprep.subr.mxu0 0.0
    %4630 = vmatpush1.msra.mxu0 0.0
    %4631 = vmatprep.subr.mxu0 0.0
    %4632 = vmatpush1.msra.mxu0 0.0
    %4633 = vmatprep.subr.mxu0 0.0
    %4634 = vmatpush1.msra.mxu0 0.0
    %4635 = vmatprep.subr.mxu0 0.0
    %4636 = vmatpush1.msra.mxu0 0.0
    %4637 = vmatprep.subr.mxu0 0.0
    %4638 = vmatpush1.msra.mxu0 0.0
    %4639 = vmatprep.subr.mxu0 0.0
    %4640 = vmatpush1.msra.mxu0 0.0
    %4641 = vmatprep.subr.mxu0 0.0
    %4642 = vmatpush1.msra.mxu0 0.0
    %4643 = vmatprep.subr.mxu0 0.0
    %4644 = vmatpush1.msra.mxu0 0.0
    %4645 = vmatprep.subr.mxu0 0.0
    %4646 = vmatpush1.msra.mxu0 0.0
    %4647 = vmatprep.subr.mxu0 0.0
    %4648 = vmatpush1.msra.mxu0 0.0
    %4649 = vmatprep.subr.mxu0 0.0
    %4650 = vmatpush1.msra.mxu0 0.0
    %4651 = vmatprep.subr.mxu0 0.0
    %4652 = vmatpush1.msra.mxu0 0.0
    %4653 = vmatprep.subr.mxu0 0.0
    %4654 = vmatpush1.msra.mxu0 0.0
    %4655 = vmatprep.subr.mxu0 0.0
    %4656 = vmatpush1.msra.mxu0 0.0
    %4657 = vmatprep.subr.mxu0 0.0
    %4658 = vmatpush1.msra.mxu0 0.0
    %4659 = vmatprep.subr.mxu0 0.0
    %4660 = vmatpush1.msra.mxu0 0.0
    %4661 = vmatprep.subr.mxu0 0.0
    %4662 = vmatpush1.msra.mxu0 0.0
    %4663 = vmatprep.mubr.f32.mxu0 0.0
    %4664 = vmatmul.mubr.f32.gmra.mrb[0].mxu0 %v4527
    %v4665 = vpop.f32.mrb[0].mxu0
    %v4666 = vadd.f32 0.0, %v4665
    %v4667 = vpop.f32.mrb[0].mxu0
    %4668 = vdwg.mxu0
    %4669 = vmatprep.subr.mxu0 0.0
    %4670 = vmatpush1.msra.mxu0 %v2808
    %4671 = vmatprep.subr.mxu0 0.0
    %4672 = vmatpush1.msra.mxu0 %v2809
    %4673 = vmatprep.subr.mxu0 0.0
    %4674 = vmatpush1.msra.mxu0 %v2810
    %4675 = vmatprep.subr.mxu0 0.0
    %4676 = vmatpush1.msra.mxu0 %v2811
    %4677 = vmatprep.subr.mxu0 0.0
    %4678 = vmatpush1.msra.mxu0 %v2812
    %4679 = vmatprep.subr.mxu0 0.0
    %4680 = vmatpush1.msra.mxu0 %v2813
    %4681 = vmatprep.subr.mxu0 0.0
    %4682 = vmatpush1.msra.mxu0 %v2814
    %4683 = vmatprep.subr.mxu0 0.0
    %4684 = vmatpush1.msra.mxu0 %v2815
    %4685 = vmatprep.subr.mxu0 0.0
    %4686 = vmatpush1.msra.mxu0 0.0
    %4687 = vmatprep.subr.mxu0 0.0
    %4688 = vmatpush1.msra.mxu0 0.0
    %4689 = vmatprep.subr.mxu0 0.0
    %4690 = vmatpush1.msra.mxu0 0.0
    %4691 = vmatprep.subr.mxu0 0.0
    %4692 = vmatpush1.msra.mxu0 0.0
    %4693 = vmatprep.subr.mxu0 0.0
    %4694 = vmatpush1.msra.mxu0 0.0
    %4695 = vmatprep.subr.mxu0 0.0
    %4696 = vmatpush1.msra.mxu0 0.0
    %4697 = vmatprep.subr.mxu0 0.0
    %4698 = vmatpush1.msra.mxu0 0.0
    %4699 = vmatprep.subr.mxu0 0.0
    %4700 = vmatpush1.msra.mxu0 0.0
    %4701 = vmatprep.subr.mxu0 0.0
    %4702 = vmatpush1.msra.mxu0 0.0
    %4703 = vmatprep.subr.mxu0 0.0
    %4704 = vmatpush1.msra.mxu0 0.0
    %4705 = vmatprep.subr.mxu0 0.0
    %4706 = vmatpush1.msra.mxu0 0.0
    %4707 = vmatprep.subr.mxu0 0.0
    %4708 = vmatpush1.msra.mxu0 0.0
    %4709 = vmatprep.subr.mxu0 0.0
    %4710 = vmatpush1.msra.mxu0 0.0
    %4711 = vmatprep.subr.mxu0 0.0
    %4712 = vmatpush1.msra.mxu0 0.0
    %4713 = vmatprep.subr.mxu0 0.0
    %4714 = vmatpush1.msra.mxu0 0.0
    %4715 = vmatprep.subr.mxu0 0.0
    %4716 = vmatpush1.msra.mxu0 0.0
    %4717 = vmatprep.subr.mxu0 0.0
    %4718 = vmatpush1.msra.mxu0 0.0
    %4719 = vmatprep.subr.mxu0 0.0
    %4720 = vmatpush1.msra.mxu0 0.0
    %4721 = vmatprep.subr.mxu0 0.0
    %4722 = vmatpush1.msra.mxu0 0.0
    %4723 = vmatprep.subr.mxu0 0.0
    %4724 = vmatpush1.msra.mxu0 0.0
    %4725 = vmatprep.subr.mxu0 0.0
    %4726 = vmatpush1.msra.mxu0 0.0
    %4727 = vmatprep.subr.mxu0 0.0
    %4728 = vmatpush1.msra.mxu0 0.0
    %4729 = vmatprep.subr.mxu0 0.0
    %4730 = vmatpush1.msra.mxu0 0.0
    %4731 = vmatprep.subr.mxu0 0.0
    %4732 = vmatpush1.msra.mxu0 0.0
    %4733 = vmatprep.mubr.f32.mxu0 0.0
    %4734 = vmatmul.mubr.f32.gmra.mrb[0].mxu0 %v4527
    %v4735 = vpop.f32.mrb[0].mxu0
    %v4736 = vadd.f32 %v2961, %v4735
    %v4737 = vpop.f32.mrb[0].mxu0
    %4738 = vdwg.mxu0
    %v4740 = vrot.slane %v4596, 2
    %v4742 = vadd.f32 %v2603, %v4740
    %v4743 = vxor.u32 %v4742, 2147483648
    %v4744 = vmul.f32 %v4743, 1.442695
    %v4745 = vpow.pop %v4744
    %v4746 = vadd.f32 %v4745, 1.0
    %v4747 = vrcp.pop %v4746
    %v4748 = vmul.f32 1.0, %v4747
    %v4750 = vrot.slane %v4666, 2
    %v4752 = vadd.f32 %v2695, %v4750
    %v4753 = vxor.u32 %v4752, 2147483648
    %v4754 = vmul.f32 %v4753, 1.442695
    %v4755 = vpow.pop %v4754
    %v4756 = vadd.f32 %v4755, 1.0
    %v4757 = vrcp.pop %v4756
    %v4758 = vmul.f32 1.0, %v4757
    %v4760 = vrot.slane %v4736, 2
    %v4762 = vmul.f32 %v4748, %v4760
    %v4763 = vadd.f32 %v2787, %v4762
    %v4764 = vtanh.pop %v4763
    %v4765 = vsub.f32 1.0, %v4758
    %v4766 = vmul.f32 %v4765, %v4764
    %v4767 = vrot.slane %v4523, 6
    %v4769 = vmul.f32 %v4758, %v4767
    %v4770 = vadd.f32 %v4766, %v4769
    %4771 = vst.msk [vmem:[#allocation3 + $0x8] sm:$0xc0] %vm1529, %v4770
    %v4772 = vld [vmem:[#allocation3] sm:$0xff]
    %v4773 = vld [vmem:[#allocation3 + $0x8] sm:$0xff]
    %v4774 = vld [vmem:[#allocation14] sm:$0xff]
    %v4775 = vld [vmem:[#allocation14 + $0x8] sm:$0xff]
    %v4776 = vld [vmem:[#allocation14 + $0x10] sm:$0xff]
    %v4777 = vld [vmem:[#allocation14 + $0x18] sm:$0xff]
    %v4778 = vld [vmem:[#allocation14 + $0x20] sm:$0xff]
    %v4779 = vld [vmem:[#allocation14 + $0x28] sm:$0xff]
    %v4780 = vld [vmem:[#allocation14 + $0x30] sm:$0xff]
    %v4781 = vld [vmem:[#allocation14 + $0x38] sm:$0xff]
    %v4782 = vld [vmem:[#allocation17] sm:$0x1]
    %v4784 = vlaneseq
    %v4785 = vshrl.u32 %v4784, 7
    %v4786 = vsub.s32 0, %v4785
    %v4787 = vrot.slane %v4782, %v4786
    %v4790 = vsel %vm545, %v4772, 0
    %v4793 = vsel %vm545, %v4773, 0
    %4795 = vmatprep.subr.mxu0 0.0
    %4796 = vmatpush1.msra.mxu0 %v4774
    %4797 = vmatprep.subr.mxu0 0.0
    %4798 = vmatpush1.msra.mxu0 %v4775
    %4799 = vmatprep.subr.mxu0 0.0
    %4800 = vmatpush1.msra.mxu0 %v4776
    %4801 = vmatprep.subr.mxu0 0.0
    %4802 = vmatpush1.msra.mxu0 %v4777
    %4803 = vmatprep.subr.mxu0 0.0
    %4804 = vmatpush1.msra.mxu0 %v4778
    %4805 = vmatprep.subr.mxu0 0.0
    %4806 = vmatpush1.msra.mxu0 %v4779
    %4807 = vmatprep.subr.mxu0 0.0
    %4808 = vmatpush1.msra.mxu0 %v4780
    %4809 = vmatprep.subr.mxu0 0.0
    %4810 = vmatpush1.msra.mxu0 %v4781
    %4811 = vmatprep.subr.mxu0 0.0
    %4812 = vmatpush1.msra.mxu0 0.0
    %4813 = vmatprep.subr.mxu0 0.0
    %4814 = vmatpush1.msra.mxu0 0.0
    %4815 = vmatprep.subr.mxu0 0.0
    %4816 = vmatpush1.msra.mxu0 0.0
    %4817 = vmatprep.subr.mxu0 0.0
    %4818 = vmatpush1.msra.mxu0 0.0
    %4819 = vmatprep.subr.mxu0 0.0
    %4820 = vmatpush1.msra.mxu0 0.0
    %4821 = vmatprep.subr.mxu0 0.0
    %4822 = vmatpush1.msra.mxu0 0.0
    %4823 = vmatprep.subr.mxu0 0.0
    %4824 = vmatpush1.msra.mxu0 0.0
    %4825 = vmatprep.subr.mxu0 0.0
    %4826 = vmatpush1.msra.mxu0 0.0
    %4827 = vmatprep.subr.mxu0 0.0
    %4828 = vmatpush1.msra.mxu0 0.0
    %4829 = vmatprep.subr.mxu0 0.0
    %4830 = vmatpush1.msra.mxu0 0.0
    %4831 = vmatprep.subr.mxu0 0.0
    %4832 = vmatpush1.msra.mxu0 0.0
    %4833 = vmatprep.subr.mxu0 0.0
    %4834 = vmatpush1.msra.mxu0 0.0
    %4835 = vmatprep.subr.mxu0 0.0
    %4836 = vmatpush1.msra.mxu0 0.0
    %4837 = vmatprep.subr.mxu0 0.0
    %4838 = vmatpush1.msra.mxu0 0.0
    %4839 = vmatprep.subr.mxu0 0.0
    %4840 = vmatpush1.msra.mxu0 0.0
    %4841 = vmatprep.subr.mxu0 0.0
    %4842 = vmatpush1.msra.mxu0 0.0
    %4843 = vmatprep.subr.mxu0 0.0
    %4844 = vmatpush1.msra.mxu0 0.0
    %4845 = vmatprep.subr.mxu0 0.0
    %4846 = vmatpush1.msra.mxu0 0.0
    %4847 = vmatprep.subr.mxu0 0.0
    %4848 = vmatpush1.msra.mxu0 0.0
    %4849 = vmatprep.subr.mxu0 0.0
    %4850 = vmatpush1.msra.mxu0 0.0
    %4851 = vmatprep.subr.mxu0 0.0
    %4852 = vmatpush1.msra.mxu0 0.0
    %4853 = vmatprep.subr.mxu0 0.0
    %4854 = vmatpush1.msra.mxu0 0.0
    %4855 = vmatprep.subr.mxu0 0.0
    %4856 = vmatpush1.msra.mxu0 0.0
    %4857 = vmatprep.subr.mxu0 0.0
    %4858 = vmatpush1.msra.mxu0 0.0
    %4859 = vmatprep.mubr.f32.mxu0 0.0
    %4860 = vmatmul.mubr.f32.gmra.mrb[0].mxu0 %v4790
    %v4861 = vpop.f32.mrb[0].mxu0
    %v4862 = vadd.f32 %v4787, %v4861
    %v4863 = vpop.f32.mrb[0].mxu0
    %4864 = vmatprep.mubr.f32.mxu0 0.0
    %4865 = vmatmul.mubr.f32.gmra.mrb[0].mxu0 %v4793
    %v4866 = vpop.f32.mrb[0].mxu0
    %v4867 = vadd.f32 %v4787, %v4866
    %v4868 = vpop.f32.mrb[0].mxu0
    %4869 = vdwg.mxu0
    %s4870 = scalar_lea.vmem [#allocation14], 64
    %v4871 = vld [vmem:[%s4870] sm:$0xff]
    %v4872 = vld [vmem:[%s4870 + $0x8] sm:$0xff]
    %v4873 = vld [vmem:[%s4870 + $0x10] sm:$0xff]
    %v4874 = vld [vmem:[%s4870 + $0x18] sm:$0xff]
    %v4875 = vld [vmem:[%s4870 + $0x20] sm:$0xff]
    %v4876 = vld [vmem:[%s4870 + $0x28] sm:$0xff]
    %v4877 = vld [vmem:[%s4870 + $0x30] sm:$0xff]
    %v4878 = vld [vmem:[%s4870 + $0x38] sm:$0xff]
    %s4879 = scalar_lea.vmem [#allocation17], 1
    %v4880 = vld [vmem:[%s4879] sm:$0x1]
    %v4882 = vlaneseq
    %v4883 = vshrl.u32 %v4882, 7
    %v4884 = vsub.s32 0, %v4883
    %v4885 = vrot.slane %v4880, %v4884
    %4887 = vmatprep.subr.mxu0 0.0
    %4888 = vmatpush1.msra.mxu0 %v4871
    %4889 = vmatprep.subr.mxu0 0.0
    %4890 = vmatpush1.msra.mxu0 %v4872
    %4891 = vmatprep.subr.mxu0 0.0
    %4892 = vmatpush1.msra.mxu0 %v4873
    %4893 = vmatprep.subr.mxu0 0.0
    %4894 = vmatpush1.msra.mxu0 %v4874
    %4895 = vmatprep.subr.mxu0 0.0
    %4896 = vmatpush1.msra.mxu0 %v4875
    %4897 = vmatprep.subr.mxu0 0.0
    %4898 = vmatpush1.msra.mxu0 %v4876
    %4899 = vmatprep.subr.mxu0 0.0
    %4900 = vmatpush1.msra.mxu0 %v4877
    %4901 = vmatprep.subr.mxu0 0.0
    %4902 = vmatpush1.msra.mxu0 %v4878
    %4903 = vmatprep.subr.mxu0 0.0
    %4904 = vmatpush1.msra.mxu0 0.0
    %4905 = vmatprep.subr.mxu0 0.0
    %4906 = vmatpush1.msra.mxu0 0.0
    %4907 = vmatprep.subr.mxu0 0.0
    %4908 = vmatpush1.msra.mxu0 0.0
    %4909 = vmatprep.subr.mxu0 0.0
    %4910 = vmatpush1.msra.mxu0 0.0
    %4911 = vmatprep.subr.mxu0 0.0
    %4912 = vmatpush1.msra.mxu0 0.0
    %4913 = vmatprep.subr.mxu0 0.0
    %4914 = vmatpush1.msra.mxu0 0.0
    %4915 = vmatprep.subr.mxu0 0.0
    %4916 = vmatpush1.msra.mxu0 0.0
    %4917 = vmatprep.subr.mxu0 0.0
    %4918 = vmatpush1.msra.mxu0 0.0
    %4919 = vmatprep.subr.mxu0 0.0
    %4920 = vmatpush1.msra.mxu0 0.0
    %4921 = vmatprep.subr.mxu0 0.0
    %4922 = vmatpush1.msra.mxu0 0.0
    %4923 = vmatprep.subr.mxu0 0.0
    %4924 = vmatpush1.msra.mxu0 0.0
    %4925 = vmatprep.subr.mxu0 0.0
    %4926 = vmatpush1.msra.mxu0 0.0
    %4927 = vmatprep.subr.mxu0 0.0
    %4928 = vmatpush1.msra.mxu0 0.0
    %4929 = vmatprep.subr.mxu0 0.0
    %4930 = vmatpush1.msra.mxu0 0.0
    %4931 = vmatprep.subr.mxu0 0.0
    %4932 = vmatpush1.msra.mxu0 0.0
    %4933 = vmatprep.subr.mxu0 0.0
    %4934 = vmatpush1.msra.mxu0 0.0
    %4935 = vmatprep.subr.mxu0 0.0
    %4936 = vmatpush1.msra.mxu0 0.0
    %4937 = vmatprep.subr.mxu0 0.0
    %4938 = vmatpush1.msra.mxu0 0.0
    %4939 = vmatprep.subr.mxu0 0.0
    %4940 = vmatpush1.msra.mxu0 0.0
    %4941 = vmatprep.subr.mxu0 0.0
    %4942 = vmatpush1.msra.mxu0 0.0
    %4943 = vmatprep.subr.mxu0 0.0
    %4944 = vmatpush1.msra.mxu0 0.0
    %4945 = vmatprep.subr.mxu0 0.0
    %4946 = vmatpush1.msra.mxu0 0.0
    %4947 = vmatprep.subr.mxu0 0.0
    %4948 = vmatpush1.msra.mxu0 0.0
    %4949 = vmatprep.subr.mxu0 0.0
    %4950 = vmatpush1.msra.mxu0 0.0
    %4951 = vmatprep.mubr.f32.mxu0 0.0
    %4952 = vmatmul.mubr.f32.gmra.mrb[0].mxu0 %v4790
    %v4953 = vpop.f32.mrb[0].mxu0
    %v4954 = vadd.f32 %v4885, %v4953
    %v4955 = vpop.f32.mrb[0].mxu0
    %4956 = vmatprep.mubr.f32.mxu0 0.0
    %4957 = vmatmul.mubr.f32.gmra.mrb[0].mxu0 %v4793
    %v4958 = vpop.f32.mrb[0].mxu0
    %v4959 = vadd.f32 %v4885, %v4958
    %v4960 = vpop.f32.mrb[0].mxu0
    %4961 = vdwg.mxu0
    %s4962 = scalar_lea.vmem [#allocation14], 128
    %v4963 = vld [vmem:[%s4962] sm:$0xff]
    %v4964 = vld [vmem:[%s4962 + $0x8] sm:$0xff]
    %v4965 = vld [vmem:[%s4962 + $0x10] sm:$0xff]
    %v4966 = vld [vmem:[%s4962 + $0x18] sm:$0xff]
    %v4967 = vld [vmem:[%s4962 + $0x20] sm:$0xff]
    %v4968 = vld [vmem:[%s4962 + $0x28] sm:$0xff]
    %v4969 = vld [vmem:[%s4962 + $0x30] sm:$0xff]
    %v4970 = vld [vmem:[%s4962 + $0x38] sm:$0xff]
    %s4971 = scalar_lea.vmem [#allocation17], 2
    %v4972 = vld [vmem:[%s4971] sm:$0x1]
    %v4974 = vlaneseq
    %v4975 = vshrl.u32 %v4974, 7
    %v4976 = vsub.s32 0, %v4975
    %v4977 = vrot.slane %v4972, %v4976
    %4979 = vmatprep.subr.mxu0 0.0
    %4980 = vmatpush1.msra.mxu0 %v4963
    %4981 = vmatprep.subr.mxu0 0.0
    %4982 = vmatpush1.msra.mxu0 %v4964
    %4983 = vmatprep.subr.mxu0 0.0
    %4984 = vmatpush1.msra.mxu0 %v4965
    %4985 = vmatprep.subr.mxu0 0.0
    %4986 = vmatpush1.msra.mxu0 %v4966
    %4987 = vmatprep.subr.mxu0 0.0
    %4988 = vmatpush1.msra.mxu0 %v4967
    %4989 = vmatprep.subr.mxu0 0.0
    %4990 = vmatpush1.msra.mxu0 %v4968
    %4991 = vmatprep.subr.mxu0 0.0
    %4992 = vmatpush1.msra.mxu0 %v4969
    %4993 = vmatprep.subr.mxu0 0.0
    %4994 = vmatpush1.msra.mxu0 %v4970
    %4995 = vmatprep.subr.mxu0 0.0
    %4996 = vmatpush1.msra.mxu0 0.0
    %4997 = vmatprep.subr.mxu0 0.0
    %4998 = vmatpush1.msra.mxu0 0.0
    %4999 = vmatprep.subr.mxu0 0.0
    %5000 = vmatpush1.msra.mxu0 0.0
    %5001 = vmatprep.subr.mxu0 0.0
    %5002 = vmatpush1.msra.mxu0 0.0
    %5003 = vmatprep.subr.mxu0 0.0
    %5004 = vmatpush1.msra.mxu0 0.0
    %5005 = vmatprep.subr.mxu0 0.0
    %5006 = vmatpush1.msra.mxu0 0.0
    %5007 = vmatprep.subr.mxu0 0.0
    %5008 = vmatpush1.msra.mxu0 0.0
    %5009 = vmatprep.subr.mxu0 0.0
    %5010 = vmatpush1.msra.mxu0 0.0
    %5011 = vmatprep.subr.mxu0 0.0
    %5012 = vmatpush1.msra.mxu0 0.0
    %5013 = vmatprep.subr.mxu0 0.0
    %5014 = vmatpush1.msra.mxu0 0.0
    %5015 = vmatprep.subr.mxu0 0.0
    %5016 = vmatpush1.msra.mxu0 0.0
    %5017 = vmatprep.subr.mxu0 0.0
    %5018 = vmatpush1.msra.mxu0 0.0
    %5019 = vmatprep.subr.mxu0 0.0
    %5020 = vmatpush1.msra.mxu0 0.0
    %5021 = vmatprep.subr.mxu0 0.0
    %5022 = vmatpush1.msra.mxu0 0.0
    %5023 = vmatprep.subr.mxu0 0.0
    %5024 = vmatpush1.msra.mxu0 0.0
    %5025 = vmatprep.subr.mxu0 0.0
    %5026 = vmatpush1.msra.mxu0 0.0
    %5027 = vmatprep.subr.mxu0 0.0
    %5028 = vmatpush1.msra.mxu0 0.0
    %5029 = vmatprep.subr.mxu0 0.0
    %5030 = vmatpush1.msra.mxu0 0.0
    %5031 = vmatprep.subr.mxu0 0.0
    %5032 = vmatpush1.msra.mxu0 0.0
    %5033 = vmatprep.subr.mxu0 0.0
    %5034 = vmatpush1.msra.mxu0 0.0
    %5035 = vmatprep.subr.mxu0 0.0
    %5036 = vmatpush1.msra.mxu0 0.0
    %5037 = vmatprep.subr.mxu0 0.0
    %5038 = vmatpush1.msra.mxu0 0.0
    %5039 = vmatprep.subr.mxu0 0.0
    %5040 = vmatpush1.msra.mxu0 0.0
    %5041 = vmatprep.subr.mxu0 0.0
    %5042 = vmatpush1.msra.mxu0 0.0
    %5043 = vmatprep.mubr.f32.mxu0 0.0
    %5044 = vmatmul.mubr.f32.gmra.mrb[0].mxu0 %v4790
    %v5045 = vpop.f32.mrb[0].mxu0
    %v5046 = vadd.f32 %v4977, %v5045
    %v5047 = vpop.f32.mrb[0].mxu0
    %5048 = vmatprep.mubr.f32.mxu0 0.0
    %5049 = vmatmul.mubr.f32.gmra.mrb[0].mxu0 %v4793
    %v5050 = vpop.f32.mrb[0].mxu0
    %v5051 = vadd.f32 %v4977, %v5050
    %v5052 = vpop.f32.mrb[0].mxu0
    %5053 = vdwg.mxu0
    %v5054 = vld [vmem:[#allocation16] sm:$0xff]
    %v5055 = vld [vmem:[#allocation16 + $0x8] sm:$0xff]
    %v5056 = vld [vmem:[#allocation16 + $0x10] sm:$0xff]
    %v5057 = vld [vmem:[#allocation16 + $0x18] sm:$0xff]
    %v5058 = vld [vmem:[#allocation16 + $0x20] sm:$0xff]
    %v5059 = vld [vmem:[#allocation16 + $0x28] sm:$0xff]
    %v5060 = vld [vmem:[#allocation16 + $0x30] sm:$0xff]
    %v5061 = vld [vmem:[#allocation16 + $0x38] sm:$0xff]
    %s5062 = scalar_lea.vmem [#allocation16], 64
    %v5063 = vld [vmem:[%s5062] sm:$0xff]
    %v5064 = vld [vmem:[%s5062 + $0x8] sm:$0xff]
    %v5065 = vld [vmem:[%s5062 + $0x10] sm:$0xff]
    %v5066 = vld [vmem:[%s5062 + $0x18] sm:$0xff]
    %v5067 = vld [vmem:[%s5062 + $0x20] sm:$0xff]
    %v5068 = vld [vmem:[%s5062 + $0x28] sm:$0xff]
    %v5069 = vld [vmem:[%s5062 + $0x30] sm:$0xff]
    %v5070 = vld [vmem:[%s5062 + $0x38] sm:$0xff]
    %s5071 = scalar_lea.vmem [#allocation16], 128
    %v5072 = vld [vmem:[%s5071] sm:$0xff]
    %v5073 = vld [vmem:[%s5071 + $0x8] sm:$0xff]
    %v5074 = vld [vmem:[%s5071 + $0x10] sm:$0xff]
    %v5075 = vld [vmem:[%s5071 + $0x18] sm:$0xff]
    %v5076 = vld [vmem:[%s5071 + $0x20] sm:$0xff]
    %v5077 = vld [vmem:[%s5071 + $0x28] sm:$0xff]
    %v5078 = vld [vmem:[%s5071 + $0x30] sm:$0xff]
    %v5079 = vld [vmem:[%s5071 + $0x38] sm:$0xff]
    %v5080 = vld [vmem:[#allocation19] sm:$0x1]
    %5081 = vmatprep.subr.mxu0 0.0
    %5082 = vmatpush1.msra.mxu0 %v5054
    %5083 = vmatprep.subr.mxu0 0.0
    %5084 = vmatpush1.msra.mxu0 %v5055
    %5085 = vmatprep.subr.mxu0 0.0
    %5086 = vmatpush1.msra.mxu0 %v5056
    %5087 = vmatprep.subr.mxu0 0.0
    %5088 = vmatpush1.msra.mxu0 %v5057
    %5089 = vmatprep.subr.mxu0 0.0
    %5090 = vmatpush1.msra.mxu0 %v5058
    %5091 = vmatprep.subr.mxu0 0.0
    %5092 = vmatpush1.msra.mxu0 %v5059
    %5093 = vmatprep.subr.mxu0 0.0
    %5094 = vmatpush1.msra.mxu0 %v5060
    %5095 = vmatprep.subr.mxu0 0.0
    %5096 = vmatpush1.msra.mxu0 %v5061
    %5097 = vmatprep.subr.mxu0 0.0
    %5098 = vmatpush1.msra.mxu0 0.0
    %5099 = vmatprep.subr.mxu0 0.0
    %5100 = vmatpush1.msra.mxu0 0.0
    %5101 = vmatprep.subr.mxu0 0.0
    %5102 = vmatpush1.msra.mxu0 0.0
    %5103 = vmatprep.subr.mxu0 0.0
    %5104 = vmatpush1.msra.mxu0 0.0
    %5105 = vmatprep.subr.mxu0 0.0
    %5106 = vmatpush1.msra.mxu0 0.0
    %5107 = vmatprep.subr.mxu0 0.0
    %5108 = vmatpush1.msra.mxu0 0.0
    %5109 = vmatprep.subr.mxu0 0.0
    %5110 = vmatpush1.msra.mxu0 0.0
    %5111 = vmatprep.subr.mxu0 0.0
    %5112 = vmatpush1.msra.mxu0 0.0
    %5113 = vmatprep.subr.mxu0 0.0
    %5114 = vmatpush1.msra.mxu0 0.0
    %5115 = vmatprep.subr.mxu0 0.0
    %5116 = vmatpush1.msra.mxu0 0.0
    %5117 = vmatprep.subr.mxu0 0.0
    %5118 = vmatpush1.msra.mxu0 0.0
    %5119 = vmatprep.subr.mxu0 0.0
    %5120 = vmatpush1.msra.mxu0 0.0
    %5121 = vmatprep.subr.mxu0 0.0
    %5122 = vmatpush1.msra.mxu0 0.0
    %5123 = vmatprep.subr.mxu0 0.0
    %5124 = vmatpush1.msra.mxu0 0.0
    %5125 = vmatprep.subr.mxu0 0.0
    %5126 = vmatpush1.msra.mxu0 0.0
    %5127 = vmatprep.subr.mxu0 0.0
    %5128 = vmatpush1.msra.mxu0 0.0
    %5129 = vmatprep.subr.mxu0 0.0
    %5130 = vmatpush1.msra.mxu0 0.0
    %5131 = vmatprep.subr.mxu0 0.0
    %5132 = vmatpush1.msra.mxu0 0.0
    %5133 = vmatprep.subr.mxu0 0.0
    %5134 = vmatpush1.msra.mxu0 0.0
    %5135 = vmatprep.subr.mxu0 0.0
    %5136 = vmatpush1.msra.mxu0 0.0
    %5137 = vmatprep.subr.mxu0 0.0
    %5138 = vmatpush1.msra.mxu0 0.0
    %5139 = vmatprep.subr.mxu0 0.0
    %5140 = vmatpush1.msra.mxu0 0.0
    %5141 = vmatprep.subr.mxu0 0.0
    %5142 = vmatpush1.msra.mxu0 0.0
    %5143 = vmatprep.subr.mxu0 0.0
    %5144 = vmatpush1.msra.mxu0 0.0
    %5145 = vmatprep.mubr.f32.mxu0 0.0
    %5146 = vmatmul.mubr.f32.gmra.mrb[0].mxu0 %v547
    %v5147 = vpop.f32.mrb[0].mxu0
    %v5148 = vadd.f32 0.0, %v5147
    %v5149 = vpop.f32.mrb[0].mxu0
    %5150 = vdwg.mxu0
    %5151 = vmatprep.subr.mxu0 0.0
    %5152 = vmatpush1.msra.mxu0 %v5063
    %5153 = vmatprep.subr.mxu0 0.0
    %5154 = vmatpush1.msra.mxu0 %v5064
    %5155 = vmatprep.subr.mxu0 0.0
    %5156 = vmatpush1.msra.mxu0 %v5065
    %5157 = vmatprep.subr.mxu0 0.0
    %5158 = vmatpush1.msra.mxu0 %v5066
    %5159 = vmatprep.subr.mxu0 0.0
    %5160 = vmatpush1.msra.mxu0 %v5067
    %5161 = vmatprep.subr.mxu0 0.0
    %5162 = vmatpush1.msra.mxu0 %v5068
    %5163 = vmatprep.subr.mxu0 0.0
    %5164 = vmatpush1.msra.mxu0 %v5069
    %5165 = vmatprep.subr.mxu0 0.0
    %5166 = vmatpush1.msra.mxu0 %v5070
    %5167 = vmatprep.subr.mxu0 0.0
    %5168 = vmatpush1.msra.mxu0 0.0
    %5169 = vmatprep.subr.mxu0 0.0
    %5170 = vmatpush1.msra.mxu0 0.0
    %5171 = vmatprep.subr.mxu0 0.0
    %5172 = vmatpush1.msra.mxu0 0.0
    %5173 = vmatprep.subr.mxu0 0.0
    %5174 = vmatpush1.msra.mxu0 0.0
    %5175 = vmatprep.subr.mxu0 0.0
    %5176 = vmatpush1.msra.mxu0 0.0
    %5177 = vmatprep.subr.mxu0 0.0
    %5178 = vmatpush1.msra.mxu0 0.0
    %5179 = vmatprep.subr.mxu0 0.0
    %5180 = vmatpush1.msra.mxu0 0.0
    %5181 = vmatprep.subr.mxu0 0.0
    %5182 = vmatpush1.msra.mxu0 0.0
    %5183 = vmatprep.subr.mxu0 0.0
    %5184 = vmatpush1.msra.mxu0 0.0
    %5185 = vmatprep.subr.mxu0 0.0
    %5186 = vmatpush1.msra.mxu0 0.0
    %5187 = vmatprep.subr.mxu0 0.0
    %5188 = vmatpush1.msra.mxu0 0.0
    %5189 = vmatprep.subr.mxu0 0.0
    %5190 = vmatpush1.msra.mxu0 0.0
    %5191 = vmatprep.subr.mxu0 0.0
    %5192 = vmatpush1.msra.mxu0 0.0
    %5193 = vmatprep.subr.mxu0 0.0
    %5194 = vmatpush1.msra.mxu0 0.0
    %5195 = vmatprep.subr.mxu0 0.0
    %5196 = vmatpush1.msra.mxu0 0.0
    %5197 = vmatprep.subr.mxu0 0.0
    %5198 = vmatpush1.msra.mxu0 0.0
    %5199 = vmatprep.subr.mxu0 0.0
    %5200 = vmatpush1.msra.mxu0 0.0
    %5201 = vmatprep.subr.mxu0 0.0
    %5202 = vmatpush1.msra.mxu0 0.0
    %5203 = vmatprep.subr.mxu0 0.0
    %5204 = vmatpush1.msra.mxu0 0.0
    %5205 = vmatprep.subr.mxu0 0.0
    %5206 = vmatpush1.msra.mxu0 0.0
    %5207 = vmatprep.subr.mxu0 0.0
    %5208 = vmatpush1.msra.mxu0 0.0
    %5209 = vmatprep.subr.mxu0 0.0
    %5210 = vmatpush1.msra.mxu0 0.0
    %5211 = vmatprep.subr.mxu0 0.0
    %5212 = vmatpush1.msra.mxu0 0.0
    %5213 = vmatprep.subr.mxu0 0.0
    %5214 = vmatpush1.msra.mxu0 0.0
    %5215 = vmatprep.mubr.f32.mxu0 0.0
    %5216 = vmatmul.mubr.f32.gmra.mrb[0].mxu0 %v547
    %v5217 = vpop.f32.mrb[0].mxu0
    %v5218 = vadd.f32 0.0, %v5217
    %v5219 = vpop.f32.mrb[0].mxu0
    %5220 = vdwg.mxu0
    %v5222 = vlaneseq
    %v5223 = vshrl.u32 %v5222, 7
    %v5224 = vsub.s32 0, %v5223
    %v5225 = vrot.slane %v5080, %v5224
    %5227 = vmatprep.subr.mxu0 0.0
    %5228 = vmatpush1.msra.mxu0 %v5072
    %5229 = vmatprep.subr.mxu0 0.0
    %5230 = vmatpush1.msra.mxu0 %v5073
    %5231 = vmatprep.subr.mxu0 0.0
    %5232 = vmatpush1.msra.mxu0 %v5074
    %5233 = vmatprep.subr.mxu0 0.0
    %5234 = vmatpush1.msra.mxu0 %v5075
    %5235 = vmatprep.subr.mxu0 0.0
    %5236 = vmatpush1.msra.mxu0 %v5076
    %5237 = vmatprep.subr.mxu0 0.0
    %5238 = vmatpush1.msra.mxu0 %v5077
    %5239 = vmatprep.subr.mxu0 0.0
    %5240 = vmatpush1.msra.mxu0 %v5078
    %5241 = vmatprep.subr.mxu0 0.0
    %5242 = vmatpush1.msra.mxu0 %v5079
    %5243 = vmatprep.subr.mxu0 0.0
    %5244 = vmatpush1.msra.mxu0 0.0
    %5245 = vmatprep.subr.mxu0 0.0
    %5246 = vmatpush1.msra.mxu0 0.0
    %5247 = vmatprep.subr.mxu0 0.0
    %5248 = vmatpush1.msra.mxu0 0.0
    %5249 = vmatprep.subr.mxu0 0.0
    %5250 = vmatpush1.msra.mxu0 0.0
    %5251 = vmatprep.subr.mxu0 0.0
    %5252 = vmatpush1.msra.mxu0 0.0
    %5253 = vmatprep.subr.mxu0 0.0
    %5254 = vmatpush1.msra.mxu0 0.0
    %5255 = vmatprep.subr.mxu0 0.0
    %5256 = vmatpush1.msra.mxu0 0.0
    %5257 = vmatprep.subr.mxu0 0.0
    %5258 = vmatpush1.msra.mxu0 0.0
    %5259 = vmatprep.subr.mxu0 0.0
    %5260 = vmatpush1.msra.mxu0 0.0
    %5261 = vmatprep.subr.mxu0 0.0
    %5262 = vmatpush1.msra.mxu0 0.0
    %5263 = vmatprep.subr.mxu0 0.0
    %5264 = vmatpush1.msra.mxu0 0.0
    %5265 = vmatprep.subr.mxu0 0.0
    %5266 = vmatpush1.msra.mxu0 0.0
    %5267 = vmatprep.subr.mxu0 0.0
    %5268 = vmatpush1.msra.mxu0 0.0
    %5269 = vmatprep.subr.mxu0 0.0
    %5270 = vmatpush1.msra.mxu0 0.0
    %5271 = vmatprep.subr.mxu0 0.0
    %5272 = vmatpush1.msra.mxu0 0.0
    %5273 = vmatprep.subr.mxu0 0.0
    %5274 = vmatpush1.msra.mxu0 0.0
    %5275 = vmatprep.subr.mxu0 0.0
    %5276 = vmatpush1.msra.mxu0 0.0
    %5277 = vmatprep.subr.mxu0 0.0
    %5278 = vmatpush1.msra.mxu0 0.0
    %5279 = vmatprep.subr.mxu0 0.0
    %5280 = vmatpush1.msra.mxu0 0.0
    %5281 = vmatprep.subr.mxu0 0.0
    %5282 = vmatpush1.msra.mxu0 0.0
    %5283 = vmatprep.subr.mxu0 0.0
    %5284 = vmatpush1.msra.mxu0 0.0
    %5285 = vmatprep.subr.mxu0 0.0
    %5286 = vmatpush1.msra.mxu0 0.0
    %5287 = vmatprep.subr.mxu0 0.0
    %5288 = vmatpush1.msra.mxu0 0.0
    %5289 = vmatprep.subr.mxu0 0.0
    %5290 = vmatpush1.msra.mxu0 0.0
    %5291 = vmatprep.mubr.f32.mxu0 0.0
    %5292 = vmatmul.mubr.f32.gmra.mrb[0].mxu0 %v547
    %v5293 = vpop.f32.mrb[0].mxu0
    %v5294 = vadd.f32 %v5225, %v5293
    %v5295 = vpop.f32.mrb[0].mxu0
    %5296 = vdwg.mxu0
    %v5297 = vadd.f32 %v4862, %v5148
    %v5298 = vxor.u32 %v5297, 2147483648
    %v5299 = vmul.f32 %v5298, 1.442695
    %v5300 = vpow.pop %v5299
    %v5301 = vadd.f32 %v5300, 1.0
    %v5302 = vrcp.pop %v5301
    %v5303 = vmul.f32 1.0, %v5302
    %v5304 = vadd.f32 %v4954, %v5218
    %v5305 = vxor.u32 %v5304, 2147483648
    %v5306 = vmul.f32 %v5305, 1.442695
    %v5307 = vpow.pop %v5306
    %v5308 = vadd.f32 %v5307, 1.0
    %v5309 = vrcp.pop %v5308
    %v5310 = vmul.f32 1.0, %v5309
    %v5311 = vmul.f32 %v5303, %v5294
    %v5312 = vadd.f32 %v5046, %v5311
    %v5313 = vtanh.pop %v5312
    %v5314 = vsub.f32 1.0, %v5310
    %v5315 = vmul.f32 %v5314, %v5313
    %v5316 = vmul.f32 %v5310, 0.0
    %v5317 = vadd.f32 %v5315, %v5316
    %5318 = vst.msk [vmem:[#allocation2] sm:$0x3] %vm786, %v5317
    %v5320 = vsel %vm545, %v5317, 0
    %5322 = vmatprep.subr.mxu0 0.0
    %5323 = vmatpush1.msra.mxu0 %v5054
    %5324 = vmatprep.subr.mxu0 0.0
    %5325 = vmatpush1.msra.mxu0 %v5055
    %5326 = vmatprep.subr.mxu0 0.0
    %5327 = vmatpush1.msra.mxu0 %v5056
    %5328 = vmatprep.subr.mxu0 0.0
    %5329 = vmatpush1.msra.mxu0 %v5057
    %5330 = vmatprep.subr.mxu0 0.0
    %5331 = vmatpush1.msra.mxu0 %v5058
    %5332 = vmatprep.subr.mxu0 0.0
    %5333 = vmatpush1.msra.mxu0 %v5059
    %5334 = vmatprep.subr.mxu0 0.0
    %5335 = vmatpush1.msra.mxu0 %v5060
    %5336 = vmatprep.subr.mxu0 0.0
    %5337 = vmatpush1.msra.mxu0 %v5061
    %5338 = vmatprep.subr.mxu0 0.0
    %5339 = vmatpush1.msra.mxu0 0.0
    %5340 = vmatprep.subr.mxu0 0.0
    %5341 = vmatpush1.msra.mxu0 0.0
    %5342 = vmatprep.subr.mxu0 0.0
    %5343 = vmatpush1.msra.mxu0 0.0
    %5344 = vmatprep.subr.mxu0 0.0
    %5345 = vmatpush1.msra.mxu0 0.0
    %5346 = vmatprep.subr.mxu0 0.0
    %5347 = vmatpush1.msra.mxu0 0.0
    %5348 = vmatprep.subr.mxu0 0.0
    %5349 = vmatpush1.msra.mxu0 0.0
    %5350 = vmatprep.subr.mxu0 0.0
    %5351 = vmatpush1.msra.mxu0 0.0
    %5352 = vmatprep.subr.mxu0 0.0
    %5353 = vmatpush1.msra.mxu0 0.0
    %5354 = vmatprep.subr.mxu0 0.0
    %5355 = vmatpush1.msra.mxu0 0.0
    %5356 = vmatprep.subr.mxu0 0.0
    %5357 = vmatpush1.msra.mxu0 0.0
    %5358 = vmatprep.subr.mxu0 0.0
    %5359 = vmatpush1.msra.mxu0 0.0
    %5360 = vmatprep.subr.mxu0 0.0
    %5361 = vmatpush1.msra.mxu0 0.0
    %5362 = vmatprep.subr.mxu0 0.0
    %5363 = vmatpush1.msra.mxu0 0.0
    %5364 = vmatprep.subr.mxu0 0.0
    %5365 = vmatpush1.msra.mxu0 0.0
    %5366 = vmatprep.subr.mxu0 0.0
    %5367 = vmatpush1.msra.mxu0 0.0
    %5368 = vmatprep.subr.mxu0 0.0
    %5369 = vmatpush1.msra.mxu0 0.0
    %5370 = vmatprep.subr.mxu0 0.0
    %5371 = vmatpush1.msra.mxu0 0.0
    %5372 = vmatprep.subr.mxu0 0.0
    %5373 = vmatpush1.msra.mxu0 0.0
    %5374 = vmatprep.subr.mxu0 0.0
    %5375 = vmatpush1.msra.mxu0 0.0
    %5376 = vmatprep.subr.mxu0 0.0
    %5377 = vmatpush1.msra.mxu0 0.0
    %5378 = vmatprep.subr.mxu0 0.0
    %5379 = vmatpush1.msra.mxu0 0.0
    %5380 = vmatprep.subr.mxu0 0.0
    %5381 = vmatpush1.msra.mxu0 0.0
    %5382 = vmatprep.subr.mxu0 0.0
    %5383 = vmatpush1.msra.mxu0 0.0
    %5384 = vmatprep.subr.mxu0 0.0
    %5385 = vmatpush1.msra.mxu0 0.0
    %5386 = vmatprep.mubr.f32.mxu0 0.0
    %5387 = vmatmul.mubr.f32.gmra.mrb[0].mxu0 %v5320
    %v5388 = vpop.f32.mrb[0].mxu0
    %v5389 = vadd.f32 0.0, %v5388
    %v5390 = vpop.f32.mrb[0].mxu0
    %5391 = vdwg.mxu0
    %5392 = vmatprep.subr.mxu0 0.0
    %5393 = vmatpush1.msra.mxu0 %v5063
    %5394 = vmatprep.subr.mxu0 0.0
    %5395 = vmatpush1.msra.mxu0 %v5064
    %5396 = vmatprep.subr.mxu0 0.0
    %5397 = vmatpush1.msra.mxu0 %v5065
    %5398 = vmatprep.subr.mxu0 0.0
    %5399 = vmatpush1.msra.mxu0 %v5066
    %5400 = vmatprep.subr.mxu0 0.0
    %5401 = vmatpush1.msra.mxu0 %v5067
    %5402 = vmatprep.subr.mxu0 0.0
    %5403 = vmatpush1.msra.mxu0 %v5068
    %5404 = vmatprep.subr.mxu0 0.0
    %5405 = vmatpush1.msra.mxu0 %v5069
    %5406 = vmatprep.subr.mxu0 0.0
    %5407 = vmatpush1.msra.mxu0 %v5070
    %5408 = vmatprep.subr.mxu0 0.0
    %5409 = vmatpush1.msra.mxu0 0.0
    %5410 = vmatprep.subr.mxu0 0.0
    %5411 = vmatpush1.msra.mxu0 0.0
    %5412 = vmatprep.subr.mxu0 0.0
    %5413 = vmatpush1.msra.mxu0 0.0
    %5414 = vmatprep.subr.mxu0 0.0
    %5415 = vmatpush1.msra.mxu0 0.0
    %5416 = vmatprep.subr.mxu0 0.0
    %5417 = vmatpush1.msra.mxu0 0.0
    %5418 = vmatprep.subr.mxu0 0.0
    %5419 = vmatpush1.msra.mxu0 0.0
    %5420 = vmatprep.subr.mxu0 0.0
    %5421 = vmatpush1.msra.mxu0 0.0
    %5422 = vmatprep.subr.mxu0 0.0
    %5423 = vmatpush1.msra.mxu0 0.0
    %5424 = vmatprep.subr.mxu0 0.0
    %5425 = vmatpush1.msra.mxu0 0.0
    %5426 = vmatprep.subr.mxu0 0.0
    %5427 = vmatpush1.msra.mxu0 0.0
    %5428 = vmatprep.subr.mxu0 0.0
    %5429 = vmatpush1.msra.mxu0 0.0
    %5430 = vmatprep.subr.mxu0 0.0
    %5431 = vmatpush1.msra.mxu0 0.0
    %5432 = vmatprep.subr.mxu0 0.0
    %5433 = vmatpush1.msra.mxu0 0.0
    %5434 = vmatprep.subr.mxu0 0.0
    %5435 = vmatpush1.msra.mxu0 0.0
    %5436 = vmatprep.subr.mxu0 0.0
    %5437 = vmatpush1.msra.mxu0 0.0
    %5438 = vmatprep.subr.mxu0 0.0
    %5439 = vmatpush1.msra.mxu0 0.0
    %5440 = vmatprep.subr.mxu0 0.0
    %5441 = vmatpush1.msra.mxu0 0.0
    %5442 = vmatprep.subr.mxu0 0.0
    %5443 = vmatpush1.msra.mxu0 0.0
    %5444 = vmatprep.subr.mxu0 0.0
    %5445 = vmatpush1.msra.mxu0 0.0
    %5446 = vmatprep.subr.mxu0 0.0
    %5447 = vmatpush1.msra.mxu0 0.0
    %5448 = vmatprep.subr.mxu0 0.0
    %5449 = vmatpush1.msra.mxu0 0.0
    %5450 = vmatprep.subr.mxu0 0.0
    %5451 = vmatpush1.msra.mxu0 0.0
    %5452 = vmatprep.subr.mxu0 0.0
    %5453 = vmatpush1.msra.mxu0 0.0
    %5454 = vmatprep.subr.mxu0 0.0
    %5455 = vmatpush1.msra.mxu0 0.0
    %5456 = vmatprep.mubr.f32.mxu0 0.0
    %5457 = vmatmul.mubr.f32.gmra.mrb[0].mxu0 %v5320
    %v5458 = vpop.f32.mrb[0].mxu0
    %v5459 = vadd.f32 0.0, %v5458
    %v5460 = vpop.f32.mrb[0].mxu0
    %5461 = vdwg.mxu0
    %5462 = vmatprep.subr.mxu0 0.0
    %5463 = vmatpush1.msra.mxu0 %v5072
    %5464 = vmatprep.subr.mxu0 0.0
    %5465 = vmatpush1.msra.mxu0 %v5073
    %5466 = vmatprep.subr.mxu0 0.0
    %5467 = vmatpush1.msra.mxu0 %v5074
    %5468 = vmatprep.subr.mxu0 0.0
    %5469 = vmatpush1.msra.mxu0 %v5075
    %5470 = vmatprep.subr.mxu0 0.0
    %5471 = vmatpush1.msra.mxu0 %v5076
    %5472 = vmatprep.subr.mxu0 0.0
    %5473 = vmatpush1.msra.mxu0 %v5077
    %5474 = vmatprep.subr.mxu0 0.0
    %5475 = vmatpush1.msra.mxu0 %v5078
    %5476 = vmatprep.subr.mxu0 0.0
    %5477 = vmatpush1.msra.mxu0 %v5079
    %5478 = vmatprep.subr.mxu0 0.0
    %5479 = vmatpush1.msra.mxu0 0.0
    %5480 = vmatprep.subr.mxu0 0.0
    %5481 = vmatpush1.msra.mxu0 0.0
    %5482 = vmatprep.subr.mxu0 0.0
    %5483 = vmatpush1.msra.mxu0 0.0
    %5484 = vmatprep.subr.mxu0 0.0
    %5485 = vmatpush1.msra.mxu0 0.0
    %5486 = vmatprep.subr.mxu0 0.0
    %5487 = vmatpush1.msra.mxu0 0.0
    %5488 = vmatprep.subr.mxu0 0.0
    %5489 = vmatpush1.msra.mxu0 0.0
    %5490 = vmatprep.subr.mxu0 0.0
    %5491 = vmatpush1.msra.mxu0 0.0
    %5492 = vmatprep.subr.mxu0 0.0
    %5493 = vmatpush1.msra.mxu0 0.0
    %5494 = vmatprep.subr.mxu0 0.0
    %5495 = vmatpush1.msra.mxu0 0.0
    %5496 = vmatprep.subr.mxu0 0.0
    %5497 = vmatpush1.msra.mxu0 0.0
    %5498 = vmatprep.subr.mxu0 0.0
    %5499 = vmatpush1.msra.mxu0 0.0
    %5500 = vmatprep.subr.mxu0 0.0
    %5501 = vmatpush1.msra.mxu0 0.0
    %5502 = vmatprep.subr.mxu0 0.0
    %5503 = vmatpush1.msra.mxu0 0.0
    %5504 = vmatprep.subr.mxu0 0.0
    %5505 = vmatpush1.msra.mxu0 0.0
    %5506 = vmatprep.subr.mxu0 0.0
    %5507 = vmatpush1.msra.mxu0 0.0
    %5508 = vmatprep.subr.mxu0 0.0
    %5509 = vmatpush1.msra.mxu0 0.0
    %5510 = vmatprep.subr.mxu0 0.0
    %5511 = vmatpush1.msra.mxu0 0.0
    %5512 = vmatprep.subr.mxu0 0.0
    %5513 = vmatpush1.msra.mxu0 0.0
    %5514 = vmatprep.subr.mxu0 0.0
    %5515 = vmatpush1.msra.mxu0 0.0
    %5516 = vmatprep.subr.mxu0 0.0
    %5517 = vmatpush1.msra.mxu0 0.0
    %5518 = vmatprep.subr.mxu0 0.0
    %5519 = vmatpush1.msra.mxu0 0.0
    %5520 = vmatprep.subr.mxu0 0.0
    %5521 = vmatpush1.msra.mxu0 0.0
    %5522 = vmatprep.subr.mxu0 0.0
    %5523 = vmatpush1.msra.mxu0 0.0
    %5524 = vmatprep.subr.mxu0 0.0
    %5525 = vmatpush1.msra.mxu0 0.0
    %5526 = vmatprep.mubr.f32.mxu0 0.0
    %5527 = vmatmul.mubr.f32.gmra.mrb[0].mxu0 %v5320
    %v5528 = vpop.f32.mrb[0].mxu0
    %v5529 = vadd.f32 %v5225, %v5528
    %v5530 = vpop.f32.mrb[0].mxu0
    %5531 = vdwg.mxu0
    %v5533 = vrot.slane %v5389, 6
    %v5535 = vadd.f32 %v4862, %v5533
    %v5536 = vxor.u32 %v5535, 2147483648
    %v5537 = vmul.f32 %v5536, 1.442695
    %v5538 = vpow.pop %v5537
    %v5539 = vadd.f32 %v5538, 1.0
    %v5540 = vrcp.pop %v5539
    %v5541 = vmul.f32 1.0, %v5540
    %v5543 = vrot.slane %v5459, 6
    %v5545 = vadd.f32 %v4954, %v5543
    %v5546 = vxor.u32 %v5545, 2147483648
    %v5547 = vmul.f32 %v5546, 1.442695
    %v5548 = vpow.pop %v5547
    %v5549 = vadd.f32 %v5548, 1.0
    %v5550 = vrcp.pop %v5549
    %v5551 = vmul.f32 1.0, %v5550
    %v5553 = vrot.slane %v5529, 6
    %v5555 = vmul.f32 %v5541, %v5553
    %v5556 = vadd.f32 %v5046, %v5555
    %v5557 = vtanh.pop %v5556
    %v5558 = vsub.f32 1.0, %v5551
    %v5559 = vmul.f32 %v5558, %v5557
    %v5560 = vrot.slane %v5317, 6
    %v5562 = vmul.f32 %v5551, %v5560
    %v5563 = vadd.f32 %v5559, %v5562
    %5564 = vst.msk [vmem:[#allocation2] sm:$0xc] %vm1033, %v5563
    %v5566 = vrot.slane %v5563, 2
    %v5567 = vsel %vm545, %v5566, 0
    %5569 = vmatprep.subr.mxu0 0.0
    %5570 = vmatpush1.msra.mxu0 %v5054
    %5571 = vmatprep.subr.mxu0 0.0
    %5572 = vmatpush1.msra.mxu0 %v5055
    %5573 = vmatprep.subr.mxu0 0.0
    %5574 = vmatpush1.msra.mxu0 %v5056
    %5575 = vmatprep.subr.mxu0 0.0
    %5576 = vmatpush1.msra.mxu0 %v5057
    %5577 = vmatprep.subr.mxu0 0.0
    %5578 = vmatpush1.msra.mxu0 %v5058
    %5579 = vmatprep.subr.mxu0 0.0
    %5580 = vmatpush1.msra.mxu0 %v5059
    %5581 = vmatprep.subr.mxu0 0.0
    %5582 = vmatpush1.msra.mxu0 %v5060
    %5583 = vmatprep.subr.mxu0 0.0
    %5584 = vmatpush1.msra.mxu0 %v5061
    %5585 = vmatprep.subr.mxu0 0.0
    %5586 = vmatpush1.msra.mxu0 0.0
    %5587 = vmatprep.subr.mxu0 0.0
    %5588 = vmatpush1.msra.mxu0 0.0
    %5589 = vmatprep.subr.mxu0 0.0
    %5590 = vmatpush1.msra.mxu0 0.0
    %5591 = vmatprep.subr.mxu0 0.0
    %5592 = vmatpush1.msra.mxu0 0.0
    %5593 = vmatprep.subr.mxu0 0.0
    %5594 = vmatpush1.msra.mxu0 0.0
    %5595 = vmatprep.subr.mxu0 0.0
    %5596 = vmatpush1.msra.mxu0 0.0
    %5597 = vmatprep.subr.mxu0 0.0
    %5598 = vmatpush1.msra.mxu0 0.0
    %5599 = vmatprep.subr.mxu0 0.0
    %5600 = vmatpush1.msra.mxu0 0.0
    %5601 = vmatprep.subr.mxu0 0.0
    %5602 = vmatpush1.msra.mxu0 0.0
    %5603 = vmatprep.subr.mxu0 0.0
    %5604 = vmatpush1.msra.mxu0 0.0
    %5605 = vmatprep.subr.mxu0 0.0
    %5606 = vmatpush1.msra.mxu0 0.0
    %5607 = vmatprep.subr.mxu0 0.0
    %5608 = vmatpush1.msra.mxu0 0.0
    %5609 = vmatprep.subr.mxu0 0.0
    %5610 = vmatpush1.msra.mxu0 0.0
    %5611 = vmatprep.subr.mxu0 0.0
    %5612 = vmatpush1.msra.mxu0 0.0
    %5613 = vmatprep.subr.mxu0 0.0
    %5614 = vmatpush1.msra.mxu0 0.0
    %5615 = vmatprep.subr.mxu0 0.0
    %5616 = vmatpush1.msra.mxu0 0.0
    %5617 = vmatprep.subr.mxu0 0.0
    %5618 = vmatpush1.msra.mxu0 0.0
    %5619 = vmatprep.subr.mxu0 0.0
    %5620 = vmatpush1.msra.mxu0 0.0
    %5621 = vmatprep.subr.mxu0 0.0
    %5622 = vmatpush1.msra.mxu0 0.0
    %5623 = vmatprep.subr.mxu0 0.0
    %5624 = vmatpush1.msra.mxu0 0.0
    %5625 = vmatprep.subr.mxu0 0.0
    %5626 = vmatpush1.msra.mxu0 0.0
    %5627 = vmatprep.subr.mxu0 0.0
    %5628 = vmatpush1.msra.mxu0 0.0
    %5629 = vmatprep.subr.mxu0 0.0
    %5630 = vmatpush1.msra.mxu0 0.0
    %5631 = vmatprep.subr.mxu0 0.0
    %5632 = vmatpush1.msra.mxu0 0.0
    %5633 = vmatprep.mubr.f32.mxu0 0.0
    %5634 = vmatmul.mubr.f32.gmra.mrb[0].mxu0 %v5567
    %v5635 = vpop.f32.mrb[0].mxu0
    %v5636 = vadd.f32 0.0, %v5635
    %v5637 = vpop.f32.mrb[0].mxu0
    %5638 = vdwg.mxu0
    %5639 = vmatprep.subr.mxu0 0.0
    %5640 = vmatpush1.msra.mxu0 %v5063
    %5641 = vmatprep.subr.mxu0 0.0
    %5642 = vmatpush1.msra.mxu0 %v5064
    %5643 = vmatprep.subr.mxu0 0.0
    %5644 = vmatpush1.msra.mxu0 %v5065
    %5645 = vmatprep.subr.mxu0 0.0
    %5646 = vmatpush1.msra.mxu0 %v5066
    %5647 = vmatprep.subr.mxu0 0.0
    %5648 = vmatpush1.msra.mxu0 %v5067
    %5649 = vmatprep.subr.mxu0 0.0
    %5650 = vmatpush1.msra.mxu0 %v5068
    %5651 = vmatprep.subr.mxu0 0.0
    %5652 = vmatpush1.msra.mxu0 %v5069
    %5653 = vmatprep.subr.mxu0 0.0
    %5654 = vmatpush1.msra.mxu0 %v5070
    %5655 = vmatprep.subr.mxu0 0.0
    %5656 = vmatpush1.msra.mxu0 0.0
    %5657 = vmatprep.subr.mxu0 0.0
    %5658 = vmatpush1.msra.mxu0 0.0
    %5659 = vmatprep.subr.mxu0 0.0
    %5660 = vmatpush1.msra.mxu0 0.0
    %5661 = vmatprep.subr.mxu0 0.0
    %5662 = vmatpush1.msra.mxu0 0.0
    %5663 = vmatprep.subr.mxu0 0.0
    %5664 = vmatpush1.msra.mxu0 0.0
    %5665 = vmatprep.subr.mxu0 0.0
    %5666 = vmatpush1.msra.mxu0 0.0
    %5667 = vmatprep.subr.mxu0 0.0
    %5668 = vmatpush1.msra.mxu0 0.0
    %5669 = vmatprep.subr.mxu0 0.0
    %5670 = vmatpush1.msra.mxu0 0.0
    %5671 = vmatprep.subr.mxu0 0.0
    %5672 = vmatpush1.msra.mxu0 0.0
    %5673 = vmatprep.subr.mxu0 0.0
    %5674 = vmatpush1.msra.mxu0 0.0
    %5675 = vmatprep.subr.mxu0 0.0
    %5676 = vmatpush1.msra.mxu0 0.0
    %5677 = vmatprep.subr.mxu0 0.0
    %5678 = vmatpush1.msra.mxu0 0.0
    %5679 = vmatprep.subr.mxu0 0.0
    %5680 = vmatpush1.msra.mxu0 0.0
    %5681 = vmatprep.subr.mxu0 0.0
    %5682 = vmatpush1.msra.mxu0 0.0
    %5683 = vmatprep.subr.mxu0 0.0
    %5684 = vmatpush1.msra.mxu0 0.0
    %5685 = vmatprep.subr.mxu0 0.0
    %5686 = vmatpush1.msra.mxu0 0.0
    %5687 = vmatprep.subr.mxu0 0.0
    %5688 = vmatpush1.msra.mxu0 0.0
    %5689 = vmatprep.subr.mxu0 0.0
    %5690 = vmatpush1.msra.mxu0 0.0
    %5691 = vmatprep.subr.mxu0 0.0
    %5692 = vmatpush1.msra.mxu0 0.0
    %5693 = vmatprep.subr.mxu0 0.0
    %5694 = vmatpush1.msra.mxu0 0.0
    %5695 = vmatprep.subr.mxu0 0.0
    %5696 = vmatpush1.msra.mxu0 0.0
    %5697 = vmatprep.subr.mxu0 0.0
    %5698 = vmatpush1.msra.mxu0 0.0
    %5699 = vmatprep.subr.mxu0 0.0
    %5700 = vmatpush1.msra.mxu0 0.0
    %5701 = vmatprep.subr.mxu0 0.0
    %5702 = vmatpush1.msra.mxu0 0.0
    %5703 = vmatprep.mubr.f32.mxu0 0.0
    %5704 = vmatmul.mubr.f32.gmra.mrb[0].mxu0 %v5567
    %v5705 = vpop.f32.mrb[0].mxu0
    %v5706 = vadd.f32 0.0, %v5705
    %v5707 = vpop.f32.mrb[0].mxu0
    %5708 = vdwg.mxu0
    %5709 = vmatprep.subr.mxu0 0.0
    %5710 = vmatpush1.msra.mxu0 %v5072
    %5711 = vmatprep.subr.mxu0 0.0
    %5712 = vmatpush1.msra.mxu0 %v5073
    %5713 = vmatprep.subr.mxu0 0.0
    %5714 = vmatpush1.msra.mxu0 %v5074
    %5715 = vmatprep.subr.mxu0 0.0
    %5716 = vmatpush1.msra.mxu0 %v5075
    %5717 = vmatprep.subr.mxu0 0.0
    %5718 = vmatpush1.msra.mxu0 %v5076
    %5719 = vmatprep.subr.mxu0 0.0
    %5720 = vmatpush1.msra.mxu0 %v5077
    %5721 = vmatprep.subr.mxu0 0.0
    %5722 = vmatpush1.msra.mxu0 %v5078
    %5723 = vmatprep.subr.mxu0 0.0
    %5724 = vmatpush1.msra.mxu0 %v5079
    %5725 = vmatprep.subr.mxu0 0.0
    %5726 = vmatpush1.msra.mxu0 0.0
    %5727 = vmatprep.subr.mxu0 0.0
    %5728 = vmatpush1.msra.mxu0 0.0
    %5729 = vmatprep.subr.mxu0 0.0
    %5730 = vmatpush1.msra.mxu0 0.0
    %5731 = vmatprep.subr.mxu0 0.0
    %5732 = vmatpush1.msra.mxu0 0.0
    %5733 = vmatprep.subr.mxu0 0.0
    %5734 = vmatpush1.msra.mxu0 0.0
    %5735 = vmatprep.subr.mxu0 0.0
    %5736 = vmatpush1.msra.mxu0 0.0
    %5737 = vmatprep.subr.mxu0 0.0
    %5738 = vmatpush1.msra.mxu0 0.0
    %5739 = vmatprep.subr.mxu0 0.0
    %5740 = vmatpush1.msra.mxu0 0.0
    %5741 = vmatprep.subr.mxu0 0.0
    %5742 = vmatpush1.msra.mxu0 0.0
    %5743 = vmatprep.subr.mxu0 0.0
    %5744 = vmatpush1.msra.mxu0 0.0
    %5745 = vmatprep.subr.mxu0 0.0
    %5746 = vmatpush1.msra.mxu0 0.0
    %5747 = vmatprep.subr.mxu0 0.0
    %5748 = vmatpush1.msra.mxu0 0.0
    %5749 = vmatprep.subr.mxu0 0.0
    %5750 = vmatpush1.msra.mxu0 0.0
    %5751 = vmatprep.subr.mxu0 0.0
    %5752 = vmatpush1.msra.mxu0 0.0
    %5753 = vmatprep.subr.mxu0 0.0
    %5754 = vmatpush1.msra.mxu0 0.0
    %5755 = vmatprep.subr.mxu0 0.0
    %5756 = vmatpush1.msra.mxu0 0.0
    %5757 = vmatprep.subr.mxu0 0.0
    %5758 = vmatpush1.msra.mxu0 0.0
    %5759 = vmatprep.subr.mxu0 0.0
    %5760 = vmatpush1.msra.mxu0 0.0
    %5761 = vmatprep.subr.mxu0 0.0
    %5762 = vmatpush1.msra.mxu0 0.0
    %5763 = vmatprep.subr.mxu0 0.0
    %5764 = vmatpush1.msra.mxu0 0.0
    %5765 = vmatprep.subr.mxu0 0.0
    %5766 = vmatpush1.msra.mxu0 0.0
    %5767 = vmatprep.subr.mxu0 0.0
    %5768 = vmatpush1.msra.mxu0 0.0
    %5769 = vmatprep.subr.mxu0 0.0
    %5770 = vmatpush1.msra.mxu0 0.0
    %5771 = vmatprep.subr.mxu0 0.0
    %5772 = vmatpush1.msra.mxu0 0.0
    %5773 = vmatprep.mubr.f32.mxu0 0.0
    %5774 = vmatmul.mubr.f32.gmra.mrb[0].mxu0 %v5567
    %v5775 = vpop.f32.mrb[0].mxu0
    %v5776 = vadd.f32 %v5225, %v5775
    %v5777 = vpop.f32.mrb[0].mxu0
    %5778 = vdwg.mxu0
    %v5780 = vrot.slane %v5636, 4
    %v5782 = vadd.f32 %v4862, %v5780
    %v5783 = vxor.u32 %v5782, 2147483648
    %v5784 = vmul.f32 %v5783, 1.442695
    %v5785 = vpow.pop %v5784
    %v5786 = vadd.f32 %v5785, 1.0
    %v5787 = vrcp.pop %v5786
    %v5788 = vmul.f32 1.0, %v5787
    %v5790 = vrot.slane %v5706, 4
    %v5792 = vadd.f32 %v4954, %v5790
    %v5793 = vxor.u32 %v5792, 2147483648
    %v5794 = vmul.f32 %v5793, 1.442695
    %v5795 = vpow.pop %v5794
    %v5796 = vadd.f32 %v5795, 1.0
    %v5797 = vrcp.pop %v5796
    %v5798 = vmul.f32 1.0, %v5797
    %v5800 = vrot.slane %v5776, 4
    %v5802 = vmul.f32 %v5788, %v5800
    %v5803 = vadd.f32 %v5046, %v5802
    %v5804 = vtanh.pop %v5803
    %v5805 = vsub.f32 1.0, %v5798
    %v5806 = vmul.f32 %v5805, %v5804
    %v5807 = vrot.slane %v5563, 6
    %v5809 = vmul.f32 %v5798, %v5807
    %v5810 = vadd.f32 %v5806, %v5809
    %5811 = vst.msk [vmem:[#allocation2] sm:$0x30] %vm1281, %v5810
    %v5813 = vrot.slane %v5810, 4
    %v5814 = vsel %vm545, %v5813, 0
    %5816 = vmatprep.subr.mxu0 0.0
    %5817 = vmatpush1.msra.mxu0 %v5054
    %5818 = vmatprep.subr.mxu0 0.0
    %5819 = vmatpush1.msra.mxu0 %v5055
    %5820 = vmatprep.subr.mxu0 0.0
    %5821 = vmatpush1.msra.mxu0 %v5056
    %5822 = vmatprep.subr.mxu0 0.0
    %5823 = vmatpush1.msra.mxu0 %v5057
    %5824 = vmatprep.subr.mxu0 0.0
    %5825 = vmatpush1.msra.mxu0 %v5058
    %5826 = vmatprep.subr.mxu0 0.0
    %5827 = vmatpush1.msra.mxu0 %v5059
    %5828 = vmatprep.subr.mxu0 0.0
    %5829 = vmatpush1.msra.mxu0 %v5060
    %5830 = vmatprep.subr.mxu0 0.0
    %5831 = vmatpush1.msra.mxu0 %v5061
    %5832 = vmatprep.subr.mxu0 0.0
    %5833 = vmatpush1.msra.mxu0 0.0
    %5834 = vmatprep.subr.mxu0 0.0
    %5835 = vmatpush1.msra.mxu0 0.0
    %5836 = vmatprep.subr.mxu0 0.0
    %5837 = vmatpush1.msra.mxu0 0.0
    %5838 = vmatprep.subr.mxu0 0.0
    %5839 = vmatpush1.msra.mxu0 0.0
    %5840 = vmatprep.subr.mxu0 0.0
    %5841 = vmatpush1.msra.mxu0 0.0
    %5842 = vmatprep.subr.mxu0 0.0
    %5843 = vmatpush1.msra.mxu0 0.0
    %5844 = vmatprep.subr.mxu0 0.0
    %5845 = vmatpush1.msra.mxu0 0.0
    %5846 = vmatprep.subr.mxu0 0.0
    %5847 = vmatpush1.msra.mxu0 0.0
    %5848 = vmatprep.subr.mxu0 0.0
    %5849 = vmatpush1.msra.mxu0 0.0
    %5850 = vmatprep.subr.mxu0 0.0
    %5851 = vmatpush1.msra.mxu0 0.0
    %5852 = vmatprep.subr.mxu0 0.0
    %5853 = vmatpush1.msra.mxu0 0.0
    %5854 = vmatprep.subr.mxu0 0.0
    %5855 = vmatpush1.msra.mxu0 0.0
    %5856 = vmatprep.subr.mxu0 0.0
    %5857 = vmatpush1.msra.mxu0 0.0
    %5858 = vmatprep.subr.mxu0 0.0
    %5859 = vmatpush1.msra.mxu0 0.0
    %5860 = vmatprep.subr.mxu0 0.0
    %5861 = vmatpush1.msra.mxu0 0.0
    %5862 = vmatprep.subr.mxu0 0.0
    %5863 = vmatpush1.msra.mxu0 0.0
    %5864 = vmatprep.subr.mxu0 0.0
    %5865 = vmatpush1.msra.mxu0 0.0
    %5866 = vmatprep.subr.mxu0 0.0
    %5867 = vmatpush1.msra.mxu0 0.0
    %5868 = vmatprep.subr.mxu0 0.0
    %5869 = vmatpush1.msra.mxu0 0.0
    %5870 = vmatprep.subr.mxu0 0.0
    %5871 = vmatpush1.msra.mxu0 0.0
    %5872 = vmatprep.subr.mxu0 0.0
    %5873 = vmatpush1.msra.mxu0 0.0
    %5874 = vmatprep.subr.mxu0 0.0
    %5875 = vmatpush1.msra.mxu0 0.0
    %5876 = vmatprep.subr.mxu0 0.0
    %5877 = vmatpush1.msra.mxu0 0.0
    %5878 = vmatprep.subr.mxu0 0.0
    %5879 = vmatpush1.msra.mxu0 0.0
    %5880 = vmatprep.mubr.f32.mxu0 0.0
    %5881 = vmatmul.mubr.f32.gmra.mrb[0].mxu0 %v5814
    %v5882 = vpop.f32.mrb[0].mxu0
    %v5883 = vadd.f32 0.0, %v5882
    %v5884 = vpop.f32.mrb[0].mxu0
    %5885 = vdwg.mxu0
    %5886 = vmatprep.subr.mxu0 0.0
    %5887 = vmatpush1.msra.mxu0 %v5063
    %5888 = vmatprep.subr.mxu0 0.0
    %5889 = vmatpush1.msra.mxu0 %v5064
    %5890 = vmatprep.subr.mxu0 0.0
    %5891 = vmatpush1.msra.mxu0 %v5065
    %5892 = vmatprep.subr.mxu0 0.0
    %5893 = vmatpush1.msra.mxu0 %v5066
    %5894 = vmatprep.subr.mxu0 0.0
    %5895 = vmatpush1.msra.mxu0 %v5067
    %5896 = vmatprep.subr.mxu0 0.0
    %5897 = vmatpush1.msra.mxu0 %v5068
    %5898 = vmatprep.subr.mxu0 0.0
    %5899 = vmatpush1.msra.mxu0 %v5069
    %5900 = vmatprep.subr.mxu0 0.0
    %5901 = vmatpush1.msra.mxu0 %v5070
    %5902 = vmatprep.subr.mxu0 0.0
    %5903 = vmatpush1.msra.mxu0 0.0
    %5904 = vmatprep.subr.mxu0 0.0
    %5905 = vmatpush1.msra.mxu0 0.0
    %5906 = vmatprep.subr.mxu0 0.0
    %5907 = vmatpush1.msra.mxu0 0.0
    %5908 = vmatprep.subr.mxu0 0.0
    %5909 = vmatpush1.msra.mxu0 0.0
    %5910 = vmatprep.subr.mxu0 0.0
    %5911 = vmatpush1.msra.mxu0 0.0
    %5912 = vmatprep.subr.mxu0 0.0
    %5913 = vmatpush1.msra.mxu0 0.0
    %5914 = vmatprep.subr.mxu0 0.0
    %5915 = vmatpush1.msra.mxu0 0.0
    %5916 = vmatprep.subr.mxu0 0.0
    %5917 = vmatpush1.msra.mxu0 0.0
    %5918 = vmatprep.subr.mxu0 0.0
    %5919 = vmatpush1.msra.mxu0 0.0
    %5920 = vmatprep.subr.mxu0 0.0
    %5921 = vmatpush1.msra.mxu0 0.0
    %5922 = vmatprep.subr.mxu0 0.0
    %5923 = vmatpush1.msra.mxu0 0.0
    %5924 = vmatprep.subr.mxu0 0.0
    %5925 = vmatpush1.msra.mxu0 0.0
    %5926 = vmatprep.subr.mxu0 0.0
    %5927 = vmatpush1.msra.mxu0 0.0
    %5928 = vmatprep.subr.mxu0 0.0
    %5929 = vmatpush1.msra.mxu0 0.0
    %5930 = vmatprep.subr.mxu0 0.0
    %5931 = vmatpush1.msra.mxu0 0.0
    %5932 = vmatprep.subr.mxu0 0.0
    %5933 = vmatpush1.msra.mxu0 0.0
    %5934 = vmatprep.subr.mxu0 0.0
    %5935 = vmatpush1.msra.mxu0 0.0
    %5936 = vmatprep.subr.mxu0 0.0
    %5937 = vmatpush1.msra.mxu0 0.0
    %5938 = vmatprep.subr.mxu0 0.0
    %5939 = vmatpush1.msra.mxu0 0.0
    %5940 = vmatprep.subr.mxu0 0.0
    %5941 = vmatpush1.msra.mxu0 0.0
    %5942 = vmatprep.subr.mxu0 0.0
    %5943 = vmatpush1.msra.mxu0 0.0
    %5944 = vmatprep.subr.mxu0 0.0
    %5945 = vmatpush1.msra.mxu0 0.0
    %5946 = vmatprep.subr.mxu0 0.0
    %5947 = vmatpush1.msra.mxu0 0.0
    %5948 = vmatprep.subr.mxu0 0.0
    %5949 = vmatpush1.msra.mxu0 0.0
    %5950 = vmatprep.mubr.f32.mxu0 0.0
    %5951 = vmatmul.mubr.f32.gmra.mrb[0].mxu0 %v5814
    %v5952 = vpop.f32.mrb[0].mxu0
    %v5953 = vadd.f32 0.0, %v5952
    %v5954 = vpop.f32.mrb[0].mxu0
    %5955 = vdwg.mxu0
    %5956 = vmatprep.subr.mxu0 0.0
    %5957 = vmatpush1.msra.mxu0 %v5072
    %5958 = vmatprep.subr.mxu0 0.0
    %5959 = vmatpush1.msra.mxu0 %v5073
    %5960 = vmatprep.subr.mxu0 0.0
    %5961 = vmatpush1.msra.mxu0 %v5074
    %5962 = vmatprep.subr.mxu0 0.0
    %5963 = vmatpush1.msra.mxu0 %v5075
    %5964 = vmatprep.subr.mxu0 0.0
    %5965 = vmatpush1.msra.mxu0 %v5076
    %5966 = vmatprep.subr.mxu0 0.0
    %5967 = vmatpush1.msra.mxu0 %v5077
    %5968 = vmatprep.subr.mxu0 0.0
    %5969 = vmatpush1.msra.mxu0 %v5078
    %5970 = vmatprep.subr.mxu0 0.0
    %5971 = vmatpush1.msra.mxu0 %v5079
    %5972 = vmatprep.subr.mxu0 0.0
    %5973 = vmatpush1.msra.mxu0 0.0
    %5974 = vmatprep.subr.mxu0 0.0
    %5975 = vmatpush1.msra.mxu0 0.0
    %5976 = vmatprep.subr.mxu0 0.0
    %5977 = vmatpush1.msra.mxu0 0.0
    %5978 = vmatprep.subr.mxu0 0.0
    %5979 = vmatpush1.msra.mxu0 0.0
    %5980 = vmatprep.subr.mxu0 0.0
    %5981 = vmatpush1.msra.mxu0 0.0
    %5982 = vmatprep.subr.mxu0 0.0
    %5983 = vmatpush1.msra.mxu0 0.0
    %5984 = vmatprep.subr.mxu0 0.0
    %5985 = vmatpush1.msra.mxu0 0.0
    %5986 = vmatprep.subr.mxu0 0.0
    %5987 = vmatpush1.msra.mxu0 0.0
    %5988 = vmatprep.subr.mxu0 0.0
    %5989 = vmatpush1.msra.mxu0 0.0
    %5990 = vmatprep.subr.mxu0 0.0
    %5991 = vmatpush1.msra.mxu0 0.0
    %5992 = vmatprep.subr.mxu0 0.0
    %5993 = vmatpush1.msra.mxu0 0.0
    %5994 = vmatprep.subr.mxu0 0.0
    %5995 = vmatpush1.msra.mxu0 0.0
    %5996 = vmatprep.subr.mxu0 0.0
    %5997 = vmatpush1.msra.mxu0 0.0
    %5998 = vmatprep.subr.mxu0 0.0
    %5999 = vmatpush1.msra.mxu0 0.0
    %6000 = vmatprep.subr.mxu0 0.0
    %6001 = vmatpush1.msra.mxu0 0.0
    %6002 = vmatprep.subr.mxu0 0.0
    %6003 = vmatpush1.msra.mxu0 0.0
    %6004 = vmatprep.subr.mxu0 0.0
    %6005 = vmatpush1.msra.mxu0 0.0
    %6006 = vmatprep.subr.mxu0 0.0
    %6007 = vmatpush1.msra.mxu0 0.0
    %6008 = vmatprep.subr.mxu0 0.0
    %6009 = vmatpush1.msra.mxu0 0.0
    %6010 = vmatprep.subr.mxu0 0.0
    %6011 = vmatpush1.msra.mxu0 0.0
    %6012 = vmatprep.subr.mxu0 0.0
    %6013 = vmatpush1.msra.mxu0 0.0
    %6014 = vmatprep.subr.mxu0 0.0
    %6015 = vmatpush1.msra.mxu0 0.0
    %6016 = vmatprep.subr.mxu0 0.0
    %6017 = vmatpush1.msra.mxu0 0.0
    %6018 = vmatprep.subr.mxu0 0.0
    %6019 = vmatpush1.msra.mxu0 0.0
    %6020 = vmatprep.mubr.f32.mxu0 0.0
    %6021 = vmatmul.mubr.f32.gmra.mrb[0].mxu0 %v5814
    %v6022 = vpop.f32.mrb[0].mxu0
    %v6023 = vadd.f32 %v5225, %v6022
    %v6024 = vpop.f32.mrb[0].mxu0
    %6025 = vdwg.mxu0
    %v6027 = vrot.slane %v5883, 2
    %v6029 = vadd.f32 %v4862, %v6027
    %v6030 = vxor.u32 %v6029, 2147483648
    %v6031 = vmul.f32 %v6030, 1.442695
    %v6032 = vpow.pop %v6031
    %v6033 = vadd.f32 %v6032, 1.0
    %v6034 = vrcp.pop %v6033
    %v6035 = vmul.f32 1.0, %v6034
    %v6037 = vrot.slane %v5953, 2
    %v6039 = vadd.f32 %v4954, %v6037
    %v6040 = vxor.u32 %v6039, 2147483648
    %v6041 = vmul.f32 %v6040, 1.442695
    %v6042 = vpow.pop %v6041
    %v6043 = vadd.f32 %v6042, 1.0
    %v6044 = vrcp.pop %v6043
    %v6045 = vmul.f32 1.0, %v6044
    %v6047 = vrot.slane %v6023, 2
    %v6049 = vmul.f32 %v6035, %v6047
    %v6050 = vadd.f32 %v5046, %v6049
    %v6051 = vtanh.pop %v6050
    %v6052 = vsub.f32 1.0, %v6045
    %v6053 = vmul.f32 %v6052, %v6051
    %v6054 = vrot.slane %v5810, 6
    %v6056 = vmul.f32 %v6045, %v6054
    %v6057 = vadd.f32 %v6053, %v6056
    %6058 = vst.msk [vmem:[#allocation2] sm:$0xc0] %vm1529, %v6057
    %v6060 = vrot.slane %v6057, 6
    %v6061 = vsel %vm545, %v6060, 0
    %6063 = vmatprep.subr.mxu0 0.0
    %6064 = vmatpush1.msra.mxu0 %v5054
    %6065 = vmatprep.subr.mxu0 0.0
    %6066 = vmatpush1.msra.mxu0 %v5055
    %6067 = vmatprep.subr.mxu0 0.0
    %6068 = vmatpush1.msra.mxu0 %v5056
    %6069 = vmatprep.subr.mxu0 0.0
    %6070 = vmatpush1.msra.mxu0 %v5057
    %6071 = vmatprep.subr.mxu0 0.0
    %6072 = vmatpush1.msra.mxu0 %v5058
    %6073 = vmatprep.subr.mxu0 0.0
    %6074 = vmatpush1.msra.mxu0 %v5059
    %6075 = vmatprep.subr.mxu0 0.0
    %6076 = vmatpush1.msra.mxu0 %v5060
    %6077 = vmatprep.subr.mxu0 0.0
    %6078 = vmatpush1.msra.mxu0 %v5061
    %6079 = vmatprep.subr.mxu0 0.0
    %6080 = vmatpush1.msra.mxu0 0.0
    %6081 = vmatprep.subr.mxu0 0.0
    %6082 = vmatpush1.msra.mxu0 0.0
    %6083 = vmatprep.subr.mxu0 0.0
    %6084 = vmatpush1.msra.mxu0 0.0
    %6085 = vmatprep.subr.mxu0 0.0
    %6086 = vmatpush1.msra.mxu0 0.0
    %6087 = vmatprep.subr.mxu0 0.0
    %6088 = vmatpush1.msra.mxu0 0.0
    %6089 = vmatprep.subr.mxu0 0.0
    %6090 = vmatpush1.msra.mxu0 0.0
    %6091 = vmatprep.subr.mxu0 0.0
    %6092 = vmatpush1.msra.mxu0 0.0
    %6093 = vmatprep.subr.mxu0 0.0
    %6094 = vmatpush1.msra.mxu0 0.0
    %6095 = vmatprep.subr.mxu0 0.0
    %6096 = vmatpush1.msra.mxu0 0.0
    %6097 = vmatprep.subr.mxu0 0.0
    %6098 = vmatpush1.msra.mxu0 0.0
    %6099 = vmatprep.subr.mxu0 0.0
    %6100 = vmatpush1.msra.mxu0 0.0
    %6101 = vmatprep.subr.mxu0 0.0
    %6102 = vmatpush1.msra.mxu0 0.0
    %6103 = vmatprep.subr.mxu0 0.0
    %6104 = vmatpush1.msra.mxu0 0.0
    %6105 = vmatprep.subr.mxu0 0.0
    %6106 = vmatpush1.msra.mxu0 0.0
    %6107 = vmatprep.subr.mxu0 0.0
    %6108 = vmatpush1.msra.mxu0 0.0
    %6109 = vmatprep.subr.mxu0 0.0
    %6110 = vmatpush1.msra.mxu0 0.0
    %6111 = vmatprep.subr.mxu0 0.0
    %6112 = vmatpush1.msra.mxu0 0.0
    %6113 = vmatprep.subr.mxu0 0.0
    %6114 = vmatpush1.msra.mxu0 0.0
    %6115 = vmatprep.subr.mxu0 0.0
    %6116 = vmatpush1.msra.mxu0 0.0
    %6117 = vmatprep.subr.mxu0 0.0
    %6118 = vmatpush1.msra.mxu0 0.0
    %6119 = vmatprep.subr.mxu0 0.0
    %6120 = vmatpush1.msra.mxu0 0.0
    %6121 = vmatprep.subr.mxu0 0.0
    %6122 = vmatpush1.msra.mxu0 0.0
    %6123 = vmatprep.subr.mxu0 0.0
    %6124 = vmatpush1.msra.mxu0 0.0
    %6125 = vmatprep.subr.mxu0 0.0
    %6126 = vmatpush1.msra.mxu0 0.0
    %6127 = vmatprep.mubr.f32.mxu0 0.0
    %6128 = vmatmul.mubr.f32.gmra.mrb[0].mxu0 %v6061
    %v6129 = vpop.f32.mrb[0].mxu0
    %v6130 = vadd.f32 0.0, %v6129
    %v6131 = vpop.f32.mrb[0].mxu0
    %6132 = vdwg.mxu0
    %6133 = vmatprep.subr.mxu0 0.0
    %6134 = vmatpush1.msra.mxu0 %v5063
    %6135 = vmatprep.subr.mxu0 0.0
    %6136 = vmatpush1.msra.mxu0 %v5064
    %6137 = vmatprep.subr.mxu0 0.0
    %6138 = vmatpush1.msra.mxu0 %v5065
    %6139 = vmatprep.subr.mxu0 0.0
    %6140 = vmatpush1.msra.mxu0 %v5066
    %6141 = vmatprep.subr.mxu0 0.0
    %6142 = vmatpush1.msra.mxu0 %v5067
    %6143 = vmatprep.subr.mxu0 0.0
    %6144 = vmatpush1.msra.mxu0 %v5068
    %6145 = vmatprep.subr.mxu0 0.0
    %6146 = vmatpush1.msra.mxu0 %v5069
    %6147 = vmatprep.subr.mxu0 0.0
    %6148 = vmatpush1.msra.mxu0 %v5070
    %6149 = vmatprep.subr.mxu0 0.0
    %6150 = vmatpush1.msra.mxu0 0.0
    %6151 = vmatprep.subr.mxu0 0.0
    %6152 = vmatpush1.msra.mxu0 0.0
    %6153 = vmatprep.subr.mxu0 0.0
    %6154 = vmatpush1.msra.mxu0 0.0
    %6155 = vmatprep.subr.mxu0 0.0
    %6156 = vmatpush1.msra.mxu0 0.0
    %6157 = vmatprep.subr.mxu0 0.0
    %6158 = vmatpush1.msra.mxu0 0.0
    %6159 = vmatprep.subr.mxu0 0.0
    %6160 = vmatpush1.msra.mxu0 0.0
    %6161 = vmatprep.subr.mxu0 0.0
    %6162 = vmatpush1.msra.mxu0 0.0
    %6163 = vmatprep.subr.mxu0 0.0
    %6164 = vmatpush1.msra.mxu0 0.0
    %6165 = vmatprep.subr.mxu0 0.0
    %6166 = vmatpush1.msra.mxu0 0.0
    %6167 = vmatprep.subr.mxu0 0.0
    %6168 = vmatpush1.msra.mxu0 0.0
    %6169 = vmatprep.subr.mxu0 0.0
    %6170 = vmatpush1.msra.mxu0 0.0
    %6171 = vmatprep.subr.mxu0 0.0
    %6172 = vmatpush1.msra.mxu0 0.0
    %6173 = vmatprep.subr.mxu0 0.0
    %6174 = vmatpush1.msra.mxu0 0.0
    %6175 = vmatprep.subr.mxu0 0.0
    %6176 = vmatpush1.msra.mxu0 0.0
    %6177 = vmatprep.subr.mxu0 0.0
    %6178 = vmatpush1.msra.mxu0 0.0
    %6179 = vmatprep.subr.mxu0 0.0
    %6180 = vmatpush1.msra.mxu0 0.0
    %6181 = vmatprep.subr.mxu0 0.0
    %6182 = vmatpush1.msra.mxu0 0.0
    %6183 = vmatprep.subr.mxu0 0.0
    %6184 = vmatpush1.msra.mxu0 0.0
    %6185 = vmatprep.subr.mxu0 0.0
    %6186 = vmatpush1.msra.mxu0 0.0
    %6187 = vmatprep.subr.mxu0 0.0
    %6188 = vmatpush1.msra.mxu0 0.0
    %6189 = vmatprep.subr.mxu0 0.0
    %6190 = vmatpush1.msra.mxu0 0.0
    %6191 = vmatprep.subr.mxu0 0.0
    %6192 = vmatpush1.msra.mxu0 0.0
    %6193 = vmatprep.subr.mxu0 0.0
    %6194 = vmatpush1.msra.mxu0 0.0
    %6195 = vmatprep.subr.mxu0 0.0
    %6196 = vmatpush1.msra.mxu0 0.0
    %6197 = vmatprep.mubr.f32.mxu0 0.0
    %6198 = vmatmul.mubr.f32.gmra.mrb[0].mxu0 %v6061
    %v6199 = vpop.f32.mrb[0].mxu0
    %v6200 = vadd.f32 0.0, %v6199
    %v6201 = vpop.f32.mrb[0].mxu0
    %6202 = vdwg.mxu0
    %6203 = vmatprep.subr.mxu0 0.0
    %6204 = vmatpush1.msra.mxu0 %v5072
    %6205 = vmatprep.subr.mxu0 0.0
    %6206 = vmatpush1.msra.mxu0 %v5073
    %6207 = vmatprep.subr.mxu0 0.0
    %6208 = vmatpush1.msra.mxu0 %v5074
    %6209 = vmatprep.subr.mxu0 0.0
    %6210 = vmatpush1.msra.mxu0 %v5075
    %6211 = vmatprep.subr.mxu0 0.0
    %6212 = vmatpush1.msra.mxu0 %v5076
    %6213 = vmatprep.subr.mxu0 0.0
    %6214 = vmatpush1.msra.mxu0 %v5077
    %6215 = vmatprep.subr.mxu0 0.0
    %6216 = vmatpush1.msra.mxu0 %v5078
    %6217 = vmatprep.subr.mxu0 0.0
    %6218 = vmatpush1.msra.mxu0 %v5079
    %6219 = vmatprep.subr.mxu0 0.0
    %6220 = vmatpush1.msra.mxu0 0.0
    %6221 = vmatprep.subr.mxu0 0.0
    %6222 = vmatpush1.msra.mxu0 0.0
    %6223 = vmatprep.subr.mxu0 0.0
    %6224 = vmatpush1.msra.mxu0 0.0
    %6225 = vmatprep.subr.mxu0 0.0
    %6226 = vmatpush1.msra.mxu0 0.0
    %6227 = vmatprep.subr.mxu0 0.0
    %6228 = vmatpush1.msra.mxu0 0.0
    %6229 = vmatprep.subr.mxu0 0.0
    %6230 = vmatpush1.msra.mxu0 0.0
    %6231 = vmatprep.subr.mxu0 0.0
    %6232 = vmatpush1.msra.mxu0 0.0
    %6233 = vmatprep.subr.mxu0 0.0
    %6234 = vmatpush1.msra.mxu0 0.0
    %6235 = vmatprep.subr.mxu0 0.0
    %6236 = vmatpush1.msra.mxu0 0.0
    %6237 = vmatprep.subr.mxu0 0.0
    %6238 = vmatpush1.msra.mxu0 0.0
    %6239 = vmatprep.subr.mxu0 0.0
    %6240 = vmatpush1.msra.mxu0 0.0
    %6241 = vmatprep.subr.mxu0 0.0
    %6242 = vmatpush1.msra.mxu0 0.0
    %6243 = vmatprep.subr.mxu0 0.0
    %6244 = vmatpush1.msra.mxu0 0.0
    %6245 = vmatprep.subr.mxu0 0.0
    %6246 = vmatpush1.msra.mxu0 0.0
    %6247 = vmatprep.subr.mxu0 0.0
    %6248 = vmatpush1.msra.mxu0 0.0
    %6249 = vmatprep.subr.mxu0 0.0
    %6250 = vmatpush1.msra.mxu0 0.0
    %6251 = vmatprep.subr.mxu0 0.0
    %6252 = vmatpush1.msra.mxu0 0.0
    %6253 = vmatprep.subr.mxu0 0.0
    %6254 = vmatpush1.msra.mxu0 0.0
    %6255 = vmatprep.subr.mxu0 0.0
    %6256 = vmatpush1.msra.mxu0 0.0
    %6257 = vmatprep.subr.mxu0 0.0
    %6258 = vmatpush1.msra.mxu0 0.0
    %6259 = vmatprep.subr.mxu0 0.0
    %6260 = vmatpush1.msra.mxu0 0.0
    %6261 = vmatprep.subr.mxu0 0.0
    %6262 = vmatpush1.msra.mxu0 0.0
    %6263 = vmatprep.subr.mxu0 0.0
    %6264 = vmatpush1.msra.mxu0 0.0
    %6265 = vmatprep.subr.mxu0 0.0
    %6266 = vmatpush1.msra.mxu0 0.0
    %6267 = vmatprep.mubr.f32.mxu0 0.0
    %6268 = vmatmul.mubr.f32.gmra.mrb[0].mxu0 %v6061
    %v6269 = vpop.f32.mrb[0].mxu0
    %v6270 = vadd.f32 %v5225, %v6269
    %v6271 = vpop.f32.mrb[0].mxu0
    %6272 = vdwg.mxu0
    %v6273 = vadd.f32 %v4867, %v6130
    %v6274 = vxor.u32 %v6273, 2147483648
    %v6275 = vmul.f32 %v6274, 1.442695
    %v6276 = vpow.pop %v6275
    %v6277 = vadd.f32 %v6276, 1.0
    %v6278 = vrcp.pop %v6277
    %v6279 = vmul.f32 1.0, %v6278
    %v6280 = vadd.f32 %v4959, %v6200
    %v6281 = vxor.u32 %v6280, 2147483648
    %v6282 = vmul.f32 %v6281, 1.442695
    %v6283 = vpow.pop %v6282
    %v6284 = vadd.f32 %v6283, 1.0
    %v6285 = vrcp.pop %v6284
    %v6286 = vmul.f32 1.0, %v6285
    %v6287 = vmul.f32 %v6279, %v6270
    %v6288 = vadd.f32 %v5051, %v6287
    %v6289 = vtanh.pop %v6288
    %v6290 = vsub.f32 1.0, %v6286
    %v6291 = vmul.f32 %v6290, %v6289
    %v6293 = vmul.f32 %v6286, %v6060
    %v6294 = vadd.f32 %v6291, %v6293
    %6295 = vst.msk [vmem:[#allocation2 + $0x8] sm:$0x3] %vm786, %v6294
    %v6297 = vsel %vm545, %v6294, 0
    %6299 = vmatprep.subr.mxu0 0.0
    %6300 = vmatpush1.msra.mxu0 %v5054
    %6301 = vmatprep.subr.mxu0 0.0
    %6302 = vmatpush1.msra.mxu0 %v5055
    %6303 = vmatprep.subr.mxu0 0.0
    %6304 = vmatpush1.msra.mxu0 %v5056
    %6305 = vmatprep.subr.mxu0 0.0
    %6306 = vmatpush1.msra.mxu0 %v5057
    %6307 = vmatprep.subr.mxu0 0.0
    %6308 = vmatpush1.msra.mxu0 %v5058
    %6309 = vmatprep.subr.mxu0 0.0
    %6310 = vmatpush1.msra.mxu0 %v5059
    %6311 = vmatprep.subr.mxu0 0.0
    %6312 = vmatpush1.msra.mxu0 %v5060
    %6313 = vmatprep.subr.mxu0 0.0
    %6314 = vmatpush1.msra.mxu0 %v5061
    %6315 = vmatprep.subr.mxu0 0.0
    %6316 = vmatpush1.msra.mxu0 0.0
    %6317 = vmatprep.subr.mxu0 0.0
    %6318 = vmatpush1.msra.mxu0 0.0
    %6319 = vmatprep.subr.mxu0 0.0
    %6320 = vmatpush1.msra.mxu0 0.0
    %6321 = vmatprep.subr.mxu0 0.0
    %6322 = vmatpush1.msra.mxu0 0.0
    %6323 = vmatprep.subr.mxu0 0.0
    %6324 = vmatpush1.msra.mxu0 0.0
    %6325 = vmatprep.subr.mxu0 0.0
    %6326 = vmatpush1.msra.mxu0 0.0
    %6327 = vmatprep.subr.mxu0 0.0
    %6328 = vmatpush1.msra.mxu0 0.0
    %6329 = vmatprep.subr.mxu0 0.0
    %6330 = vmatpush1.msra.mxu0 0.0
    %6331 = vmatprep.subr.mxu0 0.0
    %6332 = vmatpush1.msra.mxu0 0.0
    %6333 = vmatprep.subr.mxu0 0.0
    %6334 = vmatpush1.msra.mxu0 0.0
    %6335 = vmatprep.subr.mxu0 0.0
    %6336 = vmatpush1.msra.mxu0 0.0
    %6337 = vmatprep.subr.mxu0 0.0
    %6338 = vmatpush1.msra.mxu0 0.0
    %6339 = vmatprep.subr.mxu0 0.0
    %6340 = vmatpush1.msra.mxu0 0.0
    %6341 = vmatprep.subr.mxu0 0.0
    %6342 = vmatpush1.msra.mxu0 0.0
    %6343 = vmatprep.subr.mxu0 0.0
    %6344 = vmatpush1.msra.mxu0 0.0
    %6345 = vmatprep.subr.mxu0 0.0
    %6346 = vmatpush1.msra.mxu0 0.0
    %6347 = vmatprep.subr.mxu0 0.0
    %6348 = vmatpush1.msra.mxu0 0.0
    %6349 = vmatprep.subr.mxu0 0.0
    %6350 = vmatpush1.msra.mxu0 0.0
    %6351 = vmatprep.subr.mxu0 0.0
    %6352 = vmatpush1.msra.mxu0 0.0
    %6353 = vmatprep.subr.mxu0 0.0
    %6354 = vmatpush1.msra.mxu0 0.0
    %6355 = vmatprep.subr.mxu0 0.0
    %6356 = vmatpush1.msra.mxu0 0.0
    %6357 = vmatprep.subr.mxu0 0.0
    %6358 = vmatpush1.msra.mxu0 0.0
    %6359 = vmatprep.subr.mxu0 0.0
    %6360 = vmatpush1.msra.mxu0 0.0
    %6361 = vmatprep.subr.mxu0 0.0
    %6362 = vmatpush1.msra.mxu0 0.0
    %6363 = vmatprep.mubr.f32.mxu0 0.0
    %6364 = vmatmul.mubr.f32.gmra.mrb[0].mxu0 %v6297
    %v6365 = vpop.f32.mrb[0].mxu0
    %v6366 = vadd.f32 0.0, %v6365
    %v6367 = vpop.f32.mrb[0].mxu0
    %6368 = vdwg.mxu0
    %6369 = vmatprep.subr.mxu0 0.0
    %6370 = vmatpush1.msra.mxu0 %v5063
    %6371 = vmatprep.subr.mxu0 0.0
    %6372 = vmatpush1.msra.mxu0 %v5064
    %6373 = vmatprep.subr.mxu0 0.0
    %6374 = vmatpush1.msra.mxu0 %v5065
    %6375 = vmatprep.subr.mxu0 0.0
    %6376 = vmatpush1.msra.mxu0 %v5066
    %6377 = vmatprep.subr.mxu0 0.0
    %6378 = vmatpush1.msra.mxu0 %v5067
    %6379 = vmatprep.subr.mxu0 0.0
    %6380 = vmatpush1.msra.mxu0 %v5068
    %6381 = vmatprep.subr.mxu0 0.0
    %6382 = vmatpush1.msra.mxu0 %v5069
    %6383 = vmatprep.subr.mxu0 0.0
    %6384 = vmatpush1.msra.mxu0 %v5070
    %6385 = vmatprep.subr.mxu0 0.0
    %6386 = vmatpush1.msra.mxu0 0.0
    %6387 = vmatprep.subr.mxu0 0.0
    %6388 = vmatpush1.msra.mxu0 0.0
    %6389 = vmatprep.subr.mxu0 0.0
    %6390 = vmatpush1.msra.mxu0 0.0
    %6391 = vmatprep.subr.mxu0 0.0
    %6392 = vmatpush1.msra.mxu0 0.0
    %6393 = vmatprep.subr.mxu0 0.0
    %6394 = vmatpush1.msra.mxu0 0.0
    %6395 = vmatprep.subr.mxu0 0.0
    %6396 = vmatpush1.msra.mxu0 0.0
    %6397 = vmatprep.subr.mxu0 0.0
    %6398 = vmatpush1.msra.mxu0 0.0
    %6399 = vmatprep.subr.mxu0 0.0
    %6400 = vmatpush1.msra.mxu0 0.0
    %6401 = vmatprep.subr.mxu0 0.0
    %6402 = vmatpush1.msra.mxu0 0.0
    %6403 = vmatprep.subr.mxu0 0.0
    %6404 = vmatpush1.msra.mxu0 0.0
    %6405 = vmatprep.subr.mxu0 0.0
    %6406 = vmatpush1.msra.mxu0 0.0
    %6407 = vmatprep.subr.mxu0 0.0
    %6408 = vmatpush1.msra.mxu0 0.0
    %6409 = vmatprep.subr.mxu0 0.0
    %6410 = vmatpush1.msra.mxu0 0.0
    %6411 = vmatprep.subr.mxu0 0.0
    %6412 = vmatpush1.msra.mxu0 0.0
    %6413 = vmatprep.subr.mxu0 0.0
    %6414 = vmatpush1.msra.mxu0 0.0
    %6415 = vmatprep.subr.mxu0 0.0
    %6416 = vmatpush1.msra.mxu0 0.0
    %6417 = vmatprep.subr.mxu0 0.0
    %6418 = vmatpush1.msra.mxu0 0.0
    %6419 = vmatprep.subr.mxu0 0.0
    %6420 = vmatpush1.msra.mxu0 0.0
    %6421 = vmatprep.subr.mxu0 0.0
    %6422 = vmatpush1.msra.mxu0 0.0
    %6423 = vmatprep.subr.mxu0 0.0
    %6424 = vmatpush1.msra.mxu0 0.0
    %6425 = vmatprep.subr.mxu0 0.0
    %6426 = vmatpush1.msra.mxu0 0.0
    %6427 = vmatprep.subr.mxu0 0.0
    %6428 = vmatpush1.msra.mxu0 0.0
    %6429 = vmatprep.subr.mxu0 0.0
    %6430 = vmatpush1.msra.mxu0 0.0
    %6431 = vmatprep.subr.mxu0 0.0
    %6432 = vmatpush1.msra.mxu0 0.0
    %6433 = vmatprep.mubr.f32.mxu0 0.0
    %6434 = vmatmul.mubr.f32.gmra.mrb[0].mxu0 %v6297
    %v6435 = vpop.f32.mrb[0].mxu0
    %v6436 = vadd.f32 0.0, %v6435
    %v6437 = vpop.f32.mrb[0].mxu0
    %6438 = vdwg.mxu0
    %6439 = vmatprep.subr.mxu0 0.0
    %6440 = vmatpush1.msra.mxu0 %v5072
    %6441 = vmatprep.subr.mxu0 0.0
    %6442 = vmatpush1.msra.mxu0 %v5073
    %6443 = vmatprep.subr.mxu0 0.0
    %6444 = vmatpush1.msra.mxu0 %v5074
    %6445 = vmatprep.subr.mxu0 0.0
    %6446 = vmatpush1.msra.mxu0 %v5075
    %6447 = vmatprep.subr.mxu0 0.0
    %6448 = vmatpush1.msra.mxu0 %v5076
    %6449 = vmatprep.subr.mxu0 0.0
    %6450 = vmatpush1.msra.mxu0 %v5077
    %6451 = vmatprep.subr.mxu0 0.0
    %6452 = vmatpush1.msra.mxu0 %v5078
    %6453 = vmatprep.subr.mxu0 0.0
    %6454 = vmatpush1.msra.mxu0 %v5079
    %6455 = vmatprep.subr.mxu0 0.0
    %6456 = vmatpush1.msra.mxu0 0.0
    %6457 = vmatprep.subr.mxu0 0.0
    %6458 = vmatpush1.msra.mxu0 0.0
    %6459 = vmatprep.subr.mxu0 0.0
    %6460 = vmatpush1.msra.mxu0 0.0
    %6461 = vmatprep.subr.mxu0 0.0
    %6462 = vmatpush1.msra.mxu0 0.0
    %6463 = vmatprep.subr.mxu0 0.0
    %6464 = vmatpush1.msra.mxu0 0.0
    %6465 = vmatprep.subr.mxu0 0.0
    %6466 = vmatpush1.msra.mxu0 0.0
    %6467 = vmatprep.subr.mxu0 0.0
    %6468 = vmatpush1.msra.mxu0 0.0
    %6469 = vmatprep.subr.mxu0 0.0
    %6470 = vmatpush1.msra.mxu0 0.0
    %6471 = vmatprep.subr.mxu0 0.0
    %6472 = vmatpush1.msra.mxu0 0.0
    %6473 = vmatprep.subr.mxu0 0.0
    %6474 = vmatpush1.msra.mxu0 0.0
    %6475 = vmatprep.subr.mxu0 0.0
    %6476 = vmatpush1.msra.mxu0 0.0
    %6477 = vmatprep.subr.mxu0 0.0
    %6478 = vmatpush1.msra.mxu0 0.0
    %6479 = vmatprep.subr.mxu0 0.0
    %6480 = vmatpush1.msra.mxu0 0.0
    %6481 = vmatprep.subr.mxu0 0.0
    %6482 = vmatpush1.msra.mxu0 0.0
    %6483 = vmatprep.subr.mxu0 0.0
    %6484 = vmatpush1.msra.mxu0 0.0
    %6485 = vmatprep.subr.mxu0 0.0
    %6486 = vmatpush1.msra.mxu0 0.0
    %6487 = vmatprep.subr.mxu0 0.0
    %6488 = vmatpush1.msra.mxu0 0.0
    %6489 = vmatprep.subr.mxu0 0.0
    %6490 = vmatpush1.msra.mxu0 0.0
    %6491 = vmatprep.subr.mxu0 0.0
    %6492 = vmatpush1.msra.mxu0 0.0
    %6493 = vmatprep.subr.mxu0 0.0
    %6494 = vmatpush1.msra.mxu0 0.0
    %6495 = vmatprep.subr.mxu0 0.0
    %6496 = vmatpush1.msra.mxu0 0.0
    %6497 = vmatprep.subr.mxu0 0.0
    %6498 = vmatpush1.msra.mxu0 0.0
    %6499 = vmatprep.subr.mxu0 0.0
    %6500 = vmatpush1.msra.mxu0 0.0
    %6501 = vmatprep.subr.mxu0 0.0
    %6502 = vmatpush1.msra.mxu0 0.0
    %6503 = vmatprep.mubr.f32.mxu0 0.0
    %6504 = vmatmul.mubr.f32.gmra.mrb[0].mxu0 %v6297
    %v6505 = vpop.f32.mrb[0].mxu0
    %v6506 = vadd.f32 %v5225, %v6505
    %v6507 = vpop.f32.mrb[0].mxu0
    %6508 = vdwg.mxu0
    %v6510 = vrot.slane %v6366, 6
    %v6512 = vadd.f32 %v4867, %v6510
    %v6513 = vxor.u32 %v6512, 2147483648
    %v6514 = vmul.f32 %v6513, 1.442695
    %v6515 = vpow.pop %v6514
    %v6516 = vadd.f32 %v6515, 1.0
    %v6517 = vrcp.pop %v6516
    %v6518 = vmul.f32 1.0, %v6517
    %v6520 = vrot.slane %v6436, 6
    %v6522 = vadd.f32 %v4959, %v6520
    %v6523 = vxor.u32 %v6522, 2147483648
    %v6524 = vmul.f32 %v6523, 1.442695
    %v6525 = vpow.pop %v6524
    %v6526 = vadd.f32 %v6525, 1.0
    %v6527 = vrcp.pop %v6526
    %v6528 = vmul.f32 1.0, %v6527
    %v6530 = vrot.slane %v6506, 6
    %v6532 = vmul.f32 %v6518, %v6530
    %v6533 = vadd.f32 %v5051, %v6532
    %v6534 = vtanh.pop %v6533
    %v6535 = vsub.f32 1.0, %v6528
    %v6536 = vmul.f32 %v6535, %v6534
    %v6537 = vrot.slane %v6294, 6
    %v6539 = vmul.f32 %v6528, %v6537
    %v6540 = vadd.f32 %v6536, %v6539
    %6541 = vst.msk [vmem:[#allocation2 + $0x8] sm:$0xc] %vm1033, %v6540
    %v6543 = vrot.slane %v6540, 2
    %v6544 = vsel %vm545, %v6543, 0
    %6546 = vmatprep.subr.mxu0 0.0
    %6547 = vmatpush1.msra.mxu0 %v5054
    %6548 = vmatprep.subr.mxu0 0.0
    %6549 = vmatpush1.msra.mxu0 %v5055
    %6550 = vmatprep.subr.mxu0 0.0
    %6551 = vmatpush1.msra.mxu0 %v5056
    %6552 = vmatprep.subr.mxu0 0.0
    %6553 = vmatpush1.msra.mxu0 %v5057
    %6554 = vmatprep.subr.mxu0 0.0
    %6555 = vmatpush1.msra.mxu0 %v5058
    %6556 = vmatprep.subr.mxu0 0.0
    %6557 = vmatpush1.msra.mxu0 %v5059
    %6558 = vmatprep.subr.mxu0 0.0
    %6559 = vmatpush1.msra.mxu0 %v5060
    %6560 = vmatprep.subr.mxu0 0.0
    %6561 = vmatpush1.msra.mxu0 %v5061
    %6562 = vmatprep.subr.mxu0 0.0
    %6563 = vmatpush1.msra.mxu0 0.0
    %6564 = vmatprep.subr.mxu0 0.0
    %6565 = vmatpush1.msra.mxu0 0.0
    %6566 = vmatprep.subr.mxu0 0.0
    %6567 = vmatpush1.msra.mxu0 0.0
    %6568 = vmatprep.subr.mxu0 0.0
    %6569 = vmatpush1.msra.mxu0 0.0
    %6570 = vmatprep.subr.mxu0 0.0
    %6571 = vmatpush1.msra.mxu0 0.0
    %6572 = vmatprep.subr.mxu0 0.0
    %6573 = vmatpush1.msra.mxu0 0.0
    %6574 = vmatprep.subr.mxu0 0.0
    %6575 = vmatpush1.msra.mxu0 0.0
    %6576 = vmatprep.subr.mxu0 0.0
    %6577 = vmatpush1.msra.mxu0 0.0
    %6578 = vmatprep.subr.mxu0 0.0
    %6579 = vmatpush1.msra.mxu0 0.0
    %6580 = vmatprep.subr.mxu0 0.0
    %6581 = vmatpush1.msra.mxu0 0.0
    %6582 = vmatprep.subr.mxu0 0.0
    %6583 = vmatpush1.msra.mxu0 0.0
    %6584 = vmatprep.subr.mxu0 0.0
    %6585 = vmatpush1.msra.mxu0 0.0
    %6586 = vmatprep.subr.mxu0 0.0
    %6587 = vmatpush1.msra.mxu0 0.0
    %6588 = vmatprep.subr.mxu0 0.0
    %6589 = vmatpush1.msra.mxu0 0.0
    %6590 = vmatprep.subr.mxu0 0.0
    %6591 = vmatpush1.msra.mxu0 0.0
    %6592 = vmatprep.subr.mxu0 0.0
    %6593 = vmatpush1.msra.mxu0 0.0
    %6594 = vmatprep.subr.mxu0 0.0
    %6595 = vmatpush1.msra.mxu0 0.0
    %6596 = vmatprep.subr.mxu0 0.0
    %6597 = vmatpush1.msra.mxu0 0.0
    %6598 = vmatprep.subr.mxu0 0.0
    %6599 = vmatpush1.msra.mxu0 0.0
    %6600 = vmatprep.subr.mxu0 0.0
    %6601 = vmatpush1.msra.mxu0 0.0
    %6602 = vmatprep.subr.mxu0 0.0
    %6603 = vmatpush1.msra.mxu0 0.0
    %6604 = vmatprep.subr.mxu0 0.0
    %6605 = vmatpush1.msra.mxu0 0.0
    %6606 = vmatprep.subr.mxu0 0.0
    %6607 = vmatpush1.msra.mxu0 0.0
    %6608 = vmatprep.subr.mxu0 0.0
    %6609 = vmatpush1.msra.mxu0 0.0
    %6610 = vmatprep.mubr.f32.mxu0 0.0
    %6611 = vmatmul.mubr.f32.gmra.mrb[0].mxu0 %v6544
    %v6612 = vpop.f32.mrb[0].mxu0
    %v6613 = vadd.f32 0.0, %v6612
    %v6614 = vpop.f32.mrb[0].mxu0
    %6615 = vdwg.mxu0
    %6616 = vmatprep.subr.mxu0 0.0
    %6617 = vmatpush1.msra.mxu0 %v5063
    %6618 = vmatprep.subr.mxu0 0.0
    %6619 = vmatpush1.msra.mxu0 %v5064
    %6620 = vmatprep.subr.mxu0 0.0
    %6621 = vmatpush1.msra.mxu0 %v5065
    %6622 = vmatprep.subr.mxu0 0.0
    %6623 = vmatpush1.msra.mxu0 %v5066
    %6624 = vmatprep.subr.mxu0 0.0
    %6625 = vmatpush1.msra.mxu0 %v5067
    %6626 = vmatprep.subr.mxu0 0.0
    %6627 = vmatpush1.msra.mxu0 %v5068
    %6628 = vmatprep.subr.mxu0 0.0
    %6629 = vmatpush1.msra.mxu0 %v5069
    %6630 = vmatprep.subr.mxu0 0.0
    %6631 = vmatpush1.msra.mxu0 %v5070
    %6632 = vmatprep.subr.mxu0 0.0
    %6633 = vmatpush1.msra.mxu0 0.0
    %6634 = vmatprep.subr.mxu0 0.0
    %6635 = vmatpush1.msra.mxu0 0.0
    %6636 = vmatprep.subr.mxu0 0.0
    %6637 = vmatpush1.msra.mxu0 0.0
    %6638 = vmatprep.subr.mxu0 0.0
    %6639 = vmatpush1.msra.mxu0 0.0
    %6640 = vmatprep.subr.mxu0 0.0
    %6641 = vmatpush1.msra.mxu0 0.0
    %6642 = vmatprep.subr.mxu0 0.0
    %6643 = vmatpush1.msra.mxu0 0.0
    %6644 = vmatprep.subr.mxu0 0.0
    %6645 = vmatpush1.msra.mxu0 0.0
    %6646 = vmatprep.subr.mxu0 0.0
    %6647 = vmatpush1.msra.mxu0 0.0
    %6648 = vmatprep.subr.mxu0 0.0
    %6649 = vmatpush1.msra.mxu0 0.0
    %6650 = vmatprep.subr.mxu0 0.0
    %6651 = vmatpush1.msra.mxu0 0.0
    %6652 = vmatprep.subr.mxu0 0.0
    %6653 = vmatpush1.msra.mxu0 0.0
    %6654 = vmatprep.subr.mxu0 0.0
    %6655 = vmatpush1.msra.mxu0 0.0
    %6656 = vmatprep.subr.mxu0 0.0
    %6657 = vmatpush1.msra.mxu0 0.0
    %6658 = vmatprep.subr.mxu0 0.0
    %6659 = vmatpush1.msra.mxu0 0.0
    %6660 = vmatprep.subr.mxu0 0.0
    %6661 = vmatpush1.msra.mxu0 0.0
    %6662 = vmatprep.subr.mxu0 0.0
    %6663 = vmatpush1.msra.mxu0 0.0
    %6664 = vmatprep.subr.mxu0 0.0
    %6665 = vmatpush1.msra.mxu0 0.0
    %6666 = vmatprep.subr.mxu0 0.0
    %6667 = vmatpush1.msra.mxu0 0.0
    %6668 = vmatprep.subr.mxu0 0.0
    %6669 = vmatpush1.msra.mxu0 0.0
    %6670 = vmatprep.subr.mxu0 0.0
    %6671 = vmatpush1.msra.mxu0 0.0
    %6672 = vmatprep.subr.mxu0 0.0
    %6673 = vmatpush1.msra.mxu0 0.0
    %6674 = vmatprep.subr.mxu0 0.0
    %6675 = vmatpush1.msra.mxu0 0.0
    %6676 = vmatprep.subr.mxu0 0.0
    %6677 = vmatpush1.msra.mxu0 0.0
    %6678 = vmatprep.subr.mxu0 0.0
    %6679 = vmatpush1.msra.mxu0 0.0
    %6680 = vmatprep.mubr.f32.mxu0 0.0
    %6681 = vmatmul.mubr.f32.gmra.mrb[0].mxu0 %v6544
    %v6682 = vpop.f32.mrb[0].mxu0
    %v6683 = vadd.f32 0.0, %v6682
    %v6684 = vpop.f32.mrb[0].mxu0
    %6685 = vdwg.mxu0
    %6686 = vmatprep.subr.mxu0 0.0
    %6687 = vmatpush1.msra.mxu0 %v5072
    %6688 = vmatprep.subr.mxu0 0.0
    %6689 = vmatpush1.msra.mxu0 %v5073
    %6690 = vmatprep.subr.mxu0 0.0
    %6691 = vmatpush1.msra.mxu0 %v5074
    %6692 = vmatprep.subr.mxu0 0.0
    %6693 = vmatpush1.msra.mxu0 %v5075
    %6694 = vmatprep.subr.mxu0 0.0
    %6695 = vmatpush1.msra.mxu0 %v5076
    %6696 = vmatprep.subr.mxu0 0.0
    %6697 = vmatpush1.msra.mxu0 %v5077
    %6698 = vmatprep.subr.mxu0 0.0
    %6699 = vmatpush1.msra.mxu0 %v5078
    %6700 = vmatprep.subr.mxu0 0.0
    %6701 = vmatpush1.msra.mxu0 %v5079
    %6702 = vmatprep.subr.mxu0 0.0
    %6703 = vmatpush1.msra.mxu0 0.0
    %6704 = vmatprep.subr.mxu0 0.0
    %6705 = vmatpush1.msra.mxu0 0.0
    %6706 = vmatprep.subr.mxu0 0.0
    %6707 = vmatpush1.msra.mxu0 0.0
    %6708 = vmatprep.subr.mxu0 0.0
    %6709 = vmatpush1.msra.mxu0 0.0
    %6710 = vmatprep.subr.mxu0 0.0
    %6711 = vmatpush1.msra.mxu0 0.0
    %6712 = vmatprep.subr.mxu0 0.0
    %6713 = vmatpush1.msra.mxu0 0.0
    %6714 = vmatprep.subr.mxu0 0.0
    %6715 = vmatpush1.msra.mxu0 0.0
    %6716 = vmatprep.subr.mxu0 0.0
    %6717 = vmatpush1.msra.mxu0 0.0
    %6718 = vmatprep.subr.mxu0 0.0
    %6719 = vmatpush1.msra.mxu0 0.0
    %6720 = vmatprep.subr.mxu0 0.0
    %6721 = vmatpush1.msra.mxu0 0.0
    %6722 = vmatprep.subr.mxu0 0.0
    %6723 = vmatpush1.msra.mxu0 0.0
    %6724 = vmatprep.subr.mxu0 0.0
    %6725 = vmatpush1.msra.mxu0 0.0
    %6726 = vmatprep.subr.mxu0 0.0
    %6727 = vmatpush1.msra.mxu0 0.0
    %6728 = vmatprep.subr.mxu0 0.0
    %6729 = vmatpush1.msra.mxu0 0.0
    %6730 = vmatprep.subr.mxu0 0.0
    %6731 = vmatpush1.msra.mxu0 0.0
    %6732 = vmatprep.subr.mxu0 0.0
    %6733 = vmatpush1.msra.mxu0 0.0
    %6734 = vmatprep.subr.mxu0 0.0
    %6735 = vmatpush1.msra.mxu0 0.0
    %6736 = vmatprep.subr.mxu0 0.0
    %6737 = vmatpush1.msra.mxu0 0.0
    %6738 = vmatprep.subr.mxu0 0.0
    %6739 = vmatpush1.msra.mxu0 0.0
    %6740 = vmatprep.subr.mxu0 0.0
    %6741 = vmatpush1.msra.mxu0 0.0
    %6742 = vmatprep.subr.mxu0 0.0
    %6743 = vmatpush1.msra.mxu0 0.0
    %6744 = vmatprep.subr.mxu0 0.0
    %6745 = vmatpush1.msra.mxu0 0.0
    %6746 = vmatprep.subr.mxu0 0.0
    %6747 = vmatpush1.msra.mxu0 0.0
    %6748 = vmatprep.subr.mxu0 0.0
    %6749 = vmatpush1.msra.mxu0 0.0
    %6750 = vmatprep.mubr.f32.mxu0 0.0
    %6751 = vmatmul.mubr.f32.gmra.mrb[0].mxu0 %v6544
    %v6752 = vpop.f32.mrb[0].mxu0
    %v6753 = vadd.f32 %v5225, %v6752
    %v6754 = vpop.f32.mrb[0].mxu0
    %6755 = vdwg.mxu0
    %v6757 = vrot.slane %v6613, 4
    %v6759 = vadd.f32 %v4867, %v6757
    %v6760 = vxor.u32 %v6759, 2147483648
    %v6761 = vmul.f32 %v6760, 1.442695
    %v6762 = vpow.pop %v6761
    %v6763 = vadd.f32 %v6762, 1.0
    %v6764 = vrcp.pop %v6763
    %v6765 = vmul.f32 1.0, %v6764
    %v6767 = vrot.slane %v6683, 4
    %v6769 = vadd.f32 %v4959, %v6767
    %v6770 = vxor.u32 %v6769, 2147483648
    %v6771 = vmul.f32 %v6770, 1.442695
    %v6772 = vpow.pop %v6771
    %v6773 = vadd.f32 %v6772, 1.0
    %v6774 = vrcp.pop %v6773
    %v6775 = vmul.f32 1.0, %v6774
    %v6777 = vrot.slane %v6753, 4
    %v6779 = vmul.f32 %v6765, %v6777
    %v6780 = vadd.f32 %v5051, %v6779
    %v6781 = vtanh.pop %v6780
    %v6782 = vsub.f32 1.0, %v6775
    %v6783 = vmul.f32 %v6782, %v6781
    %v6784 = vrot.slane %v6540, 6
    %v6786 = vmul.f32 %v6775, %v6784
    %v6787 = vadd.f32 %v6783, %v6786
    %6788 = vst.msk [vmem:[#allocation2 + $0x8] sm:$0x30] %vm1281, %v6787
    %v6790 = vrot.slane %v6787, 4
    %v6791 = vsel %vm545, %v6790, 0
    %6793 = vmatprep.subr.mxu0 0.0
    %6794 = vmatpush1.msra.mxu0 %v5054
    %6795 = vmatprep.subr.mxu0 0.0
    %6796 = vmatpush1.msra.mxu0 %v5055
    %6797 = vmatprep.subr.mxu0 0.0
    %6798 = vmatpush1.msra.mxu0 %v5056
    %6799 = vmatprep.subr.mxu0 0.0
    %6800 = vmatpush1.msra.mxu0 %v5057
    %6801 = vmatprep.subr.mxu0 0.0
    %6802 = vmatpush1.msra.mxu0 %v5058
    %6803 = vmatprep.subr.mxu0 0.0
    %6804 = vmatpush1.msra.mxu0 %v5059
    %6805 = vmatprep.subr.mxu0 0.0
    %6806 = vmatpush1.msra.mxu0 %v5060
    %6807 = vmatprep.subr.mxu0 0.0
    %6808 = vmatpush1.msra.mxu0 %v5061
    %6809 = vmatprep.subr.mxu0 0.0
    %6810 = vmatpush1.msra.mxu0 0.0
    %6811 = vmatprep.subr.mxu0 0.0
    %6812 = vmatpush1.msra.mxu0 0.0
    %6813 = vmatprep.subr.mxu0 0.0
    %6814 = vmatpush1.msra.mxu0 0.0
    %6815 = vmatprep.subr.mxu0 0.0
    %6816 = vmatpush1.msra.mxu0 0.0
    %6817 = vmatprep.subr.mxu0 0.0
    %6818 = vmatpush1.msra.mxu0 0.0
    %6819 = vmatprep.subr.mxu0 0.0
    %6820 = vmatpush1.msra.mxu0 0.0
    %6821 = vmatprep.subr.mxu0 0.0
    %6822 = vmatpush1.msra.mxu0 0.0
    %6823 = vmatprep.subr.mxu0 0.0
    %6824 = vmatpush1.msra.mxu0 0.0
    %6825 = vmatprep.subr.mxu0 0.0
    %6826 = vmatpush1.msra.mxu0 0.0
    %6827 = vmatprep.subr.mxu0 0.0
    %6828 = vmatpush1.msra.mxu0 0.0
    %6829 = vmatprep.subr.mxu0 0.0
    %6830 = vmatpush1.msra.mxu0 0.0
    %6831 = vmatprep.subr.mxu0 0.0
    %6832 = vmatpush1.msra.mxu0 0.0
    %6833 = vmatprep.subr.mxu0 0.0
    %6834 = vmatpush1.msra.mxu0 0.0
    %6835 = vmatprep.subr.mxu0 0.0
    %6836 = vmatpush1.msra.mxu0 0.0
    %6837 = vmatprep.subr.mxu0 0.0
    %6838 = vmatpush1.msra.mxu0 0.0
    %6839 = vmatprep.subr.mxu0 0.0
    %6840 = vmatpush1.msra.mxu0 0.0
    %6841 = vmatprep.subr.mxu0 0.0
    %6842 = vmatpush1.msra.mxu0 0.0
    %6843 = vmatprep.subr.mxu0 0.0
    %6844 = vmatpush1.msra.mxu0 0.0
    %6845 = vmatprep.subr.mxu0 0.0
    %6846 = vmatpush1.msra.mxu0 0.0
    %6847 = vmatprep.subr.mxu0 0.0
    %6848 = vmatpush1.msra.mxu0 0.0
    %6849 = vmatprep.subr.mxu0 0.0
    %6850 = vmatpush1.msra.mxu0 0.0
    %6851 = vmatprep.subr.mxu0 0.0
    %6852 = vmatpush1.msra.mxu0 0.0
    %6853 = vmatprep.subr.mxu0 0.0
    %6854 = vmatpush1.msra.mxu0 0.0
    %6855 = vmatprep.subr.mxu0 0.0
    %6856 = vmatpush1.msra.mxu0 0.0
    %6857 = vmatprep.mubr.f32.mxu0 0.0
    %6858 = vmatmul.mubr.f32.gmra.mrb[0].mxu0 %v6791
    %v6859 = vpop.f32.mrb[0].mxu0
    %v6860 = vadd.f32 0.0, %v6859
    %v6861 = vpop.f32.mrb[0].mxu0
    %6862 = vdwg.mxu0
    %6863 = vmatprep.subr.mxu0 0.0
    %6864 = vmatpush1.msra.mxu0 %v5063
    %6865 = vmatprep.subr.mxu0 0.0
    %6866 = vmatpush1.msra.mxu0 %v5064
    %6867 = vmatprep.subr.mxu0 0.0
    %6868 = vmatpush1.msra.mxu0 %v5065
    %6869 = vmatprep.subr.mxu0 0.0
    %6870 = vmatpush1.msra.mxu0 %v5066
    %6871 = vmatprep.subr.mxu0 0.0
    %6872 = vmatpush1.msra.mxu0 %v5067
    %6873 = vmatprep.subr.mxu0 0.0
    %6874 = vmatpush1.msra.mxu0 %v5068
    %6875 = vmatprep.subr.mxu0 0.0
    %6876 = vmatpush1.msra.mxu0 %v5069
    %6877 = vmatprep.subr.mxu0 0.0
    %6878 = vmatpush1.msra.mxu0 %v5070
    %6879 = vmatprep.subr.mxu0 0.0
    %6880 = vmatpush1.msra.mxu0 0.0
    %6881 = vmatprep.subr.mxu0 0.0
    %6882 = vmatpush1.msra.mxu0 0.0
    %6883 = vmatprep.subr.mxu0 0.0
    %6884 = vmatpush1.msra.mxu0 0.0
    %6885 = vmatprep.subr.mxu0 0.0
    %6886 = vmatpush1.msra.mxu0 0.0
    %6887 = vmatprep.subr.mxu0 0.0
    %6888 = vmatpush1.msra.mxu0 0.0
    %6889 = vmatprep.subr.mxu0 0.0
    %6890 = vmatpush1.msra.mxu0 0.0
    %6891 = vmatprep.subr.mxu0 0.0
    %6892 = vmatpush1.msra.mxu0 0.0
    %6893 = vmatprep.subr.mxu0 0.0
    %6894 = vmatpush1.msra.mxu0 0.0
    %6895 = vmatprep.subr.mxu0 0.0
    %6896 = vmatpush1.msra.mxu0 0.0
    %6897 = vmatprep.subr.mxu0 0.0
    %6898 = vmatpush1.msra.mxu0 0.0
    %6899 = vmatprep.subr.mxu0 0.0
    %6900 = vmatpush1.msra.mxu0 0.0
    %6901 = vmatprep.subr.mxu0 0.0
    %6902 = vmatpush1.msra.mxu0 0.0
    %6903 = vmatprep.subr.mxu0 0.0
    %6904 = vmatpush1.msra.mxu0 0.0
    %6905 = vmatprep.subr.mxu0 0.0
    %6906 = vmatpush1.msra.mxu0 0.0
    %6907 = vmatprep.subr.mxu0 0.0
    %6908 = vmatpush1.msra.mxu0 0.0
    %6909 = vmatprep.subr.mxu0 0.0
    %6910 = vmatpush1.msra.mxu0 0.0
    %6911 = vmatprep.subr.mxu0 0.0
    %6912 = vmatpush1.msra.mxu0 0.0
    %6913 = vmatprep.subr.mxu0 0.0
    %6914 = vmatpush1.msra.mxu0 0.0
    %6915 = vmatprep.subr.mxu0 0.0
    %6916 = vmatpush1.msra.mxu0 0.0
    %6917 = vmatprep.subr.mxu0 0.0
    %6918 = vmatpush1.msra.mxu0 0.0
    %6919 = vmatprep.subr.mxu0 0.0
    %6920 = vmatpush1.msra.mxu0 0.0
    %6921 = vmatprep.subr.mxu0 0.0
    %6922 = vmatpush1.msra.mxu0 0.0
    %6923 = vmatprep.subr.mxu0 0.0
    %6924 = vmatpush1.msra.mxu0 0.0
    %6925 = vmatprep.subr.mxu0 0.0
    %6926 = vmatpush1.msra.mxu0 0.0
    %6927 = vmatprep.mubr.f32.mxu0 0.0
    %6928 = vmatmul.mubr.f32.gmra.mrb[0].mxu0 %v6791
    %v6929 = vpop.f32.mrb[0].mxu0
    %v6930 = vadd.f32 0.0, %v6929
    %v6931 = vpop.f32.mrb[0].mxu0
    %6932 = vdwg.mxu0
    %6933 = vmatprep.subr.mxu0 0.0
    %6934 = vmatpush1.msra.mxu0 %v5072
    %6935 = vmatprep.subr.mxu0 0.0
    %6936 = vmatpush1.msra.mxu0 %v5073
    %6937 = vmatprep.subr.mxu0 0.0
    %6938 = vmatpush1.msra.mxu0 %v5074
    %6939 = vmatprep.subr.mxu0 0.0
    %6940 = vmatpush1.msra.mxu0 %v5075
    %6941 = vmatprep.subr.mxu0 0.0
    %6942 = vmatpush1.msra.mxu0 %v5076
    %6943 = vmatprep.subr.mxu0 0.0
    %6944 = vmatpush1.msra.mxu0 %v5077
    %6945 = vmatprep.subr.mxu0 0.0
    %6946 = vmatpush1.msra.mxu0 %v5078
    %6947 = vmatprep.subr.mxu0 0.0
    %6948 = vmatpush1.msra.mxu0 %v5079
    %6949 = vmatprep.subr.mxu0 0.0
    %6950 = vmatpush1.msra.mxu0 0.0
    %6951 = vmatprep.subr.mxu0 0.0
    %6952 = vmatpush1.msra.mxu0 0.0
    %6953 = vmatprep.subr.mxu0 0.0
    %6954 = vmatpush1.msra.mxu0 0.0
    %6955 = vmatprep.subr.mxu0 0.0
    %6956 = vmatpush1.msra.mxu0 0.0
    %6957 = vmatprep.subr.mxu0 0.0
    %6958 = vmatpush1.msra.mxu0 0.0
    %6959 = vmatprep.subr.mxu0 0.0
    %6960 = vmatpush1.msra.mxu0 0.0
    %6961 = vmatprep.subr.mxu0 0.0
    %6962 = vmatpush1.msra.mxu0 0.0
    %6963 = vmatprep.subr.mxu0 0.0
    %6964 = vmatpush1.msra.mxu0 0.0
    %6965 = vmatprep.subr.mxu0 0.0
    %6966 = vmatpush1.msra.mxu0 0.0
    %6967 = vmatprep.subr.mxu0 0.0
    %6968 = vmatpush1.msra.mxu0 0.0
    %6969 = vmatprep.subr.mxu0 0.0
    %6970 = vmatpush1.msra.mxu0 0.0
    %6971 = vmatprep.subr.mxu0 0.0
    %6972 = vmatpush1.msra.mxu0 0.0
    %6973 = vmatprep.subr.mxu0 0.0
    %6974 = vmatpush1.msra.mxu0 0.0
    %6975 = vmatprep.subr.mxu0 0.0
    %6976 = vmatpush1.msra.mxu0 0.0
    %6977 = vmatprep.subr.mxu0 0.0
    %6978 = vmatpush1.msra.mxu0 0.0
    %6979 = vmatprep.subr.mxu0 0.0
    %6980 = vmatpush1.msra.mxu0 0.0
    %6981 = vmatprep.subr.mxu0 0.0
    %6982 = vmatpush1.msra.mxu0 0.0
    %6983 = vmatprep.subr.mxu0 0.0
    %6984 = vmatpush1.msra.mxu0 0.0
    %6985 = vmatprep.subr.mxu0 0.0
    %6986 = vmatpush1.msra.mxu0 0.0
    %6987 = vmatprep.subr.mxu0 0.0
    %6988 = vmatpush1.msra.mxu0 0.0
    %6989 = vmatprep.subr.mxu0 0.0
    %6990 = vmatpush1.msra.mxu0 0.0
    %6991 = vmatprep.subr.mxu0 0.0
    %6992 = vmatpush1.msra.mxu0 0.0
    %6993 = vmatprep.subr.mxu0 0.0
    %6994 = vmatpush1.msra.mxu0 0.0
    %6995 = vmatprep.subr.mxu0 0.0
    %6996 = vmatpush1.msra.mxu0 0.0
    %6997 = vmatprep.mubr.f32.mxu0 0.0
    %6998 = vmatmul.mubr.f32.gmra.mrb[0].mxu0 %v6791
    %v6999 = vpop.f32.mrb[0].mxu0
    %v7000 = vadd.f32 %v5225, %v6999
    %v7001 = vpop.f32.mrb[0].mxu0
    %7002 = vdwg.mxu0
    %v7004 = vrot.slane %v6860, 2
    %v7006 = vadd.f32 %v4867, %v7004
    %v7007 = vxor.u32 %v7006, 2147483648
    %v7008 = vmul.f32 %v7007, 1.442695
    %v7009 = vpow.pop %v7008
    %v7010 = vadd.f32 %v7009, 1.0
    %v7011 = vrcp.pop %v7010
    %v7012 = vmul.f32 1.0, %v7011
    %v7014 = vrot.slane %v6930, 2
    %v7016 = vadd.f32 %v4959, %v7014
    %v7017 = vxor.u32 %v7016, 2147483648
    %v7018 = vmul.f32 %v7017, 1.442695
    %v7019 = vpow.pop %v7018
    %v7020 = vadd.f32 %v7019, 1.0
    %v7021 = vrcp.pop %v7020
    %v7022 = vmul.f32 1.0, %v7021
    %v7024 = vrot.slane %v7000, 2
    %v7026 = vmul.f32 %v7012, %v7024
    %v7027 = vadd.f32 %v5051, %v7026
    %v7028 = vtanh.pop %v7027
    %v7029 = vsub.f32 1.0, %v7022
    %v7030 = vmul.f32 %v7029, %v7028
    %v7031 = vrot.slane %v6787, 6
    %v7033 = vmul.f32 %v7022, %v7031
    %v7034 = vadd.f32 %v7030, %v7033
    %7035 = vst.msk [vmem:[#allocation2 + $0x8] sm:$0xc0] %vm1529, %v7034
    %v7036 = vld [vmem:[#allocation2] sm:$0xff]
    %v7037 = vld [vmem:[#allocation2 + $0x8] sm:$0xff]
    %v7038 = vld [vmem:[%s13] sm:$0xff]
    %v7039 = vld [vmem:[%s13 + $0x8] sm:$0xff]
    %v7040 = vld [vmem:[%s13 + $0x10] sm:$0xff]
    %v7041 = vld [vmem:[%s13 + $0x18] sm:$0xff]
    %v7042 = vld [vmem:[%s13 + $0x20] sm:$0xff]
    %v7043 = vld [vmem:[%s13 + $0x28] sm:$0xff]
    %v7044 = vld [vmem:[%s13 + $0x30] sm:$0xff]
    %v7045 = vld [vmem:[%s13 + $0x38] sm:$0xff]
    %v7046 = vld [vmem:[#allocation22] sm:$0x1]
    %v7048 = vlaneseq
    %v7049 = vshrl.u32 %v7048, 7
    %v7050 = vsub.s32 0, %v7049
    %v7051 = vrot.slane %v7046, %v7050
    %v7054 = vsel %vm545, %v7036, 0
    %v7057 = vsel %vm545, %v7037, 0
    %7059 = vmatprep.subr.mxu0 0.0
    %7060 = vmatpush1.msra.mxu0 %v7038
    %7061 = vmatprep.subr.mxu0 0.0
    %7062 = vmatpush1.msra.mxu0 %v7039
    %7063 = vmatprep.subr.mxu0 0.0
    %7064 = vmatpush1.msra.mxu0 %v7040
    %7065 = vmatprep.subr.mxu0 0.0
    %7066 = vmatpush1.msra.mxu0 %v7041
    %7067 = vmatprep.subr.mxu0 0.0
    %7068 = vmatpush1.msra.mxu0 %v7042
    %7069 = vmatprep.subr.mxu0 0.0
    %7070 = vmatpush1.msra.mxu0 %v7043
    %7071 = vmatprep.subr.mxu0 0.0
    %7072 = vmatpush1.msra.mxu0 %v7044
    %7073 = vmatprep.subr.mxu0 0.0
    %7074 = vmatpush1.msra.mxu0 %v7045
    %7075 = vmatprep.subr.mxu0 0.0
    %7076 = vmatpush1.msra.mxu0 0.0
    %7077 = vmatprep.subr.mxu0 0.0
    %7078 = vmatpush1.msra.mxu0 0.0
    %7079 = vmatprep.subr.mxu0 0.0
    %7080 = vmatpush1.msra.mxu0 0.0
    %7081 = vmatprep.subr.mxu0 0.0
    %7082 = vmatpush1.msra.mxu0 0.0
    %7083 = vmatprep.subr.mxu0 0.0
    %7084 = vmatpush1.msra.mxu0 0.0
    %7085 = vmatprep.subr.mxu0 0.0
    %7086 = vmatpush1.msra.mxu0 0.0
    %7087 = vmatprep.subr.mxu0 0.0
    %7088 = vmatpush1.msra.mxu0 0.0
    %7089 = vmatprep.subr.mxu0 0.0
    %7090 = vmatpush1.msra.mxu0 0.0
    %7091 = vmatprep.subr.mxu0 0.0
    %7092 = vmatpush1.msra.mxu0 0.0
    %7093 = vmatprep.subr.mxu0 0.0
    %7094 = vmatpush1.msra.mxu0 0.0
    %7095 = vmatprep.subr.mxu0 0.0
    %7096 = vmatpush1.msra.mxu0 0.0
    %7097 = vmatprep.subr.mxu0 0.0
    %7098 = vmatpush1.msra.mxu0 0.0
    %7099 = vmatprep.subr.mxu0 0.0
    %7100 = vmatpush1.msra.mxu0 0.0
    %7101 = vmatprep.subr.mxu0 0.0
    %7102 = vmatpush1.msra.mxu0 0.0
    %7103 = vmatprep.subr.mxu0 0.0
    %7104 = vmatpush1.msra.mxu0 0.0
    %7105 = vmatprep.subr.mxu0 0.0
    %7106 = vmatpush1.msra.mxu0 0.0
    %7107 = vmatprep.subr.mxu0 0.0
    %7108 = vmatpush1.msra.mxu0 0.0
    %7109 = vmatprep.subr.mxu0 0.0
    %7110 = vmatpush1.msra.mxu0 0.0
    %7111 = vmatprep.subr.mxu0 0.0
    %7112 = vmatpush1.msra.mxu0 0.0
    %7113 = vmatprep.subr.mxu0 0.0
    %7114 = vmatpush1.msra.mxu0 0.0
    %7115 = vmatprep.subr.mxu0 0.0
    %7116 = vmatpush1.msra.mxu0 0.0
    %7117 = vmatprep.subr.mxu0 0.0
    %7118 = vmatpush1.msra.mxu0 0.0
    %7119 = vmatprep.subr.mxu0 0.0
    %7120 = vmatpush1.msra.mxu0 0.0
    %7121 = vmatprep.subr.mxu0 0.0
    %7122 = vmatpush1.msra.mxu0 0.0
    %7123 = vmatprep.mubr.f32.mxu0 0.0
    %7124 = vmatmul.mubr.f32.gmra.mrb[0].mxu0 %v7054
    %v7125 = vpop.f32.mrb[0].mxu0
    %v7126 = vadd.f32 %v7051, %v7125
    %v7127 = vpop.f32.mrb[0].mxu0
    %7128 = vmatprep.mubr.f32.mxu0 0.0
    %7129 = vmatmul.mubr.f32.gmra.mrb[0].mxu0 %v7057
    %v7130 = vpop.f32.mrb[0].mxu0
    %v7131 = vadd.f32 %v7051, %v7130
    %v7132 = vpop.f32.mrb[0].mxu0
    %7133 = vdwg.mxu0
    %s7134 = scalar_lea.vmem %s13, 64
    %v7135 = vld [vmem:[%s7134] sm:$0xff]
    %v7136 = vld [vmem:[%s7134 + $0x8] sm:$0xff]
    %v7137 = vld [vmem:[%s7134 + $0x10] sm:$0xff]
    %v7138 = vld [vmem:[%s7134 + $0x18] sm:$0xff]
    %v7139 = vld [vmem:[%s7134 + $0x20] sm:$0xff]
    %v7140 = vld [vmem:[%s7134 + $0x28] sm:$0xff]
    %v7141 = vld [vmem:[%s7134 + $0x30] sm:$0xff]
    %v7142 = vld [vmem:[%s7134 + $0x38] sm:$0xff]
    %s7143 = scalar_lea.vmem [#allocation22], 1
    %v7144 = vld [vmem:[%s7143] sm:$0x1]
    %v7146 = vlaneseq
    %v7147 = vshrl.u32 %v7146, 7
    %v7148 = vsub.s32 0, %v7147
    %v7149 = vrot.slane %v7144, %v7148
    %7151 = vmatprep.subr.mxu0 0.0
    %7152 = vmatpush1.msra.mxu0 %v7135
    %7153 = vmatprep.subr.mxu0 0.0
    %7154 = vmatpush1.msra.mxu0 %v7136
    %7155 = vmatprep.subr.mxu0 0.0
    %7156 = vmatpush1.msra.mxu0 %v7137
    %7157 = vmatprep.subr.mxu0 0.0
    %7158 = vmatpush1.msra.mxu0 %v7138
    %7159 = vmatprep.subr.mxu0 0.0
    %7160 = vmatpush1.msra.mxu0 %v7139
    %7161 = vmatprep.subr.mxu0 0.0
    %7162 = vmatpush1.msra.mxu0 %v7140
    %7163 = vmatprep.subr.mxu0 0.0
    %7164 = vmatpush1.msra.mxu0 %v7141
    %7165 = vmatprep.subr.mxu0 0.0
    %7166 = vmatpush1.msra.mxu0 %v7142
    %7167 = vmatprep.subr.mxu0 0.0
    %7168 = vmatpush1.msra.mxu0 0.0
    %7169 = vmatprep.subr.mxu0 0.0
    %7170 = vmatpush1.msra.mxu0 0.0
    %7171 = vmatprep.subr.mxu0 0.0
    %7172 = vmatpush1.msra.mxu0 0.0
    %7173 = vmatprep.subr.mxu0 0.0
    %7174 = vmatpush1.msra.mxu0 0.0
    %7175 = vmatprep.subr.mxu0 0.0
    %7176 = vmatpush1.msra.mxu0 0.0
    %7177 = vmatprep.subr.mxu0 0.0
    %7178 = vmatpush1.msra.mxu0 0.0
    %7179 = vmatprep.subr.mxu0 0.0
    %7180 = vmatpush1.msra.mxu0 0.0
    %7181 = vmatprep.subr.mxu0 0.0
    %7182 = vmatpush1.msra.mxu0 0.0
    %7183 = vmatprep.subr.mxu0 0.0
    %7184 = vmatpush1.msra.mxu0 0.0
    %7185 = vmatprep.subr.mxu0 0.0
    %7186 = vmatpush1.msra.mxu0 0.0
    %7187 = vmatprep.subr.mxu0 0.0
    %7188 = vmatpush1.msra.mxu0 0.0
    %7189 = vmatprep.subr.mxu0 0.0
    %7190 = vmatpush1.msra.mxu0 0.0
    %7191 = vmatprep.subr.mxu0 0.0
    %7192 = vmatpush1.msra.mxu0 0.0
    %7193 = vmatprep.subr.mxu0 0.0
    %7194 = vmatpush1.msra.mxu0 0.0
    %7195 = vmatprep.subr.mxu0 0.0
    %7196 = vmatpush1.msra.mxu0 0.0
    %7197 = vmatprep.subr.mxu0 0.0
    %7198 = vmatpush1.msra.mxu0 0.0
    %7199 = vmatprep.subr.mxu0 0.0
    %7200 = vmatpush1.msra.mxu0 0.0
    %7201 = vmatprep.subr.mxu0 0.0
    %7202 = vmatpush1.msra.mxu0 0.0
    %7203 = vmatprep.subr.mxu0 0.0
    %7204 = vmatpush1.msra.mxu0 0.0
    %7205 = vmatprep.subr.mxu0 0.0
    %7206 = vmatpush1.msra.mxu0 0.0
    %7207 = vmatprep.subr.mxu0 0.0
    %7208 = vmatpush1.msra.mxu0 0.0
    %7209 = vmatprep.subr.mxu0 0.0
    %7210 = vmatpush1.msra.mxu0 0.0
    %7211 = vmatprep.subr.mxu0 0.0
    %7212 = vmatpush1.msra.mxu0 0.0
    %7213 = vmatprep.subr.mxu0 0.0
    %7214 = vmatpush1.msra.mxu0 0.0
    %7215 = vmatprep.mubr.f32.mxu0 0.0
    %7216 = vmatmul.mubr.f32.gmra.mrb[0].mxu0 %v7054
    %v7217 = vpop.f32.mrb[0].mxu0
    %v7218 = vadd.f32 %v7149, %v7217
    %v7219 = vpop.f32.mrb[0].mxu0
    %7220 = vmatprep.mubr.f32.mxu0 0.0
    %7221 = vmatmul.mubr.f32.gmra.mrb[0].mxu0 %v7057
    %v7222 = vpop.f32.mrb[0].mxu0
    %v7223 = vadd.f32 %v7149, %v7222
    %v7224 = vpop.f32.mrb[0].mxu0
    %7225 = vdwg.mxu0
    %s7226 = scalar_lea.vmem %s13, 128
    %v7227 = vld [vmem:[%s7226] sm:$0xff]
    %v7228 = vld [vmem:[%s7226 + $0x8] sm:$0xff]
    %v7229 = vld [vmem:[%s7226 + $0x10] sm:$0xff]
    %v7230 = vld [vmem:[%s7226 + $0x18] sm:$0xff]
    %v7231 = vld [vmem:[%s7226 + $0x20] sm:$0xff]
    %v7232 = vld [vmem:[%s7226 + $0x28] sm:$0xff]
    %v7233 = vld [vmem:[%s7226 + $0x30] sm:$0xff]
    %v7234 = vld [vmem:[%s7226 + $0x38] sm:$0xff]
    %s7235 = scalar_lea.vmem [#allocation22], 2
    %v7236 = vld [vmem:[%s7235] sm:$0x1]
    %v7238 = vlaneseq
    %v7239 = vshrl.u32 %v7238, 7
    %v7240 = vsub.s32 0, %v7239
    %v7241 = vrot.slane %v7236, %v7240
    %7243 = vmatprep.subr.mxu0 0.0
    %7244 = vmatpush1.msra.mxu0 %v7227
    %7245 = vmatprep.subr.mxu0 0.0
    %7246 = vmatpush1.msra.mxu0 %v7228
    %7247 = vmatprep.subr.mxu0 0.0
    %7248 = vmatpush1.msra.mxu0 %v7229
    %7249 = vmatprep.subr.mxu0 0.0
    %7250 = vmatpush1.msra.mxu0 %v7230
    %7251 = vmatprep.subr.mxu0 0.0
    %7252 = vmatpush1.msra.mxu0 %v7231
    %7253 = vmatprep.subr.mxu0 0.0
    %7254 = vmatpush1.msra.mxu0 %v7232
    %7255 = vmatprep.subr.mxu0 0.0
    %7256 = vmatpush1.msra.mxu0 %v7233
    %7257 = vmatprep.subr.mxu0 0.0
    %7258 = vmatpush1.msra.mxu0 %v7234
    %7259 = vmatprep.subr.mxu0 0.0
    %7260 = vmatpush1.msra.mxu0 0.0
    %7261 = vmatprep.subr.mxu0 0.0
    %7262 = vmatpush1.msra.mxu0 0.0
    %7263 = vmatprep.subr.mxu0 0.0
    %7264 = vmatpush1.msra.mxu0 0.0
    %7265 = vmatprep.subr.mxu0 0.0
    %7266 = vmatpush1.msra.mxu0 0.0
    %7267 = vmatprep.subr.mxu0 0.0
    %7268 = vmatpush1.msra.mxu0 0.0
    %7269 = vmatprep.subr.mxu0 0.0
    %7270 = vmatpush1.msra.mxu0 0.0
    %7271 = vmatprep.subr.mxu0 0.0
    %7272 = vmatpush1.msra.mxu0 0.0
    %7273 = vmatprep.subr.mxu0 0.0
    %7274 = vmatpush1.msra.mxu0 0.0
    %7275 = vmatprep.subr.mxu0 0.0
    %7276 = vmatpush1.msra.mxu0 0.0
    %7277 = vmatprep.subr.mxu0 0.0
    %7278 = vmatpush1.msra.mxu0 0.0
    %7279 = vmatprep.subr.mxu0 0.0
    %7280 = vmatpush1.msra.mxu0 0.0
    %7281 = vmatprep.subr.mxu0 0.0
    %7282 = vmatpush1.msra.mxu0 0.0
    %7283 = vmatprep.subr.mxu0 0.0
    %7284 = vmatpush1.msra.mxu0 0.0
    %7285 = vmatprep.subr.mxu0 0.0
    %7286 = vmatpush1.msra.mxu0 0.0
    %7287 = vmatprep.subr.mxu0 0.0
    %7288 = vmatpush1.msra.mxu0 0.0
    %7289 = vmatprep.subr.mxu0 0.0
    %7290 = vmatpush1.msra.mxu0 0.0
    %7291 = vmatprep.subr.mxu0 0.0
    %7292 = vmatpush1.msra.mxu0 0.0
    %7293 = vmatprep.subr.mxu0 0.0
    %7294 = vmatpush1.msra.mxu0 0.0
    %7295 = vmatprep.subr.mxu0 0.0
    %7296 = vmatpush1.msra.mxu0 0.0
    %7297 = vmatprep.subr.mxu0 0.0
    %7298 = vmatpush1.msra.mxu0 0.0
    %7299 = vmatprep.subr.mxu0 0.0
    %7300 = vmatpush1.msra.mxu0 0.0
    %7301 = vmatprep.subr.mxu0 0.0
    %7302 = vmatpush1.msra.mxu0 0.0
    %7303 = vmatprep.subr.mxu0 0.0
    %7304 = vmatpush1.msra.mxu0 0.0
    %7305 = vmatprep.subr.mxu0 0.0
    %7306 = vmatpush1.msra.mxu0 0.0
    %7307 = vmatprep.mubr.f32.mxu0 0.0
    %7308 = vmatmul.mubr.f32.gmra.mrb[0].mxu0 %v7054
    %v7309 = vpop.f32.mrb[0].mxu0
    %v7310 = vadd.f32 %v7241, %v7309
    %v7311 = vpop.f32.mrb[0].mxu0
    %7312 = vmatprep.mubr.f32.mxu0 0.0
    %7313 = vmatmul.mubr.f32.gmra.mrb[0].mxu0 %v7057
    %v7314 = vpop.f32.mrb[0].mxu0
    %v7315 = vadd.f32 %v7241, %v7314
    %v7316 = vpop.f32.mrb[0].mxu0
    %7317 = vdwg.mxu0
    %v7318 = vld [vmem:[#allocation20] sm:$0xff]
    %v7319 = vld [vmem:[#allocation20 + $0x8] sm:$0xff]
    %v7320 = vld [vmem:[#allocation20 + $0x10] sm:$0xff]
    %v7321 = vld [vmem:[#allocation20 + $0x18] sm:$0xff]
    %v7322 = vld [vmem:[#allocation20 + $0x20] sm:$0xff]
    %v7323 = vld [vmem:[#allocation20 + $0x28] sm:$0xff]
    %v7324 = vld [vmem:[#allocation20 + $0x30] sm:$0xff]
    %v7325 = vld [vmem:[#allocation20 + $0x38] sm:$0xff]
    %s7326 = scalar_lea.vmem [#allocation20], 64
    %v7327 = vld [vmem:[%s7326] sm:$0xff]
    %v7328 = vld [vmem:[%s7326 + $0x8] sm:$0xff]
    %v7329 = vld [vmem:[%s7326 + $0x10] sm:$0xff]
    %v7330 = vld [vmem:[%s7326 + $0x18] sm:$0xff]
    %v7331 = vld [vmem:[%s7326 + $0x20] sm:$0xff]
    %v7332 = vld [vmem:[%s7326 + $0x28] sm:$0xff]
    %v7333 = vld [vmem:[%s7326 + $0x30] sm:$0xff]
    %v7334 = vld [vmem:[%s7326 + $0x38] sm:$0xff]
    %s7335 = scalar_lea.vmem [#allocation20], 128
    %v7336 = vld [vmem:[%s7335] sm:$0xff]
    %v7337 = vld [vmem:[%s7335 + $0x8] sm:$0xff]
    %v7338 = vld [vmem:[%s7335 + $0x10] sm:$0xff]
    %v7339 = vld [vmem:[%s7335 + $0x18] sm:$0xff]
    %v7340 = vld [vmem:[%s7335 + $0x20] sm:$0xff]
    %v7341 = vld [vmem:[%s7335 + $0x28] sm:$0xff]
    %v7342 = vld [vmem:[%s7335 + $0x30] sm:$0xff]
    %v7343 = vld [vmem:[%s7335 + $0x38] sm:$0xff]
    %v7344 = vld [vmem:[#allocation23] sm:$0x1]
    %7345 = vmatprep.subr.mxu0 0.0
    %7346 = vmatpush1.msra.mxu0 %v7318
    %7347 = vmatprep.subr.mxu0 0.0
    %7348 = vmatpush1.msra.mxu0 %v7319
    %7349 = vmatprep.subr.mxu0 0.0
    %7350 = vmatpush1.msra.mxu0 %v7320
    %7351 = vmatprep.subr.mxu0 0.0
    %7352 = vmatpush1.msra.mxu0 %v7321
    %7353 = vmatprep.subr.mxu0 0.0
    %7354 = vmatpush1.msra.mxu0 %v7322
    %7355 = vmatprep.subr.mxu0 0.0
    %7356 = vmatpush1.msra.mxu0 %v7323
    %7357 = vmatprep.subr.mxu0 0.0
    %7358 = vmatpush1.msra.mxu0 %v7324
    %7359 = vmatprep.subr.mxu0 0.0
    %7360 = vmatpush1.msra.mxu0 %v7325
    %7361 = vmatprep.subr.mxu0 0.0
    %7362 = vmatpush1.msra.mxu0 0.0
    %7363 = vmatprep.subr.mxu0 0.0
    %7364 = vmatpush1.msra.mxu0 0.0
    %7365 = vmatprep.subr.mxu0 0.0
    %7366 = vmatpush1.msra.mxu0 0.0
    %7367 = vmatprep.subr.mxu0 0.0
    %7368 = vmatpush1.msra.mxu0 0.0
    %7369 = vmatprep.subr.mxu0 0.0
    %7370 = vmatpush1.msra.mxu0 0.0
    %7371 = vmatprep.subr.mxu0 0.0
    %7372 = vmatpush1.msra.mxu0 0.0
    %7373 = vmatprep.subr.mxu0 0.0
    %7374 = vmatpush1.msra.mxu0 0.0
    %7375 = vmatprep.subr.mxu0 0.0
    %7376 = vmatpush1.msra.mxu0 0.0
    %7377 = vmatprep.subr.mxu0 0.0
    %7378 = vmatpush1.msra.mxu0 0.0
    %7379 = vmatprep.subr.mxu0 0.0
    %7380 = vmatpush1.msra.mxu0 0.0
    %7381 = vmatprep.subr.mxu0 0.0
    %7382 = vmatpush1.msra.mxu0 0.0
    %7383 = vmatprep.subr.mxu0 0.0
    %7384 = vmatpush1.msra.mxu0 0.0
    %7385 = vmatprep.subr.mxu0 0.0
    %7386 = vmatpush1.msra.mxu0 0.0
    %7387 = vmatprep.subr.mxu0 0.0
    %7388 = vmatpush1.msra.mxu0 0.0
    %7389 = vmatprep.subr.mxu0 0.0
    %7390 = vmatpush1.msra.mxu0 0.0
    %7391 = vmatprep.subr.mxu0 0.0
    %7392 = vmatpush1.msra.mxu0 0.0
    %7393 = vmatprep.subr.mxu0 0.0
    %7394 = vmatpush1.msra.mxu0 0.0
    %7395 = vmatprep.subr.mxu0 0.0
    %7396 = vmatpush1.msra.mxu0 0.0
    %7397 = vmatprep.subr.mxu0 0.0
    %7398 = vmatpush1.msra.mxu0 0.0
    %7399 = vmatprep.subr.mxu0 0.0
    %7400 = vmatpush1.msra.mxu0 0.0
    %7401 = vmatprep.subr.mxu0 0.0
    %7402 = vmatpush1.msra.mxu0 0.0
    %7403 = vmatprep.subr.mxu0 0.0
    %7404 = vmatpush1.msra.mxu0 0.0
    %7405 = vmatprep.subr.mxu0 0.0
    %7406 = vmatpush1.msra.mxu0 0.0
    %7407 = vmatprep.subr.mxu0 0.0
    %7408 = vmatpush1.msra.mxu0 0.0
    %7409 = vmatprep.mubr.f32.mxu0 0.0
    %7410 = vmatmul.mubr.f32.gmra.mrb[0].mxu0 %v547
    %v7411 = vpop.f32.mrb[0].mxu0
    %v7412 = vadd.f32 0.0, %v7411
    %v7413 = vpop.f32.mrb[0].mxu0
    %7414 = vdwg.mxu0
    %7415 = vmatprep.subr.mxu0 0.0
    %7416 = vmatpush1.msra.mxu0 %v7327
    %7417 = vmatprep.subr.mxu0 0.0
    %7418 = vmatpush1.msra.mxu0 %v7328
    %7419 = vmatprep.subr.mxu0 0.0
    %7420 = vmatpush1.msra.mxu0 %v7329
    %7421 = vmatprep.subr.mxu0 0.0
    %7422 = vmatpush1.msra.mxu0 %v7330
    %7423 = vmatprep.subr.mxu0 0.0
    %7424 = vmatpush1.msra.mxu0 %v7331
    %7425 = vmatprep.subr.mxu0 0.0
    %7426 = vmatpush1.msra.mxu0 %v7332
    %7427 = vmatprep.subr.mxu0 0.0
    %7428 = vmatpush1.msra.mxu0 %v7333
    %7429 = vmatprep.subr.mxu0 0.0
    %7430 = vmatpush1.msra.mxu0 %v7334
    %7431 = vmatprep.subr.mxu0 0.0
    %7432 = vmatpush1.msra.mxu0 0.0
    %7433 = vmatprep.subr.mxu0 0.0
    %7434 = vmatpush1.msra.mxu0 0.0
    %7435 = vmatprep.subr.mxu0 0.0
    %7436 = vmatpush1.msra.mxu0 0.0
    %7437 = vmatprep.subr.mxu0 0.0
    %7438 = vmatpush1.msra.mxu0 0.0
    %7439 = vmatprep.subr.mxu0 0.0
    %7440 = vmatpush1.msra.mxu0 0.0
    %7441 = vmatprep.subr.mxu0 0.0
    %7442 = vmatpush1.msra.mxu0 0.0
    %7443 = vmatprep.subr.mxu0 0.0
    %7444 = vmatpush1.msra.mxu0 0.0
    %7445 = vmatprep.subr.mxu0 0.0
    %7446 = vmatpush1.msra.mxu0 0.0
    %7447 = vmatprep.subr.mxu0 0.0
    %7448 = vmatpush1.msra.mxu0 0.0
    %7449 = vmatprep.subr.mxu0 0.0
    %7450 = vmatpush1.msra.mxu0 0.0
    %7451 = vmatprep.subr.mxu0 0.0
    %7452 = vmatpush1.msra.mxu0 0.0
    %7453 = vmatprep.subr.mxu0 0.0
    %7454 = vmatpush1.msra.mxu0 0.0
    %7455 = vmatprep.subr.mxu0 0.0
    %7456 = vmatpush1.msra.mxu0 0.0
    %7457 = vmatprep.subr.mxu0 0.0
    %7458 = vmatpush1.msra.mxu0 0.0
    %7459 = vmatprep.subr.mxu0 0.0
    %7460 = vmatpush1.msra.mxu0 0.0
    %7461 = vmatprep.subr.mxu0 0.0
    %7462 = vmatpush1.msra.mxu0 0.0
    %7463 = vmatprep.subr.mxu0 0.0
    %7464 = vmatpush1.msra.mxu0 0.0
    %7465 = vmatprep.subr.mxu0 0.0
    %7466 = vmatpush1.msra.mxu0 0.0
    %7467 = vmatprep.subr.mxu0 0.0
    %7468 = vmatpush1.msra.mxu0 0.0
    %7469 = vmatprep.subr.mxu0 0.0
    %7470 = vmatpush1.msra.mxu0 0.0
    %7471 = vmatprep.subr.mxu0 0.0
    %7472 = vmatpush1.msra.mxu0 0.0
    %7473 = vmatprep.subr.mxu0 0.0
    %7474 = vmatpush1.msra.mxu0 0.0
    %7475 = vmatprep.subr.mxu0 0.0
    %7476 = vmatpush1.msra.mxu0 0.0
    %7477 = vmatprep.subr.mxu0 0.0
    %7478 = vmatpush1.msra.mxu0 0.0
    %7479 = vmatprep.mubr.f32.mxu0 0.0
    %7480 = vmatmul.mubr.f32.gmra.mrb[0].mxu0 %v547
    %v7481 = vpop.f32.mrb[0].mxu0
    %v7482 = vadd.f32 0.0, %v7481
    %v7483 = vpop.f32.mrb[0].mxu0
    %7484 = vdwg.mxu0
    %v7486 = vlaneseq
    %v7487 = vshrl.u32 %v7486, 7
    %v7488 = vsub.s32 0, %v7487
    %v7489 = vrot.slane %v7344, %v7488
    %7491 = vmatprep.subr.mxu0 0.0
    %7492 = vmatpush1.msra.mxu0 %v7336
    %7493 = vmatprep.subr.mxu0 0.0
    %7494 = vmatpush1.msra.mxu0 %v7337
    %7495 = vmatprep.subr.mxu0 0.0
    %7496 = vmatpush1.msra.mxu0 %v7338
    %7497 = vmatprep.subr.mxu0 0.0
    %7498 = vmatpush1.msra.mxu0 %v7339
    %7499 = vmatprep.subr.mxu0 0.0
    %7500 = vmatpush1.msra.mxu0 %v7340
    %7501 = vmatprep.subr.mxu0 0.0
    %7502 = vmatpush1.msra.mxu0 %v7341
    %7503 = vmatprep.subr.mxu0 0.0
    %7504 = vmatpush1.msra.mxu0 %v7342
    %7505 = vmatprep.subr.mxu0 0.0
    %7506 = vmatpush1.msra.mxu0 %v7343
    %7507 = vmatprep.subr.mxu0 0.0
    %7508 = vmatpush1.msra.mxu0 0.0
    %7509 = vmatprep.subr.mxu0 0.0
    %7510 = vmatpush1.msra.mxu0 0.0
    %7511 = vmatprep.subr.mxu0 0.0
    %7512 = vmatpush1.msra.mxu0 0.0
    %7513 = vmatprep.subr.mxu0 0.0
    %7514 = vmatpush1.msra.mxu0 0.0
    %7515 = vmatprep.subr.mxu0 0.0
    %7516 = vmatpush1.msra.mxu0 0.0
    %7517 = vmatprep.subr.mxu0 0.0
    %7518 = vmatpush1.msra.mxu0 0.0
    %7519 = vmatprep.subr.mxu0 0.0
    %7520 = vmatpush1.msra.mxu0 0.0
    %7521 = vmatprep.subr.mxu0 0.0
    %7522 = vmatpush1.msra.mxu0 0.0
    %7523 = vmatprep.subr.mxu0 0.0
    %7524 = vmatpush1.msra.mxu0 0.0
    %7525 = vmatprep.subr.mxu0 0.0
    %7526 = vmatpush1.msra.mxu0 0.0
    %7527 = vmatprep.subr.mxu0 0.0
    %7528 = vmatpush1.msra.mxu0 0.0
    %7529 = vmatprep.subr.mxu0 0.0
    %7530 = vmatpush1.msra.mxu0 0.0
    %7531 = vmatprep.subr.mxu0 0.0
    %7532 = vmatpush1.msra.mxu0 0.0
    %7533 = vmatprep.subr.mxu0 0.0
    %7534 = vmatpush1.msra.mxu0 0.0
    %7535 = vmatprep.subr.mxu0 0.0
    %7536 = vmatpush1.msra.mxu0 0.0
    %7537 = vmatprep.subr.mxu0 0.0
    %7538 = vmatpush1.msra.mxu0 0.0
    %7539 = vmatprep.subr.mxu0 0.0
    %7540 = vmatpush1.msra.mxu0 0.0
    %7541 = vmatprep.subr.mxu0 0.0
    %7542 = vmatpush1.msra.mxu0 0.0
    %7543 = vmatprep.subr.mxu0 0.0
    %7544 = vmatpush1.msra.mxu0 0.0
    %7545 = vmatprep.subr.mxu0 0.0
    %7546 = vmatpush1.msra.mxu0 0.0
    %7547 = vmatprep.subr.mxu0 0.0
    %7548 = vmatpush1.msra.mxu0 0.0
    %7549 = vmatprep.subr.mxu0 0.0
    %7550 = vmatpush1.msra.mxu0 0.0
    %7551 = vmatprep.subr.mxu0 0.0
    %7552 = vmatpush1.msra.mxu0 0.0
    %7553 = vmatprep.subr.mxu0 0.0
    %7554 = vmatpush1.msra.mxu0 0.0
    %7555 = vmatprep.mubr.f32.mxu0 0.0
    %7556 = vmatmul.mubr.f32.gmra.mrb[0].mxu0 %v547
    %v7557 = vpop.f32.mrb[0].mxu0
    %v7558 = vadd.f32 %v7489, %v7557
    %v7559 = vpop.f32.mrb[0].mxu0
    %7560 = vdwg.mxu0
    %v7561 = vadd.f32 %v7126, %v7412
    %v7562 = vxor.u32 %v7561, 2147483648
    %v7563 = vmul.f32 %v7562, 1.442695
    %v7564 = vpow.pop %v7563
    %v7565 = vadd.f32 %v7564, 1.0
    %v7566 = vrcp.pop %v7565
    %v7567 = vmul.f32 1.0, %v7566
    %v7568 = vadd.f32 %v7218, %v7482
    %v7569 = vxor.u32 %v7568, 2147483648
    %v7570 = vmul.f32 %v7569, 1.442695
    %v7571 = vpow.pop %v7570
    %v7572 = vadd.f32 %v7571, 1.0
    %v7573 = vrcp.pop %v7572
    %v7574 = vmul.f32 1.0, %v7573
    %v7575 = vmul.f32 %v7567, %v7558
    %v7576 = vadd.f32 %v7310, %v7575
    %v7577 = vtanh.pop %v7576
    %v7578 = vsub.f32 1.0, %v7574
    %v7579 = vmul.f32 %v7578, %v7577
    %v7580 = vmul.f32 %v7574, 0.0
    %v7581 = vadd.f32 %v7579, %v7580
    %7582 = vst.msk [vmem:[#allocation4] sm:$0x3] %vm786, %v7581
    %v7584 = vsel %vm545, %v7581, 0
    %7586 = vmatprep.subr.mxu0 0.0
    %7587 = vmatpush1.msra.mxu0 %v7318
    %7588 = vmatprep.subr.mxu0 0.0
    %7589 = vmatpush1.msra.mxu0 %v7319
    %7590 = vmatprep.subr.mxu0 0.0
    %7591 = vmatpush1.msra.mxu0 %v7320
    %7592 = vmatprep.subr.mxu0 0.0
    %7593 = vmatpush1.msra.mxu0 %v7321
    %7594 = vmatprep.subr.mxu0 0.0
    %7595 = vmatpush1.msra.mxu0 %v7322
    %7596 = vmatprep.subr.mxu0 0.0
    %7597 = vmatpush1.msra.mxu0 %v7323
    %7598 = vmatprep.subr.mxu0 0.0
    %7599 = vmatpush1.msra.mxu0 %v7324
    %7600 = vmatprep.subr.mxu0 0.0
    %7601 = vmatpush1.msra.mxu0 %v7325
    %7602 = vmatprep.subr.mxu0 0.0
    %7603 = vmatpush1.msra.mxu0 0.0
    %7604 = vmatprep.subr.mxu0 0.0
    %7605 = vmatpush1.msra.mxu0 0.0
    %7606 = vmatprep.subr.mxu0 0.0
    %7607 = vmatpush1.msra.mxu0 0.0
    %7608 = vmatprep.subr.mxu0 0.0
    %7609 = vmatpush1.msra.mxu0 0.0
    %7610 = vmatprep.subr.mxu0 0.0
    %7611 = vmatpush1.msra.mxu0 0.0
    %7612 = vmatprep.subr.mxu0 0.0
    %7613 = vmatpush1.msra.mxu0 0.0
    %7614 = vmatprep.subr.mxu0 0.0
    %7615 = vmatpush1.msra.mxu0 0.0
    %7616 = vmatprep.subr.mxu0 0.0
    %7617 = vmatpush1.msra.mxu0 0.0
    %7618 = vmatprep.subr.mxu0 0.0
    %7619 = vmatpush1.msra.mxu0 0.0
    %7620 = vmatprep.subr.mxu0 0.0
    %7621 = vmatpush1.msra.mxu0 0.0
    %7622 = vmatprep.subr.mxu0 0.0
    %7623 = vmatpush1.msra.mxu0 0.0
    %7624 = vmatprep.subr.mxu0 0.0
    %7625 = vmatpush1.msra.mxu0 0.0
    %7626 = vmatprep.subr.mxu0 0.0
    %7627 = vmatpush1.msra.mxu0 0.0
    %7628 = vmatprep.subr.mxu0 0.0
    %7629 = vmatpush1.msra.mxu0 0.0
    %7630 = vmatprep.subr.mxu0 0.0
    %7631 = vmatpush1.msra.mxu0 0.0
    %7632 = vmatprep.subr.mxu0 0.0
    %7633 = vmatpush1.msra.mxu0 0.0
    %7634 = vmatprep.subr.mxu0 0.0
    %7635 = vmatpush1.msra.mxu0 0.0
    %7636 = vmatprep.subr.mxu0 0.0
    %7637 = vmatpush1.msra.mxu0 0.0
    %7638 = vmatprep.subr.mxu0 0.0
    %7639 = vmatpush1.msra.mxu0 0.0
    %7640 = vmatprep.subr.mxu0 0.0
    %7641 = vmatpush1.msra.mxu0 0.0
    %7642 = vmatprep.subr.mxu0 0.0
    %7643 = vmatpush1.msra.mxu0 0.0
    %7644 = vmatprep.subr.mxu0 0.0
    %7645 = vmatpush1.msra.mxu0 0.0
    %7646 = vmatprep.subr.mxu0 0.0
    %7647 = vmatpush1.msra.mxu0 0.0
    %7648 = vmatprep.subr.mxu0 0.0
    %7649 = vmatpush1.msra.mxu0 0.0
    %7650 = vmatprep.mubr.f32.mxu0 0.0
    %7651 = vmatmul.mubr.f32.gmra.mrb[0].mxu0 %v7584
    %v7652 = vpop.f32.mrb[0].mxu0
    %v7653 = vadd.f32 0.0, %v7652
    %v7654 = vpop.f32.mrb[0].mxu0
    %7655 = vdwg.mxu0
    %7656 = vmatprep.subr.mxu0 0.0
    %7657 = vmatpush1.msra.mxu0 %v7327
    %7658 = vmatprep.subr.mxu0 0.0
    %7659 = vmatpush1.msra.mxu0 %v7328
    %7660 = vmatprep.subr.mxu0 0.0
    %7661 = vmatpush1.msra.mxu0 %v7329
    %7662 = vmatprep.subr.mxu0 0.0
    %7663 = vmatpush1.msra.mxu0 %v7330
    %7664 = vmatprep.subr.mxu0 0.0
    %7665 = vmatpush1.msra.mxu0 %v7331
    %7666 = vmatprep.subr.mxu0 0.0
    %7667 = vmatpush1.msra.mxu0 %v7332
    %7668 = vmatprep.subr.mxu0 0.0
    %7669 = vmatpush1.msra.mxu0 %v7333
    %7670 = vmatprep.subr.mxu0 0.0
    %7671 = vmatpush1.msra.mxu0 %v7334
    %7672 = vmatprep.subr.mxu0 0.0
    %7673 = vmatpush1.msra.mxu0 0.0
    %7674 = vmatprep.subr.mxu0 0.0
    %7675 = vmatpush1.msra.mxu0 0.0
    %7676 = vmatprep.subr.mxu0 0.0
    %7677 = vmatpush1.msra.mxu0 0.0
    %7678 = vmatprep.subr.mxu0 0.0
    %7679 = vmatpush1.msra.mxu0 0.0
    %7680 = vmatprep.subr.mxu0 0.0
    %7681 = vmatpush1.msra.mxu0 0.0
    %7682 = vmatprep.subr.mxu0 0.0
    %7683 = vmatpush1.msra.mxu0 0.0
    %7684 = vmatprep.subr.mxu0 0.0
    %7685 = vmatpush1.msra.mxu0 0.0
    %7686 = vmatprep.subr.mxu0 0.0
    %7687 = vmatpush1.msra.mxu0 0.0
    %7688 = vmatprep.subr.mxu0 0.0
    %7689 = vmatpush1.msra.mxu0 0.0
    %7690 = vmatprep.subr.mxu0 0.0
    %7691 = vmatpush1.msra.mxu0 0.0
    %7692 = vmatprep.subr.mxu0 0.0
    %7693 = vmatpush1.msra.mxu0 0.0
    %7694 = vmatprep.subr.mxu0 0.0
    %7695 = vmatpush1.msra.mxu0 0.0
    %7696 = vmatprep.subr.mxu0 0.0
    %7697 = vmatpush1.msra.mxu0 0.0
    %7698 = vmatprep.subr.mxu0 0.0
    %7699 = vmatpush1.msra.mxu0 0.0
    %7700 = vmatprep.subr.mxu0 0.0
    %7701 = vmatpush1.msra.mxu0 0.0
    %7702 = vmatprep.subr.mxu0 0.0
    %7703 = vmatpush1.msra.mxu0 0.0
    %7704 = vmatprep.subr.mxu0 0.0
    %7705 = vmatpush1.msra.mxu0 0.0
    %7706 = vmatprep.subr.mxu0 0.0
    %7707 = vmatpush1.msra.mxu0 0.0
    %7708 = vmatprep.subr.mxu0 0.0
    %7709 = vmatpush1.msra.mxu0 0.0
    %7710 = vmatprep.subr.mxu0 0.0
    %7711 = vmatpush1.msra.mxu0 0.0
    %7712 = vmatprep.subr.mxu0 0.0
    %7713 = vmatpush1.msra.mxu0 0.0
    %7714 = vmatprep.subr.mxu0 0.0
    %7715 = vmatpush1.msra.mxu0 0.0
    %7716 = vmatprep.subr.mxu0 0.0
    %7717 = vmatpush1.msra.mxu0 0.0
    %7718 = vmatprep.subr.mxu0 0.0
    %7719 = vmatpush1.msra.mxu0 0.0
    %7720 = vmatprep.mubr.f32.mxu0 0.0
    %7721 = vmatmul.mubr.f32.gmra.mrb[0].mxu0 %v7584
    %v7722 = vpop.f32.mrb[0].mxu0
    %v7723 = vadd.f32 0.0, %v7722
    %v7724 = vpop.f32.mrb[0].mxu0
    %7725 = vdwg.mxu0
    %7726 = vmatprep.subr.mxu0 0.0
    %7727 = vmatpush1.msra.mxu0 %v7336
    %7728 = vmatprep.subr.mxu0 0.0
    %7729 = vmatpush1.msra.mxu0 %v7337
    %7730 = vmatprep.subr.mxu0 0.0
    %7731 = vmatpush1.msra.mxu0 %v7338
    %7732 = vmatprep.subr.mxu0 0.0
    %7733 = vmatpush1.msra.mxu0 %v7339
    %7734 = vmatprep.subr.mxu0 0.0
    %7735 = vmatpush1.msra.mxu0 %v7340
    %7736 = vmatprep.subr.mxu0 0.0
    %7737 = vmatpush1.msra.mxu0 %v7341
    %7738 = vmatprep.subr.mxu0 0.0
    %7739 = vmatpush1.msra.mxu0 %v7342
    %7740 = vmatprep.subr.mxu0 0.0
    %7741 = vmatpush1.msra.mxu0 %v7343
    %7742 = vmatprep.subr.mxu0 0.0
    %7743 = vmatpush1.msra.mxu0 0.0
    %7744 = vmatprep.subr.mxu0 0.0
    %7745 = vmatpush1.msra.mxu0 0.0
    %7746 = vmatprep.subr.mxu0 0.0
    %7747 = vmatpush1.msra.mxu0 0.0
    %7748 = vmatprep.subr.mxu0 0.0
    %7749 = vmatpush1.msra.mxu0 0.0
    %7750 = vmatprep.subr.mxu0 0.0
    %7751 = vmatpush1.msra.mxu0 0.0
    %7752 = vmatprep.subr.mxu0 0.0
    %7753 = vmatpush1.msra.mxu0 0.0
    %7754 = vmatprep.subr.mxu0 0.0
    %7755 = vmatpush1.msra.mxu0 0.0
    %7756 = vmatprep.subr.mxu0 0.0
    %7757 = vmatpush1.msra.mxu0 0.0
    %7758 = vmatprep.subr.mxu0 0.0
    %7759 = vmatpush1.msra.mxu0 0.0
    %7760 = vmatprep.subr.mxu0 0.0
    %7761 = vmatpush1.msra.mxu0 0.0
    %7762 = vmatprep.subr.mxu0 0.0
    %7763 = vmatpush1.msra.mxu0 0.0
    %7764 = vmatprep.subr.mxu0 0.0
    %7765 = vmatpush1.msra.mxu0 0.0
    %7766 = vmatprep.subr.mxu0 0.0
    %7767 = vmatpush1.msra.mxu0 0.0
    %7768 = vmatprep.subr.mxu0 0.0
    %7769 = vmatpush1.msra.mxu0 0.0
    %7770 = vmatprep.subr.mxu0 0.0
    %7771 = vmatpush1.msra.mxu0 0.0
    %7772 = vmatprep.subr.mxu0 0.0
    %7773 = vmatpush1.msra.mxu0 0.0
    %7774 = vmatprep.subr.mxu0 0.0
    %7775 = vmatpush1.msra.mxu0 0.0
    %7776 = vmatprep.subr.mxu0 0.0
    %7777 = vmatpush1.msra.mxu0 0.0
    %7778 = vmatprep.subr.mxu0 0.0
    %7779 = vmatpush1.msra.mxu0 0.0
    %7780 = vmatprep.subr.mxu0 0.0
    %7781 = vmatpush1.msra.mxu0 0.0
    %7782 = vmatprep.subr.mxu0 0.0
    %7783 = vmatpush1.msra.mxu0 0.0
    %7784 = vmatprep.subr.mxu0 0.0
    %7785 = vmatpush1.msra.mxu0 0.0
    %7786 = vmatprep.subr.mxu0 0.0
    %7787 = vmatpush1.msra.mxu0 0.0
    %7788 = vmatprep.subr.mxu0 0.0
    %7789 = vmatpush1.msra.mxu0 0.0
    %7790 = vmatprep.mubr.f32.mxu0 0.0
    %7791 = vmatmul.mubr.f32.gmra.mrb[0].mxu0 %v7584
    %v7792 = vpop.f32.mrb[0].mxu0
    %v7793 = vadd.f32 %v7489, %v7792
    %v7794 = vpop.f32.mrb[0].mxu0
    %7795 = vdwg.mxu0
    %v7797 = vrot.slane %v7653, 6
    %v7799 = vadd.f32 %v7126, %v7797
    %v7800 = vxor.u32 %v7799, 2147483648
    %v7801 = vmul.f32 %v7800, 1.442695
    %v7802 = vpow.pop %v7801
    %v7803 = vadd.f32 %v7802, 1.0
    %v7804 = vrcp.pop %v7803
    %v7805 = vmul.f32 1.0, %v7804
    %v7807 = vrot.slane %v7723, 6
    %v7809 = vadd.f32 %v7218, %v7807
    %v7810 = vxor.u32 %v7809, 2147483648
    %v7811 = vmul.f32 %v7810, 1.442695
    %v7812 = vpow.pop %v7811
    %v7813 = vadd.f32 %v7812, 1.0
    %v7814 = vrcp.pop %v7813
    %v7815 = vmul.f32 1.0, %v7814
    %v7817 = vrot.slane %v7793, 6
    %v7819 = vmul.f32 %v7805, %v7817
    %v7820 = vadd.f32 %v7310, %v7819
    %v7821 = vtanh.pop %v7820
    %v7822 = vsub.f32 1.0, %v7815
    %v7823 = vmul.f32 %v7822, %v7821
    %v7824 = vrot.slane %v7581, 6
    %v7826 = vmul.f32 %v7815, %v7824
    %v7827 = vadd.f32 %v7823, %v7826
    %v7830 = vunpack.c.l.s4 1983009808
    %v7831 = vunpack.c.0.s8 %v7830
    %v7832 = vlaneseq
    %v7833 = vshrl.u32 %v7832, 7
    %v7834 = vsub.s32 %v7831, %v7833
    %v7835 = vrot.slane %v7827, %v7834
    %v7836 = vcombine.high %v7835, %v7835
    %7837 = vrot.lane.b32.xlu0 %v7836, 64
    %v7838 = vpop.permute.xlu0 %7837
    %vm7840 = vcmask 1041920
    %7841 = vst.msk [vmem:[#allocation4] sm:$0x3] %vm7840, %v7838
    %v7842 = vrot.slane %v7827, 2
    %v7843 = vsel %vm545, %v7842, 0
    %7845 = vmatprep.subr.mxu0 0.0
    %7846 = vmatpush1.msra.mxu0 %v7318
    %7847 = vmatprep.subr.mxu0 0.0
    %7848 = vmatpush1.msra.mxu0 %v7319
    %7849 = vmatprep.subr.mxu0 0.0
    %7850 = vmatpush1.msra.mxu0 %v7320
    %7851 = vmatprep.subr.mxu0 0.0
    %7852 = vmatpush1.msra.mxu0 %v7321
    %7853 = vmatprep.subr.mxu0 0.0
    %7854 = vmatpush1.msra.mxu0 %v7322
    %7855 = vmatprep.subr.mxu0 0.0
    %7856 = vmatpush1.msra.mxu0 %v7323
    %7857 = vmatprep.subr.mxu0 0.0
    %7858 = vmatpush1.msra.mxu0 %v7324
    %7859 = vmatprep.subr.mxu0 0.0
    %7860 = vmatpush1.msra.mxu0 %v7325
    %7861 = vmatprep.subr.mxu0 0.0
    %7862 = vmatpush1.msra.mxu0 0.0
    %7863 = vmatprep.subr.mxu0 0.0
    %7864 = vmatpush1.msra.mxu0 0.0
    %7865 = vmatprep.subr.mxu0 0.0
    %7866 = vmatpush1.msra.mxu0 0.0
    %7867 = vmatprep.subr.mxu0 0.0
    %7868 = vmatpush1.msra.mxu0 0.0
    %7869 = vmatprep.subr.mxu0 0.0
    %7870 = vmatpush1.msra.mxu0 0.0
    %7871 = vmatprep.subr.mxu0 0.0
    %7872 = vmatpush1.msra.mxu0 0.0
    %7873 = vmatprep.subr.mxu0 0.0
    %7874 = vmatpush1.msra.mxu0 0.0
    %7875 = vmatprep.subr.mxu0 0.0
    %7876 = vmatpush1.msra.mxu0 0.0
    %7877 = vmatprep.subr.mxu0 0.0
    %7878 = vmatpush1.msra.mxu0 0.0
    %7879 = vmatprep.subr.mxu0 0.0
    %7880 = vmatpush1.msra.mxu0 0.0
    %7881 = vmatprep.subr.mxu0 0.0
    %7882 = vmatpush1.msra.mxu0 0.0
    %7883 = vmatprep.subr.mxu0 0.0
    %7884 = vmatpush1.msra.mxu0 0.0
    %7885 = vmatprep.subr.mxu0 0.0
    %7886 = vmatpush1.msra.mxu0 0.0
    %7887 = vmatprep.subr.mxu0 0.0
    %7888 = vmatpush1.msra.mxu0 0.0
    %7889 = vmatprep.subr.mxu0 0.0
    %7890 = vmatpush1.msra.mxu0 0.0
    %7891 = vmatprep.subr.mxu0 0.0
    %7892 = vmatpush1.msra.mxu0 0.0
    %7893 = vmatprep.subr.mxu0 0.0
    %7894 = vmatpush1.msra.mxu0 0.0
    %7895 = vmatprep.subr.mxu0 0.0
    %7896 = vmatpush1.msra.mxu0 0.0
    %7897 = vmatprep.subr.mxu0 0.0
    %7898 = vmatpush1.msra.mxu0 0.0
    %7899 = vmatprep.subr.mxu0 0.0
    %7900 = vmatpush1.msra.mxu0 0.0
    %7901 = vmatprep.subr.mxu0 0.0
    %7902 = vmatpush1.msra.mxu0 0.0
    %7903 = vmatprep.subr.mxu0 0.0
    %7904 = vmatpush1.msra.mxu0 0.0
    %7905 = vmatprep.subr.mxu0 0.0
    %7906 = vmatpush1.msra.mxu0 0.0
    %7907 = vmatprep.subr.mxu0 0.0
    %7908 = vmatpush1.msra.mxu0 0.0
    %7909 = vmatprep.mubr.f32.mxu0 0.0
    %7910 = vmatmul.mubr.f32.gmra.mrb[0].mxu0 %v7843
    %v7911 = vpop.f32.mrb[0].mxu0
    %v7912 = vadd.f32 0.0, %v7911
    %v7913 = vpop.f32.mrb[0].mxu0
    %7914 = vdwg.mxu0
    %7915 = vmatprep.subr.mxu0 0.0
    %7916 = vmatpush1.msra.mxu0 %v7327
    %7917 = vmatprep.subr.mxu0 0.0
    %7918 = vmatpush1.msra.mxu0 %v7328
    %7919 = vmatprep.subr.mxu0 0.0
    %7920 = vmatpush1.msra.mxu0 %v7329
    %7921 = vmatprep.subr.mxu0 0.0
    %7922 = vmatpush1.msra.mxu0 %v7330
    %7923 = vmatprep.subr.mxu0 0.0
    %7924 = vmatpush1.msra.mxu0 %v7331
    %7925 = vmatprep.subr.mxu0 0.0
    %7926 = vmatpush1.msra.mxu0 %v7332
    %7927 = vmatprep.subr.mxu0 0.0
    %7928 = vmatpush1.msra.mxu0 %v7333
    %7929 = vmatprep.subr.mxu0 0.0
    %7930 = vmatpush1.msra.mxu0 %v7334
    %7931 = vmatprep.subr.mxu0 0.0
    %7932 = vmatpush1.msra.mxu0 0.0
    %7933 = vmatprep.subr.mxu0 0.0
    %7934 = vmatpush1.msra.mxu0 0.0
    %7935 = vmatprep.subr.mxu0 0.0
    %7936 = vmatpush1.msra.mxu0 0.0
    %7937 = vmatprep.subr.mxu0 0.0
    %7938 = vmatpush1.msra.mxu0 0.0
    %7939 = vmatprep.subr.mxu0 0.0
    %7940 = vmatpush1.msra.mxu0 0.0
    %7941 = vmatprep.subr.mxu0 0.0
    %7942 = vmatpush1.msra.mxu0 0.0
    %7943 = vmatprep.subr.mxu0 0.0
    %7944 = vmatpush1.msra.mxu0 0.0
    %7945 = vmatprep.subr.mxu0 0.0
    %7946 = vmatpush1.msra.mxu0 0.0
    %7947 = vmatprep.subr.mxu0 0.0
    %7948 = vmatpush1.msra.mxu0 0.0
    %7949 = vmatprep.subr.mxu0 0.0
    %7950 = vmatpush1.msra.mxu0 0.0
    %7951 = vmatprep.subr.mxu0 0.0
    %7952 = vmatpush1.msra.mxu0 0.0
    %7953 = vmatprep.subr.mxu0 0.0
    %7954 = vmatpush1.msra.mxu0 0.0
    %7955 = vmatprep.subr.mxu0 0.0
    %7956 = vmatpush1.msra.mxu0 0.0
    %7957 = vmatprep.subr.mxu0 0.0
    %7958 = vmatpush1.msra.mxu0 0.0
    %7959 = vmatprep.subr.mxu0 0.0
    %7960 = vmatpush1.msra.mxu0 0.0
    %7961 = vmatprep.subr.mxu0 0.0
    %7962 = vmatpush1.msra.mxu0 0.0
    %7963 = vmatprep.subr.mxu0 0.0
    %7964 = vmatpush1.msra.mxu0 0.0
    %7965 = vmatprep.subr.mxu0 0.0
    %7966 = vmatpush1.msra.mxu0 0.0
    %7967 = vmatprep.subr.mxu0 0.0
    %7968 = vmatpush1.msra.mxu0 0.0
    %7969 = vmatprep.subr.mxu0 0.0
    %7970 = vmatpush1.msra.mxu0 0.0
    %7971 = vmatprep.subr.mxu0 0.0
    %7972 = vmatpush1.msra.mxu0 0.0
    %7973 = vmatprep.subr.mxu0 0.0
    %7974 = vmatpush1.msra.mxu0 0.0
    %7975 = vmatprep.subr.mxu0 0.0
    %7976 = vmatpush1.msra.mxu0 0.0
    %7977 = vmatprep.subr.mxu0 0.0
    %7978 = vmatpush1.msra.mxu0 0.0
    %7979 = vmatprep.mubr.f32.mxu0 0.0
    %7980 = vmatmul.mubr.f32.gmra.mrb[0].mxu0 %v7843
    %v7981 = vpop.f32.mrb[0].mxu0
    %v7982 = vadd.f32 0.0, %v7981
    %v7983 = vpop.f32.mrb[0].mxu0
    %7984 = vdwg.mxu0
    %7985 = vmatprep.subr.mxu0 0.0
    %7986 = vmatpush1.msra.mxu0 %v7336
    %7987 = vmatprep.subr.mxu0 0.0
    %7988 = vmatpush1.msra.mxu0 %v7337
    %7989 = vmatprep.subr.mxu0 0.0
    %7990 = vmatpush1.msra.mxu0 %v7338
    %7991 = vmatprep.subr.mxu0 0.0
    %7992 = vmatpush1.msra.mxu0 %v7339
    %7993 = vmatprep.subr.mxu0 0.0
    %7994 = vmatpush1.msra.mxu0 %v7340
    %7995 = vmatprep.subr.mxu0 0.0
    %7996 = vmatpush1.msra.mxu0 %v7341
    %7997 = vmatprep.subr.mxu0 0.0
    %7998 = vmatpush1.msra.mxu0 %v7342
    %7999 = vmatprep.subr.mxu0 0.0
    %8000 = vmatpush1.msra.mxu0 %v7343
    %8001 = vmatprep.subr.mxu0 0.0
    %8002 = vmatpush1.msra.mxu0 0.0
    %8003 = vmatprep.subr.mxu0 0.0
    %8004 = vmatpush1.msra.mxu0 0.0
    %8005 = vmatprep.subr.mxu0 0.0
    %8006 = vmatpush1.msra.mxu0 0.0
    %8007 = vmatprep.subr.mxu0 0.0
    %8008 = vmatpush1.msra.mxu0 0.0
    %8009 = vmatprep.subr.mxu0 0.0
    %8010 = vmatpush1.msra.mxu0 0.0
    %8011 = vmatprep.subr.mxu0 0.0
    %8012 = vmatpush1.msra.mxu0 0.0
    %8013 = vmatprep.subr.mxu0 0.0
    %8014 = vmatpush1.msra.mxu0 0.0
    %8015 = vmatprep.subr.mxu0 0.0
    %8016 = vmatpush1.msra.mxu0 0.0
    %8017 = vmatprep.subr.mxu0 0.0
    %8018 = vmatpush1.msra.mxu0 0.0
    %8019 = vmatprep.subr.mxu0 0.0
    %8020 = vmatpush1.msra.mxu0 0.0
    %8021 = vmatprep.subr.mxu0 0.0
    %8022 = vmatpush1.msra.mxu0 0.0
    %8023 = vmatprep.subr.mxu0 0.0
    %8024 = vmatpush1.msra.mxu0 0.0
    %8025 = vmatprep.subr.mxu0 0.0
    %8026 = vmatpush1.msra.mxu0 0.0
    %8027 = vmatprep.subr.mxu0 0.0
    %8028 = vmatpush1.msra.mxu0 0.0
    %8029 = vmatprep.subr.mxu0 0.0
    %8030 = vmatpush1.msra.mxu0 0.0
    %8031 = vmatprep.subr.mxu0 0.0
    %8032 = vmatpush1.msra.mxu0 0.0
    %8033 = vmatprep.subr.mxu0 0.0
    %8034 = vmatpush1.msra.mxu0 0.0
    %8035 = vmatprep.subr.mxu0 0.0
    %8036 = vmatpush1.msra.mxu0 0.0
    %8037 = vmatprep.subr.mxu0 0.0
    %8038 = vmatpush1.msra.mxu0 0.0
    %8039 = vmatprep.subr.mxu0 0.0
    %8040 = vmatpush1.msra.mxu0 0.0
    %8041 = vmatprep.subr.mxu0 0.0
    %8042 = vmatpush1.msra.mxu0 0.0
    %8043 = vmatprep.subr.mxu0 0.0
    %8044 = vmatpush1.msra.mxu0 0.0
    %8045 = vmatprep.subr.mxu0 0.0
    %8046 = vmatpush1.msra.mxu0 0.0
    %8047 = vmatprep.subr.mxu0 0.0
    %8048 = vmatpush1.msra.mxu0 0.0
    %8049 = vmatprep.mubr.f32.mxu0 0.0
    %8050 = vmatmul.mubr.f32.gmra.mrb[0].mxu0 %v7843
    %v8051 = vpop.f32.mrb[0].mxu0
    %v8052 = vadd.f32 %v7489, %v8051
    %v8053 = vpop.f32.mrb[0].mxu0
    %8054 = vdwg.mxu0
    %v8056 = vrot.slane %v7912, 4
    %v8058 = vadd.f32 %v7126, %v8056
    %v8059 = vxor.u32 %v8058, 2147483648
    %v8060 = vmul.f32 %v8059, 1.442695
    %v8061 = vpow.pop %v8060
    %v8062 = vadd.f32 %v8061, 1.0
    %v8063 = vrcp.pop %v8062
    %v8064 = vmul.f32 1.0, %v8063
    %v8066 = vrot.slane %v7982, 4
    %v8068 = vadd.f32 %v7218, %v8066
    %v8069 = vxor.u32 %v8068, 2147483648
    %v8070 = vmul.f32 %v8069, 1.442695
    %v8071 = vpow.pop %v8070
    %v8072 = vadd.f32 %v8071, 1.0
    %v8073 = vrcp.pop %v8072
    %v8074 = vmul.f32 1.0, %v8073
    %v8076 = vrot.slane %v8052, 4
    %v8078 = vmul.f32 %v8064, %v8076
    %v8079 = vadd.f32 %v7310, %v8078
    %v8080 = vtanh.pop %v8079
    %v8081 = vsub.f32 1.0, %v8074
    %v8082 = vmul.f32 %v8081, %v8080
    %v8083 = vrot.slane %v7827, 6
    %v8085 = vmul.f32 %v8074, %v8083
    %v8086 = vadd.f32 %v8082, %v8085
    %v8088 = vcombine.high %v8086, %v8086
    %v8090 = vunpack.c.l.s4 1983009808
    %v8091 = vunpack.c.0.s8 %v8090
    %v8092 = vlaneseq
    %v8093 = vshrl.u32 %v8092, 7
    %v8094 = vsub.s32 %v8091, %v8093
    %v8095 = vrot.slane %v8088, %v8094
    %8097 = vst.msk [vmem:[#allocation4 + $0x2] sm:$0x3] %vm786, %v8095
    %v8098 = vrot.slane %v8086, 4
    %v8099 = vsel %vm545, %v8098, 0
    %8101 = vmatprep.subr.mxu0 0.0
    %8102 = vmatpush1.msra.mxu0 %v7318
    %8103 = vmatprep.subr.mxu0 0.0
    %8104 = vmatpush1.msra.mxu0 %v7319
    %8105 = vmatprep.subr.mxu0 0.0
    %8106 = vmatpush1.msra.mxu0 %v7320
    %8107 = vmatprep.subr.mxu0 0.0
    %8108 = vmatpush1.msra.mxu0 %v7321
    %8109 = vmatprep.subr.mxu0 0.0
    %8110 = vmatpush1.msra.mxu0 %v7322
    %8111 = vmatprep.subr.mxu0 0.0
    %8112 = vmatpush1.msra.mxu0 %v7323
    %8113 = vmatprep.subr.mxu0 0.0
    %8114 = vmatpush1.msra.mxu0 %v7324
    %8115 = vmatprep.subr.mxu0 0.0
    %8116 = vmatpush1.msra.mxu0 %v7325
    %8117 = vmatprep.subr.mxu0 0.0
    %8118 = vmatpush1.msra.mxu0 0.0
    %8119 = vmatprep.subr.mxu0 0.0
    %8120 = vmatpush1.msra.mxu0 0.0
    %8121 = vmatprep.subr.mxu0 0.0
    %8122 = vmatpush1.msra.mxu0 0.0
    %8123 = vmatprep.subr.mxu0 0.0
    %8124 = vmatpush1.msra.mxu0 0.0
    %8125 = vmatprep.subr.mxu0 0.0
    %8126 = vmatpush1.msra.mxu0 0.0
    %8127 = vmatprep.subr.mxu0 0.0
    %8128 = vmatpush1.msra.mxu0 0.0
    %8129 = vmatprep.subr.mxu0 0.0
    %8130 = vmatpush1.msra.mxu0 0.0
    %8131 = vmatprep.subr.mxu0 0.0
    %8132 = vmatpush1.msra.mxu0 0.0
    %8133 = vmatprep.subr.mxu0 0.0
    %8134 = vmatpush1.msra.mxu0 0.0
    %8135 = vmatprep.subr.mxu0 0.0
    %8136 = vmatpush1.msra.mxu0 0.0
    %8137 = vmatprep.subr.mxu0 0.0
    %8138 = vmatpush1.msra.mxu0 0.0
    %8139 = vmatprep.subr.mxu0 0.0
    %8140 = vmatpush1.msra.mxu0 0.0
    %8141 = vmatprep.subr.mxu0 0.0
    %8142 = vmatpush1.msra.mxu0 0.0
    %8143 = vmatprep.subr.mxu0 0.0
    %8144 = vmatpush1.msra.mxu0 0.0
    %8145 = vmatprep.subr.mxu0 0.0
    %8146 = vmatpush1.msra.mxu0 0.0
    %8147 = vmatprep.subr.mxu0 0.0
    %8148 = vmatpush1.msra.mxu0 0.0
    %8149 = vmatprep.subr.mxu0 0.0
    %8150 = vmatpush1.msra.mxu0 0.0
    %8151 = vmatprep.subr.mxu0 0.0
    %8152 = vmatpush1.msra.mxu0 0.0
    %8153 = vmatprep.subr.mxu0 0.0
    %8154 = vmatpush1.msra.mxu0 0.0
    %8155 = vmatprep.subr.mxu0 0.0
    %8156 = vmatpush1.msra.mxu0 0.0
    %8157 = vmatprep.subr.mxu0 0.0
    %8158 = vmatpush1.msra.mxu0 0.0
    %8159 = vmatprep.subr.mxu0 0.0
    %8160 = vmatpush1.msra.mxu0 0.0
    %8161 = vmatprep.subr.mxu0 0.0
    %8162 = vmatpush1.msra.mxu0 0.0
    %8163 = vmatprep.subr.mxu0 0.0
    %8164 = vmatpush1.msra.mxu0 0.0
    %8165 = vmatprep.mubr.f32.mxu0 0.0
    %8166 = vmatmul.mubr.f32.gmra.mrb[0].mxu0 %v8099
    %v8167 = vpop.f32.mrb[0].mxu0
    %v8168 = vadd.f32 0.0, %v8167
    %v8169 = vpop.f32.mrb[0].mxu0
    %8170 = vdwg.mxu0
    %8171 = vmatprep.subr.mxu0 0.0
    %8172 = vmatpush1.msra.mxu0 %v7327
    %8173 = vmatprep.subr.mxu0 0.0
    %8174 = vmatpush1.msra.mxu0 %v7328
    %8175 = vmatprep.subr.mxu0 0.0
    %8176 = vmatpush1.msra.mxu0 %v7329
    %8177 = vmatprep.subr.mxu0 0.0
    %8178 = vmatpush1.msra.mxu0 %v7330
    %8179 = vmatprep.subr.mxu0 0.0
    %8180 = vmatpush1.msra.mxu0 %v7331
    %8181 = vmatprep.subr.mxu0 0.0
    %8182 = vmatpush1.msra.mxu0 %v7332
    %8183 = vmatprep.subr.mxu0 0.0
    %8184 = vmatpush1.msra.mxu0 %v7333
    %8185 = vmatprep.subr.mxu0 0.0
    %8186 = vmatpush1.msra.mxu0 %v7334
    %8187 = vmatprep.subr.mxu0 0.0
    %8188 = vmatpush1.msra.mxu0 0.0
    %8189 = vmatprep.subr.mxu0 0.0
    %8190 = vmatpush1.msra.mxu0 0.0
    %8191 = vmatprep.subr.mxu0 0.0
    %8192 = vmatpush1.msra.mxu0 0.0
    %8193 = vmatprep.subr.mxu0 0.0
    %8194 = vmatpush1.msra.mxu0 0.0
    %8195 = vmatprep.subr.mxu0 0.0
    %8196 = vmatpush1.msra.mxu0 0.0
    %8197 = vmatprep.subr.mxu0 0.0
    %8198 = vmatpush1.msra.mxu0 0.0
    %8199 = vmatprep.subr.mxu0 0.0
    %8200 = vmatpush1.msra.mxu0 0.0
    %8201 = vmatprep.subr.mxu0 0.0
    %8202 = vmatpush1.msra.mxu0 0.0
    %8203 = vmatprep.subr.mxu0 0.0
    %8204 = vmatpush1.msra.mxu0 0.0
    %8205 = vmatprep.subr.mxu0 0.0
    %8206 = vmatpush1.msra.mxu0 0.0
    %8207 = vmatprep.subr.mxu0 0.0
    %8208 = vmatpush1.msra.mxu0 0.0
    %8209 = vmatprep.subr.mxu0 0.0
    %8210 = vmatpush1.msra.mxu0 0.0
    %8211 = vmatprep.subr.mxu0 0.0
    %8212 = vmatpush1.msra.mxu0 0.0
    %8213 = vmatprep.subr.mxu0 0.0
    %8214 = vmatpush1.msra.mxu0 0.0
    %8215 = vmatprep.subr.mxu0 0.0
    %8216 = vmatpush1.msra.mxu0 0.0
    %8217 = vmatprep.subr.mxu0 0.0
    %8218 = vmatpush1.msra.mxu0 0.0
    %8219 = vmatprep.subr.mxu0 0.0
    %8220 = vmatpush1.msra.mxu0 0.0
    %8221 = vmatprep.subr.mxu0 0.0
    %8222 = vmatpush1.msra.mxu0 0.0
    %8223 = vmatprep.subr.mxu0 0.0
    %8224 = vmatpush1.msra.mxu0 0.0
    %8225 = vmatprep.subr.mxu0 0.0
    %8226 = vmatpush1.msra.mxu0 0.0
    %8227 = vmatprep.subr.mxu0 0.0
    %8228 = vmatpush1.msra.mxu0 0.0
    %8229 = vmatprep.subr.mxu0 0.0
    %8230 = vmatpush1.msra.mxu0 0.0
    %8231 = vmatprep.subr.mxu0 0.0
    %8232 = vmatpush1.msra.mxu0 0.0
    %8233 = vmatprep.subr.mxu0 0.0
    %8234 = vmatpush1.msra.mxu0 0.0
    %8235 = vmatprep.mubr.f32.mxu0 0.0
    %8236 = vmatmul.mubr.f32.gmra.mrb[0].mxu0 %v8099
    %v8237 = vpop.f32.mrb[0].mxu0
    %v8238 = vadd.f32 0.0, %v8237
    %v8239 = vpop.f32.mrb[0].mxu0
    %8240 = vdwg.mxu0
    %8241 = vmatprep.subr.mxu0 0.0
    %8242 = vmatpush1.msra.mxu0 %v7336
    %8243 = vmatprep.subr.mxu0 0.0
    %8244 = vmatpush1.msra.mxu0 %v7337
    %8245 = vmatprep.subr.mxu0 0.0
    %8246 = vmatpush1.msra.mxu0 %v7338
    %8247 = vmatprep.subr.mxu0 0.0
    %8248 = vmatpush1.msra.mxu0 %v7339
    %8249 = vmatprep.subr.mxu0 0.0
    %8250 = vmatpush1.msra.mxu0 %v7340
    %8251 = vmatprep.subr.mxu0 0.0
    %8252 = vmatpush1.msra.mxu0 %v7341
    %8253 = vmatprep.subr.mxu0 0.0
    %8254 = vmatpush1.msra.mxu0 %v7342
    %8255 = vmatprep.subr.mxu0 0.0
    %8256 = vmatpush1.msra.mxu0 %v7343
    %8257 = vmatprep.subr.mxu0 0.0
    %8258 = vmatpush1.msra.mxu0 0.0
    %8259 = vmatprep.subr.mxu0 0.0
    %8260 = vmatpush1.msra.mxu0 0.0
    %8261 = vmatprep.subr.mxu0 0.0
    %8262 = vmatpush1.msra.mxu0 0.0
    %8263 = vmatprep.subr.mxu0 0.0
    %8264 = vmatpush1.msra.mxu0 0.0
    %8265 = vmatprep.subr.mxu0 0.0
    %8266 = vmatpush1.msra.mxu0 0.0
    %8267 = vmatprep.subr.mxu0 0.0
    %8268 = vmatpush1.msra.mxu0 0.0
    %8269 = vmatprep.subr.mxu0 0.0
    %8270 = vmatpush1.msra.mxu0 0.0
    %8271 = vmatprep.subr.mxu0 0.0
    %8272 = vmatpush1.msra.mxu0 0.0
    %8273 = vmatprep.subr.mxu0 0.0
    %8274 = vmatpush1.msra.mxu0 0.0
    %8275 = vmatprep.subr.mxu0 0.0
    %8276 = vmatpush1.msra.mxu0 0.0
    %8277 = vmatprep.subr.mxu0 0.0
    %8278 = vmatpush1.msra.mxu0 0.0
    %8279 = vmatprep.subr.mxu0 0.0
    %8280 = vmatpush1.msra.mxu0 0.0
    %8281 = vmatprep.subr.mxu0 0.0
    %8282 = vmatpush1.msra.mxu0 0.0
    %8283 = vmatprep.subr.mxu0 0.0
    %8284 = vmatpush1.msra.mxu0 0.0
    %8285 = vmatprep.subr.mxu0 0.0
    %8286 = vmatpush1.msra.mxu0 0.0
    %8287 = vmatprep.subr.mxu0 0.0
    %8288 = vmatpush1.msra.mxu0 0.0
    %8289 = vmatprep.subr.mxu0 0.0
    %8290 = vmatpush1.msra.mxu0 0.0
    %8291 = vmatprep.subr.mxu0 0.0
    %8292 = vmatpush1.msra.mxu0 0.0
    %8293 = vmatprep.subr.mxu0 0.0
    %8294 = vmatpush1.msra.mxu0 0.0
    %8295 = vmatprep.subr.mxu0 0.0
    %8296 = vmatpush1.msra.mxu0 0.0
    %8297 = vmatprep.subr.mxu0 0.0
    %8298 = vmatpush1.msra.mxu0 0.0
    %8299 = vmatprep.subr.mxu0 0.0
    %8300 = vmatpush1.msra.mxu0 0.0
    %8301 = vmatprep.subr.mxu0 0.0
    %8302 = vmatpush1.msra.mxu0 0.0
    %8303 = vmatprep.subr.mxu0 0.0
    %8304 = vmatpush1.msra.mxu0 0.0
    %8305 = vmatprep.mubr.f32.mxu0 0.0
    %8306 = vmatmul.mubr.f32.gmra.mrb[0].mxu0 %v8099
    %v8307 = vpop.f32.mrb[0].mxu0
    %v8308 = vadd.f32 %v7489, %v8307
    %v8309 = vpop.f32.mrb[0].mxu0
    %8310 = vdwg.mxu0
    %v8312 = vrot.slane %v8168, 2
    %v8314 = vadd.f32 %v7126, %v8312
    %v8315 = vxor.u32 %v8314, 2147483648
    %v8316 = vmul.f32 %v8315, 1.442695
    %v8317 = vpow.pop %v8316
    %v8318 = vadd.f32 %v8317, 1.0
    %v8319 = vrcp.pop %v8318
    %v8320 = vmul.f32 1.0, %v8319
    %v8322 = vrot.slane %v8238, 2
    %v8324 = vadd.f32 %v7218, %v8322
    %v8325 = vxor.u32 %v8324, 2147483648
    %v8326 = vmul.f32 %v8325, 1.442695
    %v8327 = vpow.pop %v8326
    %v8328 = vadd.f32 %v8327, 1.0
    %v8329 = vrcp.pop %v8328
    %v8330 = vmul.f32 1.0, %v8329
    %v8332 = vrot.slane %v8308, 2
    %v8334 = vmul.f32 %v8320, %v8332
    %v8335 = vadd.f32 %v7310, %v8334
    %v8336 = vtanh.pop %v8335
    %v8337 = vsub.f32 1.0, %v8330
    %v8338 = vmul.f32 %v8337, %v8336
    %v8339 = vrot.slane %v8086, 6
    %v8341 = vmul.f32 %v8330, %v8339
    %v8342 = vadd.f32 %v8338, %v8341
    %v8344 = vcombine.high %v8342, %v8342
    %v8346 = vunpack.c.l.s4 1983009808
    %v8347 = vunpack.c.0.s8 %v8346
    %v8348 = vlaneseq
    %v8349 = vshrl.u32 %v8348, 7
    %v8350 = vsub.s32 %v8347, %v8349
    %v8351 = vrot.slane %v8344, %v8350
    %v8352 = vcombine.high %v8351, %v8351
    %8353 = vrot.lane.b32.xlu0 %v8352, 64
    %v8354 = vpop.permute.xlu0 %8353
    %8356 = vst.msk [vmem:[#allocation4 + $0x2] sm:$0x3] %vm7840, %v8354
    %v8357 = vrot.slane %v8342, 6
    %v8358 = vsel %vm545, %v8357, 0
    %8360 = vmatprep.subr.mxu0 0.0
    %8361 = vmatpush1.msra.mxu0 %v7318
    %8362 = vmatprep.subr.mxu0 0.0
    %8363 = vmatpush1.msra.mxu0 %v7319
    %8364 = vmatprep.subr.mxu0 0.0
    %8365 = vmatpush1.msra.mxu0 %v7320
    %8366 = vmatprep.subr.mxu0 0.0
    %8367 = vmatpush1.msra.mxu0 %v7321
    %8368 = vmatprep.subr.mxu0 0.0
    %8369 = vmatpush1.msra.mxu0 %v7322
    %8370 = vmatprep.subr.mxu0 0.0
    %8371 = vmatpush1.msra.mxu0 %v7323
    %8372 = vmatprep.subr.mxu0 0.0
    %8373 = vmatpush1.msra.mxu0 %v7324
    %8374 = vmatprep.subr.mxu0 0.0
    %8375 = vmatpush1.msra.mxu0 %v7325
    %8376 = vmatprep.subr.mxu0 0.0
    %8377 = vmatpush1.msra.mxu0 0.0
    %8378 = vmatprep.subr.mxu0 0.0
    %8379 = vmatpush1.msra.mxu0 0.0
    %8380 = vmatprep.subr.mxu0 0.0
    %8381 = vmatpush1.msra.mxu0 0.0
    %8382 = vmatprep.subr.mxu0 0.0
    %8383 = vmatpush1.msra.mxu0 0.0
    %8384 = vmatprep.subr.mxu0 0.0
    %8385 = vmatpush1.msra.mxu0 0.0
    %8386 = vmatprep.subr.mxu0 0.0
    %8387 = vmatpush1.msra.mxu0 0.0
    %8388 = vmatprep.subr.mxu0 0.0
    %8389 = vmatpush1.msra.mxu0 0.0
    %8390 = vmatprep.subr.mxu0 0.0
    %8391 = vmatpush1.msra.mxu0 0.0
    %8392 = vmatprep.subr.mxu0 0.0
    %8393 = vmatpush1.msra.mxu0 0.0
    %8394 = vmatprep.subr.mxu0 0.0
    %8395 = vmatpush1.msra.mxu0 0.0
    %8396 = vmatprep.subr.mxu0 0.0
    %8397 = vmatpush1.msra.mxu0 0.0
    %8398 = vmatprep.subr.mxu0 0.0
    %8399 = vmatpush1.msra.mxu0 0.0
    %8400 = vmatprep.subr.mxu0 0.0
    %8401 = vmatpush1.msra.mxu0 0.0
    %8402 = vmatprep.subr.mxu0 0.0
    %8403 = vmatpush1.msra.mxu0 0.0
    %8404 = vmatprep.subr.mxu0 0.0
    %8405 = vmatpush1.msra.mxu0 0.0
    %8406 = vmatprep.subr.mxu0 0.0
    %8407 = vmatpush1.msra.mxu0 0.0
    %8408 = vmatprep.subr.mxu0 0.0
    %8409 = vmatpush1.msra.mxu0 0.0
    %8410 = vmatprep.subr.mxu0 0.0
    %8411 = vmatpush1.msra.mxu0 0.0
    %8412 = vmatprep.subr.mxu0 0.0
    %8413 = vmatpush1.msra.mxu0 0.0
    %8414 = vmatprep.subr.mxu0 0.0
    %8415 = vmatpush1.msra.mxu0 0.0
    %8416 = vmatprep.subr.mxu0 0.0
    %8417 = vmatpush1.msra.mxu0 0.0
    %8418 = vmatprep.subr.mxu0 0.0
    %8419 = vmatpush1.msra.mxu0 0.0
    %8420 = vmatprep.subr.mxu0 0.0
    %8421 = vmatpush1.msra.mxu0 0.0
    %8422 = vmatprep.subr.mxu0 0.0
    %8423 = vmatpush1.msra.mxu0 0.0
    %8424 = vmatprep.mubr.f32.mxu0 0.0
    %8425 = vmatmul.mubr.f32.gmra.mrb[0].mxu0 %v8358
    %v8426 = vpop.f32.mrb[0].mxu0
    %v8427 = vadd.f32 0.0, %v8426
    %v8428 = vpop.f32.mrb[0].mxu0
    %8429 = vdwg.mxu0
    %8430 = vmatprep.subr.mxu0 0.0
    %8431 = vmatpush1.msra.mxu0 %v7327
    %8432 = vmatprep.subr.mxu0 0.0
    %8433 = vmatpush1.msra.mxu0 %v7328
    %8434 = vmatprep.subr.mxu0 0.0
    %8435 = vmatpush1.msra.mxu0 %v7329
    %8436 = vmatprep.subr.mxu0 0.0
    %8437 = vmatpush1.msra.mxu0 %v7330
    %8438 = vmatprep.subr.mxu0 0.0
    %8439 = vmatpush1.msra.mxu0 %v7331
    %8440 = vmatprep.subr.mxu0 0.0
    %8441 = vmatpush1.msra.mxu0 %v7332
    %8442 = vmatprep.subr.mxu0 0.0
    %8443 = vmatpush1.msra.mxu0 %v7333
    %8444 = vmatprep.subr.mxu0 0.0
    %8445 = vmatpush1.msra.mxu0 %v7334
    %8446 = vmatprep.subr.mxu0 0.0
    %8447 = vmatpush1.msra.mxu0 0.0
    %8448 = vmatprep.subr.mxu0 0.0
    %8449 = vmatpush1.msra.mxu0 0.0
    %8450 = vmatprep.subr.mxu0 0.0
    %8451 = vmatpush1.msra.mxu0 0.0
    %8452 = vmatprep.subr.mxu0 0.0
    %8453 = vmatpush1.msra.mxu0 0.0
    %8454 = vmatprep.subr.mxu0 0.0
    %8455 = vmatpush1.msra.mxu0 0.0
    %8456 = vmatprep.subr.mxu0 0.0
    %8457 = vmatpush1.msra.mxu0 0.0
    %8458 = vmatprep.subr.mxu0 0.0
    %8459 = vmatpush1.msra.mxu0 0.0
    %8460 = vmatprep.subr.mxu0 0.0
    %8461 = vmatpush1.msra.mxu0 0.0
    %8462 = vmatprep.subr.mxu0 0.0
    %8463 = vmatpush1.msra.mxu0 0.0
    %8464 = vmatprep.subr.mxu0 0.0
    %8465 = vmatpush1.msra.mxu0 0.0
    %8466 = vmatprep.subr.mxu0 0.0
    %8467 = vmatpush1.msra.mxu0 0.0
    %8468 = vmatprep.subr.mxu0 0.0
    %8469 = vmatpush1.msra.mxu0 0.0
    %8470 = vmatprep.subr.mxu0 0.0
    %8471 = vmatpush1.msra.mxu0 0.0
    %8472 = vmatprep.subr.mxu0 0.0
    %8473 = vmatpush1.msra.mxu0 0.0
    %8474 = vmatprep.subr.mxu0 0.0
    %8475 = vmatpush1.msra.mxu0 0.0
    %8476 = vmatprep.subr.mxu0 0.0
    %8477 = vmatpush1.msra.mxu0 0.0
    %8478 = vmatprep.subr.mxu0 0.0
    %8479 = vmatpush1.msra.mxu0 0.0
    %8480 = vmatprep.subr.mxu0 0.0
    %8481 = vmatpush1.msra.mxu0 0.0
    %8482 = vmatprep.subr.mxu0 0.0
    %8483 = vmatpush1.msra.mxu0 0.0
    %8484 = vmatprep.subr.mxu0 0.0
    %8485 = vmatpush1.msra.mxu0 0.0
    %8486 = vmatprep.subr.mxu0 0.0
    %8487 = vmatpush1.msra.mxu0 0.0
    %8488 = vmatprep.subr.mxu0 0.0
    %8489 = vmatpush1.msra.mxu0 0.0
    %8490 = vmatprep.subr.mxu0 0.0
    %8491 = vmatpush1.msra.mxu0 0.0
    %8492 = vmatprep.subr.mxu0 0.0
    %8493 = vmatpush1.msra.mxu0 0.0
    %8494 = vmatprep.mubr.f32.mxu0 0.0
    %8495 = vmatmul.mubr.f32.gmra.mrb[0].mxu0 %v8358
    %v8496 = vpop.f32.mrb[0].mxu0
    %v8497 = vadd.f32 0.0, %v8496
    %v8498 = vpop.f32.mrb[0].mxu0
    %8499 = vdwg.mxu0
    %8500 = vmatprep.subr.mxu0 0.0
    %8501 = vmatpush1.msra.mxu0 %v7336
    %8502 = vmatprep.subr.mxu0 0.0
    %8503 = vmatpush1.msra.mxu0 %v7337
    %8504 = vmatprep.subr.mxu0 0.0
    %8505 = vmatpush1.msra.mxu0 %v7338
    %8506 = vmatprep.subr.mxu0 0.0
    %8507 = vmatpush1.msra.mxu0 %v7339
    %8508 = vmatprep.subr.mxu0 0.0
    %8509 = vmatpush1.msra.mxu0 %v7340
    %8510 = vmatprep.subr.mxu0 0.0
    %8511 = vmatpush1.msra.mxu0 %v7341
    %8512 = vmatprep.subr.mxu0 0.0
    %8513 = vmatpush1.msra.mxu0 %v7342
    %8514 = vmatprep.subr.mxu0 0.0
    %8515 = vmatpush1.msra.mxu0 %v7343
    %8516 = vmatprep.subr.mxu0 0.0
    %8517 = vmatpush1.msra.mxu0 0.0
    %8518 = vmatprep.subr.mxu0 0.0
    %8519 = vmatpush1.msra.mxu0 0.0
    %8520 = vmatprep.subr.mxu0 0.0
    %8521 = vmatpush1.msra.mxu0 0.0
    %8522 = vmatprep.subr.mxu0 0.0
    %8523 = vmatpush1.msra.mxu0 0.0
    %8524 = vmatprep.subr.mxu0 0.0
    %8525 = vmatpush1.msra.mxu0 0.0
    %8526 = vmatprep.subr.mxu0 0.0
    %8527 = vmatpush1.msra.mxu0 0.0
    %8528 = vmatprep.subr.mxu0 0.0
    %8529 = vmatpush1.msra.mxu0 0.0
    %8530 = vmatprep.subr.mxu0 0.0
    %8531 = vmatpush1.msra.mxu0 0.0
    %8532 = vmatprep.subr.mxu0 0.0
    %8533 = vmatpush1.msra.mxu0 0.0
    %8534 = vmatprep.subr.mxu0 0.0
    %8535 = vmatpush1.msra.mxu0 0.0
    %8536 = vmatprep.subr.mxu0 0.0
    %8537 = vmatpush1.msra.mxu0 0.0
    %8538 = vmatprep.subr.mxu0 0.0
    %8539 = vmatpush1.msra.mxu0 0.0
    %8540 = vmatprep.subr.mxu0 0.0
    %8541 = vmatpush1.msra.mxu0 0.0
    %8542 = vmatprep.subr.mxu0 0.0
    %8543 = vmatpush1.msra.mxu0 0.0
    %8544 = vmatprep.subr.mxu0 0.0
    %8545 = vmatpush1.msra.mxu0 0.0
    %8546 = vmatprep.subr.mxu0 0.0
    %8547 = vmatpush1.msra.mxu0 0.0
    %8548 = vmatprep.subr.mxu0 0.0
    %8549 = vmatpush1.msra.mxu0 0.0
    %8550 = vmatprep.subr.mxu0 0.0
    %8551 = vmatpush1.msra.mxu0 0.0
    %8552 = vmatprep.subr.mxu0 0.0
    %8553 = vmatpush1.msra.mxu0 0.0
    %8554 = vmatprep.subr.mxu0 0.0
    %8555 = vmatpush1.msra.mxu0 0.0
    %8556 = vmatprep.subr.mxu0 0.0
    %8557 = vmatpush1.msra.mxu0 0.0
    %8558 = vmatprep.subr.mxu0 0.0
    %8559 = vmatpush1.msra.mxu0 0.0
    %8560 = vmatprep.subr.mxu0 0.0
    %8561 = vmatpush1.msra.mxu0 0.0
    %8562 = vmatprep.subr.mxu0 0.0
    %8563 = vmatpush1.msra.mxu0 0.0
    %8564 = vmatprep.mubr.f32.mxu0 0.0
    %8565 = vmatmul.mubr.f32.gmra.mrb[0].mxu0 %v8358
    %v8566 = vpop.f32.mrb[0].mxu0
    %v8567 = vadd.f32 %v7489, %v8566
    %v8568 = vpop.f32.mrb[0].mxu0
    %8569 = vdwg.mxu0
    %v8570 = vadd.f32 %v7131, %v8427
    %v8571 = vxor.u32 %v8570, 2147483648
    %v8572 = vmul.f32 %v8571, 1.442695
    %v8573 = vpow.pop %v8572
    %v8574 = vadd.f32 %v8573, 1.0
    %v8575 = vrcp.pop %v8574
    %v8576 = vmul.f32 1.0, %v8575
    %v8577 = vadd.f32 %v7223, %v8497
    %v8578 = vxor.u32 %v8577, 2147483648
    %v8579 = vmul.f32 %v8578, 1.442695
    %v8580 = vpow.pop %v8579
    %v8581 = vadd.f32 %v8580, 1.0
    %v8582 = vrcp.pop %v8581
    %v8583 = vmul.f32 1.0, %v8582
    %v8584 = vmul.f32 %v8576, %v8567
    %v8585 = vadd.f32 %v7315, %v8584
    %v8586 = vtanh.pop %v8585
    %v8587 = vsub.f32 1.0, %v8583
    %v8588 = vmul.f32 %v8587, %v8586
    %v8590 = vmul.f32 %v8583, %v8357
    %v8591 = vadd.f32 %v8588, %v8590
    %8592 = vst.msk [vmem:[#allocation4 + $0x4] sm:$0x3] %vm786, %v8591
    %v8594 = vsel %vm545, %v8591, 0
    %8596 = vmatprep.subr.mxu0 0.0
    %8597 = vmatpush1.msra.mxu0 %v7318
    %8598 = vmatprep.subr.mxu0 0.0
    %8599 = vmatpush1.msra.mxu0 %v7319
    %8600 = vmatprep.subr.mxu0 0.0
    %8601 = vmatpush1.msra.mxu0 %v7320
    %8602 = vmatprep.subr.mxu0 0.0
    %8603 = vmatpush1.msra.mxu0 %v7321
    %8604 = vmatprep.subr.mxu0 0.0
    %8605 = vmatpush1.msra.mxu0 %v7322
    %8606 = vmatprep.subr.mxu0 0.0
    %8607 = vmatpush1.msra.mxu0 %v7323
    %8608 = vmatprep.subr.mxu0 0.0
    %8609 = vmatpush1.msra.mxu0 %v7324
    %8610 = vmatprep.subr.mxu0 0.0
    %8611 = vmatpush1.msra.mxu0 %v7325
    %8612 = vmatprep.subr.mxu0 0.0
    %8613 = vmatpush1.msra.mxu0 0.0
    %8614 = vmatprep.subr.mxu0 0.0
    %8615 = vmatpush1.msra.mxu0 0.0
    %8616 = vmatprep.subr.mxu0 0.0
    %8617 = vmatpush1.msra.mxu0 0.0
    %8618 = vmatprep.subr.mxu0 0.0
    %8619 = vmatpush1.msra.mxu0 0.0
    %8620 = vmatprep.subr.mxu0 0.0
    %8621 = vmatpush1.msra.mxu0 0.0
    %8622 = vmatprep.subr.mxu0 0.0
    %8623 = vmatpush1.msra.mxu0 0.0
    %8624 = vmatprep.subr.mxu0 0.0
    %8625 = vmatpush1.msra.mxu0 0.0
    %8626 = vmatprep.subr.mxu0 0.0
    %8627 = vmatpush1.msra.mxu0 0.0
    %8628 = vmatprep.subr.mxu0 0.0
    %8629 = vmatpush1.msra.mxu0 0.0
    %8630 = vmatprep.subr.mxu0 0.0
    %8631 = vmatpush1.msra.mxu0 0.0
    %8632 = vmatprep.subr.mxu0 0.0
    %8633 = vmatpush1.msra.mxu0 0.0
    %8634 = vmatprep.subr.mxu0 0.0
    %8635 = vmatpush1.msra.mxu0 0.0
    %8636 = vmatprep.subr.mxu0 0.0
    %8637 = vmatpush1.msra.mxu0 0.0
    %8638 = vmatprep.subr.mxu0 0.0
    %8639 = vmatpush1.msra.mxu0 0.0
    %8640 = vmatprep.subr.mxu0 0.0
    %8641 = vmatpush1.msra.mxu0 0.0
    %8642 = vmatprep.subr.mxu0 0.0
    %8643 = vmatpush1.msra.mxu0 0.0
    %8644 = vmatprep.subr.mxu0 0.0
    %8645 = vmatpush1.msra.mxu0 0.0
    %8646 = vmatprep.subr.mxu0 0.0
    %8647 = vmatpush1.msra.mxu0 0.0
    %8648 = vmatprep.subr.mxu0 0.0
    %8649 = vmatpush1.msra.mxu0 0.0
    %8650 = vmatprep.subr.mxu0 0.0
    %8651 = vmatpush1.msra.mxu0 0.0
    %8652 = vmatprep.subr.mxu0 0.0
    %8653 = vmatpush1.msra.mxu0 0.0
    %8654 = vmatprep.subr.mxu0 0.0
    %8655 = vmatpush1.msra.mxu0 0.0
    %8656 = vmatprep.subr.mxu0 0.0
    %8657 = vmatpush1.msra.mxu0 0.0
    %8658 = vmatprep.subr.mxu0 0.0
    %8659 = vmatpush1.msra.mxu0 0.0
    %8660 = vmatprep.mubr.f32.mxu0 0.0
    %8661 = vmatmul.mubr.f32.gmra.mrb[0].mxu0 %v8594
    %v8662 = vpop.f32.mrb[0].mxu0
    %v8663 = vadd.f32 0.0, %v8662
    %v8664 = vpop.f32.mrb[0].mxu0
    %8665 = vdwg.mxu0
    %8666 = vmatprep.subr.mxu0 0.0
    %8667 = vmatpush1.msra.mxu0 %v7327
    %8668 = vmatprep.subr.mxu0 0.0
    %8669 = vmatpush1.msra.mxu0 %v7328
    %8670 = vmatprep.subr.mxu0 0.0
    %8671 = vmatpush1.msra.mxu0 %v7329
    %8672 = vmatprep.subr.mxu0 0.0
    %8673 = vmatpush1.msra.mxu0 %v7330
    %8674 = vmatprep.subr.mxu0 0.0
    %8675 = vmatpush1.msra.mxu0 %v7331
    %8676 = vmatprep.subr.mxu0 0.0
    %8677 = vmatpush1.msra.mxu0 %v7332
    %8678 = vmatprep.subr.mxu0 0.0
    %8679 = vmatpush1.msra.mxu0 %v7333
    %8680 = vmatprep.subr.mxu0 0.0
    %8681 = vmatpush1.msra.mxu0 %v7334
    %8682 = vmatprep.subr.mxu0 0.0
    %8683 = vmatpush1.msra.mxu0 0.0
    %8684 = vmatprep.subr.mxu0 0.0
    %8685 = vmatpush1.msra.mxu0 0.0
    %8686 = vmatprep.subr.mxu0 0.0
    %8687 = vmatpush1.msra.mxu0 0.0
    %8688 = vmatprep.subr.mxu0 0.0
    %8689 = vmatpush1.msra.mxu0 0.0
    %8690 = vmatprep.subr.mxu0 0.0
    %8691 = vmatpush1.msra.mxu0 0.0
    %8692 = vmatprep.subr.mxu0 0.0
    %8693 = vmatpush1.msra.mxu0 0.0
    %8694 = vmatprep.subr.mxu0 0.0
    %8695 = vmatpush1.msra.mxu0 0.0
    %8696 = vmatprep.subr.mxu0 0.0
    %8697 = vmatpush1.msra.mxu0 0.0
    %8698 = vmatprep.subr.mxu0 0.0
    %8699 = vmatpush1.msra.mxu0 0.0
    %8700 = vmatprep.subr.mxu0 0.0
    %8701 = vmatpush1.msra.mxu0 0.0
    %8702 = vmatprep.subr.mxu0 0.0
    %8703 = vmatpush1.msra.mxu0 0.0
    %8704 = vmatprep.subr.mxu0 0.0
    %8705 = vmatpush1.msra.mxu0 0.0
    %8706 = vmatprep.subr.mxu0 0.0
    %8707 = vmatpush1.msra.mxu0 0.0
    %8708 = vmatprep.subr.mxu0 0.0
    %8709 = vmatpush1.msra.mxu0 0.0
    %8710 = vmatprep.subr.mxu0 0.0
    %8711 = vmatpush1.msra.mxu0 0.0
    %8712 = vmatprep.subr.mxu0 0.0
    %8713 = vmatpush1.msra.mxu0 0.0
    %8714 = vmatprep.subr.mxu0 0.0
    %8715 = vmatpush1.msra.mxu0 0.0
    %8716 = vmatprep.subr.mxu0 0.0
    %8717 = vmatpush1.msra.mxu0 0.0
    %8718 = vmatprep.subr.mxu0 0.0
    %8719 = vmatpush1.msra.mxu0 0.0
    %8720 = vmatprep.subr.mxu0 0.0
    %8721 = vmatpush1.msra.mxu0 0.0
    %8722 = vmatprep.subr.mxu0 0.0
    %8723 = vmatpush1.msra.mxu0 0.0
    %8724 = vmatprep.subr.mxu0 0.0
    %8725 = vmatpush1.msra.mxu0 0.0
    %8726 = vmatprep.subr.mxu0 0.0
    %8727 = vmatpush1.msra.mxu0 0.0
    %8728 = vmatprep.subr.mxu0 0.0
    %8729 = vmatpush1.msra.mxu0 0.0
    %8730 = vmatprep.mubr.f32.mxu0 0.0
    %8731 = vmatmul.mubr.f32.gmra.mrb[0].mxu0 %v8594
    %v8732 = vpop.f32.mrb[0].mxu0
    %v8733 = vadd.f32 0.0, %v8732
    %v8734 = vpop.f32.mrb[0].mxu0
    %8735 = vdwg.mxu0
    %8736 = vmatprep.subr.mxu0 0.0
    %8737 = vmatpush1.msra.mxu0 %v7336
    %8738 = vmatprep.subr.mxu0 0.0
    %8739 = vmatpush1.msra.mxu0 %v7337
    %8740 = vmatprep.subr.mxu0 0.0
    %8741 = vmatpush1.msra.mxu0 %v7338
    %8742 = vmatprep.subr.mxu0 0.0
    %8743 = vmatpush1.msra.mxu0 %v7339
    %8744 = vmatprep.subr.mxu0 0.0
    %8745 = vmatpush1.msra.mxu0 %v7340
    %8746 = vmatprep.subr.mxu0 0.0
    %8747 = vmatpush1.msra.mxu0 %v7341
    %8748 = vmatprep.subr.mxu0 0.0
    %8749 = vmatpush1.msra.mxu0 %v7342
    %8750 = vmatprep.subr.mxu0 0.0
    %8751 = vmatpush1.msra.mxu0 %v7343
    %8752 = vmatprep.subr.mxu0 0.0
    %8753 = vmatpush1.msra.mxu0 0.0
    %8754 = vmatprep.subr.mxu0 0.0
    %8755 = vmatpush1.msra.mxu0 0.0
    %8756 = vmatprep.subr.mxu0 0.0
    %8757 = vmatpush1.msra.mxu0 0.0
    %8758 = vmatprep.subr.mxu0 0.0
    %8759 = vmatpush1.msra.mxu0 0.0
    %8760 = vmatprep.subr.mxu0 0.0
    %8761 = vmatpush1.msra.mxu0 0.0
    %8762 = vmatprep.subr.mxu0 0.0
    %8763 = vmatpush1.msra.mxu0 0.0
    %8764 = vmatprep.subr.mxu0 0.0
    %8765 = vmatpush1.msra.mxu0 0.0
    %8766 = vmatprep.subr.mxu0 0.0
    %8767 = vmatpush1.msra.mxu0 0.0
    %8768 = vmatprep.subr.mxu0 0.0
    %8769 = vmatpush1.msra.mxu0 0.0
    %8770 = vmatprep.subr.mxu0 0.0
    %8771 = vmatpush1.msra.mxu0 0.0
    %8772 = vmatprep.subr.mxu0 0.0
    %8773 = vmatpush1.msra.mxu0 0.0
    %8774 = vmatprep.subr.mxu0 0.0
    %8775 = vmatpush1.msra.mxu0 0.0
    %8776 = vmatprep.subr.mxu0 0.0
    %8777 = vmatpush1.msra.mxu0 0.0
    %8778 = vmatprep.subr.mxu0 0.0
    %8779 = vmatpush1.msra.mxu0 0.0
    %8780 = vmatprep.subr.mxu0 0.0
    %8781 = vmatpush1.msra.mxu0 0.0
    %8782 = vmatprep.subr.mxu0 0.0
    %8783 = vmatpush1.msra.mxu0 0.0
    %8784 = vmatprep.subr.mxu0 0.0
    %8785 = vmatpush1.msra.mxu0 0.0
    %8786 = vmatprep.subr.mxu0 0.0
    %8787 = vmatpush1.msra.mxu0 0.0
    %8788 = vmatprep.subr.mxu0 0.0
    %8789 = vmatpush1.msra.mxu0 0.0
    %8790 = vmatprep.subr.mxu0 0.0
    %8791 = vmatpush1.msra.mxu0 0.0
    %8792 = vmatprep.subr.mxu0 0.0
    %8793 = vmatpush1.msra.mxu0 0.0
    %8794 = vmatprep.subr.mxu0 0.0
    %8795 = vmatpush1.msra.mxu0 0.0
    %8796 = vmatprep.subr.mxu0 0.0
    %8797 = vmatpush1.msra.mxu0 0.0
    %8798 = vmatprep.subr.mxu0 0.0
    %8799 = vmatpush1.msra.mxu0 0.0
    %8800 = vmatprep.mubr.f32.mxu0 0.0
    %8801 = vmatmul.mubr.f32.gmra.mrb[0].mxu0 %v8594
    %v8802 = vpop.f32.mrb[0].mxu0
    %v8803 = vadd.f32 %v7489, %v8802
    %v8804 = vpop.f32.mrb[0].mxu0
    %8805 = vdwg.mxu0
    %v8807 = vrot.slane %v8663, 6
    %v8809 = vadd.f32 %v7131, %v8807
    %v8810 = vxor.u32 %v8809, 2147483648
    %v8811 = vmul.f32 %v8810, 1.442695
    %v8812 = vpow.pop %v8811
    %v8813 = vadd.f32 %v8812, 1.0
    %v8814 = vrcp.pop %v8813
    %v8815 = vmul.f32 1.0, %v8814
    %v8817 = vrot.slane %v8733, 6
    %v8819 = vadd.f32 %v7223, %v8817
    %v8820 = vxor.u32 %v8819, 2147483648
    %v8821 = vmul.f32 %v8820, 1.442695
    %v8822 = vpow.pop %v8821
    %v8823 = vadd.f32 %v8822, 1.0
    %v8824 = vrcp.pop %v8823
    %v8825 = vmul.f32 1.0, %v8824
    %v8827 = vrot.slane %v8803, 6
    %v8829 = vmul.f32 %v8815, %v8827
    %v8830 = vadd.f32 %v7315, %v8829
    %v8831 = vtanh.pop %v8830
    %v8832 = vsub.f32 1.0, %v8825
    %v8833 = vmul.f32 %v8832, %v8831
    %v8834 = vrot.slane %v8591, 6
    %v8836 = vmul.f32 %v8825, %v8834
    %v8837 = vadd.f32 %v8833, %v8836
    %v8840 = vunpack.c.l.s4 1983009808
    %v8841 = vunpack.c.0.s8 %v8840
    %v8842 = vlaneseq
    %v8843 = vshrl.u32 %v8842, 7
    %v8844 = vsub.s32 %v8841, %v8843
    %v8845 = vrot.slane %v8837, %v8844
    %v8846 = vcombine.high %v8845, %v8845
    %8847 = vrot.lane.b32.xlu0 %v8846, 64
    %v8848 = vpop.permute.xlu0 %8847
    %8850 = vst.msk [vmem:[#allocation4 + $0x4] sm:$0x3] %vm7840, %v8848
    %v8851 = vrot.slane %v8837, 2
    %v8852 = vsel %vm545, %v8851, 0
    %8854 = vmatprep.subr.mxu0 0.0
    %8855 = vmatpush1.msra.mxu0 %v7318
    %8856 = vmatprep.subr.mxu0 0.0
    %8857 = vmatpush1.msra.mxu0 %v7319
    %8858 = vmatprep.subr.mxu0 0.0
    %8859 = vmatpush1.msra.mxu0 %v7320
    %8860 = vmatprep.subr.mxu0 0.0
    %8861 = vmatpush1.msra.mxu0 %v7321
    %8862 = vmatprep.subr.mxu0 0.0
    %8863 = vmatpush1.msra.mxu0 %v7322
    %8864 = vmatprep.subr.mxu0 0.0
    %8865 = vmatpush1.msra.mxu0 %v7323
    %8866 = vmatprep.subr.mxu0 0.0
    %8867 = vmatpush1.msra.mxu0 %v7324
    %8868 = vmatprep.subr.mxu0 0.0
    %8869 = vmatpush1.msra.mxu0 %v7325
    %8870 = vmatprep.subr.mxu0 0.0
    %8871 = vmatpush1.msra.mxu0 0.0
    %8872 = vmatprep.subr.mxu0 0.0
    %8873 = vmatpush1.msra.mxu0 0.0
    %8874 = vmatprep.subr.mxu0 0.0
    %8875 = vmatpush1.msra.mxu0 0.0
    %8876 = vmatprep.subr.mxu0 0.0
    %8877 = vmatpush1.msra.mxu0 0.0
    %8878 = vmatprep.subr.mxu0 0.0
    %8879 = vmatpush1.msra.mxu0 0.0
    %8880 = vmatprep.subr.mxu0 0.0
    %8881 = vmatpush1.msra.mxu0 0.0
    %8882 = vmatprep.subr.mxu0 0.0
    %8883 = vmatpush1.msra.mxu0 0.0
    %8884 = vmatprep.subr.mxu0 0.0
    %8885 = vmatpush1.msra.mxu0 0.0
    %8886 = vmatprep.subr.mxu0 0.0
    %8887 = vmatpush1.msra.mxu0 0.0
    %8888 = vmatprep.subr.mxu0 0.0
    %8889 = vmatpush1.msra.mxu0 0.0
    %8890 = vmatprep.subr.mxu0 0.0
    %8891 = vmatpush1.msra.mxu0 0.0
    %8892 = vmatprep.subr.mxu0 0.0
    %8893 = vmatpush1.msra.mxu0 0.0
    %8894 = vmatprep.subr.mxu0 0.0
    %8895 = vmatpush1.msra.mxu0 0.0
    %8896 = vmatprep.subr.mxu0 0.0
    %8897 = vmatpush1.msra.mxu0 0.0
    %8898 = vmatprep.subr.mxu0 0.0
    %8899 = vmatpush1.msra.mxu0 0.0
    %8900 = vmatprep.subr.mxu0 0.0
    %8901 = vmatpush1.msra.mxu0 0.0
    %8902 = vmatprep.subr.mxu0 0.0
    %8903 = vmatpush1.msra.mxu0 0.0
    %8904 = vmatprep.subr.mxu0 0.0
    %8905 = vmatpush1.msra.mxu0 0.0
    %8906 = vmatprep.subr.mxu0 0.0
    %8907 = vmatpush1.msra.mxu0 0.0
    %8908 = vmatprep.subr.mxu0 0.0
    %8909 = vmatpush1.msra.mxu0 0.0
    %8910 = vmatprep.subr.mxu0 0.0
    %8911 = vmatpush1.msra.mxu0 0.0
    %8912 = vmatprep.subr.mxu0 0.0
    %8913 = vmatpush1.msra.mxu0 0.0
    %8914 = vmatprep.subr.mxu0 0.0
    %8915 = vmatpush1.msra.mxu0 0.0
    %8916 = vmatprep.subr.mxu0 0.0
    %8917 = vmatpush1.msra.mxu0 0.0
    %8918 = vmatprep.mubr.f32.mxu0 0.0
    %8919 = vmatmul.mubr.f32.gmra.mrb[0].mxu0 %v8852
    %v8920 = vpop.f32.mrb[0].mxu0
    %v8921 = vadd.f32 0.0, %v8920
    %v8922 = vpop.f32.mrb[0].mxu0
    %8923 = vdwg.mxu0
    %8924 = vmatprep.subr.mxu0 0.0
    %8925 = vmatpush1.msra.mxu0 %v7327
    %8926 = vmatprep.subr.mxu0 0.0
    %8927 = vmatpush1.msra.mxu0 %v7328
    %8928 = vmatprep.subr.mxu0 0.0
    %8929 = vmatpush1.msra.mxu0 %v7329
    %8930 = vmatprep.subr.mxu0 0.0
    %8931 = vmatpush1.msra.mxu0 %v7330
    %8932 = vmatprep.subr.mxu0 0.0
    %8933 = vmatpush1.msra.mxu0 %v7331
    %8934 = vmatprep.subr.mxu0 0.0
    %8935 = vmatpush1.msra.mxu0 %v7332
    %8936 = vmatprep.subr.mxu0 0.0
    %8937 = vmatpush1.msra.mxu0 %v7333
    %8938 = vmatprep.subr.mxu0 0.0
    %8939 = vmatpush1.msra.mxu0 %v7334
    %8940 = vmatprep.subr.mxu0 0.0
    %8941 = vmatpush1.msra.mxu0 0.0
    %8942 = vmatprep.subr.mxu0 0.0
    %8943 = vmatpush1.msra.mxu0 0.0
    %8944 = vmatprep.subr.mxu0 0.0
    %8945 = vmatpush1.msra.mxu0 0.0
    %8946 = vmatprep.subr.mxu0 0.0
    %8947 = vmatpush1.msra.mxu0 0.0
    %8948 = vmatprep.subr.mxu0 0.0
    %8949 = vmatpush1.msra.mxu0 0.0
    %8950 = vmatprep.subr.mxu0 0.0
    %8951 = vmatpush1.msra.mxu0 0.0
    %8952 = vmatprep.subr.mxu0 0.0
    %8953 = vmatpush1.msra.mxu0 0.0
    %8954 = vmatprep.subr.mxu0 0.0
    %8955 = vmatpush1.msra.mxu0 0.0
    %8956 = vmatprep.subr.mxu0 0.0
    %8957 = vmatpush1.msra.mxu0 0.0
    %8958 = vmatprep.subr.mxu0 0.0
    %8959 = vmatpush1.msra.mxu0 0.0
    %8960 = vmatprep.subr.mxu0 0.0
    %8961 = vmatpush1.msra.mxu0 0.0
    %8962 = vmatprep.subr.mxu0 0.0
    %8963 = vmatpush1.msra.mxu0 0.0
    %8964 = vmatprep.subr.mxu0 0.0
    %8965 = vmatpush1.msra.mxu0 0.0
    %8966 = vmatprep.subr.mxu0 0.0
    %8967 = vmatpush1.msra.mxu0 0.0
    %8968 = vmatprep.subr.mxu0 0.0
    %8969 = vmatpush1.msra.mxu0 0.0
    %8970 = vmatprep.subr.mxu0 0.0
    %8971 = vmatpush1.msra.mxu0 0.0
    %8972 = vmatprep.subr.mxu0 0.0
    %8973 = vmatpush1.msra.mxu0 0.0
    %8974 = vmatprep.subr.mxu0 0.0
    %8975 = vmatpush1.msra.mxu0 0.0
    %8976 = vmatprep.subr.mxu0 0.0
    %8977 = vmatpush1.msra.mxu0 0.0
    %8978 = vmatprep.subr.mxu0 0.0
    %8979 = vmatpush1.msra.mxu0 0.0
    %8980 = vmatprep.subr.mxu0 0.0
    %8981 = vmatpush1.msra.mxu0 0.0
    %8982 = vmatprep.subr.mxu0 0.0
    %8983 = vmatpush1.msra.mxu0 0.0
    %8984 = vmatprep.subr.mxu0 0.0
    %8985 = vmatpush1.msra.mxu0 0.0
    %8986 = vmatprep.subr.mxu0 0.0
    %8987 = vmatpush1.msra.mxu0 0.0
    %8988 = vmatprep.mubr.f32.mxu0 0.0
    %8989 = vmatmul.mubr.f32.gmra.mrb[0].mxu0 %v8852
    %v8990 = vpop.f32.mrb[0].mxu0
    %v8991 = vadd.f32 0.0, %v8990
    %v8992 = vpop.f32.mrb[0].mxu0
    %8993 = vdwg.mxu0
    %8994 = vmatprep.subr.mxu0 0.0
    %8995 = vmatpush1.msra.mxu0 %v7336
    %8996 = vmatprep.subr.mxu0 0.0
    %8997 = vmatpush1.msra.mxu0 %v7337
    %8998 = vmatprep.subr.mxu0 0.0
    %8999 = vmatpush1.msra.mxu0 %v7338
    %9000 = vmatprep.subr.mxu0 0.0
    %9001 = vmatpush1.msra.mxu0 %v7339
    %9002 = vmatprep.subr.mxu0 0.0
    %9003 = vmatpush1.msra.mxu0 %v7340
    %9004 = vmatprep.subr.mxu0 0.0
    %9005 = vmatpush1.msra.mxu0 %v7341
    %9006 = vmatprep.subr.mxu0 0.0
    %9007 = vmatpush1.msra.mxu0 %v7342
    %9008 = vmatprep.subr.mxu0 0.0
    %9009 = vmatpush1.msra.mxu0 %v7343
    %9010 = vmatprep.subr.mxu0 0.0
    %9011 = vmatpush1.msra.mxu0 0.0
    %9012 = vmatprep.subr.mxu0 0.0
    %9013 = vmatpush1.msra.mxu0 0.0
    %9014 = vmatprep.subr.mxu0 0.0
    %9015 = vmatpush1.msra.mxu0 0.0
    %9016 = vmatprep.subr.mxu0 0.0
    %9017 = vmatpush1.msra.mxu0 0.0
    %9018 = vmatprep.subr.mxu0 0.0
    %9019 = vmatpush1.msra.mxu0 0.0
    %9020 = vmatprep.subr.mxu0 0.0
    %9021 = vmatpush1.msra.mxu0 0.0
    %9022 = vmatprep.subr.mxu0 0.0
    %9023 = vmatpush1.msra.mxu0 0.0
    %9024 = vmatprep.subr.mxu0 0.0
    %9025 = vmatpush1.msra.mxu0 0.0
    %9026 = vmatprep.subr.mxu0 0.0
    %9027 = vmatpush1.msra.mxu0 0.0
    %9028 = vmatprep.subr.mxu0 0.0
    %9029 = vmatpush1.msra.mxu0 0.0
    %9030 = vmatprep.subr.mxu0 0.0
    %9031 = vmatpush1.msra.mxu0 0.0
    %9032 = vmatprep.subr.mxu0 0.0
    %9033 = vmatpush1.msra.mxu0 0.0
    %9034 = vmatprep.subr.mxu0 0.0
    %9035 = vmatpush1.msra.mxu0 0.0
    %9036 = vmatprep.subr.mxu0 0.0
    %9037 = vmatpush1.msra.mxu0 0.0
    %9038 = vmatprep.subr.mxu0 0.0
    %9039 = vmatpush1.msra.mxu0 0.0
    %9040 = vmatprep.subr.mxu0 0.0
    %9041 = vmatpush1.msra.mxu0 0.0
    %9042 = vmatprep.subr.mxu0 0.0
    %9043 = vmatpush1.msra.mxu0 0.0
    %9044 = vmatprep.subr.mxu0 0.0
    %9045 = vmatpush1.msra.mxu0 0.0
    %9046 = vmatprep.subr.mxu0 0.0
    %9047 = vmatpush1.msra.mxu0 0.0
    %9048 = vmatprep.subr.mxu0 0.0
    %9049 = vmatpush1.msra.mxu0 0.0
    %9050 = vmatprep.subr.mxu0 0.0
    %9051 = vmatpush1.msra.mxu0 0.0
    %9052 = vmatprep.subr.mxu0 0.0
    %9053 = vmatpush1.msra.mxu0 0.0
    %9054 = vmatprep.subr.mxu0 0.0
    %9055 = vmatpush1.msra.mxu0 0.0
    %9056 = vmatprep.subr.mxu0 0.0
    %9057 = vmatpush1.msra.mxu0 0.0
    %9058 = vmatprep.mubr.f32.mxu0 0.0
    %9059 = vmatmul.mubr.f32.gmra.mrb[0].mxu0 %v8852
    %v9060 = vpop.f32.mrb[0].mxu0
    %v9061 = vadd.f32 %v7489, %v9060
    %v9062 = vpop.f32.mrb[0].mxu0
    %9063 = vdwg.mxu0
    %v9065 = vrot.slane %v8921, 4
    %v9067 = vadd.f32 %v7131, %v9065
    %v9068 = vxor.u32 %v9067, 2147483648
    %v9069 = vmul.f32 %v9068, 1.442695
    %v9070 = vpow.pop %v9069
    %v9071 = vadd.f32 %v9070, 1.0
    %v9072 = vrcp.pop %v9071
    %v9073 = vmul.f32 1.0, %v9072
    %v9075 = vrot.slane %v8991, 4
    %v9077 = vadd.f32 %v7223, %v9075
    %v9078 = vxor.u32 %v9077, 2147483648
    %v9079 = vmul.f32 %v9078, 1.442695
    %v9080 = vpow.pop %v9079
    %v9081 = vadd.f32 %v9080, 1.0
    %v9082 = vrcp.pop %v9081
    %v9083 = vmul.f32 1.0, %v9082
    %v9085 = vrot.slane %v9061, 4
    %v9087 = vmul.f32 %v9073, %v9085
    %v9088 = vadd.f32 %v7315, %v9087
    %v9089 = vtanh.pop %v9088
    %v9090 = vsub.f32 1.0, %v9083
    %v9091 = vmul.f32 %v9090, %v9089
    %v9092 = vrot.slane %v8837, 6
    %v9094 = vmul.f32 %v9083, %v9092
    %v9095 = vadd.f32 %v9091, %v9094
    %v9097 = vcombine.high %v9095, %v9095
    %v9099 = vunpack.c.l.s4 1983009808
    %v9100 = vunpack.c.0.s8 %v9099
    %v9101 = vlaneseq
    %v9102 = vshrl.u32 %v9101, 7
    %v9103 = vsub.s32 %v9100, %v9102
    %v9104 = vrot.slane %v9097, %v9103
    %9106 = vst.msk [vmem:[#allocation4 + $0x6] sm:$0x3] %vm786, %v9104
    %v9107 = vrot.slane %v9095, 4
    %v9108 = vsel %vm545, %v9107, 0
    %9110 = vmatprep.subr.mxu0 0.0
    %9111 = vmatpush1.msra.mxu0 %v7318
    %9112 = vmatprep.subr.mxu0 0.0
    %9113 = vmatpush1.msra.mxu0 %v7319
    %9114 = vmatprep.subr.mxu0 0.0
    %9115 = vmatpush1.msra.mxu0 %v7320
    %9116 = vmatprep.subr.mxu0 0.0
    %9117 = vmatpush1.msra.mxu0 %v7321
    %9118 = vmatprep.subr.mxu0 0.0
    %9119 = vmatpush1.msra.mxu0 %v7322
    %9120 = vmatprep.subr.mxu0 0.0
    %9121 = vmatpush1.msra.mxu0 %v7323
    %9122 = vmatprep.subr.mxu0 0.0
    %9123 = vmatpush1.msra.mxu0 %v7324
    %9124 = vmatprep.subr.mxu0 0.0
    %9125 = vmatpush1.msra.mxu0 %v7325
    %9126 = vmatprep.subr.mxu0 0.0
    %9127 = vmatpush1.msra.mxu0 0.0
    %9128 = vmatprep.subr.mxu0 0.0
    %9129 = vmatpush1.msra.mxu0 0.0
    %9130 = vmatprep.subr.mxu0 0.0
    %9131 = vmatpush1.msra.mxu0 0.0
    %9132 = vmatprep.subr.mxu0 0.0
    %9133 = vmatpush1.msra.mxu0 0.0
    %9134 = vmatprep.subr.mxu0 0.0
    %9135 = vmatpush1.msra.mxu0 0.0
    %9136 = vmatprep.subr.mxu0 0.0
    %9137 = vmatpush1.msra.mxu0 0.0
    %9138 = vmatprep.subr.mxu0 0.0
    %9139 = vmatpush1.msra.mxu0 0.0
    %9140 = vmatprep.subr.mxu0 0.0
    %9141 = vmatpush1.msra.mxu0 0.0
    %9142 = vmatprep.subr.mxu0 0.0
    %9143 = vmatpush1.msra.mxu0 0.0
    %9144 = vmatprep.subr.mxu0 0.0
    %9145 = vmatpush1.msra.mxu0 0.0
    %9146 = vmatprep.subr.mxu0 0.0
    %9147 = vmatpush1.msra.mxu0 0.0
    %9148 = vmatprep.subr.mxu0 0.0
    %9149 = vmatpush1.msra.mxu0 0.0
    %9150 = vmatprep.subr.mxu0 0.0
    %9151 = vmatpush1.msra.mxu0 0.0
    %9152 = vmatprep.subr.mxu0 0.0
    %9153 = vmatpush1.msra.mxu0 0.0
    %9154 = vmatprep.subr.mxu0 0.0
    %9155 = vmatpush1.msra.mxu0 0.0
    %9156 = vmatprep.subr.mxu0 0.0
    %9157 = vmatpush1.msra.mxu0 0.0
    %9158 = vmatprep.subr.mxu0 0.0
    %9159 = vmatpush1.msra.mxu0 0.0
    %9160 = vmatprep.subr.mxu0 0.0
    %9161 = vmatpush1.msra.mxu0 0.0
    %9162 = vmatprep.subr.mxu0 0.0
    %9163 = vmatpush1.msra.mxu0 0.0
    %9164 = vmatprep.subr.mxu0 0.0
    %9165 = vmatpush1.msra.mxu0 0.0
    %9166 = vmatprep.subr.mxu0 0.0
    %9167 = vmatpush1.msra.mxu0 0.0
    %9168 = vmatprep.subr.mxu0 0.0
    %9169 = vmatpush1.msra.mxu0 0.0
    %9170 = vmatprep.subr.mxu0 0.0
    %9171 = vmatpush1.msra.mxu0 0.0
    %9172 = vmatprep.subr.mxu0 0.0
    %9173 = vmatpush1.msra.mxu0 0.0
    %9174 = vmatprep.mubr.f32.mxu0 0.0
    %9175 = vmatmul.mubr.f32.gmra.mrb[0].mxu0 %v9108
    %v9176 = vpop.f32.mrb[0].mxu0
    %v9177 = vadd.f32 0.0, %v9176
    %v9178 = vpop.f32.mrb[0].mxu0
    %9179 = vdwg.mxu0
    %9180 = vmatprep.subr.mxu0 0.0
    %9181 = vmatpush1.msra.mxu0 %v7327
    %9182 = vmatprep.subr.mxu0 0.0
    %9183 = vmatpush1.msra.mxu0 %v7328
    %9184 = vmatprep.subr.mxu0 0.0
    %9185 = vmatpush1.msra.mxu0 %v7329
    %9186 = vmatprep.subr.mxu0 0.0
    %9187 = vmatpush1.msra.mxu0 %v7330
    %9188 = vmatprep.subr.mxu0 0.0
    %9189 = vmatpush1.msra.mxu0 %v7331
    %9190 = vmatprep.subr.mxu0 0.0
    %9191 = vmatpush1.msra.mxu0 %v7332
    %9192 = vmatprep.subr.mxu0 0.0
    %9193 = vmatpush1.msra.mxu0 %v7333
    %9194 = vmatprep.subr.mxu0 0.0
    %9195 = vmatpush1.msra.mxu0 %v7334
    %9196 = vmatprep.subr.mxu0 0.0
    %9197 = vmatpush1.msra.mxu0 0.0
    %9198 = vmatprep.subr.mxu0 0.0
    %9199 = vmatpush1.msra.mxu0 0.0
    %9200 = vmatprep.subr.mxu0 0.0
    %9201 = vmatpush1.msra.mxu0 0.0
    %9202 = vmatprep.subr.mxu0 0.0
    %9203 = vmatpush1.msra.mxu0 0.0
    %9204 = vmatprep.subr.mxu0 0.0
    %9205 = vmatpush1.msra.mxu0 0.0
    %9206 = vmatprep.subr.mxu0 0.0
    %9207 = vmatpush1.msra.mxu0 0.0
    %9208 = vmatprep.subr.mxu0 0.0
    %9209 = vmatpush1.msra.mxu0 0.0
    %9210 = vmatprep.subr.mxu0 0.0
    %9211 = vmatpush1.msra.mxu0 0.0
    %9212 = vmatprep.subr.mxu0 0.0
    %9213 = vmatpush1.msra.mxu0 0.0
    %9214 = vmatprep.subr.mxu0 0.0
    %9215 = vmatpush1.msra.mxu0 0.0
    %9216 = vmatprep.subr.mxu0 0.0
    %9217 = vmatpush1.msra.mxu0 0.0
    %9218 = vmatprep.subr.mxu0 0.0
    %9219 = vmatpush1.msra.mxu0 0.0
    %9220 = vmatprep.subr.mxu0 0.0
    %9221 = vmatpush1.msra.mxu0 0.0
    %9222 = vmatprep.subr.mxu0 0.0
    %9223 = vmatpush1.msra.mxu0 0.0
    %9224 = vmatprep.subr.mxu0 0.0
    %9225 = vmatpush1.msra.mxu0 0.0
    %9226 = vmatprep.subr.mxu0 0.0
    %9227 = vmatpush1.msra.mxu0 0.0
    %9228 = vmatprep.subr.mxu0 0.0
    %9229 = vmatpush1.msra.mxu0 0.0
    %9230 = vmatprep.subr.mxu0 0.0
    %9231 = vmatpush1.msra.mxu0 0.0
    %9232 = vmatprep.subr.mxu0 0.0
    %9233 = vmatpush1.msra.mxu0 0.0
    %9234 = vmatprep.subr.mxu0 0.0
    %9235 = vmatpush1.msra.mxu0 0.0
    %9236 = vmatprep.subr.mxu0 0.0
    %9237 = vmatpush1.msra.mxu0 0.0
    %9238 = vmatprep.subr.mxu0 0.0
    %9239 = vmatpush1.msra.mxu0 0.0
    %9240 = vmatprep.subr.mxu0 0.0
    %9241 = vmatpush1.msra.mxu0 0.0
    %9242 = vmatprep.subr.mxu0 0.0
    %9243 = vmatpush1.msra.mxu0 0.0
    %9244 = vmatprep.mubr.f32.mxu0 0.0
    %9245 = vmatmul.mubr.f32.gmra.mrb[0].mxu0 %v9108
    %v9246 = vpop.f32.mrb[0].mxu0
    %v9247 = vadd.f32 0.0, %v9246
    %v9248 = vpop.f32.mrb[0].mxu0
    %9249 = vdwg.mxu0
    %9250 = vmatprep.subr.mxu0 0.0
    %9251 = vmatpush1.msra.mxu0 %v7336
    %9252 = vmatprep.subr.mxu0 0.0
    %9253 = vmatpush1.msra.mxu0 %v7337
    %9254 = vmatprep.subr.mxu0 0.0
    %9255 = vmatpush1.msra.mxu0 %v7338
    %9256 = vmatprep.subr.mxu0 0.0
    %9257 = vmatpush1.msra.mxu0 %v7339
    %9258 = vmatprep.subr.mxu0 0.0
    %9259 = vmatpush1.msra.mxu0 %v7340
    %9260 = vmatprep.subr.mxu0 0.0
    %9261 = vmatpush1.msra.mxu0 %v7341
    %9262 = vmatprep.subr.mxu0 0.0
    %9263 = vmatpush1.msra.mxu0 %v7342
    %9264 = vmatprep.subr.mxu0 0.0
    %9265 = vmatpush1.msra.mxu0 %v7343
    %9266 = vmatprep.subr.mxu0 0.0
    %9267 = vmatpush1.msra.mxu0 0.0
    %9268 = vmatprep.subr.mxu0 0.0
    %9269 = vmatpush1.msra.mxu0 0.0
    %9270 = vmatprep.subr.mxu0 0.0
    %9271 = vmatpush1.msra.mxu0 0.0
    %9272 = vmatprep.subr.mxu0 0.0
    %9273 = vmatpush1.msra.mxu0 0.0
    %9274 = vmatprep.subr.mxu0 0.0
    %9275 = vmatpush1.msra.mxu0 0.0
    %9276 = vmatprep.subr.mxu0 0.0
    %9277 = vmatpush1.msra.mxu0 0.0
    %9278 = vmatprep.subr.mxu0 0.0
    %9279 = vmatpush1.msra.mxu0 0.0
    %9280 = vmatprep.subr.mxu0 0.0
    %9281 = vmatpush1.msra.mxu0 0.0
    %9282 = vmatprep.subr.mxu0 0.0
    %9283 = vmatpush1.msra.mxu0 0.0
    %9284 = vmatprep.subr.mxu0 0.0
    %9285 = vmatpush1.msra.mxu0 0.0
    %9286 = vmatprep.subr.mxu0 0.0
    %9287 = vmatpush1.msra.mxu0 0.0
    %9288 = vmatprep.subr.mxu0 0.0
    %9289 = vmatpush1.msra.mxu0 0.0
    %9290 = vmatprep.subr.mxu0 0.0
    %9291 = vmatpush1.msra.mxu0 0.0
    %9292 = vmatprep.subr.mxu0 0.0
    %9293 = vmatpush1.msra.mxu0 0.0
    %9294 = vmatprep.subr.mxu0 0.0
    %9295 = vmatpush1.msra.mxu0 0.0
    %9296 = vmatprep.subr.mxu0 0.0
    %9297 = vmatpush1.msra.mxu0 0.0
    %9298 = vmatprep.subr.mxu0 0.0
    %9299 = vmatpush1.msra.mxu0 0.0
    %9300 = vmatprep.subr.mxu0 0.0
    %9301 = vmatpush1.msra.mxu0 0.0
    %9302 = vmatprep.subr.mxu0 0.0
    %9303 = vmatpush1.msra.mxu0 0.0
    %9304 = vmatprep.subr.mxu0 0.0
    %9305 = vmatpush1.msra.mxu0 0.0
    %9306 = vmatprep.subr.mxu0 0.0
    %9307 = vmatpush1.msra.mxu0 0.0
    %9308 = vmatprep.subr.mxu0 0.0
    %9309 = vmatpush1.msra.mxu0 0.0
    %9310 = vmatprep.subr.mxu0 0.0
    %9311 = vmatpush1.msra.mxu0 0.0
    %9312 = vmatprep.subr.mxu0 0.0
    %9313 = vmatpush1.msra.mxu0 0.0
    %9314 = vmatprep.mubr.f32.mxu0 0.0
    %9315 = vmatmul.mubr.f32.gmra.mrb[0].mxu0 %v9108
    %v9316 = vpop.f32.mrb[0].mxu0
    %v9317 = vadd.f32 %v7489, %v9316
    %v9318 = vpop.f32.mrb[0].mxu0
    %9319 = vdwg.mxu0
    %v9321 = vrot.slane %v9177, 2
    %v9323 = vadd.f32 %v7131, %v9321
    %v9324 = vxor.u32 %v9323, 2147483648
    %v9325 = vmul.f32 %v9324, 1.442695
    %v9326 = vpow.pop %v9325
    %v9327 = vadd.f32 %v9326, 1.0
    %v9328 = vrcp.pop %v9327
    %v9329 = vmul.f32 1.0, %v9328
    %v9331 = vrot.slane %v9247, 2
    %v9333 = vadd.f32 %v7223, %v9331
    %v9334 = vxor.u32 %v9333, 2147483648
    %v9335 = vmul.f32 %v9334, 1.442695
    %v9336 = vpow.pop %v9335
    %v9337 = vadd.f32 %v9336, 1.0
    %v9338 = vrcp.pop %v9337
    %v9339 = vmul.f32 1.0, %v9338
    %v9341 = vrot.slane %v9317, 2
    %v9343 = vmul.f32 %v9329, %v9341
    %v9344 = vadd.f32 %v7315, %v9343
    %v9345 = vtanh.pop %v9344
    %v9346 = vsub.f32 1.0, %v9339
    %v9347 = vmul.f32 %v9346, %v9345
    %v9348 = vrot.slane %v9095, 6
    %v9350 = vmul.f32 %v9339, %v9348
    %v9351 = vadd.f32 %v9347, %v9350
    %v9353 = vcombine.high %v9351, %v9351
    %v9355 = vunpack.c.l.s4 1983009808
    %v9356 = vunpack.c.0.s8 %v9355
    %v9357 = vlaneseq
    %v9358 = vshrl.u32 %v9357, 7
    %v9359 = vsub.s32 %v9356, %v9358
    %v9360 = vrot.slane %v9353, %v9359
    %v9361 = vcombine.high %v9360, %v9360
    %9362 = vrot.lane.b32.xlu0 %v9361, 64
    %v9363 = vpop.permute.xlu0 %9362
    %9365 = vst.msk [vmem:[#allocation4 + $0x6] sm:$0x3] %vm7840, %v9363
    %v9366 = vld [vmem:[#allocation4] sm:$0xff]
    %v9367 = vld [vmem:[%s17] sm:$0xff]
    %v9368 = vld [vmem:[%s17 + $0x8] sm:$0xff]
    %v9369 = vld [vmem:[%s17 + $0x10] sm:$0xff]
    %v9370 = vld [vmem:[%s17 + $0x18] sm:$0xff]
    %v9371 = vld [vmem:[%s17 + $0x20] sm:$0xff]
    %v9372 = vld [vmem:[%s17 + $0x28] sm:$0xff]
    %v9373 = vld [vmem:[%s17 + $0x30] sm:$0xff]
    %v9374 = vld [vmem:[%s17 + $0x38] sm:$0xff]
    %v9375 = vld [vmem:[%s17 + $0x40] sm:$0xff]
    %v9376 = vld [vmem:[%s17 + $0x48] sm:$0xff]
    %v9377 = vld [vmem:[%s17 + $0x50] sm:$0xff]
    %v9378 = vld [vmem:[%s17 + $0x58] sm:$0xff]
    %v9379 = vld [vmem:[%s17 + $0x60] sm:$0xff]
    %v9380 = vld [vmem:[%s17 + $0x68] sm:$0xff]
    %v9381 = vld [vmem:[%s17 + $0x70] sm:$0xff]
    %v9382 = vld [vmem:[%s17 + $0x78] sm:$0xff]
    %v9383 = vld [vmem:[%s17 + $0x80] sm:$0xff]
    %v9384 = vld [vmem:[%s17 + $0x88] sm:$0xff]
    %v9385 = vld [vmem:[%s17 + $0x90] sm:$0xff]
    %v9386 = vld [vmem:[%s17 + $0x98] sm:$0xff]
    %v9387 = vld [vmem:[%s17 + $0xa0] sm:$0xff]
    %v9388 = vld [vmem:[%s17 + $0xa8] sm:$0xff]
    %v9389 = vld [vmem:[%s17 + $0xb0] sm:$0xff]
    %v9390 = vld [vmem:[%s17 + $0xb8] sm:$0xff]
    %v9391 = vld [vmem:[%s17 + $0xc0] sm:$0xff]
    %v9392 = vld [vmem:[%s17 + $0xc8] sm:$0xff]
    %v9393 = vld [vmem:[%s17 + $0xd0] sm:$0xff]
    %v9394 = vld [vmem:[%s17 + $0xd8] sm:$0xff]
    %v9395 = vld [vmem:[%s17 + $0xe0] sm:$0xff]
    %v9396 = vld [vmem:[%s17 + $0xe8] sm:$0xff]
    %v9397 = vld [vmem:[%s17 + $0xf0] sm:$0xff]
    %v9398 = vld [vmem:[%s17 + $0xf8] sm:$0xff]
    %v9399 = vld [vmem:[%s17 + $0x100] sm:$0xff]
    %v9400 = vld [vmem:[%s17 + $0x108] sm:$0xff]
    %v9401 = vld [vmem:[%s17 + $0x110] sm:$0xff]
    %v9402 = vld [vmem:[%s17 + $0x118] sm:$0xff]
    %v9403 = vld [vmem:[%s17 + $0x120] sm:$0xff]
    %v9404 = vld [vmem:[%s17 + $0x128] sm:$0xff]
    %v9405 = vld [vmem:[%s17 + $0x130] sm:$0xff]
    %v9406 = vld [vmem:[%s17 + $0x138] sm:$0xff]
    %v9407 = vld [vmem:[%s17 + $0x140] sm:$0xff]
    %v9408 = vld [vmem:[%s17 + $0x148] sm:$0xff]
    %v9409 = vld [vmem:[%s17 + $0x150] sm:$0xff]
    %v9410 = vld [vmem:[%s17 + $0x158] sm:$0xff]
    %v9411 = vld [vmem:[%s17 + $0x160] sm:$0xff]
    %v9412 = vld [vmem:[%s17 + $0x168] sm:$0xff]
    %v9413 = vld [vmem:[%s17 + $0x170] sm:$0xff]
    %v9414 = vld [vmem:[%s17 + $0x178] sm:$0xff]
    %v9415 = vld [vmem:[%s17 + $0x180] sm:$0xff]
    %v9416 = vld [vmem:[%s17 + $0x188] sm:$0xff]
    %v9417 = vld [vmem:[%s17 + $0x190] sm:$0xff]
    %v9418 = vld [vmem:[%s17 + $0x198] sm:$0xff]
    %v9419 = vld [vmem:[%s17 + $0x1a0] sm:$0xff]
    %v9420 = vld [vmem:[%s17 + $0x1a8] sm:$0xff]
    %v9421 = vld [vmem:[%s17 + $0x1b0] sm:$0xff]
    %v9422 = vld [vmem:[%s17 + $0x1b8] sm:$0xff]
    %v9423 = vld [vmem:[%s17 + $0x1c0] sm:$0xff]
    %v9424 = vld [vmem:[%s17 + $0x1c8] sm:$0xff]
    %v9425 = vld [vmem:[%s17 + $0x1d0] sm:$0xff]
    %v9426 = vld [vmem:[%s17 + $0x1d8] sm:$0xff]
    %v9427 = vld [vmem:[%s17 + $0x1e0] sm:$0xff]
    %v9428 = vld [vmem:[%s17 + $0x1e8] sm:$0xff]
    %v9429 = vld [vmem:[%s17 + $0x1f0] sm:$0xff]
    %v9430 = vld [vmem:[%s17 + $0x1f8] sm:$0xff]
    %v9431 = vld [vmem:[#allocation25] sm:$0x1]
    %v9433 = vlaneseq
    %v9434 = vshrl.u32 %v9433, 7
    %v9435 = vsub.s32 0, %v9434
    %v9436 = vrot.slane %v9431, %v9435
    %v9439 = vcombine.high %v9366, %v9366
    %v9441 = vunpack.c.l.s4 1983009808
    %v9442 = vunpack.c.0.s8 %v9441
    %v9443 = vlaneseq
    %v9444 = vshrl.u32 %v9443, 7
    %v9445 = vsub.s32 %v9442, %v9444
    %v9446 = vrot.slane %v9366, %v9445
    %v9448 = vunpack.c.l.s4 1983009808
    %v9449 = vunpack.c.0.s8 %v9448
    %v9450 = vlaneseq
    %v9451 = vshrl.u32 %v9450, 7
    %v9452 = vsub.s32 %v9449, %v9451
    %v9453 = vrot.slane %v9439, %v9452
    %v9454 = vcombine.high %v9446, %v9446
    %v9455 = vcombine.high %v9453, %v9453
    %9460 = vmatprep.subr.mxu0 0.0
    %9461 = vmatpush1.msra.mxu0 %v9367
    %9462 = vmatprep.subr.mxu0 0.0
    %9463 = vmatpush1.msra.mxu0 %v9368
    %9464 = vmatprep.subr.mxu0 0.0
    %9465 = vmatpush1.msra.mxu0 %v9369
    %9466 = vmatprep.subr.mxu0 0.0
    %9467 = vmatpush1.msra.mxu0 %v9370
    %9468 = vmatprep.subr.mxu0 0.0
    %9469 = vmatpush1.msra.mxu0 %v9371
    %9470 = vmatprep.subr.mxu0 0.0
    %9471 = vmatpush1.msra.mxu0 %v9372
    %9472 = vmatprep.subr.mxu0 0.0
    %9473 = vmatpush1.msra.mxu0 %v9373
    %9474 = vmatprep.subr.mxu0 0.0
    %9475 = vmatpush1.msra.mxu0 %v9374
    %9476 = vmatprep.subr.mxu0 0.0
    %9477 = vmatpush1.msra.mxu0 %v9375
    %9478 = vmatprep.subr.mxu0 0.0
    %9479 = vmatpush1.msra.mxu0 %v9376
    %9480 = vmatprep.subr.mxu0 0.0
    %9481 = vmatpush1.msra.mxu0 %v9377
    %9482 = vmatprep.subr.mxu0 0.0
    %9483 = vmatpush1.msra.mxu0 %v9378
    %9484 = vmatprep.subr.mxu0 0.0
    %9485 = vmatpush1.msra.mxu0 %v9379
    %9486 = vmatprep.subr.mxu0 0.0
    %9487 = vmatpush1.msra.mxu0 %v9380
    %9488 = vmatprep.subr.mxu0 0.0
    %9489 = vmatpush1.msra.mxu0 %v9381
    %9490 = vmatprep.subr.mxu0 0.0
    %9491 = vmatpush1.msra.mxu0 %v9382
    %9492 = vmatprep.subr.mxu0 0.0
    %9493 = vmatpush1.msra.mxu0 %v9383
    %9494 = vmatprep.subr.mxu0 0.0
    %9495 = vmatpush1.msra.mxu0 %v9384
    %9496 = vmatprep.subr.mxu0 0.0
    %9497 = vmatpush1.msra.mxu0 %v9385
    %9498 = vmatprep.subr.mxu0 0.0
    %9499 = vmatpush1.msra.mxu0 %v9386
    %9500 = vmatprep.subr.mxu0 0.0
    %9501 = vmatpush1.msra.mxu0 %v9387
    %9502 = vmatprep.subr.mxu0 0.0
    %9503 = vmatpush1.msra.mxu0 %v9388
    %9504 = vmatprep.subr.mxu0 0.0
    %9505 = vmatpush1.msra.mxu0 %v9389
    %9506 = vmatprep.subr.mxu0 0.0
    %9507 = vmatpush1.msra.mxu0 %v9390
    %9508 = vmatprep.subr.mxu0 0.0
    %9509 = vmatpush1.msra.mxu0 %v9391
    %9510 = vmatprep.subr.mxu0 0.0
    %9511 = vmatpush1.msra.mxu0 %v9392
    %9512 = vmatprep.subr.mxu0 0.0
    %9513 = vmatpush1.msra.mxu0 %v9393
    %9514 = vmatprep.subr.mxu0 0.0
    %9515 = vmatpush1.msra.mxu0 %v9394
    %9516 = vmatprep.subr.mxu0 0.0
    %9517 = vmatpush1.msra.mxu0 %v9395
    %9518 = vmatprep.subr.mxu0 0.0
    %9519 = vmatpush1.msra.mxu0 %v9396
    %9520 = vmatprep.subr.mxu0 0.0
    %9521 = vmatpush1.msra.mxu0 %v9397
    %9522 = vmatprep.subr.mxu0 0.0
    %9523 = vmatpush1.msra.mxu0 %v9398
    %9524 = vmatprep.mubr.f32.mxu0 %v9454
    %9525 = vmatmul.mubr.f32.gmra.mrb[0].mxu0 %v9446
    %v9526 = vpop.f32.mrb[0].mxu0
    %v9527 = vadd.f32 %v9436, %v9526
    %v9528 = vpop.f32.mrb[0].mxu0
    %9529 = vdwg.mxu0
    %9530 = vmatprep.subr.mxu0 0.0
    %9531 = vmatpush1.msra.mxu0 %v9399
    %9532 = vmatprep.subr.mxu0 0.0
    %9533 = vmatpush1.msra.mxu0 %v9400
    %9534 = vmatprep.subr.mxu0 0.0
    %9535 = vmatpush1.msra.mxu0 %v9401
    %9536 = vmatprep.subr.mxu0 0.0
    %9537 = vmatpush1.msra.mxu0 %v9402
    %9538 = vmatprep.subr.mxu0 0.0
    %9539 = vmatpush1.msra.mxu0 %v9403
    %9540 = vmatprep.subr.mxu0 0.0
    %9541 = vmatpush1.msra.mxu0 %v9404
    %9542 = vmatprep.subr.mxu0 0.0
    %9543 = vmatpush1.msra.mxu0 %v9405
    %9544 = vmatprep.subr.mxu0 0.0
    %9545 = vmatpush1.msra.mxu0 %v9406
    %9546 = vmatprep.subr.mxu0 0.0
    %9547 = vmatpush1.msra.mxu0 %v9407
    %9548 = vmatprep.subr.mxu0 0.0
    %9549 = vmatpush1.msra.mxu0 %v9408
    %9550 = vmatprep.subr.mxu0 0.0
    %9551 = vmatpush1.msra.mxu0 %v9409
    %9552 = vmatprep.subr.mxu0 0.0
    %9553 = vmatpush1.msra.mxu0 %v9410
    %9554 = vmatprep.subr.mxu0 0.0
    %9555 = vmatpush1.msra.mxu0 %v9411
    %9556 = vmatprep.subr.mxu0 0.0
    %9557 = vmatpush1.msra.mxu0 %v9412
    %9558 = vmatprep.subr.mxu0 0.0
    %9559 = vmatpush1.msra.mxu0 %v9413
    %9560 = vmatprep.subr.mxu0 0.0
    %9561 = vmatpush1.msra.mxu0 %v9414
    %9562 = vmatprep.subr.mxu0 0.0
    %9563 = vmatpush1.msra.mxu0 %v9415
    %9564 = vmatprep.subr.mxu0 0.0
    %9565 = vmatpush1.msra.mxu0 %v9416
    %9566 = vmatprep.subr.mxu0 0.0
    %9567 = vmatpush1.msra.mxu0 %v9417
    %9568 = vmatprep.subr.mxu0 0.0
    %9569 = vmatpush1.msra.mxu0 %v9418
    %9570 = vmatprep.subr.mxu0 0.0
    %9571 = vmatpush1.msra.mxu0 %v9419
    %9572 = vmatprep.subr.mxu0 0.0
    %9573 = vmatpush1.msra.mxu0 %v9420
    %9574 = vmatprep.subr.mxu0 0.0
    %9575 = vmatpush1.msra.mxu0 %v9421
    %9576 = vmatprep.subr.mxu0 0.0
    %9577 = vmatpush1.msra.mxu0 %v9422
    %9578 = vmatprep.subr.mxu0 0.0
    %9579 = vmatpush1.msra.mxu0 %v9423
    %9580 = vmatprep.subr.mxu0 0.0
    %9581 = vmatpush1.msra.mxu0 %v9424
    %9582 = vmatprep.subr.mxu0 0.0
    %9583 = vmatpush1.msra.mxu0 %v9425
    %9584 = vmatprep.subr.mxu0 0.0
    %9585 = vmatpush1.msra.mxu0 %v9426
    %9586 = vmatprep.subr.mxu0 0.0
    %9587 = vmatpush1.msra.mxu0 %v9427
    %9588 = vmatprep.subr.mxu0 0.0
    %9589 = vmatpush1.msra.mxu0 %v9428
    %9590 = vmatprep.subr.mxu0 0.0
    %9591 = vmatpush1.msra.mxu0 %v9429
    %9592 = vmatprep.subr.mxu0 0.0
    %9593 = vmatpush1.msra.mxu0 %v9430
    %9594 = vmatprep.mubr.f32.mxu0 %v9455
    %9595 = vmatmul.mubr.f32.gmra.mrb[0].mxu0 %v9453
    %v9596 = vpop.f32.mrb[0].mxu0
    %v9597 = vadd.f32 %v9527, %v9596
    %v9598 = vpop.f32.mrb[0].mxu0
    %9599 = vdwg.mxu0
    %v9600 = vmax.f32 %v9597, 0.0
    %v9601 = vld [vmem:[%s19] sm:$0xff]
    %v9602 = vld [vmem:[%s19 + $0x8] sm:$0xff]
    %v9603 = vld [vmem:[%s19 + $0x10] sm:$0xff]
    %v9604 = vld [vmem:[%s19 + $0x18] sm:$0xff]
    %v9605 = vld [vmem:[#allocation26] sm:$0x1]
    %v9607 = vlaneseq
    %v9608 = vshrl.u32 %v9607, 7
    %v9609 = vsub.s32 0, %v9608
    %v9610 = vrot.slane %v9605, %v9609
    %v9613 = vsel %vm260, %v9600, 0
    %9615 = vmatprep.subr.mxu0 0.0
    %9616 = vmatpush1.msra.mxu0 %v9601
    %9617 = vmatprep.subr.mxu0 0.0
    %9618 = vmatpush1.msra.mxu0 %v9602
    %9619 = vmatprep.subr.mxu0 0.0
    %9620 = vmatpush1.msra.mxu0 %v9603
    %9621 = vmatprep.subr.mxu0 0.0
    %9622 = vmatpush1.msra.mxu0 %v9604
    %9623 = vmatprep.subr.mxu0 0.0
    %9624 = vmatpush1.msra.mxu0 0.0
    %9625 = vmatprep.subr.mxu0 0.0
    %9626 = vmatpush1.msra.mxu0 0.0
    %9627 = vmatprep.subr.mxu0 0.0
    %9628 = vmatpush1.msra.mxu0 0.0
    %9629 = vmatprep.subr.mxu0 0.0
    %9630 = vmatpush1.msra.mxu0 0.0
    %9631 = vmatprep.subr.mxu0 0.0
    %9632 = vmatpush1.msra.mxu0 0.0
    %9633 = vmatprep.subr.mxu0 0.0
    %9634 = vmatpush1.msra.mxu0 0.0
    %9635 = vmatprep.subr.mxu0 0.0
    %9636 = vmatpush1.msra.mxu0 0.0
    %9637 = vmatprep.subr.mxu0 0.0
    %9638 = vmatpush1.msra.mxu0 0.0
    %9639 = vmatprep.subr.mxu0 0.0
    %9640 = vmatpush1.msra.mxu0 0.0
    %9641 = vmatprep.subr.mxu0 0.0
    %9642 = vmatpush1.msra.mxu0 0.0
    %9643 = vmatprep.subr.mxu0 0.0
    %9644 = vmatpush1.msra.mxu0 0.0
    %9645 = vmatprep.subr.mxu0 0.0
    %9646 = vmatpush1.msra.mxu0 0.0
    %9647 = vmatprep.subr.mxu0 0.0
    %9648 = vmatpush1.msra.mxu0 0.0
    %9649 = vmatprep.subr.mxu0 0.0
    %9650 = vmatpush1.msra.mxu0 0.0
    %9651 = vmatprep.subr.mxu0 0.0
    %9652 = vmatpush1.msra.mxu0 0.0
    %9653 = vmatprep.subr.mxu0 0.0
    %9654 = vmatpush1.msra.mxu0 0.0
    %9655 = vmatprep.subr.mxu0 0.0
    %9656 = vmatpush1.msra.mxu0 0.0
    %9657 = vmatprep.subr.mxu0 0.0
    %9658 = vmatpush1.msra.mxu0 0.0
    %9659 = vmatprep.subr.mxu0 0.0
    %9660 = vmatpush1.msra.mxu0 0.0
    %9661 = vmatprep.subr.mxu0 0.0
    %9662 = vmatpush1.msra.mxu0 0.0
    %9663 = vmatprep.subr.mxu0 0.0
    %9664 = vmatpush1.msra.mxu0 0.0
    %9665 = vmatprep.subr.mxu0 0.0
    %9666 = vmatpush1.msra.mxu0 0.0
    %9667 = vmatprep.subr.mxu0 0.0
    %9668 = vmatpush1.msra.mxu0 0.0
    %9669 = vmatprep.subr.mxu0 0.0
    %9670 = vmatpush1.msra.mxu0 0.0
    %9671 = vmatprep.subr.mxu0 0.0
    %9672 = vmatpush1.msra.mxu0 0.0
    %9673 = vmatprep.subr.mxu0 0.0
    %9674 = vmatpush1.msra.mxu0 0.0
    %9675 = vmatprep.subr.mxu0 0.0
    %9676 = vmatpush1.msra.mxu0 0.0
    %9677 = vmatprep.subr.mxu0 0.0
    %9678 = vmatpush1.msra.mxu0 0.0
    %9679 = vmatprep.mubr.f32.mxu0 0.0
    %9680 = vmatmul.mubr.f32.gmra.mrb[0].mxu0 %v9613
    %v9681 = vpop.f32.mrb[0].mxu0
    %v9682 = vadd.f32 %v9610, %v9681
    %v9683 = vpop.f32.mrb[0].mxu0
    %9684 = vdwg.mxu0
    %v9685 = vxor.u32 %v9682, 2147483648
    %v9686 = vmul.f32 %v9685, 1.442695
    %v9687 = vpow.pop %v9686
    %v9688 = vadd.f32 %v9687, 1.0
    %v9689 = vrcp.pop %v9688
    %v9690 = vmul.f32 1.0, %v9689
    %vm9691 = vcmask 25600
    %9692 = vst.msk [vmem:[#allocation28] sm:$0x3] %vm9691, %v9690
    // Predicated region
    $region142: #{patient_finetune_gru_forward.1} parent=1 // pred_check
      _
    $region143: #{patient_finetune_gru_forward.1} parent=1 // pred_check_branch
      %9694 = sbr.rel (0) target = $region145
    $region144: #{patient_finetune_gru_forward.1} parent=1 // pred_region
      %s9696 = ssub.s32 32, 32
      %9697 = vsyncadd [#allocation7], %s9696
      %s9699 = sshll.u32 [#allocation28], 4
      %s9700 = int_to_ptr.vmem [resolvable:$true] %s9699
      %9702 = dma.vmem_to_hbm [thread:$0]  %s9700, 32, %s21, [#allocation7]
    $region145: #{patient_finetune_gru_forward.1} parent=1 // pred_fallthru
      _
    // Predicated region
    $region146: #{patient_finetune_gru_forward.1} parent=1 // pred_check
      _
    $region147: #{patient_finetune_gru_forward.1} parent=1 // pred_check_branch
      %9704 = sbr.rel (0) target = $region149
    $region148: #{patient_finetune_gru_forward.1} parent=1 // pred_region
      %9705 = dma.done [#allocation7], 32
    $region149: #{patient_finetune_gru_forward.1} parent=1 // pred_fallthru
      _
    %9706 = vsyncpa [#allocation6], 1
    %9707 = vsyncpa [#allocation9], 1
    %9708 = vsyncpa [#allocation12], 1
    %9709 = vsyncpa [#allocation15], 1
    %9710 = vsyncpa [#allocation18], 1
    %9711 = vsyncpa [#allocation21], 1
    %9712 = vsyncpa [#allocation24], 1
    %9713 = vsyncpa [#allocation27], 1
    %9714 = vsyncpa [#allocation7], 1

</llo_original>
